<compile_context>
chip_gen: v7x
topology: tpu7x:2x2x1
jax: 0.10.0
libtpu: 0.0.40
codegen_flags: <defaults>
</compile_context>

<pallas_src>
import functools

import jax
import jax.numpy as jnp
from jax.experimental import pallas as pl
from jax.experimental.pallas import tpu as pltpu


def _round_up(x, m):
    return ((x + m - 1) // m) * m


# -----------------------------------------------------------------------------
# Fused kernel.  Grid = (batch_block, layer); the layer axis is sequential and
# carries the activation in the bf16 VMEM scratch `act_ref`.
#
# Scratch layout (per batch block of B images):
#   image b, padded row p (0..H+1), padded col q (0..WPAD-1)  ->  flat row
#   b*R + p*WPAD + q   with   R = (H+2)*WPAD.
#   Interior pixel (i, j) sits at offset WPAD+1 + (i*WPAD + j) inside the image block.
# Conv output row m = b*R + i*WPAD + j  reads scratch rows  m + kh*WPAD + kw.
# -----------------------------------------------------------------------------
def fused_cnn_kernel(x_ref, wconv_ref, bconv_ref, wfc_ref, bfc_ref, out_ref,
                     act_ref, acc_ref, *, H, W, WPAD, B, n_layer):
    layer = pl.program_id(1)
    C = act_ref.shape[1]
    R = (H + 2) * WPAD
    M = B * R
    TOT = act_ref.shape[0]

    # ---- layer 0: initialize the zero-halo activation buffer for this block ----
    @pl.when(layer == 0)
    def _():
        # Head rows: image-0 top halo row + its (row 1, col 0) halo cell.
        act_ref[0:WPAD + 1, :] = jnp.zeros((WPAD + 1, C), act_ref.dtype)
        # Interior + all inter-image halos: the wrapper-prepared slab already has
        # zeros in every junk position, so one dense store covers everything.
        act_ref[WPAD + 1:WPAD + 1 + M, :] = x_ref[0]
        # Tail rows (only ever read by masked junk output rows): keep them zero.
        act_ref[M + WPAD + 1:TOT, :] = jnp.zeros((TOT - (M + WPAD + 1), C),
                                                 act_ref.dtype)

    # ---- 3x3 conv (pad=1): 9 tap-accumulated MXU matmuls over contiguous slices ----
    for t in range(9):
        kh, kw = t // 3, t % 3
        off = kh * WPAD + kw                        # static slice start
        lhs = act_ref[off:off + M, :]               # (M, C) bf16, contiguous rows
        w_t = wconv_ref[layer * 9 + t]              # (C, C) bf16 tap weight (resident)
        part = jnp.dot(lhs, w_t, preferred_element_type=jnp.float32)
        if t == 0:
            acc_ref[...] = part                     # explicit f32 VMEM accumulator
        else:
            acc_ref[...] += part

    bias = bconv_ref[layer]                         # (1, C) f32
    y = jnp.maximum(acc_ref[...] + bias, 0.0)       # (M, C) f32, bias + ReLU

    # Zero the WPAD-W junk columns: they become the next layer's zero halo and must
    # not leak into the pooled mean.  (Junk *rows* are simply never read back.)
    col_ok = jax.lax.broadcasted_iota(jnp.int32, (WPAD, 1), 0) < W
    y = jnp.where(col_ok, y.reshape(B * (H + 2), WPAD, C), 0.0).reshape(M, C)

    # ---- not the last layer: dense, lane-full writeback into the halo interior ----
    @pl.when(layer < n_layer - 1)
    def _():
        yb = y.astype(act_ref.dtype)
        for b in range(B):                          # skip each image's 2*WPAD junk rows
            act_ref[b * R + WPAD + 1:b * R + WPAD + 1 + H * WPAD, :] = \
                yb[b * R:b * R + H * WPAD, :]

    # ---- last layer: fused global average pool + Linear (lane-padded classes) ----
    @pl.when(layer == n_layer - 1)
    def _():
        sums = [jnp.sum(y[b * R:b * R + H * WPAD, :], axis=0, keepdims=True)
                for b in range(B)]
        pooled = jnp.concatenate(sums, axis=0) * (1.0 / (H * W))     # (B, C) f32
        logits = jnp.dot(pooled.astype(jnp.bfloat16), wfc_ref[...],
                         preferred_element_type=jnp.float32) + bfc_ref[...]
        out_ref[...] = logits.reshape(out_ref.shape).astype(out_ref.dtype)


# -----------------------------------------------------------------------------
# Wrapper: packs parameters, prepares the input slab, launches one pallas_call.
# -----------------------------------------------------------------------------
def cnn_n_layer_forward(x_nchw, params, batch_block=None):
    """Forward pass matching PyTorch CNNNLayer.  x_nchw: (N, Cin, H, W) float32."""
    convs = params["convs"]
    L = len(convs)
    C = convs[0][0].shape[-1]                     # conv width (128)
    num_classes = params["fc_w"].shape[-1]
    NCP = _round_up(num_classes, 128)             # lane-dense FC output width

    x = jnp.transpose(x_nchw, (0, 2, 3, 1)).astype(jnp.float32)      # NHWC
    N, H, W, Cin = x.shape
    WPAD = _round_up(W + 2, 8)                    # sublane-aligned padded row width
    R = (H + 2) * WPAD                            # scratch rows per image

    # Batch blocking: amortize per-grid-step overhead, but keep >= 2 "parallel"
    # blocks so both v7x TensorCores stay busy.
    if batch_block is None:
        batch_block = 1 if N < 4 else min(8, max(1, N // 2))
    B = batch_block
    NB = -(-N // B)
    Npad = NB * B

    M = B * R                                     # matmul M (includes masked junk rows)
    TOT = _round_up(M + 2 * WPAD + 2, 16)         # scratch rows (+ read-slack tail)

    # Input slab (NB, B*R, C) bf16: image b of block n at rows [b*R, ...), pixel
    # (i, j) at row b*R + i*WPAD + j; every junk position is zero (so the layer-0
    # store also initializes all inter-image halos).
    # TODO(synk): for very large inputs keep x at Cin channels in HBM and expand
    # in-kernel instead of padding Cin -> C here (negligible at these shapes).
    xp = jnp.pad(x, ((0, Npad - N), (0, 2), (0, WPAD - W), (0, C - Cin)))
    x_slab = xp.reshape(NB, B * R, C).astype(jnp.bfloat16)

    # Conv weights (L*9, C, C) bf16 (tap-major, rows=cin zero-padded to C) and
    # biases (L, 1, C) f32 -- kept resident in VMEM via constant index maps.
    w_list, b_list = [], []
    for (w, b) in convs:                          # w: (3,3,cin,C) HWIO, b: (C,)
        cin = w.shape[2]
        wp = jnp.pad(w, ((0, 0), (0, 0), (0, C - cin), (0, 0)))       # (3,3,C,C)
        w_list.append(wp.reshape(9, C, C))
        b_list.append(b.reshape(1, C))
    w_conv = jnp.concatenate(w_list, axis=0).astype(jnp.bfloat16)     # (L*9, C, C)
    b_conv = jnp.stack(b_list).astype(jnp.float32)                    # (L, 1, C)

    w_fc = jnp.pad(params["fc_w"],
                   ((0, 0), (0, NCP - num_classes))).astype(jnp.bfloat16)   # (C, NCP)
    b_fc = jnp.pad(params["fc_b"],
                   (0, NCP - num_classes)).reshape(1, NCP).astype(jnp.float32)

    kernel = functools.partial(fused_cnn_kernel,
                               H=H, W=W, WPAD=WPAD, B=B, n_layer=L)

    out = pl.pallas_call(
        kernel,
        out_shape=jax.ShapeDtypeStruct((NB, B, NCP), jnp.float32),
        grid=(NB, L),
        in_specs=[
            pl.BlockSpec((1, B * R, C), lambda n, l: (n, 0, 0)),      # input slab / block
            pl.BlockSpec((L * 9, C, C), lambda n, l: (0, 0, 0)),      # all conv W (resident)
            pl.BlockSpec((L, 1, C), lambda n, l: (0, 0, 0)),          # all conv b (resident)
            pl.BlockSpec((C, NCP), lambda n, l: (0, 0)),              # FC W (resident)
            pl.BlockSpec((1, NCP), lambda n, l: (0, 0)),              # FC b (resident)
        ],
        out_specs=pl.BlockSpec((1, B, NCP), lambda n, l: (n, 0, 0)),
        scratch_shapes=[
            pltpu.VMEM((TOT, C), jnp.bfloat16),   # zero-halo activation buffer (bf16)
            pltpu.VMEM((M, C), jnp.float32),      # conv accumulator (f32)
        ],
        compiler_params=pltpu.CompilerParams(
            dimension_semantics=("parallel", "arbitrary"),
            vmem_limit_bytes=32 * 1024 * 1024,
        ),
    )(x_slab, w_conv, b_conv, w_fc, b_fc)
    return out.reshape(Npad, NCP)[:N, :num_classes]


# -----------------------------------------------------------------------------
# Parameter init (PyTorch-style uniform) and a numerics-matched JAX reference.
# -----------------------------------------------------------------------------
def init_params(key, num_classes, input_channel, n_layer, hidden=128):
    params = {"convs": []}
    cin = input_channel
    for _ in range(n_layer):
        key, k1, k2 = jax.random.split(key, 3)
        scale = 1.0 / jnp.sqrt(cin * 9.0)
        w = jax.random.uniform(k1, (3, 3, cin, hidden), jnp.float32, -scale, scale)
        b = jax.random.uniform(k2, (hidden,), jnp.float32, -scale, scale)
        params["convs"].append((w, b))
        cin = hidden
    key, k1, k2 = jax.random.split(key, 3)
    scale = 1.0 / jnp.sqrt(float(hidden))
    params["fc_w"] = jax.random.uniform(k1, (hidden, num_classes), jnp.float32, -scale, scale)
    params["fc_b"] = jax.random.uniform(k2, (num_classes,), jnp.float32, -scale, scale)
    return params


def reference_forward(x_nchw, params):
    """Pure-JAX reference mirroring the kernel's numerics (bf16 matmul inputs,
    f32 accumulation); otherwise exactly the PyTorch CNNNLayer forward."""
    hi = jax.lax.Precision.HIGHEST
    x = x_nchw.astype(jnp.float32)
    for (w, b) in params["convs"]:
        xb = x.astype(jnp.bfloat16).astype(jnp.float32)
        wb = w.astype(jnp.bfloat16).astype(jnp.float32)
        y = jax.lax.conv_general_dilated(
            xb, wb, window_strides=(1, 1), padding="SAME",
            dimension_numbers=("NCHW", "HWIO", "NCHW"), precision=hi)
        x = jax.nn.relu(y + b.reshape(1, -1, 1, 1))
    pooled = jnp.mean(x, axis=(2, 3))                               # (N, C)
    pb = pooled.astype(jnp.bfloat16).astype(jnp.float32)
    wfb = params["fc_w"].astype(jnp.bfloat16).astype(jnp.float32)
    return jnp.dot(pb, wfb, precision=hi) + params["fc_b"]


if __name__ == "__main__":
    num_classes = 10
    input_channel = 4
    n_layer = 2
    N, H, W = 2, 16, 16

    key = jax.random.PRNGKey(0)
    key, xkey = jax.random.split(key)
    x = jax.random.normal(xkey, (N, input_channel, H, W), jnp.float32)   # NCHW input
    params = init_params(key, num_classes, input_channel, n_layer)

    fwd = jax.jit(cnn_n_layer_forward)
    out = jax.block_until_ready(fwd(x, params))
    ref = reference_forward(x, params)
    assert out.shape == (N, num_classes)
    err = float(jnp.max(jnp.abs(out - ref)))
    assert jnp.allclose(out, ref, atol=3e-3, rtol=3e-3), f"mismatch vs reference, max err {err}"

    # Also exercise the batch-blocked path (B > 1 images per grid step).
    N2 = 6
    key, xkey2 = jax.random.split(key)
    x2 = jax.random.normal(xkey2, (N2, input_channel, H, W), jnp.float32)
    out2 = jax.block_until_ready(jax.jit(cnn_n_layer_forward)(x2, params))
    ref2 = reference_forward(x2, params)
    err2 = float(jnp.max(jnp.abs(out2 - ref2)))
    assert out2.shape == (N2, num_classes)
    assert jnp.allclose(out2, ref2, atol=3e-3, rtol=3e-3), f"mismatch (batched), max err {err2}"

    print("KERNEL_OK")
</pallas_src>

<mosaic_0001>
module attributes {stable_mosaic.version = 11 : i64} {
  func.func @fused_cnn_kernel(%arg0: i32, %arg1: i32, %arg2: memref<1x432x128xbf16, #tpu.memory_space<vmem>>, %arg3: memref<18x128x128xbf16, #tpu.memory_space<vmem>>, %arg4: memref<2x1x128xf32, #tpu.memory_space<vmem>>, %arg5: memref<128x128xbf16, #tpu.memory_space<vmem>>, %arg6: memref<1x128xf32, #tpu.memory_space<vmem>>, %arg7: memref<1x1x128xf32, #tpu.memory_space<vmem>>, %arg8: memref<496x128xbf16, #tpu.memory_space<vmem>>, %arg9: memref<432x128xf32, #tpu.memory_space<vmem>>) attributes {dimension_semantics = [#tpu.dimension_semantics<parallel>, #tpu.dimension_semantics<arbitrary>], iteration_bounds = array<i64: 2, 2>, scalar_prefetch = 0 : i64, scratch_operands = 2 : i64, tpu.core_type = #tpu.core_type<tc>, window_params = [{transform_indices = @transform_0, window_bounds = array<i64: 1, 432, 128>}, {pipeline_mode = #tpu.pipeline_mode<synchronous>, transform_indices = @transform_1, window_bounds = array<i64: 18, 128, 128>}, {pipeline_mode = #tpu.pipeline_mode<synchronous>, transform_indices = @transform_2, window_bounds = array<i64: 2, 1, 128>}, {pipeline_mode = #tpu.pipeline_mode<synchronous>, transform_indices = @transform_3, window_bounds = array<i64: 128, 128>}, {pipeline_mode = #tpu.pipeline_mode<synchronous>, transform_indices = @transform_4, window_bounds = array<i64: 1, 128>}, {transform_indices = @transform_5, window_bounds = array<i64: 1, 1, 128>}]} {
    %c0_i32 = arith.constant 0 : i32
    %0 = arith.cmpi eq, %arg1, %c0_i32 : i32
    %1 = arith.extui %0 : i1 to i32
    %c0_i32_0 = arith.constant 0 : i32
    %2 = arith.cmpi ne, %1, %c0_i32_0 : i32
    scf.if %2 {
      %cst_89 = arith.constant 0.000000e+00 : bf16
      %114 = vector.broadcast %cst_89 : bf16 to vector<25x128xbf16>
      %c0_90 = arith.constant 0 : index
      %c0_91 = arith.constant 0 : index
      %115 = vector.load %arg8[%c0_90, %c0_91] : memref<496x128xbf16, #tpu.memory_space<vmem>>, vector<25x128xbf16>
      tpu.vector_store %arg8[%c0_90, %c0_91], %114 {strides = array<i32>} : memref<496x128xbf16, #tpu.memory_space<vmem>>, vector<25x128xbf16>,
      %c0_92 = arith.constant 0 : index
      %c0_93 = arith.constant 0 : index
      %c0_94 = arith.constant 0 : index
      %116 = vector.load %arg2[%c0_92, %c0_93, %c0_94] : memref<1x432x128xbf16, #tpu.memory_space<vmem>>, vector<1x432x128xbf16>
      %117 = vector.shape_cast %116 : vector<1x432x128xbf16> to vector<432x128xbf16>
      %c25_95 = arith.constant 25 : index
      %c0_96 = arith.constant 0 : index
      %118 = vector.load %arg8[%c25_95, %c0_96] : memref<496x128xbf16, #tpu.memory_space<vmem>>, vector<432x128xbf16>
      tpu.vector_store %arg8[%c25_95, %c0_96], %117 {strides = array<i32>} : memref<496x128xbf16, #tpu.memory_space<vmem>>, vector<432x128xbf16>,
      %cst_97 = arith.constant 0.000000e+00 : bf16
      %119 = vector.broadcast %cst_97 : bf16 to vector<39x128xbf16>
      %c457 = arith.constant 457 : index
      %c0_98 = arith.constant 0 : index
      %120 = vector.load %arg8[%c457, %c0_98] : memref<496x128xbf16, #tpu.memory_space<vmem>>, vector<39x128xbf16>
      tpu.vector_store %arg8[%c457, %c0_98], %119 {strides = array<i32>} : memref<496x128xbf16, #tpu.memory_space<vmem>>, vector<39x128xbf16>,
    } else {
    }
    %c0 = arith.constant 0 : index
    %c0_1 = arith.constant 0 : index
    %3 = vector.load %arg8[%c0, %c0_1] : memref<496x128xbf16, #tpu.memory_space<vmem>>, vector<432x128xbf16>
    %c9_i32 = arith.constant 9 : i32
    %4 = arith.muli %arg1, %c9_i32 : i32
    %c0_i32_2 = arith.constant 0 : i32
    %5 = arith.addi %4, %c0_i32_2 : i32
    %6 = arith.index_cast %5 : i32 to index
    %c0_3 = arith.constant 0 : index
    %c0_4 = arith.constant 0 : index
    %7 = vector.load %arg3[%6, %c0_3, %c0_4] : memref<18x128x128xbf16, #tpu.memory_space<vmem>>, vector<1x128x128xbf16>
    %8 = vector.shape_cast %7 : vector<1x128x128xbf16> to vector<128x128xbf16>
    %cst = arith.constant dense<0.000000e+00> : vector<432x128xf32>
    %9 = tpu.matmul %3, %8, %cst {dimension_numbers = #tpu.dot_dimension_numbers<[1], [0], [0], [1], [0, 0, 1, 1], [], []>} : vector<432x128xbf16>, vector<128x128xbf16>, vector<432x128xf32> -> vector<432x128xf32>
    %c0_5 = arith.constant 0 : index
    %c0_6 = arith.constant 0 : index
    %10 = vector.load %arg9[%c0_5, %c0_6] : memref<432x128xf32, #tpu.memory_space<vmem>>, vector<432x128xf32>
    tpu.vector_store %arg9[%c0_5, %c0_6], %9 {strides = array<i32>} : memref<432x128xf32, #tpu.memory_space<vmem>>, vector<432x128xf32>,
    %c1 = arith.constant 1 : index
    %c0_7 = arith.constant 0 : index
    %11 = vector.load %arg8[%c1, %c0_7] : memref<496x128xbf16, #tpu.memory_space<vmem>>, vector<432x128xbf16>
    %c9_i32_8 = arith.constant 9 : i32
    %12 = arith.muli %arg1, %c9_i32_8 : i32
    %c1_i32 = arith.constant 1 : i32
    %13 = arith.addi %12, %c1_i32 : i32
    %14 = arith.index_cast %13 : i32 to index
    %c0_9 = arith.constant 0 : index
    %c0_10 = arith.constant 0 : index
    %15 = vector.load %arg3[%14, %c0_9, %c0_10] : memref<18x128x128xbf16, #tpu.memory_space<vmem>>, vector<1x128x128xbf16>
    %16 = vector.shape_cast %15 : vector<1x128x128xbf16> to vector<128x128xbf16>
    %cst_11 = arith.constant dense<0.000000e+00> : vector<432x128xf32>
    %17 = tpu.matmul %11, %16, %cst_11 {dimension_numbers = #tpu.dot_dimension_numbers<[1], [0], [0], [1], [0, 0, 1, 1], [], []>} : vector<432x128xbf16>, vector<128x128xbf16>, vector<432x128xf32> -> vector<432x128xf32>
    %c0_12 = arith.constant 0 : index
    %c0_13 = arith.constant 0 : index
    %18 = vector.load %arg9[%c0_12, %c0_13] : memref<432x128xf32, #tpu.memory_space<vmem>>, vector<432x128xf32>
    %19 = arith.addf %18, %17 : vector<432x128xf32>
    %c0_14 = arith.constant 0 : index
    %c0_15 = arith.constant 0 : index
    %20 = vector.load %arg9[%c0_14, %c0_15] : memref<432x128xf32, #tpu.memory_space<vmem>>, vector<432x128xf32>
    tpu.vector_store %arg9[%c0_14, %c0_15], %19 {strides = array<i32>} : memref<432x128xf32, #tpu.memory_space<vmem>>, vector<432x128xf32>,
    %c2 = arith.constant 2 : index
    %c0_16 = arith.constant 0 : index
    %21 = vector.load %arg8[%c2, %c0_16] : memref<496x128xbf16, #tpu.memory_space<vmem>>, vector<432x128xbf16>
    %c9_i32_17 = arith.constant 9 : i32
    %22 = arith.muli %arg1, %c9_i32_17 : i32
    %c2_i32 = arith.constant 2 : i32
    %23 = arith.addi %22, %c2_i32 : i32
    %24 = arith.index_cast %23 : i32 to index
    %c0_18 = arith.constant 0 : index
    %c0_19 = arith.constant 0 : index
    %25 = vector.load %arg3[%24, %c0_18, %c0_19] : memref<18x128x128xbf16, #tpu.memory_space<vmem>>, vector<1x128x128xbf16>
    %26 = vector.shape_cast %25 : vector<1x128x128xbf16> to vector<128x128xbf16>
    %cst_20 = arith.constant dense<0.000000e+00> : vector<432x128xf32>
    %27 = tpu.matmul %21, %26, %cst_20 {dimension_numbers = #tpu.dot_dimension_numbers<[1], [0], [0], [1], [0, 0, 1, 1], [], []>} : vector<432x128xbf16>, vector<128x128xbf16>, vector<432x128xf32> -> vector<432x128xf32>
    %c0_21 = arith.constant 0 : index
    %c0_22 = arith.constant 0 : index
    %28 = vector.load %arg9[%c0_21, %c0_22] : memref<432x128xf32, #tpu.memory_space<vmem>>, vector<432x128xf32>
    %29 = arith.addf %28, %27 : vector<432x128xf32>
    %c0_23 = arith.constant 0 : index
    %c0_24 = arith.constant 0 : index
    %30 = vector.load %arg9[%c0_23, %c0_24] : memref<432x128xf32, #tpu.memory_space<vmem>>, vector<432x128xf32>
    tpu.vector_store %arg9[%c0_23, %c0_24], %29 {strides = array<i32>} : memref<432x128xf32, #tpu.memory_space<vmem>>, vector<432x128xf32>,
    %c24 = arith.constant 24 : index
    %c0_25 = arith.constant 0 : index
    %31 = vector.load %arg8[%c24, %c0_25] : memref<496x128xbf16, #tpu.memory_space<vmem>>, vector<432x128xbf16>
    %c9_i32_26 = arith.constant 9 : i32
    %32 = arith.muli %arg1, %c9_i32_26 : i32
    %c3_i32 = arith.constant 3 : i32
    %33 = arith.addi %32, %c3_i32 : i32
    %34 = arith.index_cast %33 : i32 to index
    %c0_27 = arith.constant 0 : index
    %c0_28 = arith.constant 0 : index
    %35 = vector.load %arg3[%34, %c0_27, %c0_28] : memref<18x128x128xbf16, #tpu.memory_space<vmem>>, vector<1x128x128xbf16>
    %36 = vector.shape_cast %35 : vector<1x128x128xbf16> to vector<128x128xbf16>
    %cst_29 = arith.constant dense<0.000000e+00> : vector<432x128xf32>
    %37 = tpu.matmul %31, %36, %cst_29 {dimension_numbers = #tpu.dot_dimension_numbers<[1], [0], [0], [1], [0, 0, 1, 1], [], []>} : vector<432x128xbf16>, vector<128x128xbf16>, vector<432x128xf32> -> vector<432x128xf32>
    %c0_30 = arith.constant 0 : index
    %c0_31 = arith.constant 0 : index
    %38 = vector.load %arg9[%c0_30, %c0_31] : memref<432x128xf32, #tpu.memory_space<vmem>>, vector<432x128xf32>
    %39 = arith.addf %38, %37 : vector<432x128xf32>
    %c0_32 = arith.constant 0 : index
    %c0_33 = arith.constant 0 : index
    %40 = vector.load %arg9[%c0_32, %c0_33] : memref<432x128xf32, #tpu.memory_space<vmem>>, vector<432x128xf32>
    tpu.vector_store %arg9[%c0_32, %c0_33], %39 {strides = array<i32>} : memref<432x128xf32, #tpu.memory_space<vmem>>, vector<432x128xf32>,
    %c25 = arith.constant 25 : index
    %c0_34 = arith.constant 0 : index
    %41 = vector.load %arg8[%c25, %c0_34] : memref<496x128xbf16, #tpu.memory_space<vmem>>, vector<432x128xbf16>
    %c9_i32_35 = arith.constant 9 : i32
    %42 = arith.muli %arg1, %c9_i32_35 : i32
    %c4_i32 = arith.constant 4 : i32
    %43 = arith.addi %42, %c4_i32 : i32
    %44 = arith.index_cast %43 : i32 to index
    %c0_36 = arith.constant 0 : index
    %c0_37 = arith.constant 0 : index
    %45 = vector.load %arg3[%44, %c0_36, %c0_37] : memref<18x128x128xbf16, #tpu.memory_space<vmem>>, vector<1x128x128xbf16>
    %46 = vector.shape_cast %45 : vector<1x128x128xbf16> to vector<128x128xbf16>
    %cst_38 = arith.constant dense<0.000000e+00> : vector<432x128xf32>
    %47 = tpu.matmul %41, %46, %cst_38 {dimension_numbers = #tpu.dot_dimension_numbers<[1], [0], [0], [1], [0, 0, 1, 1], [], []>} : vector<432x128xbf16>, vector<128x128xbf16>, vector<432x128xf32> -> vector<432x128xf32>
    %c0_39 = arith.constant 0 : index
    %c0_40 = arith.constant 0 : index
    %48 = vector.load %arg9[%c0_39, %c0_40] : memref<432x128xf32, #tpu.memory_space<vmem>>, vector<432x128xf32>
    %49 = arith.addf %48, %47 : vector<432x128xf32>
    %c0_41 = arith.constant 0 : index
    %c0_42 = arith.constant 0 : index
    %50 = vector.load %arg9[%c0_41, %c0_42] : memref<432x128xf32, #tpu.memory_space<vmem>>, vector<432x128xf32>
    tpu.vector_store %arg9[%c0_41, %c0_42], %49 {strides = array<i32>} : memref<432x128xf32, #tpu.memory_space<vmem>>, vector<432x128xf32>,
    %c26 = arith.constant 26 : index
    %c0_43 = arith.constant 0 : index
    %51 = vector.load %arg8[%c26, %c0_43] : memref<496x128xbf16, #tpu.memory_space<vmem>>, vector<432x128xbf16>
    %c9_i32_44 = arith.constant 9 : i32
    %52 = arith.muli %arg1, %c9_i32_44 : i32
    %c5_i32 = arith.constant 5 : i32
    %53 = arith.addi %52, %c5_i32 : i32
    %54 = arith.index_cast %53 : i32 to index
    %c0_45 = arith.constant 0 : index
    %c0_46 = arith.constant 0 : index
    %55 = vector.load %arg3[%54, %c0_45, %c0_46] : memref<18x128x128xbf16, #tpu.memory_space<vmem>>, vector<1x128x128xbf16>
    %56 = vector.shape_cast %55 : vector<1x128x128xbf16> to vector<128x128xbf16>
    %cst_47 = arith.constant dense<0.000000e+00> : vector<432x128xf32>
    %57 = tpu.matmul %51, %56, %cst_47 {dimension_numbers = #tpu.dot_dimension_numbers<[1], [0], [0], [1], [0, 0, 1, 1], [], []>} : vector<432x128xbf16>, vector<128x128xbf16>, vector<432x128xf32> -> vector<432x128xf32>
    %c0_48 = arith.constant 0 : index
    %c0_49 = arith.constant 0 : index
    %58 = vector.load %arg9[%c0_48, %c0_49] : memref<432x128xf32, #tpu.memory_space<vmem>>, vector<432x128xf32>
    %59 = arith.addf %58, %57 : vector<432x128xf32>
    %c0_50 = arith.constant 0 : index
    %c0_51 = arith.constant 0 : index
    %60 = vector.load %arg9[%c0_50, %c0_51] : memref<432x128xf32, #tpu.memory_space<vmem>>, vector<432x128xf32>
    tpu.vector_store %arg9[%c0_50, %c0_51], %59 {strides = array<i32>} : memref<432x128xf32, #tpu.memory_space<vmem>>, vector<432x128xf32>,
    %c48 = arith.constant 48 : index
    %c0_52 = arith.constant 0 : index
    %61 = vector.load %arg8[%c48, %c0_52] : memref<496x128xbf16, #tpu.memory_space<vmem>>, vector<432x128xbf16>
    %c9_i32_53 = arith.constant 9 : i32
    %62 = arith.muli %arg1, %c9_i32_53 : i32
    %c6_i32 = arith.constant 6 : i32
    %63 = arith.addi %62, %c6_i32 : i32
    %64 = arith.index_cast %63 : i32 to index
    %c0_54 = arith.constant 0 : index
    %c0_55 = arith.constant 0 : index
    %65 = vector.load %arg3[%64, %c0_54, %c0_55] : memref<18x128x128xbf16, #tpu.memory_space<vmem>>, vector<1x128x128xbf16>
    %66 = vector.shape_cast %65 : vector<1x128x128xbf16> to vector<128x128xbf16>
    %cst_56 = arith.constant dense<0.000000e+00> : vector<432x128xf32>
    %67 = tpu.matmul %61, %66, %cst_56 {dimension_numbers = #tpu.dot_dimension_numbers<[1], [0], [0], [1], [0, 0, 1, 1], [], []>} : vector<432x128xbf16>, vector<128x128xbf16>, vector<432x128xf32> -> vector<432x128xf32>
    %c0_57 = arith.constant 0 : index
    %c0_58 = arith.constant 0 : index
    %68 = vector.load %arg9[%c0_57, %c0_58] : memref<432x128xf32, #tpu.memory_space<vmem>>, vector<432x128xf32>
    %69 = arith.addf %68, %67 : vector<432x128xf32>
    %c0_59 = arith.constant 0 : index
    %c0_60 = arith.constant 0 : index
    %70 = vector.load %arg9[%c0_59, %c0_60] : memref<432x128xf32, #tpu.memory_space<vmem>>, vector<432x128xf32>
    tpu.vector_store %arg9[%c0_59, %c0_60], %69 {strides = array<i32>} : memref<432x128xf32, #tpu.memory_space<vmem>>, vector<432x128xf32>,
    %c49 = arith.constant 49 : index
    %c0_61 = arith.constant 0 : index
    %71 = vector.load %arg8[%c49, %c0_61] : memref<496x128xbf16, #tpu.memory_space<vmem>>, vector<432x128xbf16>
    %c9_i32_62 = arith.constant 9 : i32
    %72 = arith.muli %arg1, %c9_i32_62 : i32
    %c7_i32 = arith.constant 7 : i32
    %73 = arith.addi %72, %c7_i32 : i32
    %74 = arith.index_cast %73 : i32 to index
    %c0_63 = arith.constant 0 : index
    %c0_64 = arith.constant 0 : index
    %75 = vector.load %arg3[%74, %c0_63, %c0_64] : memref<18x128x128xbf16, #tpu.memory_space<vmem>>, vector<1x128x128xbf16>
    %76 = vector.shape_cast %75 : vector<1x128x128xbf16> to vector<128x128xbf16>
    %cst_65 = arith.constant dense<0.000000e+00> : vector<432x128xf32>
    %77 = tpu.matmul %71, %76, %cst_65 {dimension_numbers = #tpu.dot_dimension_numbers<[1], [0], [0], [1], [0, 0, 1, 1], [], []>} : vector<432x128xbf16>, vector<128x128xbf16>, vector<432x128xf32> -> vector<432x128xf32>
    %c0_66 = arith.constant 0 : index
    %c0_67 = arith.constant 0 : index
    %78 = vector.load %arg9[%c0_66, %c0_67] : memref<432x128xf32, #tpu.memory_space<vmem>>, vector<432x128xf32>
    %79 = arith.addf %78, %77 : vector<432x128xf32>
    %c0_68 = arith.constant 0 : index
    %c0_69 = arith.constant 0 : index
    %80 = vector.load %arg9[%c0_68, %c0_69] : memref<432x128xf32, #tpu.memory_space<vmem>>, vector<432x128xf32>
    tpu.vector_store %arg9[%c0_68, %c0_69], %79 {strides = array<i32>} : memref<432x128xf32, #tpu.memory_space<vmem>>, vector<432x128xf32>,
    %c50 = arith.constant 50 : index
    %c0_70 = arith.constant 0 : index
    %81 = vector.load %arg8[%c50, %c0_70] : memref<496x128xbf16, #tpu.memory_space<vmem>>, vector<432x128xbf16>
    %c9_i32_71 = arith.constant 9 : i32
    %82 = arith.muli %arg1, %c9_i32_71 : i32
    %c8_i32 = arith.constant 8 : i32
    %83 = arith.addi %82, %c8_i32 : i32
    %84 = arith.index_cast %83 : i32 to index
    %c0_72 = arith.constant 0 : index
    %c0_73 = arith.constant 0 : index
    %85 = vector.load %arg3[%84, %c0_72, %c0_73] : memref<18x128x128xbf16, #tpu.memory_space<vmem>>, vector<1x128x128xbf16>
    %86 = vector.shape_cast %85 : vector<1x128x128xbf16> to vector<128x128xbf16>
    %cst_74 = arith.constant dense<0.000000e+00> : vector<432x128xf32>
    %87 = tpu.matmul %81, %86, %cst_74 {dimension_numbers = #tpu.dot_dimension_numbers<[1], [0], [0], [1], [0, 0, 1, 1], [], []>} : vector<432x128xbf16>, vector<128x128xbf16>, vector<432x128xf32> -> vector<432x128xf32>
    %c0_75 = arith.constant 0 : index
    %c0_76 = arith.constant 0 : index
    %88 = vector.load %arg9[%c0_75, %c0_76] : memref<432x128xf32, #tpu.memory_space<vmem>>, vector<432x128xf32>
    %89 = arith.addf %88, %87 : vector<432x128xf32>
    %c0_77 = arith.constant 0 : index
    %c0_78 = arith.constant 0 : index
    %90 = vector.load %arg9[%c0_77, %c0_78] : memref<432x128xf32, #tpu.memory_space<vmem>>, vector<432x128xf32>
    tpu.vector_store %arg9[%c0_77, %c0_78], %89 {strides = array<i32>} : memref<432x128xf32, #tpu.memory_space<vmem>>, vector<432x128xf32>,
    %91 = arith.index_cast %arg1 : i32 to index
    %c0_79 = arith.constant 0 : index
    %c0_80 = arith.constant 0 : index
    %92 = vector.load %arg4[%91, %c0_79, %c0_80] : memref<2x1x128xf32, #tpu.memory_space<vmem>>, vector<1x1x128xf32>
    %93 = vector.shape_cast %92 : vector<1x1x128xf32> to vector<1x128xf32>
    %c0_81 = arith.constant 0 : index
    %c0_82 = arith.constant 0 : index
    %94 = vector.load %arg9[%c0_81, %c0_82] : memref<432x128xf32, #tpu.memory_space<vmem>>, vector<432x128xf32>
    %95 = vector.broadcast %93 : vector<1x128xf32> to vector<432x128xf32>
    %96 = arith.addf %94, %95 : vector<432x128xf32>
    %cst_83 = arith.constant 0.000000e+00 : f32
    %97 = vector.broadcast %cst_83 : f32 to vector<432x128xf32>
    %98 = arith.maximumf %96, %97 : vector<432x128xf32>
    %99 = tpu.iota {dimensions = array<i32: 0>} : vector<24x1xi32>
    %c16_i32 = arith.constant 16 : i32
    %100 = vector.broadcast %c16_i32 : i32 to vector<24x1xi32>
    %101 = arith.cmpi slt, %99, %100 : vector<24x1xi32>
    %102 = vector.shape_cast %98 : vector<432x128xf32> to vector<18x24x128xf32>
    %cst_84 = arith.constant 0.000000e+00 : f32
    %103 = vector.shape_cast %101 : vector<24x1xi1> to vector<1x24x1xi1>
    %104 = vector.broadcast %103 : vector<1x24x1xi1> to vector<18x24x128xi1>
    %105 = vector.broadcast %cst_84 : f32 to vector<18x24x128xf32>
    %106 = arith.select %104, %102, %105 : vector<18x24x128xi1>, vector<18x24x128xf32>
    %107 = vector.shape_cast %106 : vector<18x24x128xf32> to vector<432x128xf32>
    %c1_i32_85 = arith.constant 1 : i32
    %108 = arith.cmpi slt, %arg1, %c1_i32_85 : i32
    %109 = arith.extui %108 : i1 to i32
    %c0_i32_86 = arith.constant 0 : i32
    %110 = arith.cmpi ne, %109, %c0_i32_86 : i32
    scf.if %110 {
      %114 = arith.truncf %107 : vector<432x128xf32> to vector<432x128xbf16>
      %115 = vector.extract_strided_slice %114 {offsets = [0, 0], sizes = [384, 128], strides = [1, 1]} : vector<432x128xbf16> to vector<384x128xbf16>
      %c25_89 = arith.constant 25 : index
      %c0_90 = arith.constant 0 : index
      %116 = vector.load %arg8[%c25_89, %c0_90] : memref<496x128xbf16, #tpu.memory_space<vmem>>, vector<384x128xbf16>
      tpu.vector_store %arg8[%c25_89, %c0_90], %115 {strides = array<i32>} : memref<496x128xbf16, #tpu.memory_space<vmem>>, vector<384x128xbf16>,
    } else {
    }
    %c1_i32_87 = arith.constant 1 : i32
    %111 = arith.cmpi eq, %arg1, %c1_i32_87 : i32
    %112 = arith.extui %111 : i1 to i32
    %c0_i32_88 = arith.constant 0 : i32
    %113 = arith.cmpi ne, %112, %c0_i32_88 : i32
    scf.if %113 {
      %114 = vector.extract_strided_slice %107 {offsets = [0, 0], sizes = [384, 128], strides = [1, 1]} : vector<432x128xf32> to vector<384x128xf32>
      %cst_89 = arith.constant dense<0.000000e+00> : vector<128xf32>
      %115 = vector.multi_reduction <add>, %114, %cst_89 [0] : vector<384x128xf32> to vector<128xf32>
      %116 = vector.shape_cast %115 : vector<128xf32> to vector<1x128xf32>
      %cst_90 = arith.constant 3.906250e-03 : f32
      %117 = vector.broadcast %cst_90 : f32 to vector<1x128xf32>
      %118 = arith.mulf %116, %117 : vector<1x128xf32>
      %119 = arith.truncf %118 : vector<1x128xf32> to vector<1x128xbf16>
      %c0_91 = arith.constant 0 : index
      %c0_92 = arith.constant 0 : index
      %120 = vector.load %arg5[%c0_91, %c0_92] : memref<128x128xbf16, #tpu.memory_space<vmem>>, vector<128x128xbf16>
      %cst_93 = arith.constant dense<0.000000e+00> : vector<1x128xf32>
      %121 = tpu.matmul %119, %120, %cst_93 {dimension_numbers = #tpu.dot_dimension_numbers<[1], [0], [0], [1], [0, 0, 1, 1], [], []>} : vector<1x128xbf16>, vector<128x128xbf16>, vector<1x128xf32> -> vector<1x128xf32>
      %c0_94 = arith.constant 0 : index
      %c0_95 = arith.constant 0 : index
      %122 = vector.load %arg6[%c0_94, %c0_95] : memref<1x128xf32, #tpu.memory_space<vmem>>, vector<1x128xf32>
      %123 = arith.addf %121, %122 : vector<1x128xf32>
      %124 = vector.shape_cast %123 : vector<1x128xf32> to vector<1x1x128xf32>
      %c0_96 = arith.constant 0 : index
      %c0_97 = arith.constant 0 : index
      %c0_98 = arith.constant 0 : index
      %125 = vector.load %arg7[%c0_96, %c0_97, %c0_98] : memref<1x1x128xf32, #tpu.memory_space<vmem>>, vector<1x1x128xf32>
      tpu.vector_store %arg7[%c0_96, %c0_97, %c0_98], %124 {strides = array<i32>} : memref<1x1x128xf32, #tpu.memory_space<vmem>>, vector<1x1x128xf32>,
    } else {
    }
    return
  }
  func.func @transform_0(%arg0: i32, %arg1: i32) -> (i32, i32, i32) {
    %c0_i32 = arith.constant 0 : i32
    %c0_i32_0 = arith.constant 0 : i32
    %c0_i32_1 = arith.constant 0 : i32
    return %arg0, %c0_i32, %c0_i32_0 : i32, i32, i32
  }
  func.func @transform_1(%arg0: i32, %arg1: i32) -> (i32, i32, i32) {
    %c0_i32 = arith.constant 0 : i32
    %c0_i32_0 = arith.constant 0 : i32
    %c0_i32_1 = arith.constant 0 : i32
    %c0_i32_2 = arith.constant 0 : i32
    return %c0_i32, %c0_i32_0, %c0_i32_1 : i32, i32, i32
  }
  func.func @transform_2(%arg0: i32, %arg1: i32) -> (i32, i32, i32) {
    %c0_i32 = arith.constant 0 : i32
    %c0_i32_0 = arith.constant 0 : i32
    %c0_i32_1 = arith.constant 0 : i32
    %c0_i32_2 = arith.constant 0 : i32
    return %c0_i32, %c0_i32_0, %c0_i32_1 : i32, i32, i32
  }
  func.func @transform_3(%arg0: i32, %arg1: i32) -> (i32, i32) {
    %c0_i32 = arith.constant 0 : i32
    %c0_i32_0 = arith.constant 0 : i32
    %c0_i32_1 = arith.constant 0 : i32
    return %c0_i32, %c0_i32_0 : i32, i32
  }
  func.func @transform_4(%arg0: i32, %arg1: i32) -> (i32, i32) {
    %c0_i32 = arith.constant 0 : i32
    %c0_i32_0 = arith.constant 0 : i32
    %c0_i32_1 = arith.constant 0 : i32
    return %c0_i32, %c0_i32_0 : i32, i32
  }
  func.func @transform_5(%arg0: i32, %arg1: i32) -> (i32, i32, i32) {
    %c0_i32 = arith.constant 0 : i32
    %c0_i32_0 = arith.constant 0 : i32
    %c0_i32_1 = arith.constant 0 : i32
    return %arg0, %c0_i32, %c0_i32_0 : i32, i32, i32
  }
}

</mosaic_0001>

<llo_original>
// kernel: cnn_n_layer_forward.1
$region0: #{cnn_n_layer_forward.1}
  #allocation0 [shape = 'u32[]', space=smem, size = 0x4, offset = 0x4, fixed_abs, tag = 'smem constant byte address 0x4 - core index']
  #allocation1 [shape = 'u32[144,128]{1,0:T(1,128)}', space=vmem, size = 0x12000, scoped, tag = 'internal scratch']
  #allocation2 [shape = 'bf16[496,128]{1,0:T(16,128)(2,1)}', space=vmem, size = 0x1f000, scoped, tag = 'scratch operand']
  #allocation3 [shape = 'f32[432,128]{1,0:T(8,128)}', space=vmem, size = 0x36000, scoped, tag = 'scratch operand']
  %s0 = inlined_call_operand.vmem [shape: bf16[2,432,128], index: 0, kind: input, shape index: {}]
  %s1 = inlined_call_operand.vmem [shape: bf16[18,128,128], index: 1, kind: input, shape index: {}]
  %s2 = inlined_call_operand.vmem [shape: f32[2,1,128], index: 2, kind: input, shape index: {}]
  %s3 = inlined_call_operand.vmem [shape: bf16[128,128], index: 3, kind: input, shape index: {}]
  %s4 = inlined_call_operand.vmem [shape: f32[1,128], index: 4, kind: input, shape index: {}]
  %s5 = inlined_call_operand.hbm [shape: f32[2,1,128], index: 5, kind: output, shape index: {}]
  %s6 = sld [smem:[#allocation0]]
  $region65: #{cnn_n_layer_forward.1} parent=0
    _
  %s8 = ssub.s32 1, %s6
  %s9 = scalar_select 0, %s8, %s6
  $region1: #{cnn_n_layer_forward.1} parent=0
    #allocation4 [shape = 'u8[1024]{0}', space=vmem, size = 0x400, scoped, tag = 'output window, operand 0']
    #allocation5 [shape = 's32[2]{0}', space=sflag, size = 0x8, scoped, tag = 'scoped memory for cnn_n_layer_forward.1']
    %10 = vsyncpa [#allocation5], 0
    %s11 = scalar_lea.sflag [#allocation5], 1
    %12 = vsyncpa %s11, 0
    loop: start=0, step=1, limit=6
    $region2: #{cnn_n_layer_forward.1} parent=1 // loop_pre_header
      _
    $region3: #{cnn_n_layer_forward.1} parent=1 // loop_header
      %s14 = sphi 0, %s18
      %p15 = scmp.ge.s32.totalorder %s14, 6
      %s21 = sphi 0, %s33
      %s22 = sphi 0, %s29
      %s23 = sphi 0, %s21
      %s24 = sphi 0, %s22
      %s25 = sphi 0, %s23
      %s26 = sphi 0, %s24
      %s36 = sphi 0, %s38
      %s39 = sphi 0, %s36
      %s40 = sphi 0, %s39
      %s56 = sphi 0, %s40
      %s60 = sphi 0, %s60
      %s62 = sphi 0, %s60
      %s63 = sphi 0, %s62
      %s77 = sphi 0, %s63
      %s81 = sphi 0, %s81
      %s83 = sphi 0, %s81
      %s84 = sphi 0, %s83
      %s98 = sphi 0, %s84
      %s102 = sphi 0, %s102
      %s104 = sphi 0, %s102
      %s105 = sphi 0, %s104
      %s119 = sphi 0, %s105
      %s123 = sphi 0, %s123
      %s125 = sphi 0, %s123
      %s126 = sphi 0, %s125
      %s140 = sphi 0, %s126
      %s146 = sphi 0, %s148
      %s149 = sphi 0, %s146
      %s150 = sphi 0, %s149
      %s166 = sphi 0, %s150
    $region4: #{cnn_n_layer_forward.1} parent=1 // loop_header_branch
      %17 = sbr.rel (%p15) target = $region8
    $region5: #{cnn_n_layer_forward.1} parent=1 // loop_body
      %s19 = ssub.s32 %s14, 1
      %s20 = ssub.s32 %s14, 2
      %s27 = sadd.s32 1, %s22
      %p28 = scmp.ge.s32.totalorder %s27, 2
      %s29 = scalar_select %p28, 0, %s27
      %s30 = sadd.s32 1, %s21
      %s31 = scalar_select %p28, %s30, %s21
      %p32 = scmp.ge.s32.totalorder %s31, 2
      %s33 = scalar_select %p32, 0, %s31
      %s34 = ssub.s32 %s21, %s33
      %p35 = scmp.eq.s32.totalorder %s34, 0
      %s37 = sadd.s32 %s36, 1
      %s38 = scalar_select %p35, %s36, %s37
      %p41 = pneg %p35
      %p42 = scmp.eq.s32.totalorder %s14, 3
      %p43 = por %p41, %p42
      %p44 = scmp.ne.s32.totalorder %s36, %s39
      %p45 = scmp.eq.s32.totalorder %s14, 0
      %p46 = por %p44, %p45
      %p47 = scmp.ne.s32.totalorder %s36, %s39
      %p48 = scmp.eq.s32.totalorder %s19, 3
      %p49 = por %p47, %p48
      %p50 = scmp.ne.s32.totalorder %s39, %s40
      %p51 = scmp.eq.s32.totalorder %s19, 0
      %p52 = por %p50, %p51
      %p53 = scmp.ne.s32.totalorder %s39, %s40
      %p54 = scmp.eq.s32.totalorder %s20, 3
      %p55 = por %p53, %p54
      %p57 = scmp.ne.s32.totalorder %s40, %s56
      %p58 = scmp.eq.s32.totalorder %s20, 0
      %p59 = por %p57, %p58
      %s61 = sadd.s32 %s60, 1
      %p64 = scmp.eq.s32.totalorder %s14, 3
      %p65 = scmp.ne.s32.totalorder %s60, %s62
      %p66 = scmp.eq.s32.totalorder %s14, 0
      %p67 = por %p65, %p66
      %p68 = scmp.ne.s32.totalorder %s60, %s62
      %p69 = scmp.eq.s32.totalorder %s19, 3
      %p70 = por %p68, %p69
      %p71 = scmp.ne.s32.totalorder %s62, %s63
      %p72 = scmp.eq.s32.totalorder %s19, 0
      %p73 = por %p71, %p72
      %p74 = scmp.ne.s32.totalorder %s62, %s63
      %p75 = scmp.eq.s32.totalorder %s20, 3
      %p76 = por %p74, %p75
      %p78 = scmp.ne.s32.totalorder %s63, %s77
      %p79 = scmp.eq.s32.totalorder %s20, 0
      %p80 = por %p78, %p79
      %s82 = sadd.s32 %s81, 1
      %p85 = scmp.eq.s32.totalorder %s14, 3
      %p86 = scmp.ne.s32.totalorder %s81, %s83
      %p87 = scmp.eq.s32.totalorder %s14, 0
      %p88 = por %p86, %p87
      %p89 = scmp.ne.s32.totalorder %s81, %s83
      %p90 = scmp.eq.s32.totalorder %s19, 3
      %p91 = por %p89, %p90
      %p92 = scmp.ne.s32.totalorder %s83, %s84
      %p93 = scmp.eq.s32.totalorder %s19, 0
      %p94 = por %p92, %p93
      %p95 = scmp.ne.s32.totalorder %s83, %s84
      %p96 = scmp.eq.s32.totalorder %s20, 3
      %p97 = por %p95, %p96
      %p99 = scmp.ne.s32.totalorder %s84, %s98
      %p100 = scmp.eq.s32.totalorder %s20, 0
      %p101 = por %p99, %p100
      %s103 = sadd.s32 %s102, 1
      %p106 = scmp.eq.s32.totalorder %s14, 3
      %p107 = scmp.ne.s32.totalorder %s102, %s104
      %p108 = scmp.eq.s32.totalorder %s14, 0
      %p109 = por %p107, %p108
      %p110 = scmp.ne.s32.totalorder %s102, %s104
      %p111 = scmp.eq.s32.totalorder %s19, 3
      %p112 = por %p110, %p111
      %p113 = scmp.ne.s32.totalorder %s104, %s105
      %p114 = scmp.eq.s32.totalorder %s19, 0
      %p115 = por %p113, %p114
      %p116 = scmp.ne.s32.totalorder %s104, %s105
      %p117 = scmp.eq.s32.totalorder %s20, 3
      %p118 = por %p116, %p117
      %p120 = scmp.ne.s32.totalorder %s105, %s119
      %p121 = scmp.eq.s32.totalorder %s20, 0
      %p122 = por %p120, %p121
      %s124 = sadd.s32 %s123, 1
      %p127 = scmp.eq.s32.totalorder %s14, 3
      %p128 = scmp.ne.s32.totalorder %s123, %s125
      %p129 = scmp.eq.s32.totalorder %s14, 0
      %p130 = por %p128, %p129
      %p131 = scmp.ne.s32.totalorder %s123, %s125
      %p132 = scmp.eq.s32.totalorder %s19, 3
      %p133 = por %p131, %p132
      %p134 = scmp.ne.s32.totalorder %s125, %s126
      %p135 = scmp.eq.s32.totalorder %s19, 0
      %p136 = por %p134, %p135
      %p137 = scmp.ne.s32.totalorder %s125, %s126
      %p138 = scmp.eq.s32.totalorder %s20, 3
      %p139 = por %p137, %p138
      %p141 = scmp.ne.s32.totalorder %s126, %s140
      %p142 = scmp.eq.s32.totalorder %s20, 0
      %p143 = por %p141, %p142
      %s144 = ssub.s32 %s21, %s33
      %p145 = scmp.eq.s32.totalorder %s144, 0
      %s147 = sadd.s32 %s146, 1
      %s148 = scalar_select %p145, %s146, %s147
      %p151 = pneg %p145
      %p152 = scmp.eq.s32.totalorder %s14, 3
      %p153 = por %p151, %p152
      %p154 = scmp.ne.s32.totalorder %s146, %s149
      %p155 = scmp.eq.s32.totalorder %s14, 0
      %p156 = por %p154, %p155
      %p157 = scmp.ne.s32.totalorder %s146, %s149
      %p158 = scmp.eq.s32.totalorder %s19, 3
      %p159 = por %p157, %p158
      %p160 = scmp.ne.s32.totalorder %s149, %s150
      %p161 = scmp.eq.s32.totalorder %s19, 0
      %p162 = por %p160, %p161
      %p163 = scmp.ne.s32.totalorder %s149, %s150
      %p164 = scmp.eq.s32.totalorder %s20, 3
      %p165 = por %p163, %p164
      %p167 = scmp.ne.s32.totalorder %s150, %s166
      %p168 = scmp.eq.s32.totalorder %s20, 0
      %p169 = por %p167, %p168
      %p170 = scmp.le.s32.totalorder 1, %s14
      %p171 = scmp.lt.s32.totalorder %s14, 5
      %p172 = pnand %p170, %p171
      %p173 = pneg %p172
      // Predicated region
      $region9: #{cnn_n_layer_forward.1} parent=5 // pred_check
        _
      $region10: #{cnn_n_layer_forward.1} parent=5 // pred_check_branch
        %175 = sbr.rel (%p172) target = $region12
      $region11: #{cnn_n_layer_forward.1} parent=5 // pred_region
        %s176 = ssub.s32 %s14, 1
        // Predicated region
        $region13: #{cnn_n_layer_forward.1} parent=11 // pred_check
          %p177 = pneg %p73
        $region14: #{cnn_n_layer_forward.1} parent=11 // pred_check_branch
          %179 = sbr.rel (%p177) target = $region16
        $region15: #{cnn_n_layer_forward.1} parent=11 // pred_region
          _
        $region16: #{cnn_n_layer_forward.1} parent=11 // pred_fallthru
          _
        // Predicated region
        $region17: #{cnn_n_layer_forward.1} parent=11 // pred_check
          %p180 = pneg %p94
        $region18: #{cnn_n_layer_forward.1} parent=11 // pred_check_branch
          %182 = sbr.rel (%p180) target = $region20
        $region19: #{cnn_n_layer_forward.1} parent=11 // pred_region
          _
        $region20: #{cnn_n_layer_forward.1} parent=11 // pred_fallthru
          _
        // Predicated region
        $region21: #{cnn_n_layer_forward.1} parent=11 // pred_check
          %p183 = pneg %p115
        $region22: #{cnn_n_layer_forward.1} parent=11 // pred_check_branch
          %185 = sbr.rel (%p183) target = $region24
        $region23: #{cnn_n_layer_forward.1} parent=11 // pred_region
          _
        $region24: #{cnn_n_layer_forward.1} parent=11 // pred_fallthru
          _
        // Predicated region
        $region25: #{cnn_n_layer_forward.1} parent=11 // pred_check
          %p186 = pneg %p136
        $region26: #{cnn_n_layer_forward.1} parent=11 // pred_check_branch
          %188 = sbr.rel (%p186) target = $region28
        $region27: #{cnn_n_layer_forward.1} parent=11 // pred_region
          _
        $region28: #{cnn_n_layer_forward.1} parent=11 // pred_fallthru
          _
      $region12: #{cnn_n_layer_forward.1} parent=5 // pred_fallthru
        _
      %p189 = scmp.lt.s32.totalorder %s14, 4
      // Predicated region
      $region29: #{cnn_n_layer_forward.1} parent=5 // pred_check
        %p190 = pneg %p189
      $region30: #{cnn_n_layer_forward.1} parent=5 // pred_check_branch
        %192 = sbr.rel (%p190) target = $region32
      $region31: #{cnn_n_layer_forward.1} parent=5 // pred_region
        // Predicated region
        $region33: #{cnn_n_layer_forward.1} parent=31 // pred_check
          %p193 = pneg %p46
        $region34: #{cnn_n_layer_forward.1} parent=31 // pred_check_branch
          %195 = sbr.rel (%p193) target = $region36
        $region35: #{cnn_n_layer_forward.1} parent=31 // pred_region
          %p196 = scmp.lt.s32.totalorder %s21, 1
          %s197 = scalar_select %p196, %s21, 1
          %s198 = smul.addr %s197, 54
          %s199 = smul.addr %s198, 4
          %s200 = scalar_lea.vmem %s0, %s199
        $region36: #{cnn_n_layer_forward.1} parent=31 // pred_fallthru
          _
      $region32: #{cnn_n_layer_forward.1} parent=5 // pred_fallthru
        _
      %p201 = scmp.le.s32.totalorder 1, %s14
      %p202 = scmp.lt.s32.totalorder %s14, 5
      %p203 = pnand %p201, %p202
      %p204 = pneg %p203
      // Predicated region
      $region37: #{cnn_n_layer_forward.1} parent=5 // pred_check
        _
      $region38: #{cnn_n_layer_forward.1} parent=5 // pred_check_branch
        %206 = sbr.rel (%p203) target = $region40
      $region39: #{cnn_n_layer_forward.1} parent=5 // pred_region
        %s207 = ssub.s32 %s14, 1
        %p208 = scmp.lt.s32.totalorder %s23, 1
        %s209 = scalar_select %p208, %s23, 1
        %s210 = smul.addr %s209, 54
        %s211 = smul.addr %s210, 4
        %s212 = scalar_lea.vmem %s0, %s211
        %p213 = pneg %p52
        %p214 = pneg %p49
        %p215 = pneg %p73
        %p216 = pneg %p70
        %p217 = pneg %p94
        %p218 = pneg %p91
        %p219 = pneg %p115
        %p220 = pneg %p112
        %p221 = pneg %p136
        %p222 = pneg %p133
        %p223 = pneg %p162
        %p224 = pneg %p159
        %s225 = sand.u32 %s149, 1
        %s226 = scalar_lea.sflag [#allocation5], %s225
        %s227 = sand.u32 %s149, 1
        %s228 = scalar_lea.vmem [#allocation4], %s227
        %p229 = scmp.lt.s32.totalorder %s23, 1
        %s230 = scalar_select %p229, %s23, 1
        %s231 = smul.addr %s230, 54
        %s232 = smul.addr %s231, 4
        %s233 = scalar_lea.vmem %s0, %s232
        %p235 = scmp.eq.s32.totalorder %s24, 0
        // Predicated region
        $region41: #{cnn_n_layer_forward.1} parent=39 // pred_check
          %p236 = pneg %p235
        $region42: #{cnn_n_layer_forward.1} parent=39 // pred_check_branch
          %238 = sbr.rel (%p236) target = $region44
        $region43: #{cnn_n_layer_forward.1} parent=39 // pred_region
          %239 = vst [vmem:[#allocation2] sm:$0xff] 0
          %vm240 = vcmask 1044480
          %vm241 = vsmask.f32 4352
          %vm242 = vmand %vm240, %vm241
          %v243 = vld [vmem:[#allocation2 + $0x8] sm:$0x1f]
          %v244 = vsel %vm242, 0, %v243
          %245 = vst [vmem:[#allocation2 + $0x8] sm:$0x1f] %v244
          %v246 = vld [vmem:[%s233] sm:$0xf]
          %v247 = vld [vmem:[%s233 + $0x4] sm:$0xf]
          %v248 = vld [vmem:[%s233 + $0x8] sm:$0xf]
          %v249 = vld [vmem:[%s233 + $0xc] sm:$0xf]
          %v250 = vld [vmem:[%s233 + $0x10] sm:$0xf]
          %v251 = vld [vmem:[%s233 + $0x14] sm:$0xf]
          %v252 = vld [vmem:[%s233 + $0x18] sm:$0xf]
          %v253 = vld [vmem:[%s233 + $0x1c] sm:$0xf]
          %v254 = vld [vmem:[%s233 + $0x20] sm:$0xf]
          %v255 = vld [vmem:[%s233 + $0x24] sm:$0xf]
          %v256 = vld [vmem:[%s233 + $0x28] sm:$0xf]
          %v257 = vld [vmem:[%s233 + $0x2c] sm:$0xf]
          %v258 = vld [vmem:[%s233 + $0x30] sm:$0xf]
          %v259 = vld [vmem:[%s233 + $0x34] sm:$0xf]
          %v260 = vld [vmem:[%s233 + $0x38] sm:$0xf]
          %v261 = vld [vmem:[%s233 + $0x3c] sm:$0xf]
          %v262 = vld [vmem:[%s233 + $0x40] sm:$0xf]
          %v263 = vld [vmem:[%s233 + $0x44] sm:$0xf]
          %v264 = vld [vmem:[%s233 + $0x48] sm:$0xf]
          %v265 = vld [vmem:[%s233 + $0x4c] sm:$0xf]
          %v266 = vld [vmem:[%s233 + $0x50] sm:$0xf]
          %v267 = vld [vmem:[%s233 + $0x54] sm:$0xf]
          %v268 = vld [vmem:[%s233 + $0x58] sm:$0xf]
          %v269 = vld [vmem:[%s233 + $0x5c] sm:$0xf]
          %v270 = vld [vmem:[%s233 + $0x60] sm:$0xf]
          %v271 = vld [vmem:[%s233 + $0x64] sm:$0xf]
          %v272 = vld [vmem:[%s233 + $0x68] sm:$0xf]
          %v273 = vld [vmem:[%s233 + $0x6c] sm:$0xf]
          %v274 = vld [vmem:[%s233 + $0x70] sm:$0xf]
          %v275 = vld [vmem:[%s233 + $0x74] sm:$0xf]
          %v276 = vld [vmem:[%s233 + $0x78] sm:$0xf]
          %v277 = vld [vmem:[%s233 + $0x7c] sm:$0xf]
          %v278 = vld [vmem:[%s233 + $0x80] sm:$0xf]
          %v279 = vld [vmem:[%s233 + $0x84] sm:$0xf]
          %v280 = vld [vmem:[%s233 + $0x88] sm:$0xf]
          %v281 = vld [vmem:[%s233 + $0x8c] sm:$0xf]
          %v282 = vld [vmem:[%s233 + $0x90] sm:$0xf]
          %v283 = vld [vmem:[%s233 + $0x94] sm:$0xf]
          %v284 = vld [vmem:[%s233 + $0x98] sm:$0xf]
          %v285 = vld [vmem:[%s233 + $0x9c] sm:$0xf]
          %v286 = vld [vmem:[%s233 + $0xa0] sm:$0xf]
          %v287 = vld [vmem:[%s233 + $0xa4] sm:$0xf]
          %v288 = vld [vmem:[%s233 + $0xa8] sm:$0xf]
          %v289 = vld [vmem:[%s233 + $0xac] sm:$0xf]
          %v290 = vld [vmem:[%s233 + $0xb0] sm:$0xf]
          %v291 = vld [vmem:[%s233 + $0xb4] sm:$0xf]
          %v292 = vld [vmem:[%s233 + $0xb8] sm:$0xf]
          %v293 = vld [vmem:[%s233 + $0xbc] sm:$0xf]
          %v294 = vld [vmem:[%s233 + $0xc0] sm:$0xf]
          %v295 = vld [vmem:[%s233 + $0xc4] sm:$0xf]
          %v296 = vld [vmem:[%s233 + $0xc8] sm:$0xf]
          %v297 = vld [vmem:[%s233 + $0xcc] sm:$0xf]
          %v298 = vld [vmem:[%s233 + $0xd0] sm:$0xf]
          %v299 = vld [vmem:[%s233 + $0xd4] sm:$0xf]
          %v354 = vunpack.c.l.b16 %v246
          %v355 = vunpack.c.l.b16 %v247
          %v356 = vunpack.c.l.b16 %v248
          %v357 = vunpack.c.l.b16 %v249
          %v358 = vunpack.c.l.b16 %v250
          %v359 = vunpack.c.l.b16 %v251
          %v360 = vunpack.c.l.b16 %v252
          %v361 = vunpack.c.l.b16 %v253
          %v362 = vunpack.c.l.b16 %v254
          %v363 = vunpack.c.l.b16 %v255
          %v364 = vunpack.c.l.b16 %v256
          %v365 = vunpack.c.l.b16 %v257
          %v366 = vunpack.c.l.b16 %v258
          %v367 = vunpack.c.l.b16 %v259
          %v368 = vunpack.c.l.b16 %v260
          %v369 = vunpack.c.l.b16 %v261
          %v370 = vunpack.c.l.b16 %v262
          %v371 = vunpack.c.l.b16 %v263
          %v372 = vunpack.c.l.b16 %v264
          %v373 = vunpack.c.l.b16 %v265
          %v374 = vunpack.c.l.b16 %v266
          %v375 = vunpack.c.l.b16 %v267
          %v376 = vunpack.c.l.b16 %v268
          %v377 = vunpack.c.l.b16 %v269
          %v378 = vunpack.c.l.b16 %v270
          %v379 = vunpack.c.l.b16 %v271
          %v380 = vunpack.c.l.b16 %v272
          %v381 = vunpack.c.l.b16 %v273
          %v382 = vunpack.c.l.b16 %v274
          %v383 = vunpack.c.l.b16 %v275
          %v384 = vunpack.c.l.b16 %v276
          %v385 = vunpack.c.l.b16 %v277
          %v386 = vunpack.c.l.b16 %v278
          %v387 = vunpack.c.l.b16 %v279
          %v388 = vunpack.c.l.b16 %v280
          %v389 = vunpack.c.l.b16 %v281
          %v390 = vunpack.c.l.b16 %v282
          %v391 = vunpack.c.l.b16 %v283
          %v392 = vunpack.c.l.b16 %v284
          %v393 = vunpack.c.l.b16 %v285
          %v394 = vunpack.c.l.b16 %v286
          %v395 = vunpack.c.l.b16 %v287
          %v396 = vunpack.c.l.b16 %v288
          %v397 = vunpack.c.l.b16 %v289
          %v398 = vunpack.c.l.b16 %v290
          %v399 = vunpack.c.l.b16 %v291
          %v400 = vunpack.c.l.b16 %v292
          %v401 = vunpack.c.l.b16 %v293
          %v402 = vunpack.c.l.b16 %v294
          %v403 = vunpack.c.l.b16 %v295
          %v404 = vunpack.c.l.b16 %v296
          %v405 = vunpack.c.l.b16 %v297
          %v406 = vunpack.c.l.b16 %v298
          %v407 = vunpack.c.l.b16 %v299
          %v408 = vpack.c.b16 %v355, %v354
          %v409 = vpack.c.b16 %v357, %v356
          %v410 = vpack.c.b16 %v359, %v358
          %v411 = vpack.c.b16 %v361, %v360
          %v412 = vpack.c.b16 %v363, %v362
          %v413 = vpack.c.b16 %v365, %v364
          %v414 = vpack.c.b16 %v367, %v366
          %v415 = vpack.c.b16 %v369, %v368
          %v416 = vpack.c.b16 %v371, %v370
          %v417 = vpack.c.b16 %v373, %v372
          %v418 = vpack.c.b16 %v375, %v374
          %v419 = vpack.c.b16 %v377, %v376
          %v420 = vpack.c.b16 %v379, %v378
          %v421 = vpack.c.b16 %v381, %v380
          %v422 = vpack.c.b16 %v383, %v382
          %v423 = vpack.c.b16 %v385, %v384
          %v424 = vpack.c.b16 %v387, %v386
          %v425 = vpack.c.b16 %v389, %v388
          %v426 = vpack.c.b16 %v391, %v390
          %v427 = vpack.c.b16 %v393, %v392
          %v428 = vpack.c.b16 %v395, %v394
          %v429 = vpack.c.b16 %v397, %v396
          %v430 = vpack.c.b16 %v399, %v398
          %v431 = vpack.c.b16 %v401, %v400
          %v432 = vpack.c.b16 %v403, %v402
          %v433 = vpack.c.b16 %v405, %v404
          %v434 = vpack.c.b16 %v407, %v406
          %v436 = vshrl.u32 %v408, 16
          %v438 = vrot.slane %v436, 3
          %v439 = vshll.u32 %v408, 16
          %v441 = vrot.slane %v439, 4
          %v442 = vor.u32 %v438, %v441
          %v444 = vshrl.u32 %v409, 16
          %v446 = vrot.slane %v444, 3
          %v447 = vshll.u32 %v409, 16
          %v449 = vrot.slane %v447, 4
          %v450 = vor.u32 %v446, %v449
          %v451 = vsel %vm241, %v442, %v450
          %v453 = vshrl.u32 %v410, 16
          %v455 = vrot.slane %v453, 3
          %v456 = vshll.u32 %v410, 16
          %v458 = vrot.slane %v456, 4
          %v459 = vor.u32 %v455, %v458
          %v460 = vsel %vm241, %v450, %v459
          %v462 = vshrl.u32 %v411, 16
          %v464 = vrot.slane %v462, 3
          %v465 = vshll.u32 %v411, 16
          %v467 = vrot.slane %v465, 4
          %v468 = vor.u32 %v464, %v467
          %v469 = vsel %vm241, %v459, %v468
          %v471 = vshrl.u32 %v412, 16
          %v473 = vrot.slane %v471, 3
          %v474 = vshll.u32 %v412, 16
          %v476 = vrot.slane %v474, 4
          %v477 = vor.u32 %v473, %v476
          %v478 = vsel %vm241, %v468, %v477
          %v480 = vshrl.u32 %v413, 16
          %v482 = vrot.slane %v480, 3
          %v483 = vshll.u32 %v413, 16
          %v485 = vrot.slane %v483, 4
          %v486 = vor.u32 %v482, %v485
          %v487 = vsel %vm241, %v477, %v486
          %v489 = vshrl.u32 %v414, 16
          %v491 = vrot.slane %v489, 3
          %v492 = vshll.u32 %v414, 16
          %v494 = vrot.slane %v492, 4
          %v495 = vor.u32 %v491, %v494
          %v496 = vsel %vm241, %v486, %v495
          %v498 = vshrl.u32 %v415, 16
          %v500 = vrot.slane %v498, 3
          %v501 = vshll.u32 %v415, 16
          %v503 = vrot.slane %v501, 4
          %v504 = vor.u32 %v500, %v503
          %v505 = vsel %vm241, %v495, %v504
          %v507 = vshrl.u32 %v416, 16
          %v509 = vrot.slane %v507, 3
          %v510 = vshll.u32 %v416, 16
          %v512 = vrot.slane %v510, 4
          %v513 = vor.u32 %v509, %v512
          %v514 = vsel %vm241, %v504, %v513
          %v516 = vshrl.u32 %v417, 16
          %v518 = vrot.slane %v516, 3
          %v519 = vshll.u32 %v417, 16
          %v521 = vrot.slane %v519, 4
          %v522 = vor.u32 %v518, %v521
          %v523 = vsel %vm241, %v513, %v522
          %v525 = vshrl.u32 %v418, 16
          %v527 = vrot.slane %v525, 3
          %v528 = vshll.u32 %v418, 16
          %v530 = vrot.slane %v528, 4
          %v531 = vor.u32 %v527, %v530
          %v532 = vsel %vm241, %v522, %v531
          %v534 = vshrl.u32 %v419, 16
          %v536 = vrot.slane %v534, 3
          %v537 = vshll.u32 %v419, 16
          %v539 = vrot.slane %v537, 4
          %v540 = vor.u32 %v536, %v539
          %v541 = vsel %vm241, %v531, %v540
          %v543 = vshrl.u32 %v420, 16
          %v545 = vrot.slane %v543, 3
          %v546 = vshll.u32 %v420, 16
          %v548 = vrot.slane %v546, 4
          %v549 = vor.u32 %v545, %v548
          %v550 = vsel %vm241, %v540, %v549
          %v552 = vshrl.u32 %v421, 16
          %v554 = vrot.slane %v552, 3
          %v555 = vshll.u32 %v421, 16
          %v557 = vrot.slane %v555, 4
          %v558 = vor.u32 %v554, %v557
          %v559 = vsel %vm241, %v549, %v558
          %v561 = vshrl.u32 %v422, 16
          %v563 = vrot.slane %v561, 3
          %v564 = vshll.u32 %v422, 16
          %v566 = vrot.slane %v564, 4
          %v567 = vor.u32 %v563, %v566
          %v568 = vsel %vm241, %v558, %v567
          %v570 = vshrl.u32 %v423, 16
          %v572 = vrot.slane %v570, 3
          %v573 = vshll.u32 %v423, 16
          %v575 = vrot.slane %v573, 4
          %v576 = vor.u32 %v572, %v575
          %v577 = vsel %vm241, %v567, %v576
          %v579 = vshrl.u32 %v424, 16
          %v581 = vrot.slane %v579, 3
          %v582 = vshll.u32 %v424, 16
          %v584 = vrot.slane %v582, 4
          %v585 = vor.u32 %v581, %v584
          %v586 = vsel %vm241, %v576, %v585
          %v588 = vshrl.u32 %v425, 16
          %v590 = vrot.slane %v588, 3
          %v591 = vshll.u32 %v425, 16
          %v593 = vrot.slane %v591, 4
          %v594 = vor.u32 %v590, %v593
          %v595 = vsel %vm241, %v585, %v594
          %v597 = vshrl.u32 %v426, 16
          %v599 = vrot.slane %v597, 3
          %v600 = vshll.u32 %v426, 16
          %v602 = vrot.slane %v600, 4
          %v603 = vor.u32 %v599, %v602
          %v604 = vsel %vm241, %v594, %v603
          %v606 = vshrl.u32 %v427, 16
          %v608 = vrot.slane %v606, 3
          %v609 = vshll.u32 %v427, 16
          %v611 = vrot.slane %v609, 4
          %v612 = vor.u32 %v608, %v611
          %v613 = vsel %vm241, %v603, %v612
          %v615 = vshrl.u32 %v428, 16
          %v617 = vrot.slane %v615, 3
          %v618 = vshll.u32 %v428, 16
          %v620 = vrot.slane %v618, 4
          %v621 = vor.u32 %v617, %v620
          %v622 = vsel %vm241, %v612, %v621
          %v624 = vshrl.u32 %v429, 16
          %v626 = vrot.slane %v624, 3
          %v627 = vshll.u32 %v429, 16
          %v629 = vrot.slane %v627, 4
          %v630 = vor.u32 %v626, %v629
          %v631 = vsel %vm241, %v621, %v630
          %v633 = vshrl.u32 %v430, 16
          %v635 = vrot.slane %v633, 3
          %v636 = vshll.u32 %v430, 16
          %v638 = vrot.slane %v636, 4
          %v639 = vor.u32 %v635, %v638
          %v640 = vsel %vm241, %v630, %v639
          %v642 = vshrl.u32 %v431, 16
          %v644 = vrot.slane %v642, 3
          %v645 = vshll.u32 %v431, 16
          %v647 = vrot.slane %v645, 4
          %v648 = vor.u32 %v644, %v647
          %v649 = vsel %vm241, %v639, %v648
          %v651 = vshrl.u32 %v432, 16
          %v653 = vrot.slane %v651, 3
          %v654 = vshll.u32 %v432, 16
          %v656 = vrot.slane %v654, 4
          %v657 = vor.u32 %v653, %v656
          %v658 = vsel %vm241, %v648, %v657
          %v660 = vshrl.u32 %v433, 16
          %v662 = vrot.slane %v660, 3
          %v663 = vshll.u32 %v433, 16
          %v665 = vrot.slane %v663, 4
          %v666 = vor.u32 %v662, %v665
          %v667 = vsel %vm241, %v657, %v666
          %v669 = vshrl.u32 %v434, 16
          %v671 = vrot.slane %v669, 3
          %v672 = vshll.u32 %v434, 16
          %v674 = vrot.slane %v672, 4
          %v675 = vor.u32 %v671, %v674
          %v676 = vsel %vm241, %v666, %v675
          %vm705 = vcmask 1047556
          %vm706 = vsmask.f32 7954
          %vm707 = vmand %vm705, %vm706
          %v708 = vld [vmem:[#allocation2 + $0x8] sm:$0xf0]
          %v709 = vsel %vm707, %v442, %v708
          %710 = vst [vmem:[#allocation2 + $0x8] sm:$0xf0] %v709
          %711 = vst [vmem:[#allocation2 + $0x10] sm:$0xff] %v451
          %712 = vst [vmem:[#allocation2 + $0x18] sm:$0xff] %v460
          %713 = vst [vmem:[#allocation2 + $0x20] sm:$0xff] %v469
          %714 = vst [vmem:[#allocation2 + $0x28] sm:$0xff] %v478
          %715 = vst [vmem:[#allocation2 + $0x30] sm:$0xff] %v487
          %716 = vst [vmem:[#allocation2 + $0x38] sm:$0xff] %v496
          %717 = vst [vmem:[#allocation2 + $0x40] sm:$0xff] %v505
          %718 = vst [vmem:[#allocation2 + $0x48] sm:$0xff] %v514
          %719 = vst [vmem:[#allocation2 + $0x50] sm:$0xff] %v523
          %720 = vst [vmem:[#allocation2 + $0x58] sm:$0xff] %v532
          %721 = vst [vmem:[#allocation2 + $0x60] sm:$0xff] %v541
          %722 = vst [vmem:[#allocation2 + $0x68] sm:$0xff] %v550
          %723 = vst [vmem:[#allocation2 + $0x70] sm:$0xff] %v559
          %724 = vst [vmem:[#allocation2 + $0x78] sm:$0xff] %v568
          %725 = vst [vmem:[#allocation2 + $0x80] sm:$0xff] %v577
          %726 = vst [vmem:[#allocation2 + $0x88] sm:$0xff] %v586
          %727 = vst [vmem:[#allocation2 + $0x90] sm:$0xff] %v595
          %728 = vst [vmem:[#allocation2 + $0x98] sm:$0xff] %v604
          %729 = vst [vmem:[#allocation2 + $0xa0] sm:$0xff] %v613
          %730 = vst [vmem:[#allocation2 + $0xa8] sm:$0xff] %v622
          %731 = vst [vmem:[#allocation2 + $0xb0] sm:$0xff] %v631
          %732 = vst [vmem:[#allocation2 + $0xb8] sm:$0xff] %v640
          %733 = vst [vmem:[#allocation2 + $0xc0] sm:$0xff] %v649
          %734 = vst [vmem:[#allocation2 + $0xc8] sm:$0xff] %v658
          %735 = vst [vmem:[#allocation2 + $0xd0] sm:$0xff] %v667
          %736 = vst [vmem:[#allocation2 + $0xd8] sm:$0xff] %v676
          %v737 = vld [vmem:[#allocation2 + $0xe0] sm:$0x1f]
          %v738 = vsel %vm242, %v675, %v737
          %739 = vst [vmem:[#allocation2 + $0xe0] sm:$0x1f] %v738
          %v740 = vld [vmem:[#allocation2 + $0xe0] sm:$0xf0]
          %v741 = vsel %vm707, 0, %v740
          %742 = vst [vmem:[#allocation2 + $0xe0] sm:$0xf0] %v741
          %743 = vst [vmem:[#allocation2 + $0xe8] sm:$0xff] 0
          %744 = vst [vmem:[#allocation2 + $0xf0] sm:$0xff] 0
        $region44: #{cnn_n_layer_forward.1} parent=39 // pred_fallthru
          _
        %v745 = vld [vmem:[#allocation2] sm:$0xff]
        %v746 = vld [vmem:[#allocation2 + $0x8] sm:$0xff]
        %v747 = vld [vmem:[#allocation2 + $0x10] sm:$0xff]
        %v748 = vld [vmem:[#allocation2 + $0x18] sm:$0xff]
        %v749 = vld [vmem:[#allocation2 + $0x20] sm:$0xff]
        %v750 = vld [vmem:[#allocation2 + $0x28] sm:$0xff]
        %v751 = vld [vmem:[#allocation2 + $0x30] sm:$0xff]
        %v752 = vld [vmem:[#allocation2 + $0x38] sm:$0xff]
        %v753 = vld [vmem:[#allocation2 + $0x40] sm:$0xff]
        %v754 = vld [vmem:[#allocation2 + $0x48] sm:$0xff]
        %v755 = vld [vmem:[#allocation2 + $0x50] sm:$0xff]
        %v756 = vld [vmem:[#allocation2 + $0x58] sm:$0xff]
        %v757 = vld [vmem:[#allocation2 + $0x60] sm:$0xff]
        %v758 = vld [vmem:[#allocation2 + $0x68] sm:$0xff]
        %v759 = vld [vmem:[#allocation2 + $0x70] sm:$0xff]
        %v760 = vld [vmem:[#allocation2 + $0x78] sm:$0xff]
        %v761 = vld [vmem:[#allocation2 + $0x80] sm:$0xff]
        %v762 = vld [vmem:[#allocation2 + $0x88] sm:$0xff]
        %v763 = vld [vmem:[#allocation2 + $0x90] sm:$0xff]
        %v764 = vld [vmem:[#allocation2 + $0x98] sm:$0xff]
        %v765 = vld [vmem:[#allocation2 + $0xa0] sm:$0xff]
        %v766 = vld [vmem:[#allocation2 + $0xa8] sm:$0xff]
        %v767 = vld [vmem:[#allocation2 + $0xb0] sm:$0xff]
        %v768 = vld [vmem:[#allocation2 + $0xb8] sm:$0xff]
        %v769 = vld [vmem:[#allocation2 + $0xc0] sm:$0xff]
        %v770 = vld [vmem:[#allocation2 + $0xc8] sm:$0xff]
        %v771 = vld [vmem:[#allocation2 + $0xd0] sm:$0xff]
        %s772 = smul.u32 %s24, 9
        %s773 = smul.u32 %s772, 16
        %s774 = smul.addr %s773, 4
        %s775 = scalar_lea.vmem %s1, %s774
        %v776 = vld [vmem:[%s775] sm:$0xf]
        %v777 = vld [vmem:[%s775 + $0x4] sm:$0xf]
        %v778 = vld [vmem:[%s775 + $0x8] sm:$0xf]
        %v779 = vld [vmem:[%s775 + $0xc] sm:$0xf]
        %v780 = vld [vmem:[%s775 + $0x10] sm:$0xf]
        %v781 = vld [vmem:[%s775 + $0x14] sm:$0xf]
        %v782 = vld [vmem:[%s775 + $0x18] sm:$0xf]
        %v783 = vld [vmem:[%s775 + $0x1c] sm:$0xf]
        %v784 = vld [vmem:[%s775 + $0x20] sm:$0xf]
        %v785 = vld [vmem:[%s775 + $0x24] sm:$0xf]
        %v786 = vld [vmem:[%s775 + $0x28] sm:$0xf]
        %v787 = vld [vmem:[%s775 + $0x2c] sm:$0xf]
        %v788 = vld [vmem:[%s775 + $0x30] sm:$0xf]
        %v789 = vld [vmem:[%s775 + $0x34] sm:$0xf]
        %v790 = vld [vmem:[%s775 + $0x38] sm:$0xf]
        %v791 = vld [vmem:[%s775 + $0x3c] sm:$0xf]
        %v808 = vunpack.c.l.b16 %v776
        %v809 = vunpack.c.l.b16 %v777
        %v810 = vunpack.c.l.b16 %v778
        %v811 = vunpack.c.l.b16 %v779
        %v812 = vunpack.c.l.b16 %v780
        %v813 = vunpack.c.l.b16 %v781
        %v814 = vunpack.c.l.b16 %v782
        %v815 = vunpack.c.l.b16 %v783
        %v816 = vunpack.c.l.b16 %v784
        %v817 = vunpack.c.l.b16 %v785
        %v818 = vunpack.c.l.b16 %v786
        %v819 = vunpack.c.l.b16 %v787
        %v820 = vunpack.c.l.b16 %v788
        %v821 = vunpack.c.l.b16 %v789
        %v822 = vunpack.c.l.b16 %v790
        %v823 = vunpack.c.l.b16 %v791
        %v824 = vpack.c.b16 %v809, %v808
        %v825 = vpack.c.b16 %v811, %v810
        %v826 = vpack.c.b16 %v813, %v812
        %v827 = vpack.c.b16 %v815, %v814
        %v828 = vpack.c.b16 %v817, %v816
        %v829 = vpack.c.b16 %v819, %v818
        %v830 = vpack.c.b16 %v821, %v820
        %v831 = vpack.c.b16 %v823, %v822
        %840 = vmatprep.subr.bf16.mxu0 0
        %841 = vmatpush1.bf16.msra.mxu0 %v824
        %842 = vmatprep.subr.bf16.mxu0 0
        %843 = vmatpush1.bf16.msra.mxu0 %v825
        %844 = vmatprep.subr.bf16.mxu0 0
        %845 = vmatpush1.bf16.msra.mxu0 %v826
        %846 = vmatprep.subr.bf16.mxu0 0
        %847 = vmatpush1.bf16.msra.mxu0 %v827
        %848 = vmatprep.subr.bf16.mxu0 0
        %849 = vmatpush1.bf16.msra.mxu0 %v828
        %850 = vmatprep.subr.bf16.mxu0 0
        %851 = vmatpush1.bf16.msra.mxu0 %v829
        %852 = vmatprep.subr.bf16.mxu0 0
        %853 = vmatpush1.bf16.msra.mxu0 %v830
        %854 = vmatprep.subr.bf16.mxu0 0
        %855 = vmatpush1.bf16.msra.mxu0 %v831
        %856 = vmatprep.subr.bf16.mxu0 0
        %857 = vmatpush1.bf16.msra.mxu0 0
        %858 = vmatprep.subr.bf16.mxu0 0
        %859 = vmatpush1.bf16.msra.mxu0 0
        %860 = vmatprep.subr.bf16.mxu0 0
        %861 = vmatpush1.bf16.msra.mxu0 0
        %862 = vmatprep.subr.bf16.mxu0 0
        %863 = vmatpush1.bf16.msra.mxu0 0
        %864 = vmatprep.subr.bf16.mxu0 0
        %865 = vmatpush1.bf16.msra.mxu0 0
        %866 = vmatprep.subr.bf16.mxu0 0
        %867 = vmatpush1.bf16.msra.mxu0 0
        %868 = vmatprep.subr.bf16.mxu0 0
        %869 = vmatpush1.bf16.msra.mxu0 0
        %870 = vmatprep.subr.bf16.mxu0 0
        %871 = vmatpush1.bf16.msra.mxu0 0
        %872 = vmatprep.mubr.bf16.mxu0 0
        %873 = vmatmul.mubr.bf16.gmra.mrb[0].mxu0 %v745
        %v874 = vpop.f32.mrb[0].mxu0
        %v875 = vadd.f32 0.0, %v874
        %v876 = vpop.f32.mrb[0].mxu0
        %v877 = vpop.f32.mrb[0].mxu0
        %v878 = vadd.f32 0.0, %v877
        %v879 = vpop.f32.mrb[0].mxu0
        %880 = vmatprep.mubr.bf16.mxu0 0
        %881 = vmatmul.mubr.bf16.gmra.mrb[0].mxu0 %v746
        %v882 = vpop.f32.mrb[0].mxu0
        %v883 = vadd.f32 0.0, %v882
        %v884 = vpop.f32.mrb[0].mxu0
        %v885 = vpop.f32.mrb[0].mxu0
        %v886 = vadd.f32 0.0, %v885
        %v887 = vpop.f32.mrb[0].mxu0
        %888 = vmatprep.mubr.bf16.mxu0 0
        %889 = vmatmul.mubr.bf16.gmra.mrb[0].mxu0 %v747
        %v890 = vpop.f32.mrb[0].mxu0
        %v891 = vadd.f32 0.0, %v890
        %v892 = vpop.f32.mrb[0].mxu0
        %v893 = vpop.f32.mrb[0].mxu0
        %v894 = vadd.f32 0.0, %v893
        %v895 = vpop.f32.mrb[0].mxu0
        %896 = vmatprep.mubr.bf16.mxu0 0
        %897 = vmatmul.mubr.bf16.gmra.mrb[0].mxu0 %v748
        %v898 = vpop.f32.mrb[0].mxu0
        %v899 = vadd.f32 0.0, %v898
        %v900 = vpop.f32.mrb[0].mxu0
        %v901 = vpop.f32.mrb[0].mxu0
        %v902 = vadd.f32 0.0, %v901
        %v903 = vpop.f32.mrb[0].mxu0
        %904 = vmatprep.mubr.bf16.mxu0 0
        %905 = vmatmul.mubr.bf16.gmra.mrb[0].mxu0 %v749
        %v906 = vpop.f32.mrb[0].mxu0
        %v907 = vadd.f32 0.0, %v906
        %v908 = vpop.f32.mrb[0].mxu0
        %v909 = vpop.f32.mrb[0].mxu0
        %v910 = vadd.f32 0.0, %v909
        %v911 = vpop.f32.mrb[0].mxu0
        %912 = vmatprep.mubr.bf16.mxu0 0
        %913 = vmatmul.mubr.bf16.gmra.mrb[0].mxu0 %v750
        %v914 = vpop.f32.mrb[0].mxu0
        %v915 = vadd.f32 0.0, %v914
        %v916 = vpop.f32.mrb[0].mxu0
        %v917 = vpop.f32.mrb[0].mxu0
        %v918 = vadd.f32 0.0, %v917
        %v919 = vpop.f32.mrb[0].mxu0
        %920 = vmatprep.mubr.bf16.mxu0 0
        %921 = vmatmul.mubr.bf16.gmra.mrb[0].mxu0 %v751
        %v922 = vpop.f32.mrb[0].mxu0
        %v923 = vadd.f32 0.0, %v922
        %v924 = vpop.f32.mrb[0].mxu0
        %v925 = vpop.f32.mrb[0].mxu0
        %v926 = vadd.f32 0.0, %v925
        %v927 = vpop.f32.mrb[0].mxu0
        %928 = vmatprep.mubr.bf16.mxu0 0
        %929 = vmatmul.mubr.bf16.gmra.mrb[0].mxu0 %v752
        %v930 = vpop.f32.mrb[0].mxu0
        %v931 = vadd.f32 0.0, %v930
        %v932 = vpop.f32.mrb[0].mxu0
        %v933 = vpop.f32.mrb[0].mxu0
        %v934 = vadd.f32 0.0, %v933
        %v935 = vpop.f32.mrb[0].mxu0
        %936 = vmatprep.mubr.bf16.mxu0 0
        %937 = vmatmul.mubr.bf16.gmra.mrb[0].mxu0 %v753
        %v938 = vpop.f32.mrb[0].mxu0
        %v939 = vadd.f32 0.0, %v938
        %v940 = vpop.f32.mrb[0].mxu0
        %v941 = vpop.f32.mrb[0].mxu0
        %v942 = vadd.f32 0.0, %v941
        %v943 = vpop.f32.mrb[0].mxu0
        %944 = vmatprep.mubr.bf16.mxu0 0
        %945 = vmatmul.mubr.bf16.gmra.mrb[0].mxu0 %v754
        %v946 = vpop.f32.mrb[0].mxu0
        %v947 = vadd.f32 0.0, %v946
        %v948 = vpop.f32.mrb[0].mxu0
        %v949 = vpop.f32.mrb[0].mxu0
        %v950 = vadd.f32 0.0, %v949
        %v951 = vpop.f32.mrb[0].mxu0
        %952 = vmatprep.mubr.bf16.mxu0 0
        %953 = vmatmul.mubr.bf16.gmra.mrb[0].mxu0 %v755
        %v954 = vpop.f32.mrb[0].mxu0
        %v955 = vadd.f32 0.0, %v954
        %v956 = vpop.f32.mrb[0].mxu0
        %v957 = vpop.f32.mrb[0].mxu0
        %v958 = vadd.f32 0.0, %v957
        %v959 = vpop.f32.mrb[0].mxu0
        %960 = vmatprep.mubr.bf16.mxu0 0
        %961 = vmatmul.mubr.bf16.gmra.mrb[0].mxu0 %v756
        %v962 = vpop.f32.mrb[0].mxu0
        %v963 = vadd.f32 0.0, %v962
        %v964 = vpop.f32.mrb[0].mxu0
        %v965 = vpop.f32.mrb[0].mxu0
        %v966 = vadd.f32 0.0, %v965
        %v967 = vpop.f32.mrb[0].mxu0
        %968 = vmatprep.mubr.bf16.mxu0 0
        %969 = vmatmul.mubr.bf16.gmra.mrb[0].mxu0 %v757
        %v970 = vpop.f32.mrb[0].mxu0
        %v971 = vadd.f32 0.0, %v970
        %v972 = vpop.f32.mrb[0].mxu0
        %v973 = vpop.f32.mrb[0].mxu0
        %v974 = vadd.f32 0.0, %v973
        %v975 = vpop.f32.mrb[0].mxu0
        %976 = vmatprep.mubr.bf16.mxu0 0
        %977 = vmatmul.mubr.bf16.gmra.mrb[0].mxu0 %v758
        %v978 = vpop.f32.mrb[0].mxu0
        %v979 = vadd.f32 0.0, %v978
        %v980 = vpop.f32.mrb[0].mxu0
        %v981 = vpop.f32.mrb[0].mxu0
        %v982 = vadd.f32 0.0, %v981
        %v983 = vpop.f32.mrb[0].mxu0
        %984 = vmatprep.mubr.bf16.mxu0 0
        %985 = vmatmul.mubr.bf16.gmra.mrb[0].mxu0 %v759
        %v986 = vpop.f32.mrb[0].mxu0
        %v987 = vadd.f32 0.0, %v986
        %v988 = vpop.f32.mrb[0].mxu0
        %v989 = vpop.f32.mrb[0].mxu0
        %v990 = vadd.f32 0.0, %v989
        %v991 = vpop.f32.mrb[0].mxu0
        %992 = vmatprep.mubr.bf16.mxu0 0
        %993 = vmatmul.mubr.bf16.gmra.mrb[0].mxu0 %v760
        %v994 = vpop.f32.mrb[0].mxu0
        %v995 = vadd.f32 0.0, %v994
        %v996 = vpop.f32.mrb[0].mxu0
        %v997 = vpop.f32.mrb[0].mxu0
        %v998 = vadd.f32 0.0, %v997
        %v999 = vpop.f32.mrb[0].mxu0
        %1000 = vmatprep.mubr.bf16.mxu0 0
        %1001 = vmatmul.mubr.bf16.gmra.mrb[0].mxu0 %v761
        %v1002 = vpop.f32.mrb[0].mxu0
        %v1003 = vadd.f32 0.0, %v1002
        %v1004 = vpop.f32.mrb[0].mxu0
        %v1005 = vpop.f32.mrb[0].mxu0
        %v1006 = vadd.f32 0.0, %v1005
        %v1007 = vpop.f32.mrb[0].mxu0
        %1008 = vmatprep.mubr.bf16.mxu0 0
        %1009 = vmatmul.mubr.bf16.gmra.mrb[0].mxu0 %v762
        %v1010 = vpop.f32.mrb[0].mxu0
        %v1011 = vadd.f32 0.0, %v1010
        %v1012 = vpop.f32.mrb[0].mxu0
        %v1013 = vpop.f32.mrb[0].mxu0
        %v1014 = vadd.f32 0.0, %v1013
        %v1015 = vpop.f32.mrb[0].mxu0
        %1016 = vmatprep.mubr.bf16.mxu0 0
        %1017 = vmatmul.mubr.bf16.gmra.mrb[0].mxu0 %v763
        %v1018 = vpop.f32.mrb[0].mxu0
        %v1019 = vadd.f32 0.0, %v1018
        %v1020 = vpop.f32.mrb[0].mxu0
        %v1021 = vpop.f32.mrb[0].mxu0
        %v1022 = vadd.f32 0.0, %v1021
        %v1023 = vpop.f32.mrb[0].mxu0
        %1024 = vmatprep.mubr.bf16.mxu0 0
        %1025 = vmatmul.mubr.bf16.gmra.mrb[0].mxu0 %v764
        %v1026 = vpop.f32.mrb[0].mxu0
        %v1027 = vadd.f32 0.0, %v1026
        %v1028 = vpop.f32.mrb[0].mxu0
        %v1029 = vpop.f32.mrb[0].mxu0
        %v1030 = vadd.f32 0.0, %v1029
        %v1031 = vpop.f32.mrb[0].mxu0
        %1032 = vmatprep.mubr.bf16.mxu0 0
        %1033 = vmatmul.mubr.bf16.gmra.mrb[0].mxu0 %v765
        %v1034 = vpop.f32.mrb[0].mxu0
        %v1035 = vadd.f32 0.0, %v1034
        %v1036 = vpop.f32.mrb[0].mxu0
        %v1037 = vpop.f32.mrb[0].mxu0
        %v1038 = vadd.f32 0.0, %v1037
        %v1039 = vpop.f32.mrb[0].mxu0
        %1040 = vmatprep.mubr.bf16.mxu0 0
        %1041 = vmatmul.mubr.bf16.gmra.mrb[0].mxu0 %v766
        %v1042 = vpop.f32.mrb[0].mxu0
        %v1043 = vadd.f32 0.0, %v1042
        %v1044 = vpop.f32.mrb[0].mxu0
        %v1045 = vpop.f32.mrb[0].mxu0
        %v1046 = vadd.f32 0.0, %v1045
        %v1047 = vpop.f32.mrb[0].mxu0
        %1048 = vmatprep.mubr.bf16.mxu0 0
        %1049 = vmatmul.mubr.bf16.gmra.mrb[0].mxu0 %v767
        %v1050 = vpop.f32.mrb[0].mxu0
        %v1051 = vadd.f32 0.0, %v1050
        %v1052 = vpop.f32.mrb[0].mxu0
        %v1053 = vpop.f32.mrb[0].mxu0
        %v1054 = vadd.f32 0.0, %v1053
        %v1055 = vpop.f32.mrb[0].mxu0
        %1056 = vmatprep.mubr.bf16.mxu0 0
        %1057 = vmatmul.mubr.bf16.gmra.mrb[0].mxu0 %v768
        %v1058 = vpop.f32.mrb[0].mxu0
        %v1059 = vadd.f32 0.0, %v1058
        %v1060 = vpop.f32.mrb[0].mxu0
        %v1061 = vpop.f32.mrb[0].mxu0
        %v1062 = vadd.f32 0.0, %v1061
        %v1063 = vpop.f32.mrb[0].mxu0
        %1064 = vmatprep.mubr.bf16.mxu0 0
        %1065 = vmatmul.mubr.bf16.gmra.mrb[0].mxu0 %v769
        %v1066 = vpop.f32.mrb[0].mxu0
        %v1067 = vadd.f32 0.0, %v1066
        %v1068 = vpop.f32.mrb[0].mxu0
        %v1069 = vpop.f32.mrb[0].mxu0
        %v1070 = vadd.f32 0.0, %v1069
        %v1071 = vpop.f32.mrb[0].mxu0
        %1072 = vmatprep.mubr.bf16.mxu0 0
        %1073 = vmatmul.mubr.bf16.gmra.mrb[0].mxu0 %v770
        %v1074 = vpop.f32.mrb[0].mxu0
        %v1075 = vadd.f32 0.0, %v1074
        %v1076 = vpop.f32.mrb[0].mxu0
        %v1077 = vpop.f32.mrb[0].mxu0
        %v1078 = vadd.f32 0.0, %v1077
        %v1079 = vpop.f32.mrb[0].mxu0
        %1080 = vmatprep.mubr.bf16.mxu0 0
        %1081 = vmatmul.mubr.bf16.gmra.mrb[0].mxu0 %v771
        %v1082 = vpop.f32.mrb[0].mxu0
        %v1083 = vadd.f32 0.0, %v1082
        %v1084 = vpop.f32.mrb[0].mxu0
        %v1085 = vpop.f32.mrb[0].mxu0
        %v1086 = vadd.f32 0.0, %v1085
        %v1087 = vpop.f32.mrb[0].mxu0
        %1088 = vdwg.mxu0
        %1089 = vst [vmem:[#allocation3] sm:$0xff] %v875
        %1090 = vst [vmem:[#allocation3 + $0x8] sm:$0xff] %v878
        %1091 = vst [vmem:[#allocation3 + $0x10] sm:$0xff] %v883
        %1092 = vst [vmem:[#allocation3 + $0x18] sm:$0xff] %v886
        %1093 = vst [vmem:[#allocation3 + $0x20] sm:$0xff] %v891
        %1094 = vst [vmem:[#allocation3 + $0x28] sm:$0xff] %v894
        %1095 = vst [vmem:[#allocation3 + $0x30] sm:$0xff] %v899
        %1096 = vst [vmem:[#allocation3 + $0x38] sm:$0xff] %v902
        %1097 = vst [vmem:[#allocation3 + $0x40] sm:$0xff] %v907
        %1098 = vst [vmem:[#allocation3 + $0x48] sm:$0xff] %v910
        %1099 = vst [vmem:[#allocation3 + $0x50] sm:$0xff] %v915
        %1100 = vst [vmem:[#allocation3 + $0x58] sm:$0xff] %v918
        %1101 = vst [vmem:[#allocation3 + $0x60] sm:$0xff] %v923
        %1102 = vst [vmem:[#allocation3 + $0x68] sm:$0xff] %v926
        %1103 = vst [vmem:[#allocation3 + $0x70] sm:$0xff] %v931
        %1104 = vst [vmem:[#allocation3 + $0x78] sm:$0xff] %v934
        %1105 = vst [vmem:[#allocation3 + $0x80] sm:$0xff] %v939
        %1106 = vst [vmem:[#allocation3 + $0x88] sm:$0xff] %v942
        %1107 = vst [vmem:[#allocation3 + $0x90] sm:$0xff] %v947
        %1108 = vst [vmem:[#allocation3 + $0x98] sm:$0xff] %v950
        %1109 = vst [vmem:[#allocation3 + $0xa0] sm:$0xff] %v955
        %1110 = vst [vmem:[#allocation3 + $0xa8] sm:$0xff] %v958
        %1111 = vst [vmem:[#allocation3 + $0xb0] sm:$0xff] %v963
        %1112 = vst [vmem:[#allocation3 + $0xb8] sm:$0xff] %v966
        %1113 = vst [vmem:[#allocation3 + $0xc0] sm:$0xff] %v971
        %1114 = vst [vmem:[#allocation3 + $0xc8] sm:$0xff] %v974
        %1115 = vst [vmem:[#allocation3 + $0xd0] sm:$0xff] %v979
        %1116 = vst [vmem:[#allocation3 + $0xd8] sm:$0xff] %v982
        %1117 = vst [vmem:[#allocation3 + $0xe0] sm:$0xff] %v987
        %1118 = vst [vmem:[#allocation3 + $0xe8] sm:$0xff] %v990
        %1119 = vst [vmem:[#allocation3 + $0xf0] sm:$0xff] %v995
        %1120 = vst [vmem:[#allocation3 + $0xf8] sm:$0xff] %v998
        %1121 = vst [vmem:[#allocation3 + $0x100] sm:$0xff] %v1003
        %1122 = vst [vmem:[#allocation3 + $0x108] sm:$0xff] %v1006
        %1123 = vst [vmem:[#allocation3 + $0x110] sm:$0xff] %v1011
        %1124 = vst [vmem:[#allocation3 + $0x118] sm:$0xff] %v1014
        %1125 = vst [vmem:[#allocation3 + $0x120] sm:$0xff] %v1019
        %1126 = vst [vmem:[#allocation3 + $0x128] sm:$0xff] %v1022
        %1127 = vst [vmem:[#allocation3 + $0x130] sm:$0xff] %v1027
        %1128 = vst [vmem:[#allocation3 + $0x138] sm:$0xff] %v1030
        %1129 = vst [vmem:[#allocation3 + $0x140] sm:$0xff] %v1035
        %1130 = vst [vmem:[#allocation3 + $0x148] sm:$0xff] %v1038
        %1131 = vst [vmem:[#allocation3 + $0x150] sm:$0xff] %v1043
        %1132 = vst [vmem:[#allocation3 + $0x158] sm:$0xff] %v1046
        %1133 = vst [vmem:[#allocation3 + $0x160] sm:$0xff] %v1051
        %1134 = vst [vmem:[#allocation3 + $0x168] sm:$0xff] %v1054
        %1135 = vst [vmem:[#allocation3 + $0x170] sm:$0xff] %v1059
        %1136 = vst [vmem:[#allocation3 + $0x178] sm:$0xff] %v1062
        %1137 = vst [vmem:[#allocation3 + $0x180] sm:$0xff] %v1067
        %1138 = vst [vmem:[#allocation3 + $0x188] sm:$0xff] %v1070
        %1139 = vst [vmem:[#allocation3 + $0x190] sm:$0xff] %v1075
        %1140 = vst [vmem:[#allocation3 + $0x198] sm:$0xff] %v1078
        %1141 = vst [vmem:[#allocation3 + $0x1a0] sm:$0xff] %v1083
        %1142 = vst [vmem:[#allocation3 + $0x1a8] sm:$0xff] %v1086
        %v1143 = vld [vmem:[#allocation2] sm:$0xff]
        %v1144 = vld [vmem:[#allocation2 + $0x8] sm:$0xff]
        %v1145 = vld [vmem:[#allocation2 + $0x10] sm:$0xff]
        %v1146 = vld [vmem:[#allocation2 + $0x18] sm:$0xff]
        %v1147 = vld [vmem:[#allocation2 + $0x20] sm:$0xff]
        %v1148 = vld [vmem:[#allocation2 + $0x28] sm:$0xff]
        %v1149 = vld [vmem:[#allocation2 + $0x30] sm:$0xff]
        %v1150 = vld [vmem:[#allocation2 + $0x38] sm:$0xff]
        %v1151 = vld [vmem:[#allocation2 + $0x40] sm:$0xff]
        %v1152 = vld [vmem:[#allocation2 + $0x48] sm:$0xff]
        %v1153 = vld [vmem:[#allocation2 + $0x50] sm:$0xff]
        %v1154 = vld [vmem:[#allocation2 + $0x58] sm:$0xff]
        %v1155 = vld [vmem:[#allocation2 + $0x60] sm:$0xff]
        %v1156 = vld [vmem:[#allocation2 + $0x68] sm:$0xff]
        %v1157 = vld [vmem:[#allocation2 + $0x70] sm:$0xff]
        %v1158 = vld [vmem:[#allocation2 + $0x78] sm:$0xff]
        %v1159 = vld [vmem:[#allocation2 + $0x80] sm:$0xff]
        %v1160 = vld [vmem:[#allocation2 + $0x88] sm:$0xff]
        %v1161 = vld [vmem:[#allocation2 + $0x90] sm:$0xff]
        %v1162 = vld [vmem:[#allocation2 + $0x98] sm:$0xff]
        %v1163 = vld [vmem:[#allocation2 + $0xa0] sm:$0xff]
        %v1164 = vld [vmem:[#allocation2 + $0xa8] sm:$0xff]
        %v1165 = vld [vmem:[#allocation2 + $0xb0] sm:$0xff]
        %v1166 = vld [vmem:[#allocation2 + $0xb8] sm:$0xff]
        %v1167 = vld [vmem:[#allocation2 + $0xc0] sm:$0xff]
        %v1168 = vld [vmem:[#allocation2 + $0xc8] sm:$0xff]
        %v1169 = vld [vmem:[#allocation2 + $0xd0] sm:$0xff]
        %v1170 = vld [vmem:[#allocation2 + $0xd8] sm:$0x1]
        %s1171 = sadd.s32 %s772, 1
        %s1172 = smul.u32 %s1171, 16
        %s1173 = smul.addr %s1172, 4
        %s1174 = scalar_lea.vmem %s1, %s1173
        %v1175 = vld [vmem:[%s1174] sm:$0xf]
        %v1176 = vld [vmem:[%s1174 + $0x4] sm:$0xf]
        %v1177 = vld [vmem:[%s1174 + $0x8] sm:$0xf]
        %v1178 = vld [vmem:[%s1174 + $0xc] sm:$0xf]
        %v1179 = vld [vmem:[%s1174 + $0x10] sm:$0xf]
        %v1180 = vld [vmem:[%s1174 + $0x14] sm:$0xf]
        %v1181 = vld [vmem:[%s1174 + $0x18] sm:$0xf]
        %v1182 = vld [vmem:[%s1174 + $0x1c] sm:$0xf]
        %v1183 = vld [vmem:[%s1174 + $0x20] sm:$0xf]
        %v1184 = vld [vmem:[%s1174 + $0x24] sm:$0xf]
        %v1185 = vld [vmem:[%s1174 + $0x28] sm:$0xf]
        %v1186 = vld [vmem:[%s1174 + $0x2c] sm:$0xf]
        %v1187 = vld [vmem:[%s1174 + $0x30] sm:$0xf]
        %v1188 = vld [vmem:[%s1174 + $0x34] sm:$0xf]
        %v1189 = vld [vmem:[%s1174 + $0x38] sm:$0xf]
        %v1190 = vld [vmem:[%s1174 + $0x3c] sm:$0xf]
        %vm1191 = vsmask.f32 7424
        %v1193 = vshrl.u32 %v1143, 16
        %v1195 = vshll.u32 %v1143, 16
        %v1197 = vrot.slane %v1195, 1
        %v1198 = vor.u32 %v1193, %v1197
        %v1200 = vshll.u32 %v1144, 16
        %v1202 = vrot.slane %v1200, 1
        %v1203 = vsel %vm1191, %v1198, %v1202
        %v1204 = vshrl.u32 %v1144, 16
        %v1206 = vor.u32 %v1204, %v1202
        %v1208 = vshll.u32 %v1145, 16
        %v1210 = vrot.slane %v1208, 1
        %v1211 = vsel %vm1191, %v1206, %v1210
        %v1212 = vshrl.u32 %v1145, 16
        %v1214 = vor.u32 %v1212, %v1210
        %v1216 = vshll.u32 %v1146, 16
        %v1218 = vrot.slane %v1216, 1
        %v1219 = vsel %vm1191, %v1214, %v1218
        %v1220 = vshrl.u32 %v1146, 16
        %v1222 = vor.u32 %v1220, %v1218
        %v1224 = vshll.u32 %v1147, 16
        %v1226 = vrot.slane %v1224, 1
        %v1227 = vsel %vm1191, %v1222, %v1226
        %v1228 = vshrl.u32 %v1147, 16
        %v1230 = vor.u32 %v1228, %v1226
        %v1232 = vshll.u32 %v1148, 16
        %v1234 = vrot.slane %v1232, 1
        %v1235 = vsel %vm1191, %v1230, %v1234
        %v1236 = vshrl.u32 %v1148, 16
        %v1238 = vor.u32 %v1236, %v1234
        %v1240 = vshll.u32 %v1149, 16
        %v1242 = vrot.slane %v1240, 1
        %v1243 = vsel %vm1191, %v1238, %v1242
        %v1244 = vshrl.u32 %v1149, 16
        %v1246 = vor.u32 %v1244, %v1242
        %v1248 = vshll.u32 %v1150, 16
        %v1250 = vrot.slane %v1248, 1
        %v1251 = vsel %vm1191, %v1246, %v1250
        %v1252 = vshrl.u32 %v1150, 16
        %v1254 = vor.u32 %v1252, %v1250
        %v1256 = vshll.u32 %v1151, 16
        %v1258 = vrot.slane %v1256, 1
        %v1259 = vsel %vm1191, %v1254, %v1258
        %v1260 = vshrl.u32 %v1151, 16
        %v1262 = vor.u32 %v1260, %v1258
        %v1264 = vshll.u32 %v1152, 16
        %v1266 = vrot.slane %v1264, 1
        %v1267 = vsel %vm1191, %v1262, %v1266
        %v1268 = vshrl.u32 %v1152, 16
        %v1270 = vor.u32 %v1268, %v1266
        %v1272 = vshll.u32 %v1153, 16
        %v1274 = vrot.slane %v1272, 1
        %v1275 = vsel %vm1191, %v1270, %v1274
        %v1276 = vshrl.u32 %v1153, 16
        %v1278 = vor.u32 %v1276, %v1274
        %v1280 = vshll.u32 %v1154, 16
        %v1282 = vrot.slane %v1280, 1
        %v1283 = vsel %vm1191, %v1278, %v1282
        %v1284 = vshrl.u32 %v1154, 16
        %v1286 = vor.u32 %v1284, %v1282
        %v1288 = vshll.u32 %v1155, 16
        %v1290 = vrot.slane %v1288, 1
        %v1291 = vsel %vm1191, %v1286, %v1290
        %v1292 = vshrl.u32 %v1155, 16
        %v1294 = vor.u32 %v1292, %v1290
        %v1296 = vshll.u32 %v1156, 16
        %v1298 = vrot.slane %v1296, 1
        %v1299 = vsel %vm1191, %v1294, %v1298
        %v1300 = vshrl.u32 %v1156, 16
        %v1302 = vor.u32 %v1300, %v1298
        %v1304 = vshll.u32 %v1157, 16
        %v1306 = vrot.slane %v1304, 1
        %v1307 = vsel %vm1191, %v1302, %v1306
        %v1308 = vshrl.u32 %v1157, 16
        %v1310 = vor.u32 %v1308, %v1306
        %v1312 = vshll.u32 %v1158, 16
        %v1314 = vrot.slane %v1312, 1
        %v1315 = vsel %vm1191, %v1310, %v1314
        %v1316 = vshrl.u32 %v1158, 16
        %v1318 = vor.u32 %v1316, %v1314
        %v1320 = vshll.u32 %v1159, 16
        %v1322 = vrot.slane %v1320, 1
        %v1323 = vsel %vm1191, %v1318, %v1322
        %v1324 = vshrl.u32 %v1159, 16
        %v1326 = vor.u32 %v1324, %v1322
        %v1328 = vshll.u32 %v1160, 16
        %v1330 = vrot.slane %v1328, 1
        %v1331 = vsel %vm1191, %v1326, %v1330
        %v1332 = vshrl.u32 %v1160, 16
        %v1334 = vor.u32 %v1332, %v1330
        %v1336 = vshll.u32 %v1161, 16
        %v1338 = vrot.slane %v1336, 1
        %v1339 = vsel %vm1191, %v1334, %v1338
        %v1340 = vshrl.u32 %v1161, 16
        %v1342 = vor.u32 %v1340, %v1338
        %v1344 = vshll.u32 %v1162, 16
        %v1346 = vrot.slane %v1344, 1
        %v1347 = vsel %vm1191, %v1342, %v1346
        %v1348 = vshrl.u32 %v1162, 16
        %v1350 = vor.u32 %v1348, %v1346
        %v1352 = vshll.u32 %v1163, 16
        %v1354 = vrot.slane %v1352, 1
        %v1355 = vsel %vm1191, %v1350, %v1354
        %v1356 = vshrl.u32 %v1163, 16
        %v1358 = vor.u32 %v1356, %v1354
        %v1360 = vshll.u32 %v1164, 16
        %v1362 = vrot.slane %v1360, 1
        %v1363 = vsel %vm1191, %v1358, %v1362
        %v1364 = vshrl.u32 %v1164, 16
        %v1366 = vor.u32 %v1364, %v1362
        %v1368 = vshll.u32 %v1165, 16
        %v1370 = vrot.slane %v1368, 1
        %v1371 = vsel %vm1191, %v1366, %v1370
        %v1372 = vshrl.u32 %v1165, 16
        %v1374 = vor.u32 %v1372, %v1370
        %v1376 = vshll.u32 %v1166, 16
        %v1378 = vrot.slane %v1376, 1
        %v1379 = vsel %vm1191, %v1374, %v1378
        %v1380 = vshrl.u32 %v1166, 16
        %v1382 = vor.u32 %v1380, %v1378
        %v1384 = vshll.u32 %v1167, 16
        %v1386 = vrot.slane %v1384, 1
        %v1387 = vsel %vm1191, %v1382, %v1386
        %v1388 = vshrl.u32 %v1167, 16
        %v1390 = vor.u32 %v1388, %v1386
        %v1392 = vshll.u32 %v1168, 16
        %v1394 = vrot.slane %v1392, 1
        %v1395 = vsel %vm1191, %v1390, %v1394
        %v1396 = vshrl.u32 %v1168, 16
        %v1398 = vor.u32 %v1396, %v1394
        %v1400 = vshll.u32 %v1169, 16
        %v1402 = vrot.slane %v1400, 1
        %v1403 = vsel %vm1191, %v1398, %v1402
        %v1404 = vshrl.u32 %v1169, 16
        %v1406 = vor.u32 %v1404, %v1402
        %v1408 = vshll.u32 %v1170, 16
        %v1410 = vrot.slane %v1408, 1
        %v1411 = vsel %vm1191, %v1406, %v1410
        %v1455 = vunpack.c.l.b16 %v1175
        %v1456 = vunpack.c.l.b16 %v1176
        %v1457 = vunpack.c.l.b16 %v1177
        %v1458 = vunpack.c.l.b16 %v1178
        %v1459 = vunpack.c.l.b16 %v1179
        %v1460 = vunpack.c.l.b16 %v1180
        %v1461 = vunpack.c.l.b16 %v1181
        %v1462 = vunpack.c.l.b16 %v1182
        %v1463 = vunpack.c.l.b16 %v1183
        %v1464 = vunpack.c.l.b16 %v1184
        %v1465 = vunpack.c.l.b16 %v1185
        %v1466 = vunpack.c.l.b16 %v1186
        %v1467 = vunpack.c.l.b16 %v1187
        %v1468 = vunpack.c.l.b16 %v1188
        %v1469 = vunpack.c.l.b16 %v1189
        %v1470 = vunpack.c.l.b16 %v1190
        %v1471 = vpack.c.b16 %v1456, %v1455
        %v1472 = vpack.c.b16 %v1458, %v1457
        %v1473 = vpack.c.b16 %v1460, %v1459
        %v1474 = vpack.c.b16 %v1462, %v1461
        %v1475 = vpack.c.b16 %v1464, %v1463
        %v1476 = vpack.c.b16 %v1466, %v1465
        %v1477 = vpack.c.b16 %v1468, %v1467
        %v1478 = vpack.c.b16 %v1470, %v1469
        %1487 = vmatprep.subr.bf16.mxu0 0
        %1488 = vmatpush1.bf16.msra.mxu0 %v1471
        %1489 = vmatprep.subr.bf16.mxu0 0
        %1490 = vmatpush1.bf16.msra.mxu0 %v1472
        %1491 = vmatprep.subr.bf16.mxu0 0
        %1492 = vmatpush1.bf16.msra.mxu0 %v1473
        %1493 = vmatprep.subr.bf16.mxu0 0
        %1494 = vmatpush1.bf16.msra.mxu0 %v1474
        %1495 = vmatprep.subr.bf16.mxu0 0
        %1496 = vmatpush1.bf16.msra.mxu0 %v1475
        %1497 = vmatprep.subr.bf16.mxu0 0
        %1498 = vmatpush1.bf16.msra.mxu0 %v1476
        %1499 = vmatprep.subr.bf16.mxu0 0
        %1500 = vmatpush1.bf16.msra.mxu0 %v1477
        %1501 = vmatprep.subr.bf16.mxu0 0
        %1502 = vmatpush1.bf16.msra.mxu0 %v1478
        %1503 = vmatprep.subr.bf16.mxu0 0
        %1504 = vmatpush1.bf16.msra.mxu0 0
        %1505 = vmatprep.subr.bf16.mxu0 0
        %1506 = vmatpush1.bf16.msra.mxu0 0
        %1507 = vmatprep.subr.bf16.mxu0 0
        %1508 = vmatpush1.bf16.msra.mxu0 0
        %1509 = vmatprep.subr.bf16.mxu0 0
        %1510 = vmatpush1.bf16.msra.mxu0 0
        %1511 = vmatprep.subr.bf16.mxu0 0
        %1512 = vmatpush1.bf16.msra.mxu0 0
        %1513 = vmatprep.subr.bf16.mxu0 0
        %1514 = vmatpush1.bf16.msra.mxu0 0
        %1515 = vmatprep.subr.bf16.mxu0 0
        %1516 = vmatpush1.bf16.msra.mxu0 0
        %1517 = vmatprep.subr.bf16.mxu0 0
        %1518 = vmatpush1.bf16.msra.mxu0 0
        %1519 = vmatprep.mubr.bf16.mxu0 0
        %1520 = vmatmul.mubr.bf16.gmra.mrb[0].mxu0 %v1203
        %v1521 = vpop.f32.mrb[0].mxu0
        %v1522 = vadd.f32 0.0, %v1521
        %v1523 = vpop.f32.mrb[0].mxu0
        %v1524 = vpop.f32.mrb[0].mxu0
        %v1525 = vadd.f32 0.0, %v1524
        %v1526 = vpop.f32.mrb[0].mxu0
        %1527 = vmatprep.mubr.bf16.mxu0 0
        %1528 = vmatmul.mubr.bf16.gmra.mrb[0].mxu0 %v1211
        %v1529 = vpop.f32.mrb[0].mxu0
        %v1530 = vadd.f32 0.0, %v1529
        %v1531 = vpop.f32.mrb[0].mxu0
        %v1532 = vpop.f32.mrb[0].mxu0
        %v1533 = vadd.f32 0.0, %v1532
        %v1534 = vpop.f32.mrb[0].mxu0
        %1535 = vmatprep.mubr.bf16.mxu0 0
        %1536 = vmatmul.mubr.bf16.gmra.mrb[0].mxu0 %v1219
        %v1537 = vpop.f32.mrb[0].mxu0
        %v1538 = vadd.f32 0.0, %v1537
        %v1539 = vpop.f32.mrb[0].mxu0
        %v1540 = vpop.f32.mrb[0].mxu0
        %v1541 = vadd.f32 0.0, %v1540
        %v1542 = vpop.f32.mrb[0].mxu0
        %1543 = vmatprep.mubr.bf16.mxu0 0
        %1544 = vmatmul.mubr.bf16.gmra.mrb[0].mxu0 %v1227
        %v1545 = vpop.f32.mrb[0].mxu0
        %v1546 = vadd.f32 0.0, %v1545
        %v1547 = vpop.f32.mrb[0].mxu0
        %v1548 = vpop.f32.mrb[0].mxu0
        %v1549 = vadd.f32 0.0, %v1548
        %v1550 = vpop.f32.mrb[0].mxu0
        %1551 = vmatprep.mubr.bf16.mxu0 0
        %1552 = vmatmul.mubr.bf16.gmra.mrb[0].mxu0 %v1235
        %v1553 = vpop.f32.mrb[0].mxu0
        %v1554 = vadd.f32 0.0, %v1553
        %v1555 = vpop.f32.mrb[0].mxu0
        %v1556 = vpop.f32.mrb[0].mxu0
        %v1557 = vadd.f32 0.0, %v1556
        %v1558 = vpop.f32.mrb[0].mxu0
        %1559 = vmatprep.mubr.bf16.mxu0 0
        %1560 = vmatmul.mubr.bf16.gmra.mrb[0].mxu0 %v1243
        %v1561 = vpop.f32.mrb[0].mxu0
        %v1562 = vadd.f32 0.0, %v1561
        %v1563 = vpop.f32.mrb[0].mxu0
        %v1564 = vpop.f32.mrb[0].mxu0
        %v1565 = vadd.f32 0.0, %v1564
        %v1566 = vpop.f32.mrb[0].mxu0
        %1567 = vmatprep.mubr.bf16.mxu0 0
        %1568 = vmatmul.mubr.bf16.gmra.mrb[0].mxu0 %v1251
        %v1569 = vpop.f32.mrb[0].mxu0
        %v1570 = vadd.f32 0.0, %v1569
        %v1571 = vpop.f32.mrb[0].mxu0
        %v1572 = vpop.f32.mrb[0].mxu0
        %v1573 = vadd.f32 0.0, %v1572
        %v1574 = vpop.f32.mrb[0].mxu0
        %1575 = vmatprep.mubr.bf16.mxu0 0
        %1576 = vmatmul.mubr.bf16.gmra.mrb[0].mxu0 %v1259
        %v1577 = vpop.f32.mrb[0].mxu0
        %v1578 = vadd.f32 0.0, %v1577
        %v1579 = vpop.f32.mrb[0].mxu0
        %v1580 = vpop.f32.mrb[0].mxu0
        %v1581 = vadd.f32 0.0, %v1580
        %v1582 = vpop.f32.mrb[0].mxu0
        %1583 = vmatprep.mubr.bf16.mxu0 0
        %1584 = vmatmul.mubr.bf16.gmra.mrb[0].mxu0 %v1267
        %v1585 = vpop.f32.mrb[0].mxu0
        %v1586 = vadd.f32 0.0, %v1585
        %v1587 = vpop.f32.mrb[0].mxu0
        %v1588 = vpop.f32.mrb[0].mxu0
        %v1589 = vadd.f32 0.0, %v1588
        %v1590 = vpop.f32.mrb[0].mxu0
        %1591 = vmatprep.mubr.bf16.mxu0 0
        %1592 = vmatmul.mubr.bf16.gmra.mrb[0].mxu0 %v1275
        %v1593 = vpop.f32.mrb[0].mxu0
        %v1594 = vadd.f32 0.0, %v1593
        %v1595 = vpop.f32.mrb[0].mxu0
        %v1596 = vpop.f32.mrb[0].mxu0
        %v1597 = vadd.f32 0.0, %v1596
        %v1598 = vpop.f32.mrb[0].mxu0
        %1599 = vmatprep.mubr.bf16.mxu0 0
        %1600 = vmatmul.mubr.bf16.gmra.mrb[0].mxu0 %v1283
        %v1601 = vpop.f32.mrb[0].mxu0
        %v1602 = vadd.f32 0.0, %v1601
        %v1603 = vpop.f32.mrb[0].mxu0
        %v1604 = vpop.f32.mrb[0].mxu0
        %v1605 = vadd.f32 0.0, %v1604
        %v1606 = vpop.f32.mrb[0].mxu0
        %1607 = vmatprep.mubr.bf16.mxu0 0
        %1608 = vmatmul.mubr.bf16.gmra.mrb[0].mxu0 %v1291
        %v1609 = vpop.f32.mrb[0].mxu0
        %v1610 = vadd.f32 0.0, %v1609
        %v1611 = vpop.f32.mrb[0].mxu0
        %v1612 = vpop.f32.mrb[0].mxu0
        %v1613 = vadd.f32 0.0, %v1612
        %v1614 = vpop.f32.mrb[0].mxu0
        %1615 = vmatprep.mubr.bf16.mxu0 0
        %1616 = vmatmul.mubr.bf16.gmra.mrb[0].mxu0 %v1299
        %v1617 = vpop.f32.mrb[0].mxu0
        %v1618 = vadd.f32 0.0, %v1617
        %v1619 = vpop.f32.mrb[0].mxu0
        %v1620 = vpop.f32.mrb[0].mxu0
        %v1621 = vadd.f32 0.0, %v1620
        %v1622 = vpop.f32.mrb[0].mxu0
        %1623 = vmatprep.mubr.bf16.mxu0 0
        %1624 = vmatmul.mubr.bf16.gmra.mrb[0].mxu0 %v1307
        %v1625 = vpop.f32.mrb[0].mxu0
        %v1626 = vadd.f32 0.0, %v1625
        %v1627 = vpop.f32.mrb[0].mxu0
        %v1628 = vpop.f32.mrb[0].mxu0
        %v1629 = vadd.f32 0.0, %v1628
        %v1630 = vpop.f32.mrb[0].mxu0
        %1631 = vmatprep.mubr.bf16.mxu0 0
        %1632 = vmatmul.mubr.bf16.gmra.mrb[0].mxu0 %v1315
        %v1633 = vpop.f32.mrb[0].mxu0
        %v1634 = vadd.f32 0.0, %v1633
        %v1635 = vpop.f32.mrb[0].mxu0
        %v1636 = vpop.f32.mrb[0].mxu0
        %v1637 = vadd.f32 0.0, %v1636
        %v1638 = vpop.f32.mrb[0].mxu0
        %1639 = vmatprep.mubr.bf16.mxu0 0
        %1640 = vmatmul.mubr.bf16.gmra.mrb[0].mxu0 %v1323
        %v1641 = vpop.f32.mrb[0].mxu0
        %v1642 = vadd.f32 0.0, %v1641
        %v1643 = vpop.f32.mrb[0].mxu0
        %v1644 = vpop.f32.mrb[0].mxu0
        %v1645 = vadd.f32 0.0, %v1644
        %v1646 = vpop.f32.mrb[0].mxu0
        %1647 = vmatprep.mubr.bf16.mxu0 0
        %1648 = vmatmul.mubr.bf16.gmra.mrb[0].mxu0 %v1331
        %v1649 = vpop.f32.mrb[0].mxu0
        %v1650 = vadd.f32 0.0, %v1649
        %v1651 = vpop.f32.mrb[0].mxu0
        %v1652 = vpop.f32.mrb[0].mxu0
        %v1653 = vadd.f32 0.0, %v1652
        %v1654 = vpop.f32.mrb[0].mxu0
        %1655 = vmatprep.mubr.bf16.mxu0 0
        %1656 = vmatmul.mubr.bf16.gmra.mrb[0].mxu0 %v1339
        %v1657 = vpop.f32.mrb[0].mxu0
        %v1658 = vadd.f32 0.0, %v1657
        %v1659 = vpop.f32.mrb[0].mxu0
        %v1660 = vpop.f32.mrb[0].mxu0
        %v1661 = vadd.f32 0.0, %v1660
        %v1662 = vpop.f32.mrb[0].mxu0
        %1663 = vmatprep.mubr.bf16.mxu0 0
        %1664 = vmatmul.mubr.bf16.gmra.mrb[0].mxu0 %v1347
        %v1665 = vpop.f32.mrb[0].mxu0
        %v1666 = vadd.f32 0.0, %v1665
        %v1667 = vpop.f32.mrb[0].mxu0
        %v1668 = vpop.f32.mrb[0].mxu0
        %v1669 = vadd.f32 0.0, %v1668
        %v1670 = vpop.f32.mrb[0].mxu0
        %1671 = vmatprep.mubr.bf16.mxu0 0
        %1672 = vmatmul.mubr.bf16.gmra.mrb[0].mxu0 %v1355
        %v1673 = vpop.f32.mrb[0].mxu0
        %v1674 = vadd.f32 0.0, %v1673
        %v1675 = vpop.f32.mrb[0].mxu0
        %v1676 = vpop.f32.mrb[0].mxu0
        %v1677 = vadd.f32 0.0, %v1676
        %v1678 = vpop.f32.mrb[0].mxu0
        %1679 = vmatprep.mubr.bf16.mxu0 0
        %1680 = vmatmul.mubr.bf16.gmra.mrb[0].mxu0 %v1363
        %v1681 = vpop.f32.mrb[0].mxu0
        %v1682 = vadd.f32 0.0, %v1681
        %v1683 = vpop.f32.mrb[0].mxu0
        %v1684 = vpop.f32.mrb[0].mxu0
        %v1685 = vadd.f32 0.0, %v1684
        %v1686 = vpop.f32.mrb[0].mxu0
        %1687 = vmatprep.mubr.bf16.mxu0 0
        %1688 = vmatmul.mubr.bf16.gmra.mrb[0].mxu0 %v1371
        %v1689 = vpop.f32.mrb[0].mxu0
        %v1690 = vadd.f32 0.0, %v1689
        %v1691 = vpop.f32.mrb[0].mxu0
        %v1692 = vpop.f32.mrb[0].mxu0
        %v1693 = vadd.f32 0.0, %v1692
        %v1694 = vpop.f32.mrb[0].mxu0
        %1695 = vmatprep.mubr.bf16.mxu0 0
        %1696 = vmatmul.mubr.bf16.gmra.mrb[0].mxu0 %v1379
        %v1697 = vpop.f32.mrb[0].mxu0
        %v1698 = vadd.f32 0.0, %v1697
        %v1699 = vpop.f32.mrb[0].mxu0
        %v1700 = vpop.f32.mrb[0].mxu0
        %v1701 = vadd.f32 0.0, %v1700
        %v1702 = vpop.f32.mrb[0].mxu0
        %1703 = vmatprep.mubr.bf16.mxu0 0
        %1704 = vmatmul.mubr.bf16.gmra.mrb[0].mxu0 %v1387
        %v1705 = vpop.f32.mrb[0].mxu0
        %v1706 = vadd.f32 0.0, %v1705
        %v1707 = vpop.f32.mrb[0].mxu0
        %v1708 = vpop.f32.mrb[0].mxu0
        %v1709 = vadd.f32 0.0, %v1708
        %v1710 = vpop.f32.mrb[0].mxu0
        %1711 = vmatprep.mubr.bf16.mxu0 0
        %1712 = vmatmul.mubr.bf16.gmra.mrb[0].mxu0 %v1395
        %v1713 = vpop.f32.mrb[0].mxu0
        %v1714 = vadd.f32 0.0, %v1713
        %v1715 = vpop.f32.mrb[0].mxu0
        %v1716 = vpop.f32.mrb[0].mxu0
        %v1717 = vadd.f32 0.0, %v1716
        %v1718 = vpop.f32.mrb[0].mxu0
        %1719 = vmatprep.mubr.bf16.mxu0 0
        %1720 = vmatmul.mubr.bf16.gmra.mrb[0].mxu0 %v1403
        %v1721 = vpop.f32.mrb[0].mxu0
        %v1722 = vadd.f32 0.0, %v1721
        %v1723 = vpop.f32.mrb[0].mxu0
        %v1724 = vpop.f32.mrb[0].mxu0
        %v1725 = vadd.f32 0.0, %v1724
        %v1726 = vpop.f32.mrb[0].mxu0
        %1727 = vmatprep.mubr.bf16.mxu0 0
        %1728 = vmatmul.mubr.bf16.gmra.mrb[0].mxu0 %v1411
        %v1729 = vpop.f32.mrb[0].mxu0
        %v1730 = vadd.f32 0.0, %v1729
        %v1731 = vpop.f32.mrb[0].mxu0
        %v1732 = vpop.f32.mrb[0].mxu0
        %v1733 = vadd.f32 0.0, %v1732
        %v1734 = vpop.f32.mrb[0].mxu0
        %1735 = vdwg.mxu0
        %v1736 = vld [vmem:[#allocation3] sm:$0xff]
        %v1737 = vld [vmem:[#allocation3 + $0x8] sm:$0xff]
        %v1738 = vld [vmem:[#allocation3 + $0x10] sm:$0xff]
        %v1739 = vld [vmem:[#allocation3 + $0x18] sm:$0xff]
        %v1740 = vld [vmem:[#allocation3 + $0x20] sm:$0xff]
        %v1741 = vld [vmem:[#allocation3 + $0x28] sm:$0xff]
        %v1742 = vld [vmem:[#allocation3 + $0x30] sm:$0xff]
        %v1743 = vld [vmem:[#allocation3 + $0x38] sm:$0xff]
        %v1744 = vld [vmem:[#allocation3 + $0x40] sm:$0xff]
        %v1745 = vld [vmem:[#allocation3 + $0x48] sm:$0xff]
        %v1746 = vld [vmem:[#allocation3 + $0x50] sm:$0xff]
        %v1747 = vld [vmem:[#allocation3 + $0x58] sm:$0xff]
        %v1748 = vld [vmem:[#allocation3 + $0x60] sm:$0xff]
        %v1749 = vld [vmem:[#allocation3 + $0x68] sm:$0xff]
        %v1750 = vld [vmem:[#allocation3 + $0x70] sm:$0xff]
        %v1751 = vld [vmem:[#allocation3 + $0x78] sm:$0xff]
        %v1752 = vld [vmem:[#allocation3 + $0x80] sm:$0xff]
        %v1753 = vld [vmem:[#allocation3 + $0x88] sm:$0xff]
        %v1754 = vld [vmem:[#allocation3 + $0x90] sm:$0xff]
        %v1755 = vld [vmem:[#allocation3 + $0x98] sm:$0xff]
        %v1756 = vld [vmem:[#allocation3 + $0xa0] sm:$0xff]
        %v1757 = vld [vmem:[#allocation3 + $0xa8] sm:$0xff]
        %v1758 = vld [vmem:[#allocation3 + $0xb0] sm:$0xff]
        %v1759 = vld [vmem:[#allocation3 + $0xb8] sm:$0xff]
        %v1760 = vld [vmem:[#allocation3 + $0xc0] sm:$0xff]
        %v1761 = vld [vmem:[#allocation3 + $0xc8] sm:$0xff]
        %v1762 = vld [vmem:[#allocation3 + $0xd0] sm:$0xff]
        %v1763 = vld [vmem:[#allocation3 + $0xd8] sm:$0xff]
        %v1764 = vld [vmem:[#allocation3 + $0xe0] sm:$0xff]
        %v1765 = vld [vmem:[#allocation3 + $0xe8] sm:$0xff]
        %v1766 = vld [vmem:[#allocation3 + $0xf0] sm:$0xff]
        %v1767 = vld [vmem:[#allocation3 + $0xf8] sm:$0xff]
        %v1768 = vld [vmem:[#allocation3 + $0x100] sm:$0xff]
        %v1769 = vld [vmem:[#allocation3 + $0x108] sm:$0xff]
        %v1770 = vld [vmem:[#allocation3 + $0x110] sm:$0xff]
        %v1771 = vld [vmem:[#allocation3 + $0x118] sm:$0xff]
        %v1772 = vld [vmem:[#allocation3 + $0x120] sm:$0xff]
        %v1773 = vld [vmem:[#allocation3 + $0x128] sm:$0xff]
        %v1774 = vld [vmem:[#allocation3 + $0x130] sm:$0xff]
        %v1775 = vld [vmem:[#allocation3 + $0x138] sm:$0xff]
        %v1776 = vld [vmem:[#allocation3 + $0x140] sm:$0xff]
        %v1777 = vld [vmem:[#allocation3 + $0x148] sm:$0xff]
        %v1778 = vld [vmem:[#allocation3 + $0x150] sm:$0xff]
        %v1779 = vld [vmem:[#allocation3 + $0x158] sm:$0xff]
        %v1780 = vld [vmem:[#allocation3 + $0x160] sm:$0xff]
        %v1781 = vld [vmem:[#allocation3 + $0x168] sm:$0xff]
        %v1782 = vld [vmem:[#allocation3 + $0x170] sm:$0xff]
        %v1783 = vld [vmem:[#allocation3 + $0x178] sm:$0xff]
        %v1784 = vld [vmem:[#allocation3 + $0x180] sm:$0xff]
        %v1785 = vld [vmem:[#allocation3 + $0x188] sm:$0xff]
        %v1786 = vld [vmem:[#allocation3 + $0x190] sm:$0xff]
        %v1787 = vld [vmem:[#allocation3 + $0x198] sm:$0xff]
        %v1788 = vld [vmem:[#allocation3 + $0x1a0] sm:$0xff]
        %v1789 = vld [vmem:[#allocation3 + $0x1a8] sm:$0xff]
        %v1790 = vadd.f32 %v1736, %v1522
        %v1791 = vadd.f32 %v1737, %v1525
        %v1792 = vadd.f32 %v1738, %v1530
        %v1793 = vadd.f32 %v1739, %v1533
        %v1794 = vadd.f32 %v1740, %v1538
        %v1795 = vadd.f32 %v1741, %v1541
        %v1796 = vadd.f32 %v1742, %v1546
        %v1797 = vadd.f32 %v1743, %v1549
        %v1798 = vadd.f32 %v1744, %v1554
        %v1799 = vadd.f32 %v1745, %v1557
        %v1800 = vadd.f32 %v1746, %v1562
        %v1801 = vadd.f32 %v1747, %v1565
        %v1802 = vadd.f32 %v1748, %v1570
        %v1803 = vadd.f32 %v1749, %v1573
        %v1804 = vadd.f32 %v1750, %v1578
        %v1805 = vadd.f32 %v1751, %v1581
        %v1806 = vadd.f32 %v1752, %v1586
        %v1807 = vadd.f32 %v1753, %v1589
        %v1808 = vadd.f32 %v1754, %v1594
        %v1809 = vadd.f32 %v1755, %v1597
        %v1810 = vadd.f32 %v1756, %v1602
        %v1811 = vadd.f32 %v1757, %v1605
        %v1812 = vadd.f32 %v1758, %v1610
        %v1813 = vadd.f32 %v1759, %v1613
        %v1814 = vadd.f32 %v1760, %v1618
        %v1815 = vadd.f32 %v1761, %v1621
        %v1816 = vadd.f32 %v1762, %v1626
        %v1817 = vadd.f32 %v1763, %v1629
        %v1818 = vadd.f32 %v1764, %v1634
        %v1819 = vadd.f32 %v1765, %v1637
        %v1820 = vadd.f32 %v1766, %v1642
        %v1821 = vadd.f32 %v1767, %v1645
        %v1822 = vadd.f32 %v1768, %v1650
        %v1823 = vadd.f32 %v1769, %v1653
        %v1824 = vadd.f32 %v1770, %v1658
        %v1825 = vadd.f32 %v1771, %v1661
        %v1826 = vadd.f32 %v1772, %v1666
        %v1827 = vadd.f32 %v1773, %v1669
        %v1828 = vadd.f32 %v1774, %v1674
        %v1829 = vadd.f32 %v1775, %v1677
        %v1830 = vadd.f32 %v1776, %v1682
        %v1831 = vadd.f32 %v1777, %v1685
        %v1832 = vadd.f32 %v1778, %v1690
        %v1833 = vadd.f32 %v1779, %v1693
        %v1834 = vadd.f32 %v1780, %v1698
        %v1835 = vadd.f32 %v1781, %v1701
        %v1836 = vadd.f32 %v1782, %v1706
        %v1837 = vadd.f32 %v1783, %v1709
        %v1838 = vadd.f32 %v1784, %v1714
        %v1839 = vadd.f32 %v1785, %v1717
        %v1840 = vadd.f32 %v1786, %v1722
        %v1841 = vadd.f32 %v1787, %v1725
        %v1842 = vadd.f32 %v1788, %v1730
        %v1843 = vadd.f32 %v1789, %v1733
        %1844 = vst [vmem:[#allocation3] sm:$0xff] %v1790
        %1845 = vst [vmem:[#allocation3 + $0x8] sm:$0xff] %v1791
        %1846 = vst [vmem:[#allocation3 + $0x10] sm:$0xff] %v1792
        %1847 = vst [vmem:[#allocation3 + $0x18] sm:$0xff] %v1793
        %1848 = vst [vmem:[#allocation3 + $0x20] sm:$0xff] %v1794
        %1849 = vst [vmem:[#allocation3 + $0x28] sm:$0xff] %v1795
        %1850 = vst [vmem:[#allocation3 + $0x30] sm:$0xff] %v1796
        %1851 = vst [vmem:[#allocation3 + $0x38] sm:$0xff] %v1797
        %1852 = vst [vmem:[#allocation3 + $0x40] sm:$0xff] %v1798
        %1853 = vst [vmem:[#allocation3 + $0x48] sm:$0xff] %v1799
        %1854 = vst [vmem:[#allocation3 + $0x50] sm:$0xff] %v1800
        %1855 = vst [vmem:[#allocation3 + $0x58] sm:$0xff] %v1801
        %1856 = vst [vmem:[#allocation3 + $0x60] sm:$0xff] %v1802
        %1857 = vst [vmem:[#allocation3 + $0x68] sm:$0xff] %v1803
        %1858 = vst [vmem:[#allocation3 + $0x70] sm:$0xff] %v1804
        %1859 = vst [vmem:[#allocation3 + $0x78] sm:$0xff] %v1805
        %1860 = vst [vmem:[#allocation3 + $0x80] sm:$0xff] %v1806
        %1861 = vst [vmem:[#allocation3 + $0x88] sm:$0xff] %v1807
        %1862 = vst [vmem:[#allocation3 + $0x90] sm:$0xff] %v1808
        %1863 = vst [vmem:[#allocation3 + $0x98] sm:$0xff] %v1809
        %1864 = vst [vmem:[#allocation3 + $0xa0] sm:$0xff] %v1810
        %1865 = vst [vmem:[#allocation3 + $0xa8] sm:$0xff] %v1811
        %1866 = vst [vmem:[#allocation3 + $0xb0] sm:$0xff] %v1812
        %1867 = vst [vmem:[#allocation3 + $0xb8] sm:$0xff] %v1813
        %1868 = vst [vmem:[#allocation3 + $0xc0] sm:$0xff] %v1814
        %1869 = vst [vmem:[#allocation3 + $0xc8] sm:$0xff] %v1815
        %1870 = vst [vmem:[#allocation3 + $0xd0] sm:$0xff] %v1816
        %1871 = vst [vmem:[#allocation3 + $0xd8] sm:$0xff] %v1817
        %1872 = vst [vmem:[#allocation3 + $0xe0] sm:$0xff] %v1818
        %1873 = vst [vmem:[#allocation3 + $0xe8] sm:$0xff] %v1819
        %1874 = vst [vmem:[#allocation3 + $0xf0] sm:$0xff] %v1820
        %1875 = vst [vmem:[#allocation3 + $0xf8] sm:$0xff] %v1821
        %1876 = vst [vmem:[#allocation3 + $0x100] sm:$0xff] %v1822
        %1877 = vst [vmem:[#allocation3 + $0x108] sm:$0xff] %v1823
        %1878 = vst [vmem:[#allocation3 + $0x110] sm:$0xff] %v1824
        %1879 = vst [vmem:[#allocation3 + $0x118] sm:$0xff] %v1825
        %1880 = vst [vmem:[#allocation3 + $0x120] sm:$0xff] %v1826
        %1881 = vst [vmem:[#allocation3 + $0x128] sm:$0xff] %v1827
        %1882 = vst [vmem:[#allocation3 + $0x130] sm:$0xff] %v1828
        %1883 = vst [vmem:[#allocation3 + $0x138] sm:$0xff] %v1829
        %1884 = vst [vmem:[#allocation3 + $0x140] sm:$0xff] %v1830
        %1885 = vst [vmem:[#allocation3 + $0x148] sm:$0xff] %v1831
        %1886 = vst [vmem:[#allocation3 + $0x150] sm:$0xff] %v1832
        %1887 = vst [vmem:[#allocation3 + $0x158] sm:$0xff] %v1833
        %1888 = vst [vmem:[#allocation3 + $0x160] sm:$0xff] %v1834
        %1889 = vst [vmem:[#allocation3 + $0x168] sm:$0xff] %v1835
        %1890 = vst [vmem:[#allocation3 + $0x170] sm:$0xff] %v1836
        %1891 = vst [vmem:[#allocation3 + $0x178] sm:$0xff] %v1837
        %1892 = vst [vmem:[#allocation3 + $0x180] sm:$0xff] %v1838
        %1893 = vst [vmem:[#allocation3 + $0x188] sm:$0xff] %v1839
        %1894 = vst [vmem:[#allocation3 + $0x190] sm:$0xff] %v1840
        %1895 = vst [vmem:[#allocation3 + $0x198] sm:$0xff] %v1841
        %1896 = vst [vmem:[#allocation3 + $0x1a0] sm:$0xff] %v1842
        %1897 = vst [vmem:[#allocation3 + $0x1a8] sm:$0xff] %v1843
        %v1898 = vld [vmem:[#allocation2] sm:$0xfe]
        %v1899 = vld [vmem:[#allocation2 + $0x8] sm:$0xff]
        %v1900 = vld [vmem:[#allocation2 + $0x10] sm:$0xff]
        %v1901 = vld [vmem:[#allocation2 + $0x18] sm:$0xff]
        %v1902 = vld [vmem:[#allocation2 + $0x20] sm:$0xff]
        %v1903 = vld [vmem:[#allocation2 + $0x28] sm:$0xff]
        %v1904 = vld [vmem:[#allocation2 + $0x30] sm:$0xff]
        %v1905 = vld [vmem:[#allocation2 + $0x38] sm:$0xff]
        %v1906 = vld [vmem:[#allocation2 + $0x40] sm:$0xff]
        %v1907 = vld [vmem:[#allocation2 + $0x48] sm:$0xff]
        %v1908 = vld [vmem:[#allocation2 + $0x50] sm:$0xff]
        %v1909 = vld [vmem:[#allocation2 + $0x58] sm:$0xff]
        %v1910 = vld [vmem:[#allocation2 + $0x60] sm:$0xff]
        %v1911 = vld [vmem:[#allocation2 + $0x68] sm:$0xff]
        %v1912 = vld [vmem:[#allocation2 + $0x70] sm:$0xff]
        %v1913 = vld [vmem:[#allocation2 + $0x78] sm:$0xff]
        %v1914 = vld [vmem:[#allocation2 + $0x80] sm:$0xff]
        %v1915 = vld [vmem:[#allocation2 + $0x88] sm:$0xff]
        %v1916 = vld [vmem:[#allocation2 + $0x90] sm:$0xff]
        %v1917 = vld [vmem:[#allocation2 + $0x98] sm:$0xff]
        %v1918 = vld [vmem:[#allocation2 + $0xa0] sm:$0xff]
        %v1919 = vld [vmem:[#allocation2 + $0xa8] sm:$0xff]
        %v1920 = vld [vmem:[#allocation2 + $0xb0] sm:$0xff]
        %v1921 = vld [vmem:[#allocation2 + $0xb8] sm:$0xff]
        %v1922 = vld [vmem:[#allocation2 + $0xc0] sm:$0xff]
        %v1923 = vld [vmem:[#allocation2 + $0xc8] sm:$0xff]
        %v1924 = vld [vmem:[#allocation2 + $0xd0] sm:$0xff]
        %v1925 = vld [vmem:[#allocation2 + $0xd8] sm:$0x1]
        %s1926 = sadd.s32 %s772, 2
        %s1927 = smul.u32 %s1926, 16
        %s1928 = smul.addr %s1927, 4
        %s1929 = scalar_lea.vmem %s1, %s1928
        %v1930 = vld [vmem:[%s1929] sm:$0xf]
        %v1931 = vld [vmem:[%s1929 + $0x4] sm:$0xf]
        %v1932 = vld [vmem:[%s1929 + $0x8] sm:$0xf]
        %v1933 = vld [vmem:[%s1929 + $0xc] sm:$0xf]
        %v1934 = vld [vmem:[%s1929 + $0x10] sm:$0xf]
        %v1935 = vld [vmem:[%s1929 + $0x14] sm:$0xf]
        %v1936 = vld [vmem:[%s1929 + $0x18] sm:$0xf]
        %v1937 = vld [vmem:[%s1929 + $0x1c] sm:$0xf]
        %v1938 = vld [vmem:[%s1929 + $0x20] sm:$0xf]
        %v1939 = vld [vmem:[%s1929 + $0x24] sm:$0xf]
        %v1940 = vld [vmem:[%s1929 + $0x28] sm:$0xf]
        %v1941 = vld [vmem:[%s1929 + $0x2c] sm:$0xf]
        %v1942 = vld [vmem:[%s1929 + $0x30] sm:$0xf]
        %v1943 = vld [vmem:[%s1929 + $0x34] sm:$0xf]
        %v1944 = vld [vmem:[%s1929 + $0x38] sm:$0xf]
        %v1945 = vld [vmem:[%s1929 + $0x3c] sm:$0xf]
        %vm1974 = vcmask 1046528
        %v1975 = vrot.slane %v1898, 1
        %v1976 = vrot.slane %v1899, 1
        %v1977 = vsel %vm1974, %v1975, %v1976
        %v1978 = vrot.slane %v1900, 1
        %v1979 = vsel %vm1974, %v1976, %v1978
        %v1980 = vrot.slane %v1901, 1
        %v1981 = vsel %vm1974, %v1978, %v1980
        %v1982 = vrot.slane %v1902, 1
        %v1983 = vsel %vm1974, %v1980, %v1982
        %v1984 = vrot.slane %v1903, 1
        %v1985 = vsel %vm1974, %v1982, %v1984
        %v1986 = vrot.slane %v1904, 1
        %v1987 = vsel %vm1974, %v1984, %v1986
        %v1988 = vrot.slane %v1905, 1
        %v1989 = vsel %vm1974, %v1986, %v1988
        %v1990 = vrot.slane %v1906, 1
        %v1991 = vsel %vm1974, %v1988, %v1990
        %v1992 = vrot.slane %v1907, 1
        %v1993 = vsel %vm1974, %v1990, %v1992
        %v1994 = vrot.slane %v1908, 1
        %v1995 = vsel %vm1974, %v1992, %v1994
        %v1996 = vrot.slane %v1909, 1
        %v1997 = vsel %vm1974, %v1994, %v1996
        %v1998 = vrot.slane %v1910, 1
        %v1999 = vsel %vm1974, %v1996, %v1998
        %v2000 = vrot.slane %v1911, 1
        %v2001 = vsel %vm1974, %v1998, %v2000
        %v2002 = vrot.slane %v1912, 1
        %v2003 = vsel %vm1974, %v2000, %v2002
        %v2004 = vrot.slane %v1913, 1
        %v2005 = vsel %vm1974, %v2002, %v2004
        %v2006 = vrot.slane %v1914, 1
        %v2007 = vsel %vm1974, %v2004, %v2006
        %v2008 = vrot.slane %v1915, 1
        %v2009 = vsel %vm1974, %v2006, %v2008
        %v2010 = vrot.slane %v1916, 1
        %v2011 = vsel %vm1974, %v2008, %v2010
        %v2012 = vrot.slane %v1917, 1
        %v2013 = vsel %vm1974, %v2010, %v2012
        %v2014 = vrot.slane %v1918, 1
        %v2015 = vsel %vm1974, %v2012, %v2014
        %v2016 = vrot.slane %v1919, 1
        %v2017 = vsel %vm1974, %v2014, %v2016
        %v2018 = vrot.slane %v1920, 1
        %v2019 = vsel %vm1974, %v2016, %v2018
        %v2020 = vrot.slane %v1921, 1
        %v2021 = vsel %vm1974, %v2018, %v2020
        %v2022 = vrot.slane %v1922, 1
        %v2023 = vsel %vm1974, %v2020, %v2022
        %v2024 = vrot.slane %v1923, 1
        %v2025 = vsel %vm1974, %v2022, %v2024
        %v2026 = vrot.slane %v1924, 1
        %v2027 = vsel %vm1974, %v2024, %v2026
        %v2028 = vrot.slane %v1925, 1
        %v2029 = vsel %vm1974, %v2026, %v2028
        %v2073 = vunpack.c.l.b16 %v1930
        %v2074 = vunpack.c.l.b16 %v1931
        %v2075 = vunpack.c.l.b16 %v1932
        %v2076 = vunpack.c.l.b16 %v1933
        %v2077 = vunpack.c.l.b16 %v1934
        %v2078 = vunpack.c.l.b16 %v1935
        %v2079 = vunpack.c.l.b16 %v1936
        %v2080 = vunpack.c.l.b16 %v1937
        %v2081 = vunpack.c.l.b16 %v1938
        %v2082 = vunpack.c.l.b16 %v1939
        %v2083 = vunpack.c.l.b16 %v1940
        %v2084 = vunpack.c.l.b16 %v1941
        %v2085 = vunpack.c.l.b16 %v1942
        %v2086 = vunpack.c.l.b16 %v1943
        %v2087 = vunpack.c.l.b16 %v1944
        %v2088 = vunpack.c.l.b16 %v1945
        %v2089 = vpack.c.b16 %v2074, %v2073
        %v2090 = vpack.c.b16 %v2076, %v2075
        %v2091 = vpack.c.b16 %v2078, %v2077
        %v2092 = vpack.c.b16 %v2080, %v2079
        %v2093 = vpack.c.b16 %v2082, %v2081
        %v2094 = vpack.c.b16 %v2084, %v2083
        %v2095 = vpack.c.b16 %v2086, %v2085
        %v2096 = vpack.c.b16 %v2088, %v2087
        %2105 = vmatprep.subr.bf16.mxu0 0
        %2106 = vmatpush1.bf16.msra.mxu0 %v2089
        %2107 = vmatprep.subr.bf16.mxu0 0
        %2108 = vmatpush1.bf16.msra.mxu0 %v2090
        %2109 = vmatprep.subr.bf16.mxu0 0
        %2110 = vmatpush1.bf16.msra.mxu0 %v2091
        %2111 = vmatprep.subr.bf16.mxu0 0
        %2112 = vmatpush1.bf16.msra.mxu0 %v2092
        %2113 = vmatprep.subr.bf16.mxu0 0
        %2114 = vmatpush1.bf16.msra.mxu0 %v2093
        %2115 = vmatprep.subr.bf16.mxu0 0
        %2116 = vmatpush1.bf16.msra.mxu0 %v2094
        %2117 = vmatprep.subr.bf16.mxu0 0
        %2118 = vmatpush1.bf16.msra.mxu0 %v2095
        %2119 = vmatprep.subr.bf16.mxu0 0
        %2120 = vmatpush1.bf16.msra.mxu0 %v2096
        %2121 = vmatprep.subr.bf16.mxu0 0
        %2122 = vmatpush1.bf16.msra.mxu0 0
        %2123 = vmatprep.subr.bf16.mxu0 0
        %2124 = vmatpush1.bf16.msra.mxu0 0
        %2125 = vmatprep.subr.bf16.mxu0 0
        %2126 = vmatpush1.bf16.msra.mxu0 0
        %2127 = vmatprep.subr.bf16.mxu0 0
        %2128 = vmatpush1.bf16.msra.mxu0 0
        %2129 = vmatprep.subr.bf16.mxu0 0
        %2130 = vmatpush1.bf16.msra.mxu0 0
        %2131 = vmatprep.subr.bf16.mxu0 0
        %2132 = vmatpush1.bf16.msra.mxu0 0
        %2133 = vmatprep.subr.bf16.mxu0 0
        %2134 = vmatpush1.bf16.msra.mxu0 0
        %2135 = vmatprep.subr.bf16.mxu0 0
        %2136 = vmatpush1.bf16.msra.mxu0 0
        %2137 = vmatprep.mubr.bf16.mxu0 0
        %2138 = vmatmul.mubr.bf16.gmra.mrb[0].mxu0 %v1977
        %v2139 = vpop.f32.mrb[0].mxu0
        %v2140 = vadd.f32 0.0, %v2139
        %v2141 = vpop.f32.mrb[0].mxu0
        %v2142 = vpop.f32.mrb[0].mxu0
        %v2143 = vadd.f32 0.0, %v2142
        %v2144 = vpop.f32.mrb[0].mxu0
        %2145 = vmatprep.mubr.bf16.mxu0 0
        %2146 = vmatmul.mubr.bf16.gmra.mrb[0].mxu0 %v1979
        %v2147 = vpop.f32.mrb[0].mxu0
        %v2148 = vadd.f32 0.0, %v2147
        %v2149 = vpop.f32.mrb[0].mxu0
        %v2150 = vpop.f32.mrb[0].mxu0
        %v2151 = vadd.f32 0.0, %v2150
        %v2152 = vpop.f32.mrb[0].mxu0
        %2153 = vmatprep.mubr.bf16.mxu0 0
        %2154 = vmatmul.mubr.bf16.gmra.mrb[0].mxu0 %v1981
        %v2155 = vpop.f32.mrb[0].mxu0
        %v2156 = vadd.f32 0.0, %v2155
        %v2157 = vpop.f32.mrb[0].mxu0
        %v2158 = vpop.f32.mrb[0].mxu0
        %v2159 = vadd.f32 0.0, %v2158
        %v2160 = vpop.f32.mrb[0].mxu0
        %2161 = vmatprep.mubr.bf16.mxu0 0
        %2162 = vmatmul.mubr.bf16.gmra.mrb[0].mxu0 %v1983
        %v2163 = vpop.f32.mrb[0].mxu0
        %v2164 = vadd.f32 0.0, %v2163
        %v2165 = vpop.f32.mrb[0].mxu0
        %v2166 = vpop.f32.mrb[0].mxu0
        %v2167 = vadd.f32 0.0, %v2166
        %v2168 = vpop.f32.mrb[0].mxu0
        %2169 = vmatprep.mubr.bf16.mxu0 0
        %2170 = vmatmul.mubr.bf16.gmra.mrb[0].mxu0 %v1985
        %v2171 = vpop.f32.mrb[0].mxu0
        %v2172 = vadd.f32 0.0, %v2171
        %v2173 = vpop.f32.mrb[0].mxu0
        %v2174 = vpop.f32.mrb[0].mxu0
        %v2175 = vadd.f32 0.0, %v2174
        %v2176 = vpop.f32.mrb[0].mxu0
        %2177 = vmatprep.mubr.bf16.mxu0 0
        %2178 = vmatmul.mubr.bf16.gmra.mrb[0].mxu0 %v1987
        %v2179 = vpop.f32.mrb[0].mxu0
        %v2180 = vadd.f32 0.0, %v2179
        %v2181 = vpop.f32.mrb[0].mxu0
        %v2182 = vpop.f32.mrb[0].mxu0
        %v2183 = vadd.f32 0.0, %v2182
        %v2184 = vpop.f32.mrb[0].mxu0
        %2185 = vmatprep.mubr.bf16.mxu0 0
        %2186 = vmatmul.mubr.bf16.gmra.mrb[0].mxu0 %v1989
        %v2187 = vpop.f32.mrb[0].mxu0
        %v2188 = vadd.f32 0.0, %v2187
        %v2189 = vpop.f32.mrb[0].mxu0
        %v2190 = vpop.f32.mrb[0].mxu0
        %v2191 = vadd.f32 0.0, %v2190
        %v2192 = vpop.f32.mrb[0].mxu0
        %2193 = vmatprep.mubr.bf16.mxu0 0
        %2194 = vmatmul.mubr.bf16.gmra.mrb[0].mxu0 %v1991
        %v2195 = vpop.f32.mrb[0].mxu0
        %v2196 = vadd.f32 0.0, %v2195
        %v2197 = vpop.f32.mrb[0].mxu0
        %v2198 = vpop.f32.mrb[0].mxu0
        %v2199 = vadd.f32 0.0, %v2198
        %v2200 = vpop.f32.mrb[0].mxu0
        %2201 = vmatprep.mubr.bf16.mxu0 0
        %2202 = vmatmul.mubr.bf16.gmra.mrb[0].mxu0 %v1993
        %v2203 = vpop.f32.mrb[0].mxu0
        %v2204 = vadd.f32 0.0, %v2203
        %v2205 = vpop.f32.mrb[0].mxu0
        %v2206 = vpop.f32.mrb[0].mxu0
        %v2207 = vadd.f32 0.0, %v2206
        %v2208 = vpop.f32.mrb[0].mxu0
        %2209 = vmatprep.mubr.bf16.mxu0 0
        %2210 = vmatmul.mubr.bf16.gmra.mrb[0].mxu0 %v1995
        %v2211 = vpop.f32.mrb[0].mxu0
        %v2212 = vadd.f32 0.0, %v2211
        %v2213 = vpop.f32.mrb[0].mxu0
        %v2214 = vpop.f32.mrb[0].mxu0
        %v2215 = vadd.f32 0.0, %v2214
        %v2216 = vpop.f32.mrb[0].mxu0
        %2217 = vmatprep.mubr.bf16.mxu0 0
        %2218 = vmatmul.mubr.bf16.gmra.mrb[0].mxu0 %v1997
        %v2219 = vpop.f32.mrb[0].mxu0
        %v2220 = vadd.f32 0.0, %v2219
        %v2221 = vpop.f32.mrb[0].mxu0
        %v2222 = vpop.f32.mrb[0].mxu0
        %v2223 = vadd.f32 0.0, %v2222
        %v2224 = vpop.f32.mrb[0].mxu0
        %2225 = vmatprep.mubr.bf16.mxu0 0
        %2226 = vmatmul.mubr.bf16.gmra.mrb[0].mxu0 %v1999
        %v2227 = vpop.f32.mrb[0].mxu0
        %v2228 = vadd.f32 0.0, %v2227
        %v2229 = vpop.f32.mrb[0].mxu0
        %v2230 = vpop.f32.mrb[0].mxu0
        %v2231 = vadd.f32 0.0, %v2230
        %v2232 = vpop.f32.mrb[0].mxu0
        %2233 = vmatprep.mubr.bf16.mxu0 0
        %2234 = vmatmul.mubr.bf16.gmra.mrb[0].mxu0 %v2001
        %v2235 = vpop.f32.mrb[0].mxu0
        %v2236 = vadd.f32 0.0, %v2235
        %v2237 = vpop.f32.mrb[0].mxu0
        %v2238 = vpop.f32.mrb[0].mxu0
        %v2239 = vadd.f32 0.0, %v2238
        %v2240 = vpop.f32.mrb[0].mxu0
        %2241 = vmatprep.mubr.bf16.mxu0 0
        %2242 = vmatmul.mubr.bf16.gmra.mrb[0].mxu0 %v2003
        %v2243 = vpop.f32.mrb[0].mxu0
        %v2244 = vadd.f32 0.0, %v2243
        %v2245 = vpop.f32.mrb[0].mxu0
        %v2246 = vpop.f32.mrb[0].mxu0
        %v2247 = vadd.f32 0.0, %v2246
        %v2248 = vpop.f32.mrb[0].mxu0
        %2249 = vmatprep.mubr.bf16.mxu0 0
        %2250 = vmatmul.mubr.bf16.gmra.mrb[0].mxu0 %v2005
        %v2251 = vpop.f32.mrb[0].mxu0
        %v2252 = vadd.f32 0.0, %v2251
        %v2253 = vpop.f32.mrb[0].mxu0
        %v2254 = vpop.f32.mrb[0].mxu0
        %v2255 = vadd.f32 0.0, %v2254
        %v2256 = vpop.f32.mrb[0].mxu0
        %2257 = vmatprep.mubr.bf16.mxu0 0
        %2258 = vmatmul.mubr.bf16.gmra.mrb[0].mxu0 %v2007
        %v2259 = vpop.f32.mrb[0].mxu0
        %v2260 = vadd.f32 0.0, %v2259
        %v2261 = vpop.f32.mrb[0].mxu0
        %v2262 = vpop.f32.mrb[0].mxu0
        %v2263 = vadd.f32 0.0, %v2262
        %v2264 = vpop.f32.mrb[0].mxu0
        %2265 = vmatprep.mubr.bf16.mxu0 0
        %2266 = vmatmul.mubr.bf16.gmra.mrb[0].mxu0 %v2009
        %v2267 = vpop.f32.mrb[0].mxu0
        %v2268 = vadd.f32 0.0, %v2267
        %v2269 = vpop.f32.mrb[0].mxu0
        %v2270 = vpop.f32.mrb[0].mxu0
        %v2271 = vadd.f32 0.0, %v2270
        %v2272 = vpop.f32.mrb[0].mxu0
        %2273 = vmatprep.mubr.bf16.mxu0 0
        %2274 = vmatmul.mubr.bf16.gmra.mrb[0].mxu0 %v2011
        %v2275 = vpop.f32.mrb[0].mxu0
        %v2276 = vadd.f32 0.0, %v2275
        %v2277 = vpop.f32.mrb[0].mxu0
        %v2278 = vpop.f32.mrb[0].mxu0
        %v2279 = vadd.f32 0.0, %v2278
        %v2280 = vpop.f32.mrb[0].mxu0
        %2281 = vmatprep.mubr.bf16.mxu0 0
        %2282 = vmatmul.mubr.bf16.gmra.mrb[0].mxu0 %v2013
        %v2283 = vpop.f32.mrb[0].mxu0
        %v2284 = vadd.f32 0.0, %v2283
        %v2285 = vpop.f32.mrb[0].mxu0
        %v2286 = vpop.f32.mrb[0].mxu0
        %v2287 = vadd.f32 0.0, %v2286
        %v2288 = vpop.f32.mrb[0].mxu0
        %2289 = vmatprep.mubr.bf16.mxu0 0
        %2290 = vmatmul.mubr.bf16.gmra.mrb[0].mxu0 %v2015
        %v2291 = vpop.f32.mrb[0].mxu0
        %v2292 = vadd.f32 0.0, %v2291
        %v2293 = vpop.f32.mrb[0].mxu0
        %v2294 = vpop.f32.mrb[0].mxu0
        %v2295 = vadd.f32 0.0, %v2294
        %v2296 = vpop.f32.mrb[0].mxu0
        %2297 = vmatprep.mubr.bf16.mxu0 0
        %2298 = vmatmul.mubr.bf16.gmra.mrb[0].mxu0 %v2017
        %v2299 = vpop.f32.mrb[0].mxu0
        %v2300 = vadd.f32 0.0, %v2299
        %v2301 = vpop.f32.mrb[0].mxu0
        %v2302 = vpop.f32.mrb[0].mxu0
        %v2303 = vadd.f32 0.0, %v2302
        %v2304 = vpop.f32.mrb[0].mxu0
        %2305 = vmatprep.mubr.bf16.mxu0 0
        %2306 = vmatmul.mubr.bf16.gmra.mrb[0].mxu0 %v2019
        %v2307 = vpop.f32.mrb[0].mxu0
        %v2308 = vadd.f32 0.0, %v2307
        %v2309 = vpop.f32.mrb[0].mxu0
        %v2310 = vpop.f32.mrb[0].mxu0
        %v2311 = vadd.f32 0.0, %v2310
        %v2312 = vpop.f32.mrb[0].mxu0
        %2313 = vmatprep.mubr.bf16.mxu0 0
        %2314 = vmatmul.mubr.bf16.gmra.mrb[0].mxu0 %v2021
        %v2315 = vpop.f32.mrb[0].mxu0
        %v2316 = vadd.f32 0.0, %v2315
        %v2317 = vpop.f32.mrb[0].mxu0
        %v2318 = vpop.f32.mrb[0].mxu0
        %v2319 = vadd.f32 0.0, %v2318
        %v2320 = vpop.f32.mrb[0].mxu0
        %2321 = vmatprep.mubr.bf16.mxu0 0
        %2322 = vmatmul.mubr.bf16.gmra.mrb[0].mxu0 %v2023
        %v2323 = vpop.f32.mrb[0].mxu0
        %v2324 = vadd.f32 0.0, %v2323
        %v2325 = vpop.f32.mrb[0].mxu0
        %v2326 = vpop.f32.mrb[0].mxu0
        %v2327 = vadd.f32 0.0, %v2326
        %v2328 = vpop.f32.mrb[0].mxu0
        %2329 = vmatprep.mubr.bf16.mxu0 0
        %2330 = vmatmul.mubr.bf16.gmra.mrb[0].mxu0 %v2025
        %v2331 = vpop.f32.mrb[0].mxu0
        %v2332 = vadd.f32 0.0, %v2331
        %v2333 = vpop.f32.mrb[0].mxu0
        %v2334 = vpop.f32.mrb[0].mxu0
        %v2335 = vadd.f32 0.0, %v2334
        %v2336 = vpop.f32.mrb[0].mxu0
        %2337 = vmatprep.mubr.bf16.mxu0 0
        %2338 = vmatmul.mubr.bf16.gmra.mrb[0].mxu0 %v2027
        %v2339 = vpop.f32.mrb[0].mxu0
        %v2340 = vadd.f32 0.0, %v2339
        %v2341 = vpop.f32.mrb[0].mxu0
        %v2342 = vpop.f32.mrb[0].mxu0
        %v2343 = vadd.f32 0.0, %v2342
        %v2344 = vpop.f32.mrb[0].mxu0
        %2345 = vmatprep.mubr.bf16.mxu0 0
        %2346 = vmatmul.mubr.bf16.gmra.mrb[0].mxu0 %v2029
        %v2347 = vpop.f32.mrb[0].mxu0
        %v2348 = vadd.f32 0.0, %v2347
        %v2349 = vpop.f32.mrb[0].mxu0
        %v2350 = vpop.f32.mrb[0].mxu0
        %v2351 = vadd.f32 0.0, %v2350
        %v2352 = vpop.f32.mrb[0].mxu0
        %2353 = vdwg.mxu0
        %v2354 = vld [vmem:[#allocation3] sm:$0xff]
        %v2355 = vld [vmem:[#allocation3 + $0x8] sm:$0xff]
        %v2356 = vld [vmem:[#allocation3 + $0x10] sm:$0xff]
        %v2357 = vld [vmem:[#allocation3 + $0x18] sm:$0xff]
        %v2358 = vld [vmem:[#allocation3 + $0x20] sm:$0xff]
        %v2359 = vld [vmem:[#allocation3 + $0x28] sm:$0xff]
        %v2360 = vld [vmem:[#allocation3 + $0x30] sm:$0xff]
        %v2361 = vld [vmem:[#allocation3 + $0x38] sm:$0xff]
        %v2362 = vld [vmem:[#allocation3 + $0x40] sm:$0xff]
        %v2363 = vld [vmem:[#allocation3 + $0x48] sm:$0xff]
        %v2364 = vld [vmem:[#allocation3 + $0x50] sm:$0xff]
        %v2365 = vld [vmem:[#allocation3 + $0x58] sm:$0xff]
        %v2366 = vld [vmem:[#allocation3 + $0x60] sm:$0xff]
        %v2367 = vld [vmem:[#allocation3 + $0x68] sm:$0xff]
        %v2368 = vld [vmem:[#allocation3 + $0x70] sm:$0xff]
        %v2369 = vld [vmem:[#allocation3 + $0x78] sm:$0xff]
        %v2370 = vld [vmem:[#allocation3 + $0x80] sm:$0xff]
        %v2371 = vld [vmem:[#allocation3 + $0x88] sm:$0xff]
        %v2372 = vld [vmem:[#allocation3 + $0x90] sm:$0xff]
        %v2373 = vld [vmem:[#allocation3 + $0x98] sm:$0xff]
        %v2374 = vld [vmem:[#allocation3 + $0xa0] sm:$0xff]
        %v2375 = vld [vmem:[#allocation3 + $0xa8] sm:$0xff]
        %v2376 = vld [vmem:[#allocation3 + $0xb0] sm:$0xff]
        %v2377 = vld [vmem:[#allocation3 + $0xb8] sm:$0xff]
        %v2378 = vld [vmem:[#allocation3 + $0xc0] sm:$0xff]
        %v2379 = vld [vmem:[#allocation3 + $0xc8] sm:$0xff]
        %v2380 = vld [vmem:[#allocation3 + $0xd0] sm:$0xff]
        %v2381 = vld [vmem:[#allocation3 + $0xd8] sm:$0xff]
        %v2382 = vld [vmem:[#allocation3 + $0xe0] sm:$0xff]
        %v2383 = vld [vmem:[#allocation3 + $0xe8] sm:$0xff]
        %v2384 = vld [vmem:[#allocation3 + $0xf0] sm:$0xff]
        %v2385 = vld [vmem:[#allocation3 + $0xf8] sm:$0xff]
        %v2386 = vld [vmem:[#allocation3 + $0x100] sm:$0xff]
        %v2387 = vld [vmem:[#allocation3 + $0x108] sm:$0xff]
        %v2388 = vld [vmem:[#allocation3 + $0x110] sm:$0xff]
        %v2389 = vld [vmem:[#allocation3 + $0x118] sm:$0xff]
        %v2390 = vld [vmem:[#allocation3 + $0x120] sm:$0xff]
        %v2391 = vld [vmem:[#allocation3 + $0x128] sm:$0xff]
        %v2392 = vld [vmem:[#allocation3 + $0x130] sm:$0xff]
        %v2393 = vld [vmem:[#allocation3 + $0x138] sm:$0xff]
        %v2394 = vld [vmem:[#allocation3 + $0x140] sm:$0xff]
        %v2395 = vld [vmem:[#allocation3 + $0x148] sm:$0xff]
        %v2396 = vld [vmem:[#allocation3 + $0x150] sm:$0xff]
        %v2397 = vld [vmem:[#allocation3 + $0x158] sm:$0xff]
        %v2398 = vld [vmem:[#allocation3 + $0x160] sm:$0xff]
        %v2399 = vld [vmem:[#allocation3 + $0x168] sm:$0xff]
        %v2400 = vld [vmem:[#allocation3 + $0x170] sm:$0xff]
        %v2401 = vld [vmem:[#allocation3 + $0x178] sm:$0xff]
        %v2402 = vld [vmem:[#allocation3 + $0x180] sm:$0xff]
        %v2403 = vld [vmem:[#allocation3 + $0x188] sm:$0xff]
        %v2404 = vld [vmem:[#allocation3 + $0x190] sm:$0xff]
        %v2405 = vld [vmem:[#allocation3 + $0x198] sm:$0xff]
        %v2406 = vld [vmem:[#allocation3 + $0x1a0] sm:$0xff]
        %v2407 = vld [vmem:[#allocation3 + $0x1a8] sm:$0xff]
        %v2408 = vadd.f32 %v2354, %v2140
        %v2409 = vadd.f32 %v2355, %v2143
        %v2410 = vadd.f32 %v2356, %v2148
        %v2411 = vadd.f32 %v2357, %v2151
        %v2412 = vadd.f32 %v2358, %v2156
        %v2413 = vadd.f32 %v2359, %v2159
        %v2414 = vadd.f32 %v2360, %v2164
        %v2415 = vadd.f32 %v2361, %v2167
        %v2416 = vadd.f32 %v2362, %v2172
        %v2417 = vadd.f32 %v2363, %v2175
        %v2418 = vadd.f32 %v2364, %v2180
        %v2419 = vadd.f32 %v2365, %v2183
        %v2420 = vadd.f32 %v2366, %v2188
        %v2421 = vadd.f32 %v2367, %v2191
        %v2422 = vadd.f32 %v2368, %v2196
        %v2423 = vadd.f32 %v2369, %v2199
        %v2424 = vadd.f32 %v2370, %v2204
        %v2425 = vadd.f32 %v2371, %v2207
        %v2426 = vadd.f32 %v2372, %v2212
        %v2427 = vadd.f32 %v2373, %v2215
        %v2428 = vadd.f32 %v2374, %v2220
        %v2429 = vadd.f32 %v2375, %v2223
        %v2430 = vadd.f32 %v2376, %v2228
        %v2431 = vadd.f32 %v2377, %v2231
        %v2432 = vadd.f32 %v2378, %v2236
        %v2433 = vadd.f32 %v2379, %v2239
        %v2434 = vadd.f32 %v2380, %v2244
        %v2435 = vadd.f32 %v2381, %v2247
        %v2436 = vadd.f32 %v2382, %v2252
        %v2437 = vadd.f32 %v2383, %v2255
        %v2438 = vadd.f32 %v2384, %v2260
        %v2439 = vadd.f32 %v2385, %v2263
        %v2440 = vadd.f32 %v2386, %v2268
        %v2441 = vadd.f32 %v2387, %v2271
        %v2442 = vadd.f32 %v2388, %v2276
        %v2443 = vadd.f32 %v2389, %v2279
        %v2444 = vadd.f32 %v2390, %v2284
        %v2445 = vadd.f32 %v2391, %v2287
        %v2446 = vadd.f32 %v2392, %v2292
        %v2447 = vadd.f32 %v2393, %v2295
        %v2448 = vadd.f32 %v2394, %v2300
        %v2449 = vadd.f32 %v2395, %v2303
        %v2450 = vadd.f32 %v2396, %v2308
        %v2451 = vadd.f32 %v2397, %v2311
        %v2452 = vadd.f32 %v2398, %v2316
        %v2453 = vadd.f32 %v2399, %v2319
        %v2454 = vadd.f32 %v2400, %v2324
        %v2455 = vadd.f32 %v2401, %v2327
        %v2456 = vadd.f32 %v2402, %v2332
        %v2457 = vadd.f32 %v2403, %v2335
        %v2458 = vadd.f32 %v2404, %v2340
        %v2459 = vadd.f32 %v2405, %v2343
        %v2460 = vadd.f32 %v2406, %v2348
        %v2461 = vadd.f32 %v2407, %v2351
        %2462 = vst [vmem:[#allocation3] sm:$0xff] %v2408
        %2463 = vst [vmem:[#allocation3 + $0x8] sm:$0xff] %v2409
        %2464 = vst [vmem:[#allocation3 + $0x10] sm:$0xff] %v2410
        %2465 = vst [vmem:[#allocation3 + $0x18] sm:$0xff] %v2411
        %2466 = vst [vmem:[#allocation3 + $0x20] sm:$0xff] %v2412
        %2467 = vst [vmem:[#allocation3 + $0x28] sm:$0xff] %v2413
        %2468 = vst [vmem:[#allocation3 + $0x30] sm:$0xff] %v2414
        %2469 = vst [vmem:[#allocation3 + $0x38] sm:$0xff] %v2415
        %2470 = vst [vmem:[#allocation3 + $0x40] sm:$0xff] %v2416
        %2471 = vst [vmem:[#allocation3 + $0x48] sm:$0xff] %v2417
        %2472 = vst [vmem:[#allocation3 + $0x50] sm:$0xff] %v2418
        %2473 = vst [vmem:[#allocation3 + $0x58] sm:$0xff] %v2419
        %2474 = vst [vmem:[#allocation3 + $0x60] sm:$0xff] %v2420
        %2475 = vst [vmem:[#allocation3 + $0x68] sm:$0xff] %v2421
        %2476 = vst [vmem:[#allocation3 + $0x70] sm:$0xff] %v2422
        %2477 = vst [vmem:[#allocation3 + $0x78] sm:$0xff] %v2423
        %2478 = vst [vmem:[#allocation3 + $0x80] sm:$0xff] %v2424
        %2479 = vst [vmem:[#allocation3 + $0x88] sm:$0xff] %v2425
        %2480 = vst [vmem:[#allocation3 + $0x90] sm:$0xff] %v2426
        %2481 = vst [vmem:[#allocation3 + $0x98] sm:$0xff] %v2427
        %2482 = vst [vmem:[#allocation3 + $0xa0] sm:$0xff] %v2428
        %2483 = vst [vmem:[#allocation3 + $0xa8] sm:$0xff] %v2429
        %2484 = vst [vmem:[#allocation3 + $0xb0] sm:$0xff] %v2430
        %2485 = vst [vmem:[#allocation3 + $0xb8] sm:$0xff] %v2431
        %2486 = vst [vmem:[#allocation3 + $0xc0] sm:$0xff] %v2432
        %2487 = vst [vmem:[#allocation3 + $0xc8] sm:$0xff] %v2433
        %2488 = vst [vmem:[#allocation3 + $0xd0] sm:$0xff] %v2434
        %2489 = vst [vmem:[#allocation3 + $0xd8] sm:$0xff] %v2435
        %2490 = vst [vmem:[#allocation3 + $0xe0] sm:$0xff] %v2436
        %2491 = vst [vmem:[#allocation3 + $0xe8] sm:$0xff] %v2437
        %2492 = vst [vmem:[#allocation3 + $0xf0] sm:$0xff] %v2438
        %2493 = vst [vmem:[#allocation3 + $0xf8] sm:$0xff] %v2439
        %2494 = vst [vmem:[#allocation3 + $0x100] sm:$0xff] %v2440
        %2495 = vst [vmem:[#allocation3 + $0x108] sm:$0xff] %v2441
        %2496 = vst [vmem:[#allocation3 + $0x110] sm:$0xff] %v2442
        %2497 = vst [vmem:[#allocation3 + $0x118] sm:$0xff] %v2443
        %2498 = vst [vmem:[#allocation3 + $0x120] sm:$0xff] %v2444
        %2499 = vst [vmem:[#allocation3 + $0x128] sm:$0xff] %v2445
        %2500 = vst [vmem:[#allocation3 + $0x130] sm:$0xff] %v2446
        %2501 = vst [vmem:[#allocation3 + $0x138] sm:$0xff] %v2447
        %2502 = vst [vmem:[#allocation3 + $0x140] sm:$0xff] %v2448
        %2503 = vst [vmem:[#allocation3 + $0x148] sm:$0xff] %v2449
        %2504 = vst [vmem:[#allocation3 + $0x150] sm:$0xff] %v2450
        %2505 = vst [vmem:[#allocation3 + $0x158] sm:$0xff] %v2451
        %2506 = vst [vmem:[#allocation3 + $0x160] sm:$0xff] %v2452
        %2507 = vst [vmem:[#allocation3 + $0x168] sm:$0xff] %v2453
        %2508 = vst [vmem:[#allocation3 + $0x170] sm:$0xff] %v2454
        %2509 = vst [vmem:[#allocation3 + $0x178] sm:$0xff] %v2455
        %2510 = vst [vmem:[#allocation3 + $0x180] sm:$0xff] %v2456
        %2511 = vst [vmem:[#allocation3 + $0x188] sm:$0xff] %v2457
        %2512 = vst [vmem:[#allocation3 + $0x190] sm:$0xff] %v2458
        %2513 = vst [vmem:[#allocation3 + $0x198] sm:$0xff] %v2459
        %2514 = vst [vmem:[#allocation3 + $0x1a0] sm:$0xff] %v2460
        %2515 = vst [vmem:[#allocation3 + $0x1a8] sm:$0xff] %v2461
        %v2516 = vld [vmem:[#allocation2 + $0x8] sm:$0xf0]
        %v2517 = vld [vmem:[#allocation2 + $0x10] sm:$0xff]
        %v2518 = vld [vmem:[#allocation2 + $0x18] sm:$0xff]
        %v2519 = vld [vmem:[#allocation2 + $0x20] sm:$0xff]
        %v2520 = vld [vmem:[#allocation2 + $0x28] sm:$0xff]
        %v2521 = vld [vmem:[#allocation2 + $0x30] sm:$0xff]
        %v2522 = vld [vmem:[#allocation2 + $0x38] sm:$0xff]
        %v2523 = vld [vmem:[#allocation2 + $0x40] sm:$0xff]
        %v2524 = vld [vmem:[#allocation2 + $0x48] sm:$0xff]
        %v2525 = vld [vmem:[#allocation2 + $0x50] sm:$0xff]
        %v2526 = vld [vmem:[#allocation2 + $0x58] sm:$0xff]
        %v2527 = vld [vmem:[#allocation2 + $0x60] sm:$0xff]
        %v2528 = vld [vmem:[#allocation2 + $0x68] sm:$0xff]
        %v2529 = vld [vmem:[#allocation2 + $0x70] sm:$0xff]
        %v2530 = vld [vmem:[#allocation2 + $0x78] sm:$0xff]
        %v2531 = vld [vmem:[#allocation2 + $0x80] sm:$0xff]
        %v2532 = vld [vmem:[#allocation2 + $0x88] sm:$0xff]
        %v2533 = vld [vmem:[#allocation2 + $0x90] sm:$0xff]
        %v2534 = vld [vmem:[#allocation2 + $0x98] sm:$0xff]
        %v2535 = vld [vmem:[#allocation2 + $0xa0] sm:$0xff]
        %v2536 = vld [vmem:[#allocation2 + $0xa8] sm:$0xff]
        %v2537 = vld [vmem:[#allocation2 + $0xb0] sm:$0xff]
        %v2538 = vld [vmem:[#allocation2 + $0xb8] sm:$0xff]
        %v2539 = vld [vmem:[#allocation2 + $0xc0] sm:$0xff]
        %v2540 = vld [vmem:[#allocation2 + $0xc8] sm:$0xff]
        %v2541 = vld [vmem:[#allocation2 + $0xd0] sm:$0xff]
        %v2542 = vld [vmem:[#allocation2 + $0xd8] sm:$0xff]
        %v2543 = vld [vmem:[#allocation2 + $0xe0] sm:$0xf]
        %s2544 = sadd.s32 %s772, 3
        %s2545 = smul.u32 %s2544, 16
        %s2546 = smul.addr %s2545, 4
        %s2547 = scalar_lea.vmem %s1, %s2546
        %v2548 = vld [vmem:[%s2547] sm:$0xf]
        %v2549 = vld [vmem:[%s2547 + $0x4] sm:$0xf]
        %v2550 = vld [vmem:[%s2547 + $0x8] sm:$0xf]
        %v2551 = vld [vmem:[%s2547 + $0xc] sm:$0xf]
        %v2552 = vld [vmem:[%s2547 + $0x10] sm:$0xf]
        %v2553 = vld [vmem:[%s2547 + $0x14] sm:$0xf]
        %v2554 = vld [vmem:[%s2547 + $0x18] sm:$0xf]
        %v2555 = vld [vmem:[%s2547 + $0x1c] sm:$0xf]
        %v2556 = vld [vmem:[%s2547 + $0x20] sm:$0xf]
        %v2557 = vld [vmem:[%s2547 + $0x24] sm:$0xf]
        %v2558 = vld [vmem:[%s2547 + $0x28] sm:$0xf]
        %v2559 = vld [vmem:[%s2547 + $0x2c] sm:$0xf]
        %v2560 = vld [vmem:[%s2547 + $0x30] sm:$0xf]
        %v2561 = vld [vmem:[%s2547 + $0x34] sm:$0xf]
        %v2562 = vld [vmem:[%s2547 + $0x38] sm:$0xf]
        %v2563 = vld [vmem:[%s2547 + $0x3c] sm:$0xf]
        %vm2592 = vcmask 1043456
        %v2593 = vrot.slane %v2516, 4
        %v2594 = vrot.slane %v2517, 4
        %v2595 = vsel %vm2592, %v2593, %v2594
        %v2596 = vrot.slane %v2518, 4
        %v2597 = vsel %vm2592, %v2594, %v2596
        %v2598 = vrot.slane %v2519, 4
        %v2599 = vsel %vm2592, %v2596, %v2598
        %v2600 = vrot.slane %v2520, 4
        %v2601 = vsel %vm2592, %v2598, %v2600
        %v2602 = vrot.slane %v2521, 4
        %v2603 = vsel %vm2592, %v2600, %v2602
        %v2604 = vrot.slane %v2522, 4
        %v2605 = vsel %vm2592, %v2602, %v2604
        %v2606 = vrot.slane %v2523, 4
        %v2607 = vsel %vm2592, %v2604, %v2606
        %v2608 = vrot.slane %v2524, 4
        %v2609 = vsel %vm2592, %v2606, %v2608
        %v2610 = vrot.slane %v2525, 4
        %v2611 = vsel %vm2592, %v2608, %v2610
        %v2612 = vrot.slane %v2526, 4
        %v2613 = vsel %vm2592, %v2610, %v2612
        %v2614 = vrot.slane %v2527, 4
        %v2615 = vsel %vm2592, %v2612, %v2614
        %v2616 = vrot.slane %v2528, 4
        %v2617 = vsel %vm2592, %v2614, %v2616
        %v2618 = vrot.slane %v2529, 4
        %v2619 = vsel %vm2592, %v2616, %v2618
        %v2620 = vrot.slane %v2530, 4
        %v2621 = vsel %vm2592, %v2618, %v2620
        %v2622 = vrot.slane %v2531, 4
        %v2623 = vsel %vm2592, %v2620, %v2622
        %v2624 = vrot.slane %v2532, 4
        %v2625 = vsel %vm2592, %v2622, %v2624
        %v2626 = vrot.slane %v2533, 4
        %v2627 = vsel %vm2592, %v2624, %v2626
        %v2628 = vrot.slane %v2534, 4
        %v2629 = vsel %vm2592, %v2626, %v2628
        %v2630 = vrot.slane %v2535, 4
        %v2631 = vsel %vm2592, %v2628, %v2630
        %v2632 = vrot.slane %v2536, 4
        %v2633 = vsel %vm2592, %v2630, %v2632
        %v2634 = vrot.slane %v2537, 4
        %v2635 = vsel %vm2592, %v2632, %v2634
        %v2636 = vrot.slane %v2538, 4
        %v2637 = vsel %vm2592, %v2634, %v2636
        %v2638 = vrot.slane %v2539, 4
        %v2639 = vsel %vm2592, %v2636, %v2638
        %v2640 = vrot.slane %v2540, 4
        %v2641 = vsel %vm2592, %v2638, %v2640
        %v2642 = vrot.slane %v2541, 4
        %v2643 = vsel %vm2592, %v2640, %v2642
        %v2644 = vrot.slane %v2542, 4
        %v2645 = vsel %vm2592, %v2642, %v2644
        %v2646 = vrot.slane %v2543, 4
        %v2647 = vsel %vm2592, %v2644, %v2646
        %v2691 = vunpack.c.l.b16 %v2548
        %v2692 = vunpack.c.l.b16 %v2549
        %v2693 = vunpack.c.l.b16 %v2550
        %v2694 = vunpack.c.l.b16 %v2551
        %v2695 = vunpack.c.l.b16 %v2552
        %v2696 = vunpack.c.l.b16 %v2553
        %v2697 = vunpack.c.l.b16 %v2554
        %v2698 = vunpack.c.l.b16 %v2555
        %v2699 = vunpack.c.l.b16 %v2556
        %v2700 = vunpack.c.l.b16 %v2557
        %v2701 = vunpack.c.l.b16 %v2558
        %v2702 = vunpack.c.l.b16 %v2559
        %v2703 = vunpack.c.l.b16 %v2560
        %v2704 = vunpack.c.l.b16 %v2561
        %v2705 = vunpack.c.l.b16 %v2562
        %v2706 = vunpack.c.l.b16 %v2563
        %v2707 = vpack.c.b16 %v2692, %v2691
        %v2708 = vpack.c.b16 %v2694, %v2693
        %v2709 = vpack.c.b16 %v2696, %v2695
        %v2710 = vpack.c.b16 %v2698, %v2697
        %v2711 = vpack.c.b16 %v2700, %v2699
        %v2712 = vpack.c.b16 %v2702, %v2701
        %v2713 = vpack.c.b16 %v2704, %v2703
        %v2714 = vpack.c.b16 %v2706, %v2705
        %2723 = vmatprep.subr.bf16.mxu0 0
        %2724 = vmatpush1.bf16.msra.mxu0 %v2707
        %2725 = vmatprep.subr.bf16.mxu0 0
        %2726 = vmatpush1.bf16.msra.mxu0 %v2708
        %2727 = vmatprep.subr.bf16.mxu0 0
        %2728 = vmatpush1.bf16.msra.mxu0 %v2709
        %2729 = vmatprep.subr.bf16.mxu0 0
        %2730 = vmatpush1.bf16.msra.mxu0 %v2710
        %2731 = vmatprep.subr.bf16.mxu0 0
        %2732 = vmatpush1.bf16.msra.mxu0 %v2711
        %2733 = vmatprep.subr.bf16.mxu0 0
        %2734 = vmatpush1.bf16.msra.mxu0 %v2712
        %2735 = vmatprep.subr.bf16.mxu0 0
        %2736 = vmatpush1.bf16.msra.mxu0 %v2713
        %2737 = vmatprep.subr.bf16.mxu0 0
        %2738 = vmatpush1.bf16.msra.mxu0 %v2714
        %2739 = vmatprep.subr.bf16.mxu0 0
        %2740 = vmatpush1.bf16.msra.mxu0 0
        %2741 = vmatprep.subr.bf16.mxu0 0
        %2742 = vmatpush1.bf16.msra.mxu0 0
        %2743 = vmatprep.subr.bf16.mxu0 0
        %2744 = vmatpush1.bf16.msra.mxu0 0
        %2745 = vmatprep.subr.bf16.mxu0 0
        %2746 = vmatpush1.bf16.msra.mxu0 0
        %2747 = vmatprep.subr.bf16.mxu0 0
        %2748 = vmatpush1.bf16.msra.mxu0 0
        %2749 = vmatprep.subr.bf16.mxu0 0
        %2750 = vmatpush1.bf16.msra.mxu0 0
        %2751 = vmatprep.subr.bf16.mxu0 0
        %2752 = vmatpush1.bf16.msra.mxu0 0
        %2753 = vmatprep.subr.bf16.mxu0 0
        %2754 = vmatpush1.bf16.msra.mxu0 0
        %2755 = vmatprep.mubr.bf16.mxu0 0
        %2756 = vmatmul.mubr.bf16.gmra.mrb[0].mxu0 %v2595
        %v2757 = vpop.f32.mrb[0].mxu0
        %v2758 = vadd.f32 0.0, %v2757
        %v2759 = vpop.f32.mrb[0].mxu0
        %v2760 = vpop.f32.mrb[0].mxu0
        %v2761 = vadd.f32 0.0, %v2760
        %v2762 = vpop.f32.mrb[0].mxu0
        %2763 = vmatprep.mubr.bf16.mxu0 0
        %2764 = vmatmul.mubr.bf16.gmra.mrb[0].mxu0 %v2597
        %v2765 = vpop.f32.mrb[0].mxu0
        %v2766 = vadd.f32 0.0, %v2765
        %v2767 = vpop.f32.mrb[0].mxu0
        %v2768 = vpop.f32.mrb[0].mxu0
        %v2769 = vadd.f32 0.0, %v2768
        %v2770 = vpop.f32.mrb[0].mxu0
        %2771 = vmatprep.mubr.bf16.mxu0 0
        %2772 = vmatmul.mubr.bf16.gmra.mrb[0].mxu0 %v2599
        %v2773 = vpop.f32.mrb[0].mxu0
        %v2774 = vadd.f32 0.0, %v2773
        %v2775 = vpop.f32.mrb[0].mxu0
        %v2776 = vpop.f32.mrb[0].mxu0
        %v2777 = vadd.f32 0.0, %v2776
        %v2778 = vpop.f32.mrb[0].mxu0
        %2779 = vmatprep.mubr.bf16.mxu0 0
        %2780 = vmatmul.mubr.bf16.gmra.mrb[0].mxu0 %v2601
        %v2781 = vpop.f32.mrb[0].mxu0
        %v2782 = vadd.f32 0.0, %v2781
        %v2783 = vpop.f32.mrb[0].mxu0
        %v2784 = vpop.f32.mrb[0].mxu0
        %v2785 = vadd.f32 0.0, %v2784
        %v2786 = vpop.f32.mrb[0].mxu0
        %2787 = vmatprep.mubr.bf16.mxu0 0
        %2788 = vmatmul.mubr.bf16.gmra.mrb[0].mxu0 %v2603
        %v2789 = vpop.f32.mrb[0].mxu0
        %v2790 = vadd.f32 0.0, %v2789
        %v2791 = vpop.f32.mrb[0].mxu0
        %v2792 = vpop.f32.mrb[0].mxu0
        %v2793 = vadd.f32 0.0, %v2792
        %v2794 = vpop.f32.mrb[0].mxu0
        %2795 = vmatprep.mubr.bf16.mxu0 0
        %2796 = vmatmul.mubr.bf16.gmra.mrb[0].mxu0 %v2605
        %v2797 = vpop.f32.mrb[0].mxu0
        %v2798 = vadd.f32 0.0, %v2797
        %v2799 = vpop.f32.mrb[0].mxu0
        %v2800 = vpop.f32.mrb[0].mxu0
        %v2801 = vadd.f32 0.0, %v2800
        %v2802 = vpop.f32.mrb[0].mxu0
        %2803 = vmatprep.mubr.bf16.mxu0 0
        %2804 = vmatmul.mubr.bf16.gmra.mrb[0].mxu0 %v2607
        %v2805 = vpop.f32.mrb[0].mxu0
        %v2806 = vadd.f32 0.0, %v2805
        %v2807 = vpop.f32.mrb[0].mxu0
        %v2808 = vpop.f32.mrb[0].mxu0
        %v2809 = vadd.f32 0.0, %v2808
        %v2810 = vpop.f32.mrb[0].mxu0
        %2811 = vmatprep.mubr.bf16.mxu0 0
        %2812 = vmatmul.mubr.bf16.gmra.mrb[0].mxu0 %v2609
        %v2813 = vpop.f32.mrb[0].mxu0
        %v2814 = vadd.f32 0.0, %v2813
        %v2815 = vpop.f32.mrb[0].mxu0
        %v2816 = vpop.f32.mrb[0].mxu0
        %v2817 = vadd.f32 0.0, %v2816
        %v2818 = vpop.f32.mrb[0].mxu0
        %2819 = vmatprep.mubr.bf16.mxu0 0
        %2820 = vmatmul.mubr.bf16.gmra.mrb[0].mxu0 %v2611
        %v2821 = vpop.f32.mrb[0].mxu0
        %v2822 = vadd.f32 0.0, %v2821
        %v2823 = vpop.f32.mrb[0].mxu0
        %v2824 = vpop.f32.mrb[0].mxu0
        %v2825 = vadd.f32 0.0, %v2824
        %v2826 = vpop.f32.mrb[0].mxu0
        %2827 = vmatprep.mubr.bf16.mxu0 0
        %2828 = vmatmul.mubr.bf16.gmra.mrb[0].mxu0 %v2613
        %v2829 = vpop.f32.mrb[0].mxu0
        %v2830 = vadd.f32 0.0, %v2829
        %v2831 = vpop.f32.mrb[0].mxu0
        %v2832 = vpop.f32.mrb[0].mxu0
        %v2833 = vadd.f32 0.0, %v2832
        %v2834 = vpop.f32.mrb[0].mxu0
        %2835 = vmatprep.mubr.bf16.mxu0 0
        %2836 = vmatmul.mubr.bf16.gmra.mrb[0].mxu0 %v2615
        %v2837 = vpop.f32.mrb[0].mxu0
        %v2838 = vadd.f32 0.0, %v2837
        %v2839 = vpop.f32.mrb[0].mxu0
        %v2840 = vpop.f32.mrb[0].mxu0
        %v2841 = vadd.f32 0.0, %v2840
        %v2842 = vpop.f32.mrb[0].mxu0
        %2843 = vmatprep.mubr.bf16.mxu0 0
        %2844 = vmatmul.mubr.bf16.gmra.mrb[0].mxu0 %v2617
        %v2845 = vpop.f32.mrb[0].mxu0
        %v2846 = vadd.f32 0.0, %v2845
        %v2847 = vpop.f32.mrb[0].mxu0
        %v2848 = vpop.f32.mrb[0].mxu0
        %v2849 = vadd.f32 0.0, %v2848
        %v2850 = vpop.f32.mrb[0].mxu0
        %2851 = vmatprep.mubr.bf16.mxu0 0
        %2852 = vmatmul.mubr.bf16.gmra.mrb[0].mxu0 %v2619
        %v2853 = vpop.f32.mrb[0].mxu0
        %v2854 = vadd.f32 0.0, %v2853
        %v2855 = vpop.f32.mrb[0].mxu0
        %v2856 = vpop.f32.mrb[0].mxu0
        %v2857 = vadd.f32 0.0, %v2856
        %v2858 = vpop.f32.mrb[0].mxu0
        %2859 = vmatprep.mubr.bf16.mxu0 0
        %2860 = vmatmul.mubr.bf16.gmra.mrb[0].mxu0 %v2621
        %v2861 = vpop.f32.mrb[0].mxu0
        %v2862 = vadd.f32 0.0, %v2861
        %v2863 = vpop.f32.mrb[0].mxu0
        %v2864 = vpop.f32.mrb[0].mxu0
        %v2865 = vadd.f32 0.0, %v2864
        %v2866 = vpop.f32.mrb[0].mxu0
        %2867 = vmatprep.mubr.bf16.mxu0 0
        %2868 = vmatmul.mubr.bf16.gmra.mrb[0].mxu0 %v2623
        %v2869 = vpop.f32.mrb[0].mxu0
        %v2870 = vadd.f32 0.0, %v2869
        %v2871 = vpop.f32.mrb[0].mxu0
        %v2872 = vpop.f32.mrb[0].mxu0
        %v2873 = vadd.f32 0.0, %v2872
        %v2874 = vpop.f32.mrb[0].mxu0
        %2875 = vmatprep.mubr.bf16.mxu0 0
        %2876 = vmatmul.mubr.bf16.gmra.mrb[0].mxu0 %v2625
        %v2877 = vpop.f32.mrb[0].mxu0
        %v2878 = vadd.f32 0.0, %v2877
        %v2879 = vpop.f32.mrb[0].mxu0
        %v2880 = vpop.f32.mrb[0].mxu0
        %v2881 = vadd.f32 0.0, %v2880
        %v2882 = vpop.f32.mrb[0].mxu0
        %2883 = vmatprep.mubr.bf16.mxu0 0
        %2884 = vmatmul.mubr.bf16.gmra.mrb[0].mxu0 %v2627
        %v2885 = vpop.f32.mrb[0].mxu0
        %v2886 = vadd.f32 0.0, %v2885
        %v2887 = vpop.f32.mrb[0].mxu0
        %v2888 = vpop.f32.mrb[0].mxu0
        %v2889 = vadd.f32 0.0, %v2888
        %v2890 = vpop.f32.mrb[0].mxu0
        %2891 = vmatprep.mubr.bf16.mxu0 0
        %2892 = vmatmul.mubr.bf16.gmra.mrb[0].mxu0 %v2629
        %v2893 = vpop.f32.mrb[0].mxu0
        %v2894 = vadd.f32 0.0, %v2893
        %v2895 = vpop.f32.mrb[0].mxu0
        %v2896 = vpop.f32.mrb[0].mxu0
        %v2897 = vadd.f32 0.0, %v2896
        %v2898 = vpop.f32.mrb[0].mxu0
        %2899 = vmatprep.mubr.bf16.mxu0 0
        %2900 = vmatmul.mubr.bf16.gmra.mrb[0].mxu0 %v2631
        %v2901 = vpop.f32.mrb[0].mxu0
        %v2902 = vadd.f32 0.0, %v2901
        %v2903 = vpop.f32.mrb[0].mxu0
        %v2904 = vpop.f32.mrb[0].mxu0
        %v2905 = vadd.f32 0.0, %v2904
        %v2906 = vpop.f32.mrb[0].mxu0
        %2907 = vmatprep.mubr.bf16.mxu0 0
        %2908 = vmatmul.mubr.bf16.gmra.mrb[0].mxu0 %v2633
        %v2909 = vpop.f32.mrb[0].mxu0
        %v2910 = vadd.f32 0.0, %v2909
        %v2911 = vpop.f32.mrb[0].mxu0
        %v2912 = vpop.f32.mrb[0].mxu0
        %v2913 = vadd.f32 0.0, %v2912
        %v2914 = vpop.f32.mrb[0].mxu0
        %2915 = vmatprep.mubr.bf16.mxu0 0
        %2916 = vmatmul.mubr.bf16.gmra.mrb[0].mxu0 %v2635
        %v2917 = vpop.f32.mrb[0].mxu0
        %v2918 = vadd.f32 0.0, %v2917
        %v2919 = vpop.f32.mrb[0].mxu0
        %v2920 = vpop.f32.mrb[0].mxu0
        %v2921 = vadd.f32 0.0, %v2920
        %v2922 = vpop.f32.mrb[0].mxu0
        %2923 = vmatprep.mubr.bf16.mxu0 0
        %2924 = vmatmul.mubr.bf16.gmra.mrb[0].mxu0 %v2637
        %v2925 = vpop.f32.mrb[0].mxu0
        %v2926 = vadd.f32 0.0, %v2925
        %v2927 = vpop.f32.mrb[0].mxu0
        %v2928 = vpop.f32.mrb[0].mxu0
        %v2929 = vadd.f32 0.0, %v2928
        %v2930 = vpop.f32.mrb[0].mxu0
        %2931 = vmatprep.mubr.bf16.mxu0 0
        %2932 = vmatmul.mubr.bf16.gmra.mrb[0].mxu0 %v2639
        %v2933 = vpop.f32.mrb[0].mxu0
        %v2934 = vadd.f32 0.0, %v2933
        %v2935 = vpop.f32.mrb[0].mxu0
        %v2936 = vpop.f32.mrb[0].mxu0
        %v2937 = vadd.f32 0.0, %v2936
        %v2938 = vpop.f32.mrb[0].mxu0
        %2939 = vmatprep.mubr.bf16.mxu0 0
        %2940 = vmatmul.mubr.bf16.gmra.mrb[0].mxu0 %v2641
        %v2941 = vpop.f32.mrb[0].mxu0
        %v2942 = vadd.f32 0.0, %v2941
        %v2943 = vpop.f32.mrb[0].mxu0
        %v2944 = vpop.f32.mrb[0].mxu0
        %v2945 = vadd.f32 0.0, %v2944
        %v2946 = vpop.f32.mrb[0].mxu0
        %2947 = vmatprep.mubr.bf16.mxu0 0
        %2948 = vmatmul.mubr.bf16.gmra.mrb[0].mxu0 %v2643
        %v2949 = vpop.f32.mrb[0].mxu0
        %v2950 = vadd.f32 0.0, %v2949
        %v2951 = vpop.f32.mrb[0].mxu0
        %v2952 = vpop.f32.mrb[0].mxu0
        %v2953 = vadd.f32 0.0, %v2952
        %v2954 = vpop.f32.mrb[0].mxu0
        %2955 = vmatprep.mubr.bf16.mxu0 0
        %2956 = vmatmul.mubr.bf16.gmra.mrb[0].mxu0 %v2645
        %v2957 = vpop.f32.mrb[0].mxu0
        %v2958 = vadd.f32 0.0, %v2957
        %v2959 = vpop.f32.mrb[0].mxu0
        %v2960 = vpop.f32.mrb[0].mxu0
        %v2961 = vadd.f32 0.0, %v2960
        %v2962 = vpop.f32.mrb[0].mxu0
        %2963 = vmatprep.mubr.bf16.mxu0 0
        %2964 = vmatmul.mubr.bf16.gmra.mrb[0].mxu0 %v2647
        %v2965 = vpop.f32.mrb[0].mxu0
        %v2966 = vadd.f32 0.0, %v2965
        %v2967 = vpop.f32.mrb[0].mxu0
        %v2968 = vpop.f32.mrb[0].mxu0
        %v2969 = vadd.f32 0.0, %v2968
        %v2970 = vpop.f32.mrb[0].mxu0
        %2971 = vdwg.mxu0
        %v2972 = vld [vmem:[#allocation3] sm:$0xff]
        %v2973 = vld [vmem:[#allocation3 + $0x8] sm:$0xff]
        %v2974 = vld [vmem:[#allocation3 + $0x10] sm:$0xff]
        %v2975 = vld [vmem:[#allocation3 + $0x18] sm:$0xff]
        %v2976 = vld [vmem:[#allocation3 + $0x20] sm:$0xff]
        %v2977 = vld [vmem:[#allocation3 + $0x28] sm:$0xff]
        %v2978 = vld [vmem:[#allocation3 + $0x30] sm:$0xff]
        %v2979 = vld [vmem:[#allocation3 + $0x38] sm:$0xff]
        %v2980 = vld [vmem:[#allocation3 + $0x40] sm:$0xff]
        %v2981 = vld [vmem:[#allocation3 + $0x48] sm:$0xff]
        %v2982 = vld [vmem:[#allocation3 + $0x50] sm:$0xff]
        %v2983 = vld [vmem:[#allocation3 + $0x58] sm:$0xff]
        %v2984 = vld [vmem:[#allocation3 + $0x60] sm:$0xff]
        %v2985 = vld [vmem:[#allocation3 + $0x68] sm:$0xff]
        %v2986 = vld [vmem:[#allocation3 + $0x70] sm:$0xff]
        %v2987 = vld [vmem:[#allocation3 + $0x78] sm:$0xff]
        %v2988 = vld [vmem:[#allocation3 + $0x80] sm:$0xff]
        %v2989 = vld [vmem:[#allocation3 + $0x88] sm:$0xff]
        %v2990 = vld [vmem:[#allocation3 + $0x90] sm:$0xff]
        %v2991 = vld [vmem:[#allocation3 + $0x98] sm:$0xff]
        %v2992 = vld [vmem:[#allocation3 + $0xa0] sm:$0xff]
        %v2993 = vld [vmem:[#allocation3 + $0xa8] sm:$0xff]
        %v2994 = vld [vmem:[#allocation3 + $0xb0] sm:$0xff]
        %v2995 = vld [vmem:[#allocation3 + $0xb8] sm:$0xff]
        %v2996 = vld [vmem:[#allocation3 + $0xc0] sm:$0xff]
        %v2997 = vld [vmem:[#allocation3 + $0xc8] sm:$0xff]
        %v2998 = vld [vmem:[#allocation3 + $0xd0] sm:$0xff]
        %v2999 = vld [vmem:[#allocation3 + $0xd8] sm:$0xff]
        %v3000 = vld [vmem:[#allocation3 + $0xe0] sm:$0xff]
        %v3001 = vld [vmem:[#allocation3 + $0xe8] sm:$0xff]
        %v3002 = vld [vmem:[#allocation3 + $0xf0] sm:$0xff]
        %v3003 = vld [vmem:[#allocation3 + $0xf8] sm:$0xff]
        %v3004 = vld [vmem:[#allocation3 + $0x100] sm:$0xff]
        %v3005 = vld [vmem:[#allocation3 + $0x108] sm:$0xff]
        %v3006 = vld [vmem:[#allocation3 + $0x110] sm:$0xff]
        %v3007 = vld [vmem:[#allocation3 + $0x118] sm:$0xff]
        %v3008 = vld [vmem:[#allocation3 + $0x120] sm:$0xff]
        %v3009 = vld [vmem:[#allocation3 + $0x128] sm:$0xff]
        %v3010 = vld [vmem:[#allocation3 + $0x130] sm:$0xff]
        %v3011 = vld [vmem:[#allocation3 + $0x138] sm:$0xff]
        %v3012 = vld [vmem:[#allocation3 + $0x140] sm:$0xff]
        %v3013 = vld [vmem:[#allocation3 + $0x148] sm:$0xff]
        %v3014 = vld [vmem:[#allocation3 + $0x150] sm:$0xff]
        %v3015 = vld [vmem:[#allocation3 + $0x158] sm:$0xff]
        %v3016 = vld [vmem:[#allocation3 + $0x160] sm:$0xff]
        %v3017 = vld [vmem:[#allocation3 + $0x168] sm:$0xff]
        %v3018 = vld [vmem:[#allocation3 + $0x170] sm:$0xff]
        %v3019 = vld [vmem:[#allocation3 + $0x178] sm:$0xff]
        %v3020 = vld [vmem:[#allocation3 + $0x180] sm:$0xff]
        %v3021 = vld [vmem:[#allocation3 + $0x188] sm:$0xff]
        %v3022 = vld [vmem:[#allocation3 + $0x190] sm:$0xff]
        %v3023 = vld [vmem:[#allocation3 + $0x198] sm:$0xff]
        %v3024 = vld [vmem:[#allocation3 + $0x1a0] sm:$0xff]
        %v3025 = vld [vmem:[#allocation3 + $0x1a8] sm:$0xff]
        %v3026 = vadd.f32 %v2972, %v2758
        %v3027 = vadd.f32 %v2973, %v2761
        %v3028 = vadd.f32 %v2974, %v2766
        %v3029 = vadd.f32 %v2975, %v2769
        %v3030 = vadd.f32 %v2976, %v2774
        %v3031 = vadd.f32 %v2977, %v2777
        %v3032 = vadd.f32 %v2978, %v2782
        %v3033 = vadd.f32 %v2979, %v2785
        %v3034 = vadd.f32 %v2980, %v2790
        %v3035 = vadd.f32 %v2981, %v2793
        %v3036 = vadd.f32 %v2982, %v2798
        %v3037 = vadd.f32 %v2983, %v2801
        %v3038 = vadd.f32 %v2984, %v2806
        %v3039 = vadd.f32 %v2985, %v2809
        %v3040 = vadd.f32 %v2986, %v2814
        %v3041 = vadd.f32 %v2987, %v2817
        %v3042 = vadd.f32 %v2988, %v2822
        %v3043 = vadd.f32 %v2989, %v2825
        %v3044 = vadd.f32 %v2990, %v2830
        %v3045 = vadd.f32 %v2991, %v2833
        %v3046 = vadd.f32 %v2992, %v2838
        %v3047 = vadd.f32 %v2993, %v2841
        %v3048 = vadd.f32 %v2994, %v2846
        %v3049 = vadd.f32 %v2995, %v2849
        %v3050 = vadd.f32 %v2996, %v2854
        %v3051 = vadd.f32 %v2997, %v2857
        %v3052 = vadd.f32 %v2998, %v2862
        %v3053 = vadd.f32 %v2999, %v2865
        %v3054 = vadd.f32 %v3000, %v2870
        %v3055 = vadd.f32 %v3001, %v2873
        %v3056 = vadd.f32 %v3002, %v2878
        %v3057 = vadd.f32 %v3003, %v2881
        %v3058 = vadd.f32 %v3004, %v2886
        %v3059 = vadd.f32 %v3005, %v2889
        %v3060 = vadd.f32 %v3006, %v2894
        %v3061 = vadd.f32 %v3007, %v2897
        %v3062 = vadd.f32 %v3008, %v2902
        %v3063 = vadd.f32 %v3009, %v2905
        %v3064 = vadd.f32 %v3010, %v2910
        %v3065 = vadd.f32 %v3011, %v2913
        %v3066 = vadd.f32 %v3012, %v2918
        %v3067 = vadd.f32 %v3013, %v2921
        %v3068 = vadd.f32 %v3014, %v2926
        %v3069 = vadd.f32 %v3015, %v2929
        %v3070 = vadd.f32 %v3016, %v2934
        %v3071 = vadd.f32 %v3017, %v2937
        %v3072 = vadd.f32 %v3018, %v2942
        %v3073 = vadd.f32 %v3019, %v2945
        %v3074 = vadd.f32 %v3020, %v2950
        %v3075 = vadd.f32 %v3021, %v2953
        %v3076 = vadd.f32 %v3022, %v2958
        %v3077 = vadd.f32 %v3023, %v2961
        %v3078 = vadd.f32 %v3024, %v2966
        %v3079 = vadd.f32 %v3025, %v2969
        %3080 = vst [vmem:[#allocation3] sm:$0xff] %v3026
        %3081 = vst [vmem:[#allocation3 + $0x8] sm:$0xff] %v3027
        %3082 = vst [vmem:[#allocation3 + $0x10] sm:$0xff] %v3028
        %3083 = vst [vmem:[#allocation3 + $0x18] sm:$0xff] %v3029
        %3084 = vst [vmem:[#allocation3 + $0x20] sm:$0xff] %v3030
        %3085 = vst [vmem:[#allocation3 + $0x28] sm:$0xff] %v3031
        %3086 = vst [vmem:[#allocation3 + $0x30] sm:$0xff] %v3032
        %3087 = vst [vmem:[#allocation3 + $0x38] sm:$0xff] %v3033
        %3088 = vst [vmem:[#allocation3 + $0x40] sm:$0xff] %v3034
        %3089 = vst [vmem:[#allocation3 + $0x48] sm:$0xff] %v3035
        %3090 = vst [vmem:[#allocation3 + $0x50] sm:$0xff] %v3036
        %3091 = vst [vmem:[#allocation3 + $0x58] sm:$0xff] %v3037
        %3092 = vst [vmem:[#allocation3 + $0x60] sm:$0xff] %v3038
        %3093 = vst [vmem:[#allocation3 + $0x68] sm:$0xff] %v3039
        %3094 = vst [vmem:[#allocation3 + $0x70] sm:$0xff] %v3040
        %3095 = vst [vmem:[#allocation3 + $0x78] sm:$0xff] %v3041
        %3096 = vst [vmem:[#allocation3 + $0x80] sm:$0xff] %v3042
        %3097 = vst [vmem:[#allocation3 + $0x88] sm:$0xff] %v3043
        %3098 = vst [vmem:[#allocation3 + $0x90] sm:$0xff] %v3044
        %3099 = vst [vmem:[#allocation3 + $0x98] sm:$0xff] %v3045
        %3100 = vst [vmem:[#allocation3 + $0xa0] sm:$0xff] %v3046
        %3101 = vst [vmem:[#allocation3 + $0xa8] sm:$0xff] %v3047
        %3102 = vst [vmem:[#allocation3 + $0xb0] sm:$0xff] %v3048
        %3103 = vst [vmem:[#allocation3 + $0xb8] sm:$0xff] %v3049
        %3104 = vst [vmem:[#allocation3 + $0xc0] sm:$0xff] %v3050
        %3105 = vst [vmem:[#allocation3 + $0xc8] sm:$0xff] %v3051
        %3106 = vst [vmem:[#allocation3 + $0xd0] sm:$0xff] %v3052
        %3107 = vst [vmem:[#allocation3 + $0xd8] sm:$0xff] %v3053
        %3108 = vst [vmem:[#allocation3 + $0xe0] sm:$0xff] %v3054
        %3109 = vst [vmem:[#allocation3 + $0xe8] sm:$0xff] %v3055
        %3110 = vst [vmem:[#allocation3 + $0xf0] sm:$0xff] %v3056
        %3111 = vst [vmem:[#allocation3 + $0xf8] sm:$0xff] %v3057
        %3112 = vst [vmem:[#allocation3 + $0x100] sm:$0xff] %v3058
        %3113 = vst [vmem:[#allocation3 + $0x108] sm:$0xff] %v3059
        %3114 = vst [vmem:[#allocation3 + $0x110] sm:$0xff] %v3060
        %3115 = vst [vmem:[#allocation3 + $0x118] sm:$0xff] %v3061
        %3116 = vst [vmem:[#allocation3 + $0x120] sm:$0xff] %v3062
        %3117 = vst [vmem:[#allocation3 + $0x128] sm:$0xff] %v3063
        %3118 = vst [vmem:[#allocation3 + $0x130] sm:$0xff] %v3064
        %3119 = vst [vmem:[#allocation3 + $0x138] sm:$0xff] %v3065
        %3120 = vst [vmem:[#allocation3 + $0x140] sm:$0xff] %v3066
        %3121 = vst [vmem:[#allocation3 + $0x148] sm:$0xff] %v3067
        %3122 = vst [vmem:[#allocation3 + $0x150] sm:$0xff] %v3068
        %3123 = vst [vmem:[#allocation3 + $0x158] sm:$0xff] %v3069
        %3124 = vst [vmem:[#allocation3 + $0x160] sm:$0xff] %v3070
        %3125 = vst [vmem:[#allocation3 + $0x168] sm:$0xff] %v3071
        %3126 = vst [vmem:[#allocation3 + $0x170] sm:$0xff] %v3072
        %3127 = vst [vmem:[#allocation3 + $0x178] sm:$0xff] %v3073
        %3128 = vst [vmem:[#allocation3 + $0x180] sm:$0xff] %v3074
        %3129 = vst [vmem:[#allocation3 + $0x188] sm:$0xff] %v3075
        %3130 = vst [vmem:[#allocation3 + $0x190] sm:$0xff] %v3076
        %3131 = vst [vmem:[#allocation3 + $0x198] sm:$0xff] %v3077
        %3132 = vst [vmem:[#allocation3 + $0x1a0] sm:$0xff] %v3078
        %3133 = vst [vmem:[#allocation3 + $0x1a8] sm:$0xff] %v3079
        %v3134 = vld [vmem:[#allocation2 + $0x8] sm:$0xf0]
        %v3135 = vld [vmem:[#allocation2 + $0x10] sm:$0xff]
        %v3136 = vld [vmem:[#allocation2 + $0x18] sm:$0xff]
        %v3137 = vld [vmem:[#allocation2 + $0x20] sm:$0xff]
        %v3138 = vld [vmem:[#allocation2 + $0x28] sm:$0xff]
        %v3139 = vld [vmem:[#allocation2 + $0x30] sm:$0xff]
        %v3140 = vld [vmem:[#allocation2 + $0x38] sm:$0xff]
        %v3141 = vld [vmem:[#allocation2 + $0x40] sm:$0xff]
        %v3142 = vld [vmem:[#allocation2 + $0x48] sm:$0xff]
        %v3143 = vld [vmem:[#allocation2 + $0x50] sm:$0xff]
        %v3144 = vld [vmem:[#allocation2 + $0x58] sm:$0xff]
        %v3145 = vld [vmem:[#allocation2 + $0x60] sm:$0xff]
        %v3146 = vld [vmem:[#allocation2 + $0x68] sm:$0xff]
        %v3147 = vld [vmem:[#allocation2 + $0x70] sm:$0xff]
        %v3148 = vld [vmem:[#allocation2 + $0x78] sm:$0xff]
        %v3149 = vld [vmem:[#allocation2 + $0x80] sm:$0xff]
        %v3150 = vld [vmem:[#allocation2 + $0x88] sm:$0xff]
        %v3151 = vld [vmem:[#allocation2 + $0x90] sm:$0xff]
        %v3152 = vld [vmem:[#allocation2 + $0x98] sm:$0xff]
        %v3153 = vld [vmem:[#allocation2 + $0xa0] sm:$0xff]
        %v3154 = vld [vmem:[#allocation2 + $0xa8] sm:$0xff]
        %v3155 = vld [vmem:[#allocation2 + $0xb0] sm:$0xff]
        %v3156 = vld [vmem:[#allocation2 + $0xb8] sm:$0xff]
        %v3157 = vld [vmem:[#allocation2 + $0xc0] sm:$0xff]
        %v3158 = vld [vmem:[#allocation2 + $0xc8] sm:$0xff]
        %v3159 = vld [vmem:[#allocation2 + $0xd0] sm:$0xff]
        %v3160 = vld [vmem:[#allocation2 + $0xd8] sm:$0xff]
        %v3161 = vld [vmem:[#allocation2 + $0xe0] sm:$0x1f]
        %s3162 = sadd.s32 %s772, 4
        %s3163 = smul.u32 %s3162, 16
        %s3164 = smul.addr %s3163, 4
        %s3165 = scalar_lea.vmem %s1, %s3164
        %v3166 = vld [vmem:[%s3165] sm:$0xf]
        %v3167 = vld [vmem:[%s3165 + $0x4] sm:$0xf]
        %v3168 = vld [vmem:[%s3165 + $0x8] sm:$0xf]
        %v3169 = vld [vmem:[%s3165 + $0xc] sm:$0xf]
        %v3170 = vld [vmem:[%s3165 + $0x10] sm:$0xf]
        %v3171 = vld [vmem:[%s3165 + $0x14] sm:$0xf]
        %v3172 = vld [vmem:[%s3165 + $0x18] sm:$0xf]
        %v3173 = vld [vmem:[%s3165 + $0x1c] sm:$0xf]
        %v3174 = vld [vmem:[%s3165 + $0x20] sm:$0xf]
        %v3175 = vld [vmem:[%s3165 + $0x24] sm:$0xf]
        %v3176 = vld [vmem:[%s3165 + $0x28] sm:$0xf]
        %v3177 = vld [vmem:[%s3165 + $0x2c] sm:$0xf]
        %v3178 = vld [vmem:[%s3165 + $0x30] sm:$0xf]
        %v3179 = vld [vmem:[%s3165 + $0x34] sm:$0xf]
        %v3180 = vld [vmem:[%s3165 + $0x38] sm:$0xf]
        %v3181 = vld [vmem:[%s3165 + $0x3c] sm:$0xf]
        %vm3182 = vsmask.f32 3328
        %v3184 = vshrl.u32 %v3134, 16
        %v3186 = vrot.slane %v3184, 4
        %v3187 = vshll.u32 %v3134, 16
        %v3189 = vrot.slane %v3187, 5
        %v3190 = vor.u32 %v3186, %v3189
        %v3192 = vshrl.u32 %v3135, 16
        %v3194 = vrot.slane %v3192, 4
        %v3195 = vshll.u32 %v3135, 16
        %v3197 = vrot.slane %v3195, 5
        %v3198 = vor.u32 %v3194, %v3197
        %v3199 = vsel %vm3182, %v3190, %v3198
        %v3201 = vshrl.u32 %v3136, 16
        %v3203 = vrot.slane %v3201, 4
        %v3204 = vshll.u32 %v3136, 16
        %v3206 = vrot.slane %v3204, 5
        %v3207 = vor.u32 %v3203, %v3206
        %v3208 = vsel %vm3182, %v3198, %v3207
        %v3210 = vshrl.u32 %v3137, 16
        %v3212 = vrot.slane %v3210, 4
        %v3213 = vshll.u32 %v3137, 16
        %v3215 = vrot.slane %v3213, 5
        %v3216 = vor.u32 %v3212, %v3215
        %v3217 = vsel %vm3182, %v3207, %v3216
        %v3219 = vshrl.u32 %v3138, 16
        %v3221 = vrot.slane %v3219, 4
        %v3222 = vshll.u32 %v3138, 16
        %v3224 = vrot.slane %v3222, 5
        %v3225 = vor.u32 %v3221, %v3224
        %v3226 = vsel %vm3182, %v3216, %v3225
        %v3228 = vshrl.u32 %v3139, 16
        %v3230 = vrot.slane %v3228, 4
        %v3231 = vshll.u32 %v3139, 16
        %v3233 = vrot.slane %v3231, 5
        %v3234 = vor.u32 %v3230, %v3233
        %v3235 = vsel %vm3182, %v3225, %v3234
        %v3237 = vshrl.u32 %v3140, 16
        %v3239 = vrot.slane %v3237, 4
        %v3240 = vshll.u32 %v3140, 16
        %v3242 = vrot.slane %v3240, 5
        %v3243 = vor.u32 %v3239, %v3242
        %v3244 = vsel %vm3182, %v3234, %v3243
        %v3246 = vshrl.u32 %v3141, 16
        %v3248 = vrot.slane %v3246, 4
        %v3249 = vshll.u32 %v3141, 16
        %v3251 = vrot.slane %v3249, 5
        %v3252 = vor.u32 %v3248, %v3251
        %v3253 = vsel %vm3182, %v3243, %v3252
        %v3255 = vshrl.u32 %v3142, 16
        %v3257 = vrot.slane %v3255, 4
        %v3258 = vshll.u32 %v3142, 16
        %v3260 = vrot.slane %v3258, 5
        %v3261 = vor.u32 %v3257, %v3260
        %v3262 = vsel %vm3182, %v3252, %v3261
        %v3264 = vshrl.u32 %v3143, 16
        %v3266 = vrot.slane %v3264, 4
        %v3267 = vshll.u32 %v3143, 16
        %v3269 = vrot.slane %v3267, 5
        %v3270 = vor.u32 %v3266, %v3269
        %v3271 = vsel %vm3182, %v3261, %v3270
        %v3273 = vshrl.u32 %v3144, 16
        %v3275 = vrot.slane %v3273, 4
        %v3276 = vshll.u32 %v3144, 16
        %v3278 = vrot.slane %v3276, 5
        %v3279 = vor.u32 %v3275, %v3278
        %v3280 = vsel %vm3182, %v3270, %v3279
        %v3282 = vshrl.u32 %v3145, 16
        %v3284 = vrot.slane %v3282, 4
        %v3285 = vshll.u32 %v3145, 16
        %v3287 = vrot.slane %v3285, 5
        %v3288 = vor.u32 %v3284, %v3287
        %v3289 = vsel %vm3182, %v3279, %v3288
        %v3291 = vshrl.u32 %v3146, 16
        %v3293 = vrot.slane %v3291, 4
        %v3294 = vshll.u32 %v3146, 16
        %v3296 = vrot.slane %v3294, 5
        %v3297 = vor.u32 %v3293, %v3296
        %v3298 = vsel %vm3182, %v3288, %v3297
        %v3300 = vshrl.u32 %v3147, 16
        %v3302 = vrot.slane %v3300, 4
        %v3303 = vshll.u32 %v3147, 16
        %v3305 = vrot.slane %v3303, 5
        %v3306 = vor.u32 %v3302, %v3305
        %v3307 = vsel %vm3182, %v3297, %v3306
        %v3309 = vshrl.u32 %v3148, 16
        %v3311 = vrot.slane %v3309, 4
        %v3312 = vshll.u32 %v3148, 16
        %v3314 = vrot.slane %v3312, 5
        %v3315 = vor.u32 %v3311, %v3314
        %v3316 = vsel %vm3182, %v3306, %v3315
        %v3318 = vshrl.u32 %v3149, 16
        %v3320 = vrot.slane %v3318, 4
        %v3321 = vshll.u32 %v3149, 16
        %v3323 = vrot.slane %v3321, 5
        %v3324 = vor.u32 %v3320, %v3323
        %v3325 = vsel %vm3182, %v3315, %v3324
        %v3327 = vshrl.u32 %v3150, 16
        %v3329 = vrot.slane %v3327, 4
        %v3330 = vshll.u32 %v3150, 16
        %v3332 = vrot.slane %v3330, 5
        %v3333 = vor.u32 %v3329, %v3332
        %v3334 = vsel %vm3182, %v3324, %v3333
        %v3336 = vshrl.u32 %v3151, 16
        %v3338 = vrot.slane %v3336, 4
        %v3339 = vshll.u32 %v3151, 16
        %v3341 = vrot.slane %v3339, 5
        %v3342 = vor.u32 %v3338, %v3341
        %v3343 = vsel %vm3182, %v3333, %v3342
        %v3345 = vshrl.u32 %v3152, 16
        %v3347 = vrot.slane %v3345, 4
        %v3348 = vshll.u32 %v3152, 16
        %v3350 = vrot.slane %v3348, 5
        %v3351 = vor.u32 %v3347, %v3350
        %v3352 = vsel %vm3182, %v3342, %v3351
        %v3354 = vshrl.u32 %v3153, 16
        %v3356 = vrot.slane %v3354, 4
        %v3357 = vshll.u32 %v3153, 16
        %v3359 = vrot.slane %v3357, 5
        %v3360 = vor.u32 %v3356, %v3359
        %v3361 = vsel %vm3182, %v3351, %v3360
        %v3363 = vshrl.u32 %v3154, 16
        %v3365 = vrot.slane %v3363, 4
        %v3366 = vshll.u32 %v3154, 16
        %v3368 = vrot.slane %v3366, 5
        %v3369 = vor.u32 %v3365, %v3368
        %v3370 = vsel %vm3182, %v3360, %v3369
        %v3372 = vshrl.u32 %v3155, 16
        %v3374 = vrot.slane %v3372, 4
        %v3375 = vshll.u32 %v3155, 16
        %v3377 = vrot.slane %v3375, 5
        %v3378 = vor.u32 %v3374, %v3377
        %v3379 = vsel %vm3182, %v3369, %v3378
        %v3381 = vshrl.u32 %v3156, 16
        %v3383 = vrot.slane %v3381, 4
        %v3384 = vshll.u32 %v3156, 16
        %v3386 = vrot.slane %v3384, 5
        %v3387 = vor.u32 %v3383, %v3386
        %v3388 = vsel %vm3182, %v3378, %v3387
        %v3390 = vshrl.u32 %v3157, 16
        %v3392 = vrot.slane %v3390, 4
        %v3393 = vshll.u32 %v3157, 16
        %v3395 = vrot.slane %v3393, 5
        %v3396 = vor.u32 %v3392, %v3395
        %v3397 = vsel %vm3182, %v3387, %v3396
        %v3399 = vshrl.u32 %v3158, 16
        %v3401 = vrot.slane %v3399, 4
        %v3402 = vshll.u32 %v3158, 16
        %v3404 = vrot.slane %v3402, 5
        %v3405 = vor.u32 %v3401, %v3404
        %v3406 = vsel %vm3182, %v3396, %v3405
        %v3408 = vshrl.u32 %v3159, 16
        %v3410 = vrot.slane %v3408, 4
        %v3411 = vshll.u32 %v3159, 16
        %v3413 = vrot.slane %v3411, 5
        %v3414 = vor.u32 %v3410, %v3413
        %v3415 = vsel %vm3182, %v3405, %v3414
        %v3417 = vshrl.u32 %v3160, 16
        %v3419 = vrot.slane %v3417, 4
        %v3420 = vshll.u32 %v3160, 16
        %v3422 = vrot.slane %v3420, 5
        %v3423 = vor.u32 %v3419, %v3422
        %v3424 = vsel %vm3182, %v3414, %v3423
        %v3426 = vshrl.u32 %v3161, 16
        %v3428 = vrot.slane %v3426, 4
        %v3429 = vshll.u32 %v3161, 16
        %v3431 = vrot.slane %v3429, 5
        %v3432 = vor.u32 %v3428, %v3431
        %v3433 = vsel %vm3182, %v3423, %v3432
        %v3477 = vunpack.c.l.b16 %v3166
        %v3478 = vunpack.c.l.b16 %v3167
        %v3479 = vunpack.c.l.b16 %v3168
        %v3480 = vunpack.c.l.b16 %v3169
        %v3481 = vunpack.c.l.b16 %v3170
        %v3482 = vunpack.c.l.b16 %v3171
        %v3483 = vunpack.c.l.b16 %v3172
        %v3484 = vunpack.c.l.b16 %v3173
        %v3485 = vunpack.c.l.b16 %v3174
        %v3486 = vunpack.c.l.b16 %v3175
        %v3487 = vunpack.c.l.b16 %v3176
        %v3488 = vunpack.c.l.b16 %v3177
        %v3489 = vunpack.c.l.b16 %v3178
        %v3490 = vunpack.c.l.b16 %v3179
        %v3491 = vunpack.c.l.b16 %v3180
        %v3492 = vunpack.c.l.b16 %v3181
        %v3493 = vpack.c.b16 %v3478, %v3477
        %v3494 = vpack.c.b16 %v3480, %v3479
        %v3495 = vpack.c.b16 %v3482, %v3481
        %v3496 = vpack.c.b16 %v3484, %v3483
        %v3497 = vpack.c.b16 %v3486, %v3485
        %v3498 = vpack.c.b16 %v3488, %v3487
        %v3499 = vpack.c.b16 %v3490, %v3489
        %v3500 = vpack.c.b16 %v3492, %v3491
        %3509 = vmatprep.subr.bf16.mxu0 0
        %3510 = vmatpush1.bf16.msra.mxu0 %v3493
        %3511 = vmatprep.subr.bf16.mxu0 0
        %3512 = vmatpush1.bf16.msra.mxu0 %v3494
        %3513 = vmatprep.subr.bf16.mxu0 0
        %3514 = vmatpush1.bf16.msra.mxu0 %v3495
        %3515 = vmatprep.subr.bf16.mxu0 0
        %3516 = vmatpush1.bf16.msra.mxu0 %v3496
        %3517 = vmatprep.subr.bf16.mxu0 0
        %3518 = vmatpush1.bf16.msra.mxu0 %v3497
        %3519 = vmatprep.subr.bf16.mxu0 0
        %3520 = vmatpush1.bf16.msra.mxu0 %v3498
        %3521 = vmatprep.subr.bf16.mxu0 0
        %3522 = vmatpush1.bf16.msra.mxu0 %v3499
        %3523 = vmatprep.subr.bf16.mxu0 0
        %3524 = vmatpush1.bf16.msra.mxu0 %v3500
        %3525 = vmatprep.subr.bf16.mxu0 0
        %3526 = vmatpush1.bf16.msra.mxu0 0
        %3527 = vmatprep.subr.bf16.mxu0 0
        %3528 = vmatpush1.bf16.msra.mxu0 0
        %3529 = vmatprep.subr.bf16.mxu0 0
        %3530 = vmatpush1.bf16.msra.mxu0 0
        %3531 = vmatprep.subr.bf16.mxu0 0
        %3532 = vmatpush1.bf16.msra.mxu0 0
        %3533 = vmatprep.subr.bf16.mxu0 0
        %3534 = vmatpush1.bf16.msra.mxu0 0
        %3535 = vmatprep.subr.bf16.mxu0 0
        %3536 = vmatpush1.bf16.msra.mxu0 0
        %3537 = vmatprep.subr.bf16.mxu0 0
        %3538 = vmatpush1.bf16.msra.mxu0 0
        %3539 = vmatprep.subr.bf16.mxu0 0
        %3540 = vmatpush1.bf16.msra.mxu0 0
        %3541 = vmatprep.mubr.bf16.mxu0 0
        %3542 = vmatmul.mubr.bf16.gmra.mrb[0].mxu0 %v3199
        %v3543 = vpop.f32.mrb[0].mxu0
        %v3544 = vadd.f32 0.0, %v3543
        %v3545 = vpop.f32.mrb[0].mxu0
        %v3546 = vpop.f32.mrb[0].mxu0
        %v3547 = vadd.f32 0.0, %v3546
        %v3548 = vpop.f32.mrb[0].mxu0
        %3549 = vmatprep.mubr.bf16.mxu0 0
        %3550 = vmatmul.mubr.bf16.gmra.mrb[0].mxu0 %v3208
        %v3551 = vpop.f32.mrb[0].mxu0
        %v3552 = vadd.f32 0.0, %v3551
        %v3553 = vpop.f32.mrb[0].mxu0
        %v3554 = vpop.f32.mrb[0].mxu0
        %v3555 = vadd.f32 0.0, %v3554
        %v3556 = vpop.f32.mrb[0].mxu0
        %3557 = vmatprep.mubr.bf16.mxu0 0
        %3558 = vmatmul.mubr.bf16.gmra.mrb[0].mxu0 %v3217
        %v3559 = vpop.f32.mrb[0].mxu0
        %v3560 = vadd.f32 0.0, %v3559
        %v3561 = vpop.f32.mrb[0].mxu0
        %v3562 = vpop.f32.mrb[0].mxu0
        %v3563 = vadd.f32 0.0, %v3562
        %v3564 = vpop.f32.mrb[0].mxu0
        %3565 = vmatprep.mubr.bf16.mxu0 0
        %3566 = vmatmul.mubr.bf16.gmra.mrb[0].mxu0 %v3226
        %v3567 = vpop.f32.mrb[0].mxu0
        %v3568 = vadd.f32 0.0, %v3567
        %v3569 = vpop.f32.mrb[0].mxu0
        %v3570 = vpop.f32.mrb[0].mxu0
        %v3571 = vadd.f32 0.0, %v3570
        %v3572 = vpop.f32.mrb[0].mxu0
        %3573 = vmatprep.mubr.bf16.mxu0 0
        %3574 = vmatmul.mubr.bf16.gmra.mrb[0].mxu0 %v3235
        %v3575 = vpop.f32.mrb[0].mxu0
        %v3576 = vadd.f32 0.0, %v3575
        %v3577 = vpop.f32.mrb[0].mxu0
        %v3578 = vpop.f32.mrb[0].mxu0
        %v3579 = vadd.f32 0.0, %v3578
        %v3580 = vpop.f32.mrb[0].mxu0
        %3581 = vmatprep.mubr.bf16.mxu0 0
        %3582 = vmatmul.mubr.bf16.gmra.mrb[0].mxu0 %v3244
        %v3583 = vpop.f32.mrb[0].mxu0
        %v3584 = vadd.f32 0.0, %v3583
        %v3585 = vpop.f32.mrb[0].mxu0
        %v3586 = vpop.f32.mrb[0].mxu0
        %v3587 = vadd.f32 0.0, %v3586
        %v3588 = vpop.f32.mrb[0].mxu0
        %3589 = vmatprep.mubr.bf16.mxu0 0
        %3590 = vmatmul.mubr.bf16.gmra.mrb[0].mxu0 %v3253
        %v3591 = vpop.f32.mrb[0].mxu0
        %v3592 = vadd.f32 0.0, %v3591
        %v3593 = vpop.f32.mrb[0].mxu0
        %v3594 = vpop.f32.mrb[0].mxu0
        %v3595 = vadd.f32 0.0, %v3594
        %v3596 = vpop.f32.mrb[0].mxu0
        %3597 = vmatprep.mubr.bf16.mxu0 0
        %3598 = vmatmul.mubr.bf16.gmra.mrb[0].mxu0 %v3262
        %v3599 = vpop.f32.mrb[0].mxu0
        %v3600 = vadd.f32 0.0, %v3599
        %v3601 = vpop.f32.mrb[0].mxu0
        %v3602 = vpop.f32.mrb[0].mxu0
        %v3603 = vadd.f32 0.0, %v3602
        %v3604 = vpop.f32.mrb[0].mxu0
        %3605 = vmatprep.mubr.bf16.mxu0 0
        %3606 = vmatmul.mubr.bf16.gmra.mrb[0].mxu0 %v3271
        %v3607 = vpop.f32.mrb[0].mxu0
        %v3608 = vadd.f32 0.0, %v3607
        %v3609 = vpop.f32.mrb[0].mxu0
        %v3610 = vpop.f32.mrb[0].mxu0
        %v3611 = vadd.f32 0.0, %v3610
        %v3612 = vpop.f32.mrb[0].mxu0
        %3613 = vmatprep.mubr.bf16.mxu0 0
        %3614 = vmatmul.mubr.bf16.gmra.mrb[0].mxu0 %v3280
        %v3615 = vpop.f32.mrb[0].mxu0
        %v3616 = vadd.f32 0.0, %v3615
        %v3617 = vpop.f32.mrb[0].mxu0
        %v3618 = vpop.f32.mrb[0].mxu0
        %v3619 = vadd.f32 0.0, %v3618
        %v3620 = vpop.f32.mrb[0].mxu0
        %3621 = vmatprep.mubr.bf16.mxu0 0
        %3622 = vmatmul.mubr.bf16.gmra.mrb[0].mxu0 %v3289
        %v3623 = vpop.f32.mrb[0].mxu0
        %v3624 = vadd.f32 0.0, %v3623
        %v3625 = vpop.f32.mrb[0].mxu0
        %v3626 = vpop.f32.mrb[0].mxu0
        %v3627 = vadd.f32 0.0, %v3626
        %v3628 = vpop.f32.mrb[0].mxu0
        %3629 = vmatprep.mubr.bf16.mxu0 0
        %3630 = vmatmul.mubr.bf16.gmra.mrb[0].mxu0 %v3298
        %v3631 = vpop.f32.mrb[0].mxu0
        %v3632 = vadd.f32 0.0, %v3631
        %v3633 = vpop.f32.mrb[0].mxu0
        %v3634 = vpop.f32.mrb[0].mxu0
        %v3635 = vadd.f32 0.0, %v3634
        %v3636 = vpop.f32.mrb[0].mxu0
        %3637 = vmatprep.mubr.bf16.mxu0 0
        %3638 = vmatmul.mubr.bf16.gmra.mrb[0].mxu0 %v3307
        %v3639 = vpop.f32.mrb[0].mxu0
        %v3640 = vadd.f32 0.0, %v3639
        %v3641 = vpop.f32.mrb[0].mxu0
        %v3642 = vpop.f32.mrb[0].mxu0
        %v3643 = vadd.f32 0.0, %v3642
        %v3644 = vpop.f32.mrb[0].mxu0
        %3645 = vmatprep.mubr.bf16.mxu0 0
        %3646 = vmatmul.mubr.bf16.gmra.mrb[0].mxu0 %v3316
        %v3647 = vpop.f32.mrb[0].mxu0
        %v3648 = vadd.f32 0.0, %v3647
        %v3649 = vpop.f32.mrb[0].mxu0
        %v3650 = vpop.f32.mrb[0].mxu0
        %v3651 = vadd.f32 0.0, %v3650
        %v3652 = vpop.f32.mrb[0].mxu0
        %3653 = vmatprep.mubr.bf16.mxu0 0
        %3654 = vmatmul.mubr.bf16.gmra.mrb[0].mxu0 %v3325
        %v3655 = vpop.f32.mrb[0].mxu0
        %v3656 = vadd.f32 0.0, %v3655
        %v3657 = vpop.f32.mrb[0].mxu0
        %v3658 = vpop.f32.mrb[0].mxu0
        %v3659 = vadd.f32 0.0, %v3658
        %v3660 = vpop.f32.mrb[0].mxu0
        %3661 = vmatprep.mubr.bf16.mxu0 0
        %3662 = vmatmul.mubr.bf16.gmra.mrb[0].mxu0 %v3334
        %v3663 = vpop.f32.mrb[0].mxu0
        %v3664 = vadd.f32 0.0, %v3663
        %v3665 = vpop.f32.mrb[0].mxu0
        %v3666 = vpop.f32.mrb[0].mxu0
        %v3667 = vadd.f32 0.0, %v3666
        %v3668 = vpop.f32.mrb[0].mxu0
        %3669 = vmatprep.mubr.bf16.mxu0 0
        %3670 = vmatmul.mubr.bf16.gmra.mrb[0].mxu0 %v3343
        %v3671 = vpop.f32.mrb[0].mxu0
        %v3672 = vadd.f32 0.0, %v3671
        %v3673 = vpop.f32.mrb[0].mxu0
        %v3674 = vpop.f32.mrb[0].mxu0
        %v3675 = vadd.f32 0.0, %v3674
        %v3676 = vpop.f32.mrb[0].mxu0
        %3677 = vmatprep.mubr.bf16.mxu0 0
        %3678 = vmatmul.mubr.bf16.gmra.mrb[0].mxu0 %v3352
        %v3679 = vpop.f32.mrb[0].mxu0
        %v3680 = vadd.f32 0.0, %v3679
        %v3681 = vpop.f32.mrb[0].mxu0
        %v3682 = vpop.f32.mrb[0].mxu0
        %v3683 = vadd.f32 0.0, %v3682
        %v3684 = vpop.f32.mrb[0].mxu0
        %3685 = vmatprep.mubr.bf16.mxu0 0
        %3686 = vmatmul.mubr.bf16.gmra.mrb[0].mxu0 %v3361
        %v3687 = vpop.f32.mrb[0].mxu0
        %v3688 = vadd.f32 0.0, %v3687
        %v3689 = vpop.f32.mrb[0].mxu0
        %v3690 = vpop.f32.mrb[0].mxu0
        %v3691 = vadd.f32 0.0, %v3690
        %v3692 = vpop.f32.mrb[0].mxu0
        %3693 = vmatprep.mubr.bf16.mxu0 0
        %3694 = vmatmul.mubr.bf16.gmra.mrb[0].mxu0 %v3370
        %v3695 = vpop.f32.mrb[0].mxu0
        %v3696 = vadd.f32 0.0, %v3695
        %v3697 = vpop.f32.mrb[0].mxu0
        %v3698 = vpop.f32.mrb[0].mxu0
        %v3699 = vadd.f32 0.0, %v3698
        %v3700 = vpop.f32.mrb[0].mxu0
        %3701 = vmatprep.mubr.bf16.mxu0 0
        %3702 = vmatmul.mubr.bf16.gmra.mrb[0].mxu0 %v3379
        %v3703 = vpop.f32.mrb[0].mxu0
        %v3704 = vadd.f32 0.0, %v3703
        %v3705 = vpop.f32.mrb[0].mxu0
        %v3706 = vpop.f32.mrb[0].mxu0
        %v3707 = vadd.f32 0.0, %v3706
        %v3708 = vpop.f32.mrb[0].mxu0
        %3709 = vmatprep.mubr.bf16.mxu0 0
        %3710 = vmatmul.mubr.bf16.gmra.mrb[0].mxu0 %v3388
        %v3711 = vpop.f32.mrb[0].mxu0
        %v3712 = vadd.f32 0.0, %v3711
        %v3713 = vpop.f32.mrb[0].mxu0
        %v3714 = vpop.f32.mrb[0].mxu0
        %v3715 = vadd.f32 0.0, %v3714
        %v3716 = vpop.f32.mrb[0].mxu0
        %3717 = vmatprep.mubr.bf16.mxu0 0
        %3718 = vmatmul.mubr.bf16.gmra.mrb[0].mxu0 %v3397
        %v3719 = vpop.f32.mrb[0].mxu0
        %v3720 = vadd.f32 0.0, %v3719
        %v3721 = vpop.f32.mrb[0].mxu0
        %v3722 = vpop.f32.mrb[0].mxu0
        %v3723 = vadd.f32 0.0, %v3722
        %v3724 = vpop.f32.mrb[0].mxu0
        %3725 = vmatprep.mubr.bf16.mxu0 0
        %3726 = vmatmul.mubr.bf16.gmra.mrb[0].mxu0 %v3406
        %v3727 = vpop.f32.mrb[0].mxu0
        %v3728 = vadd.f32 0.0, %v3727
        %v3729 = vpop.f32.mrb[0].mxu0
        %v3730 = vpop.f32.mrb[0].mxu0
        %v3731 = vadd.f32 0.0, %v3730
        %v3732 = vpop.f32.mrb[0].mxu0
        %3733 = vmatprep.mubr.bf16.mxu0 0
        %3734 = vmatmul.mubr.bf16.gmra.mrb[0].mxu0 %v3415
        %v3735 = vpop.f32.mrb[0].mxu0
        %v3736 = vadd.f32 0.0, %v3735
        %v3737 = vpop.f32.mrb[0].mxu0
        %v3738 = vpop.f32.mrb[0].mxu0
        %v3739 = vadd.f32 0.0, %v3738
        %v3740 = vpop.f32.mrb[0].mxu0
        %3741 = vmatprep.mubr.bf16.mxu0 0
        %3742 = vmatmul.mubr.bf16.gmra.mrb[0].mxu0 %v3424
        %v3743 = vpop.f32.mrb[0].mxu0
        %v3744 = vadd.f32 0.0, %v3743
        %v3745 = vpop.f32.mrb[0].mxu0
        %v3746 = vpop.f32.mrb[0].mxu0
        %v3747 = vadd.f32 0.0, %v3746
        %v3748 = vpop.f32.mrb[0].mxu0
        %3749 = vmatprep.mubr.bf16.mxu0 0
        %3750 = vmatmul.mubr.bf16.gmra.mrb[0].mxu0 %v3433
        %v3751 = vpop.f32.mrb[0].mxu0
        %v3752 = vadd.f32 0.0, %v3751
        %v3753 = vpop.f32.mrb[0].mxu0
        %v3754 = vpop.f32.mrb[0].mxu0
        %v3755 = vadd.f32 0.0, %v3754
        %v3756 = vpop.f32.mrb[0].mxu0
        %3757 = vdwg.mxu0
        %v3758 = vld [vmem:[#allocation3] sm:$0xff]
        %v3759 = vld [vmem:[#allocation3 + $0x8] sm:$0xff]
        %v3760 = vld [vmem:[#allocation3 + $0x10] sm:$0xff]
        %v3761 = vld [vmem:[#allocation3 + $0x18] sm:$0xff]
        %v3762 = vld [vmem:[#allocation3 + $0x20] sm:$0xff]
        %v3763 = vld [vmem:[#allocation3 + $0x28] sm:$0xff]
        %v3764 = vld [vmem:[#allocation3 + $0x30] sm:$0xff]
        %v3765 = vld [vmem:[#allocation3 + $0x38] sm:$0xff]
        %v3766 = vld [vmem:[#allocation3 + $0x40] sm:$0xff]
        %v3767 = vld [vmem:[#allocation3 + $0x48] sm:$0xff]
        %v3768 = vld [vmem:[#allocation3 + $0x50] sm:$0xff]
        %v3769 = vld [vmem:[#allocation3 + $0x58] sm:$0xff]
        %v3770 = vld [vmem:[#allocation3 + $0x60] sm:$0xff]
        %v3771 = vld [vmem:[#allocation3 + $0x68] sm:$0xff]
        %v3772 = vld [vmem:[#allocation3 + $0x70] sm:$0xff]
        %v3773 = vld [vmem:[#allocation3 + $0x78] sm:$0xff]
        %v3774 = vld [vmem:[#allocation3 + $0x80] sm:$0xff]
        %v3775 = vld [vmem:[#allocation3 + $0x88] sm:$0xff]
        %v3776 = vld [vmem:[#allocation3 + $0x90] sm:$0xff]
        %v3777 = vld [vmem:[#allocation3 + $0x98] sm:$0xff]
        %v3778 = vld [vmem:[#allocation3 + $0xa0] sm:$0xff]
        %v3779 = vld [vmem:[#allocation3 + $0xa8] sm:$0xff]
        %v3780 = vld [vmem:[#allocation3 + $0xb0] sm:$0xff]
        %v3781 = vld [vmem:[#allocation3 + $0xb8] sm:$0xff]
        %v3782 = vld [vmem:[#allocation3 + $0xc0] sm:$0xff]
        %v3783 = vld [vmem:[#allocation3 + $0xc8] sm:$0xff]
        %v3784 = vld [vmem:[#allocation3 + $0xd0] sm:$0xff]
        %v3785 = vld [vmem:[#allocation3 + $0xd8] sm:$0xff]
        %v3786 = vld [vmem:[#allocation3 + $0xe0] sm:$0xff]
        %v3787 = vld [vmem:[#allocation3 + $0xe8] sm:$0xff]
        %v3788 = vld [vmem:[#allocation3 + $0xf0] sm:$0xff]
        %v3789 = vld [vmem:[#allocation3 + $0xf8] sm:$0xff]
        %v3790 = vld [vmem:[#allocation3 + $0x100] sm:$0xff]
        %v3791 = vld [vmem:[#allocation3 + $0x108] sm:$0xff]
        %v3792 = vld [vmem:[#allocation3 + $0x110] sm:$0xff]
        %v3793 = vld [vmem:[#allocation3 + $0x118] sm:$0xff]
        %v3794 = vld [vmem:[#allocation3 + $0x120] sm:$0xff]
        %v3795 = vld [vmem:[#allocation3 + $0x128] sm:$0xff]
        %v3796 = vld [vmem:[#allocation3 + $0x130] sm:$0xff]
        %v3797 = vld [vmem:[#allocation3 + $0x138] sm:$0xff]
        %v3798 = vld [vmem:[#allocation3 + $0x140] sm:$0xff]
        %v3799 = vld [vmem:[#allocation3 + $0x148] sm:$0xff]
        %v3800 = vld [vmem:[#allocation3 + $0x150] sm:$0xff]
        %v3801 = vld [vmem:[#allocation3 + $0x158] sm:$0xff]
        %v3802 = vld [vmem:[#allocation3 + $0x160] sm:$0xff]
        %v3803 = vld [vmem:[#allocation3 + $0x168] sm:$0xff]
        %v3804 = vld [vmem:[#allocation3 + $0x170] sm:$0xff]
        %v3805 = vld [vmem:[#allocation3 + $0x178] sm:$0xff]
        %v3806 = vld [vmem:[#allocation3 + $0x180] sm:$0xff]
        %v3807 = vld [vmem:[#allocation3 + $0x188] sm:$0xff]
        %v3808 = vld [vmem:[#allocation3 + $0x190] sm:$0xff]
        %v3809 = vld [vmem:[#allocation3 + $0x198] sm:$0xff]
        %v3810 = vld [vmem:[#allocation3 + $0x1a0] sm:$0xff]
        %v3811 = vld [vmem:[#allocation3 + $0x1a8] sm:$0xff]
        %v3812 = vadd.f32 %v3758, %v3544
        %v3813 = vadd.f32 %v3759, %v3547
        %v3814 = vadd.f32 %v3760, %v3552
        %v3815 = vadd.f32 %v3761, %v3555
        %v3816 = vadd.f32 %v3762, %v3560
        %v3817 = vadd.f32 %v3763, %v3563
        %v3818 = vadd.f32 %v3764, %v3568
        %v3819 = vadd.f32 %v3765, %v3571
        %v3820 = vadd.f32 %v3766, %v3576
        %v3821 = vadd.f32 %v3767, %v3579
        %v3822 = vadd.f32 %v3768, %v3584
        %v3823 = vadd.f32 %v3769, %v3587
        %v3824 = vadd.f32 %v3770, %v3592
        %v3825 = vadd.f32 %v3771, %v3595
        %v3826 = vadd.f32 %v3772, %v3600
        %v3827 = vadd.f32 %v3773, %v3603
        %v3828 = vadd.f32 %v3774, %v3608
        %v3829 = vadd.f32 %v3775, %v3611
        %v3830 = vadd.f32 %v3776, %v3616
        %v3831 = vadd.f32 %v3777, %v3619
        %v3832 = vadd.f32 %v3778, %v3624
        %v3833 = vadd.f32 %v3779, %v3627
        %v3834 = vadd.f32 %v3780, %v3632
        %v3835 = vadd.f32 %v3781, %v3635
        %v3836 = vadd.f32 %v3782, %v3640
        %v3837 = vadd.f32 %v3783, %v3643
        %v3838 = vadd.f32 %v3784, %v3648
        %v3839 = vadd.f32 %v3785, %v3651
        %v3840 = vadd.f32 %v3786, %v3656
        %v3841 = vadd.f32 %v3787, %v3659
        %v3842 = vadd.f32 %v3788, %v3664
        %v3843 = vadd.f32 %v3789, %v3667
        %v3844 = vadd.f32 %v3790, %v3672
        %v3845 = vadd.f32 %v3791, %v3675
        %v3846 = vadd.f32 %v3792, %v3680
        %v3847 = vadd.f32 %v3793, %v3683
        %v3848 = vadd.f32 %v3794, %v3688
        %v3849 = vadd.f32 %v3795, %v3691
        %v3850 = vadd.f32 %v3796, %v3696
        %v3851 = vadd.f32 %v3797, %v3699
        %v3852 = vadd.f32 %v3798, %v3704
        %v3853 = vadd.f32 %v3799, %v3707
        %v3854 = vadd.f32 %v3800, %v3712
        %v3855 = vadd.f32 %v3801, %v3715
        %v3856 = vadd.f32 %v3802, %v3720
        %v3857 = vadd.f32 %v3803, %v3723
        %v3858 = vadd.f32 %v3804, %v3728
        %v3859 = vadd.f32 %v3805, %v3731
        %v3860 = vadd.f32 %v3806, %v3736
        %v3861 = vadd.f32 %v3807, %v3739
        %v3862 = vadd.f32 %v3808, %v3744
        %v3863 = vadd.f32 %v3809, %v3747
        %v3864 = vadd.f32 %v3810, %v3752
        %v3865 = vadd.f32 %v3811, %v3755
        %3866 = vst [vmem:[#allocation3] sm:$0xff] %v3812
        %3867 = vst [vmem:[#allocation3 + $0x8] sm:$0xff] %v3813
        %3868 = vst [vmem:[#allocation3 + $0x10] sm:$0xff] %v3814
        %3869 = vst [vmem:[#allocation3 + $0x18] sm:$0xff] %v3815
        %3870 = vst [vmem:[#allocation3 + $0x20] sm:$0xff] %v3816
        %3871 = vst [vmem:[#allocation3 + $0x28] sm:$0xff] %v3817
        %3872 = vst [vmem:[#allocation3 + $0x30] sm:$0xff] %v3818
        %3873 = vst [vmem:[#allocation3 + $0x38] sm:$0xff] %v3819
        %3874 = vst [vmem:[#allocation3 + $0x40] sm:$0xff] %v3820
        %3875 = vst [vmem:[#allocation3 + $0x48] sm:$0xff] %v3821
        %3876 = vst [vmem:[#allocation3 + $0x50] sm:$0xff] %v3822
        %3877 = vst [vmem:[#allocation3 + $0x58] sm:$0xff] %v3823
        %3878 = vst [vmem:[#allocation3 + $0x60] sm:$0xff] %v3824
        %3879 = vst [vmem:[#allocation3 + $0x68] sm:$0xff] %v3825
        %3880 = vst [vmem:[#allocation3 + $0x70] sm:$0xff] %v3826
        %3881 = vst [vmem:[#allocation3 + $0x78] sm:$0xff] %v3827
        %3882 = vst [vmem:[#allocation3 + $0x80] sm:$0xff] %v3828
        %3883 = vst [vmem:[#allocation3 + $0x88] sm:$0xff] %v3829
        %3884 = vst [vmem:[#allocation3 + $0x90] sm:$0xff] %v3830
        %3885 = vst [vmem:[#allocation3 + $0x98] sm:$0xff] %v3831
        %3886 = vst [vmem:[#allocation3 + $0xa0] sm:$0xff] %v3832
        %3887 = vst [vmem:[#allocation3 + $0xa8] sm:$0xff] %v3833
        %3888 = vst [vmem:[#allocation3 + $0xb0] sm:$0xff] %v3834
        %3889 = vst [vmem:[#allocation3 + $0xb8] sm:$0xff] %v3835
        %3890 = vst [vmem:[#allocation3 + $0xc0] sm:$0xff] %v3836
        %3891 = vst [vmem:[#allocation3 + $0xc8] sm:$0xff] %v3837
        %3892 = vst [vmem:[#allocation3 + $0xd0] sm:$0xff] %v3838
        %3893 = vst [vmem:[#allocation3 + $0xd8] sm:$0xff] %v3839
        %3894 = vst [vmem:[#allocation3 + $0xe0] sm:$0xff] %v3840
        %3895 = vst [vmem:[#allocation3 + $0xe8] sm:$0xff] %v3841
        %3896 = vst [vmem:[#allocation3 + $0xf0] sm:$0xff] %v3842
        %3897 = vst [vmem:[#allocation3 + $0xf8] sm:$0xff] %v3843
        %3898 = vst [vmem:[#allocation3 + $0x100] sm:$0xff] %v3844
        %3899 = vst [vmem:[#allocation3 + $0x108] sm:$0xff] %v3845
        %3900 = vst [vmem:[#allocation3 + $0x110] sm:$0xff] %v3846
        %3901 = vst [vmem:[#allocation3 + $0x118] sm:$0xff] %v3847
        %3902 = vst [vmem:[#allocation3 + $0x120] sm:$0xff] %v3848
        %3903 = vst [vmem:[#allocation3 + $0x128] sm:$0xff] %v3849
        %3904 = vst [vmem:[#allocation3 + $0x130] sm:$0xff] %v3850
        %3905 = vst [vmem:[#allocation3 + $0x138] sm:$0xff] %v3851
        %3906 = vst [vmem:[#allocation3 + $0x140] sm:$0xff] %v3852
        %3907 = vst [vmem:[#allocation3 + $0x148] sm:$0xff] %v3853
        %3908 = vst [vmem:[#allocation3 + $0x150] sm:$0xff] %v3854
        %3909 = vst [vmem:[#allocation3 + $0x158] sm:$0xff] %v3855
        %3910 = vst [vmem:[#allocation3 + $0x160] sm:$0xff] %v3856
        %3911 = vst [vmem:[#allocation3 + $0x168] sm:$0xff] %v3857
        %3912 = vst [vmem:[#allocation3 + $0x170] sm:$0xff] %v3858
        %3913 = vst [vmem:[#allocation3 + $0x178] sm:$0xff] %v3859
        %3914 = vst [vmem:[#allocation3 + $0x180] sm:$0xff] %v3860
        %3915 = vst [vmem:[#allocation3 + $0x188] sm:$0xff] %v3861
        %3916 = vst [vmem:[#allocation3 + $0x190] sm:$0xff] %v3862
        %3917 = vst [vmem:[#allocation3 + $0x198] sm:$0xff] %v3863
        %3918 = vst [vmem:[#allocation3 + $0x1a0] sm:$0xff] %v3864
        %3919 = vst [vmem:[#allocation3 + $0x1a8] sm:$0xff] %v3865
        %v3920 = vld [vmem:[#allocation2 + $0x8] sm:$0xe0]
        %v3921 = vld [vmem:[#allocation2 + $0x10] sm:$0xff]
        %v3922 = vld [vmem:[#allocation2 + $0x18] sm:$0xff]
        %v3923 = vld [vmem:[#allocation2 + $0x20] sm:$0xff]
        %v3924 = vld [vmem:[#allocation2 + $0x28] sm:$0xff]
        %v3925 = vld [vmem:[#allocation2 + $0x30] sm:$0xff]
        %v3926 = vld [vmem:[#allocation2 + $0x38] sm:$0xff]
        %v3927 = vld [vmem:[#allocation2 + $0x40] sm:$0xff]
        %v3928 = vld [vmem:[#allocation2 + $0x48] sm:$0xff]
        %v3929 = vld [vmem:[#allocation2 + $0x50] sm:$0xff]
        %v3930 = vld [vmem:[#allocation2 + $0x58] sm:$0xff]
        %v3931 = vld [vmem:[#allocation2 + $0x60] sm:$0xff]
        %v3932 = vld [vmem:[#allocation2 + $0x68] sm:$0xff]
        %v3933 = vld [vmem:[#allocation2 + $0x70] sm:$0xff]
        %v3934 = vld [vmem:[#allocation2 + $0x78] sm:$0xff]
        %v3935 = vld [vmem:[#allocation2 + $0x80] sm:$0xff]
        %v3936 = vld [vmem:[#allocation2 + $0x88] sm:$0xff]
        %v3937 = vld [vmem:[#allocation2 + $0x90] sm:$0xff]
        %v3938 = vld [vmem:[#allocation2 + $0x98] sm:$0xff]
        %v3939 = vld [vmem:[#allocation2 + $0xa0] sm:$0xff]
        %v3940 = vld [vmem:[#allocation2 + $0xa8] sm:$0xff]
        %v3941 = vld [vmem:[#allocation2 + $0xb0] sm:$0xff]
        %v3942 = vld [vmem:[#allocation2 + $0xb8] sm:$0xff]
        %v3943 = vld [vmem:[#allocation2 + $0xc0] sm:$0xff]
        %v3944 = vld [vmem:[#allocation2 + $0xc8] sm:$0xff]
        %v3945 = vld [vmem:[#allocation2 + $0xd0] sm:$0xff]
        %v3946 = vld [vmem:[#allocation2 + $0xd8] sm:$0xff]
        %v3947 = vld [vmem:[#allocation2 + $0xe0] sm:$0x1f]
        %s3948 = sadd.s32 %s772, 5
        %s3949 = smul.u32 %s3948, 16
        %s3950 = smul.addr %s3949, 4
        %s3951 = scalar_lea.vmem %s1, %s3950
        %v3952 = vld [vmem:[%s3951] sm:$0xf]
        %v3953 = vld [vmem:[%s3951 + $0x4] sm:$0xf]
        %v3954 = vld [vmem:[%s3951 + $0x8] sm:$0xf]
        %v3955 = vld [vmem:[%s3951 + $0xc] sm:$0xf]
        %v3956 = vld [vmem:[%s3951 + $0x10] sm:$0xf]
        %v3957 = vld [vmem:[%s3951 + $0x14] sm:$0xf]
        %v3958 = vld [vmem:[%s3951 + $0x18] sm:$0xf]
        %v3959 = vld [vmem:[%s3951 + $0x1c] sm:$0xf]
        %v3960 = vld [vmem:[%s3951 + $0x20] sm:$0xf]
        %v3961 = vld [vmem:[%s3951 + $0x24] sm:$0xf]
        %v3962 = vld [vmem:[%s3951 + $0x28] sm:$0xf]
        %v3963 = vld [vmem:[%s3951 + $0x2c] sm:$0xf]
        %v3964 = vld [vmem:[%s3951 + $0x30] sm:$0xf]
        %v3965 = vld [vmem:[%s3951 + $0x34] sm:$0xf]
        %v3966 = vld [vmem:[%s3951 + $0x38] sm:$0xf]
        %v3967 = vld [vmem:[%s3951 + $0x3c] sm:$0xf]
        %vm3996 = vcmask 1042432
        %v3997 = vrot.slane %v3920, 5
        %v3998 = vrot.slane %v3921, 5
        %v3999 = vsel %vm3996, %v3997, %v3998
        %v4000 = vrot.slane %v3922, 5
        %v4001 = vsel %vm3996, %v3998, %v4000
        %v4002 = vrot.slane %v3923, 5
        %v4003 = vsel %vm3996, %v4000, %v4002
        %v4004 = vrot.slane %v3924, 5
        %v4005 = vsel %vm3996, %v4002, %v4004
        %v4006 = vrot.slane %v3925, 5
        %v4007 = vsel %vm3996, %v4004, %v4006
        %v4008 = vrot.slane %v3926, 5
        %v4009 = vsel %vm3996, %v4006, %v4008
        %v4010 = vrot.slane %v3927, 5
        %v4011 = vsel %vm3996, %v4008, %v4010
        %v4012 = vrot.slane %v3928, 5
        %v4013 = vsel %vm3996, %v4010, %v4012
        %v4014 = vrot.slane %v3929, 5
        %v4015 = vsel %vm3996, %v4012, %v4014
        %v4016 = vrot.slane %v3930, 5
        %v4017 = vsel %vm3996, %v4014, %v4016
        %v4018 = vrot.slane %v3931, 5
        %v4019 = vsel %vm3996, %v4016, %v4018
        %v4020 = vrot.slane %v3932, 5
        %v4021 = vsel %vm3996, %v4018, %v4020
        %v4022 = vrot.slane %v3933, 5
        %v4023 = vsel %vm3996, %v4020, %v4022
        %v4024 = vrot.slane %v3934, 5
        %v4025 = vsel %vm3996, %v4022, %v4024
        %v4026 = vrot.slane %v3935, 5
        %v4027 = vsel %vm3996, %v4024, %v4026
        %v4028 = vrot.slane %v3936, 5
        %v4029 = vsel %vm3996, %v4026, %v4028
        %v4030 = vrot.slane %v3937, 5
        %v4031 = vsel %vm3996, %v4028, %v4030
        %v4032 = vrot.slane %v3938, 5
        %v4033 = vsel %vm3996, %v4030, %v4032
        %v4034 = vrot.slane %v3939, 5
        %v4035 = vsel %vm3996, %v4032, %v4034
        %v4036 = vrot.slane %v3940, 5
        %v4037 = vsel %vm3996, %v4034, %v4036
        %v4038 = vrot.slane %v3941, 5
        %v4039 = vsel %vm3996, %v4036, %v4038
        %v4040 = vrot.slane %v3942, 5
        %v4041 = vsel %vm3996, %v4038, %v4040
        %v4042 = vrot.slane %v3943, 5
        %v4043 = vsel %vm3996, %v4040, %v4042
        %v4044 = vrot.slane %v3944, 5
        %v4045 = vsel %vm3996, %v4042, %v4044
        %v4046 = vrot.slane %v3945, 5
        %v4047 = vsel %vm3996, %v4044, %v4046
        %v4048 = vrot.slane %v3946, 5
        %v4049 = vsel %vm3996, %v4046, %v4048
        %v4050 = vrot.slane %v3947, 5
        %v4051 = vsel %vm3996, %v4048, %v4050
        %v4095 = vunpack.c.l.b16 %v3952
        %v4096 = vunpack.c.l.b16 %v3953
        %v4097 = vunpack.c.l.b16 %v3954
        %v4098 = vunpack.c.l.b16 %v3955
        %v4099 = vunpack.c.l.b16 %v3956
        %v4100 = vunpack.c.l.b16 %v3957
        %v4101 = vunpack.c.l.b16 %v3958
        %v4102 = vunpack.c.l.b16 %v3959
        %v4103 = vunpack.c.l.b16 %v3960
        %v4104 = vunpack.c.l.b16 %v3961
        %v4105 = vunpack.c.l.b16 %v3962
        %v4106 = vunpack.c.l.b16 %v3963
        %v4107 = vunpack.c.l.b16 %v3964
        %v4108 = vunpack.c.l.b16 %v3965
        %v4109 = vunpack.c.l.b16 %v3966
        %v4110 = vunpack.c.l.b16 %v3967
        %v4111 = vpack.c.b16 %v4096, %v4095
        %v4112 = vpack.c.b16 %v4098, %v4097
        %v4113 = vpack.c.b16 %v4100, %v4099
        %v4114 = vpack.c.b16 %v4102, %v4101
        %v4115 = vpack.c.b16 %v4104, %v4103
        %v4116 = vpack.c.b16 %v4106, %v4105
        %v4117 = vpack.c.b16 %v4108, %v4107
        %v4118 = vpack.c.b16 %v4110, %v4109
        %4127 = vmatprep.subr.bf16.mxu0 0
        %4128 = vmatpush1.bf16.msra.mxu0 %v4111
        %4129 = vmatprep.subr.bf16.mxu0 0
        %4130 = vmatpush1.bf16.msra.mxu0 %v4112
        %4131 = vmatprep.subr.bf16.mxu0 0
        %4132 = vmatpush1.bf16.msra.mxu0 %v4113
        %4133 = vmatprep.subr.bf16.mxu0 0
        %4134 = vmatpush1.bf16.msra.mxu0 %v4114
        %4135 = vmatprep.subr.bf16.mxu0 0
        %4136 = vmatpush1.bf16.msra.mxu0 %v4115
        %4137 = vmatprep.subr.bf16.mxu0 0
        %4138 = vmatpush1.bf16.msra.mxu0 %v4116
        %4139 = vmatprep.subr.bf16.mxu0 0
        %4140 = vmatpush1.bf16.msra.mxu0 %v4117
        %4141 = vmatprep.subr.bf16.mxu0 0
        %4142 = vmatpush1.bf16.msra.mxu0 %v4118
        %4143 = vmatprep.subr.bf16.mxu0 0
        %4144 = vmatpush1.bf16.msra.mxu0 0
        %4145 = vmatprep.subr.bf16.mxu0 0
        %4146 = vmatpush1.bf16.msra.mxu0 0
        %4147 = vmatprep.subr.bf16.mxu0 0
        %4148 = vmatpush1.bf16.msra.mxu0 0
        %4149 = vmatprep.subr.bf16.mxu0 0
        %4150 = vmatpush1.bf16.msra.mxu0 0
        %4151 = vmatprep.subr.bf16.mxu0 0
        %4152 = vmatpush1.bf16.msra.mxu0 0
        %4153 = vmatprep.subr.bf16.mxu0 0
        %4154 = vmatpush1.bf16.msra.mxu0 0
        %4155 = vmatprep.subr.bf16.mxu0 0
        %4156 = vmatpush1.bf16.msra.mxu0 0
        %4157 = vmatprep.subr.bf16.mxu0 0
        %4158 = vmatpush1.bf16.msra.mxu0 0
        %4159 = vmatprep.mubr.bf16.mxu0 0
        %4160 = vmatmul.mubr.bf16.gmra.mrb[0].mxu0 %v3999
        %v4161 = vpop.f32.mrb[0].mxu0
        %v4162 = vadd.f32 0.0, %v4161
        %v4163 = vpop.f32.mrb[0].mxu0
        %v4164 = vpop.f32.mrb[0].mxu0
        %v4165 = vadd.f32 0.0, %v4164
        %v4166 = vpop.f32.mrb[0].mxu0
        %4167 = vmatprep.mubr.bf16.mxu0 0
        %4168 = vmatmul.mubr.bf16.gmra.mrb[0].mxu0 %v4001
        %v4169 = vpop.f32.mrb[0].mxu0
        %v4170 = vadd.f32 0.0, %v4169
        %v4171 = vpop.f32.mrb[0].mxu0
        %v4172 = vpop.f32.mrb[0].mxu0
        %v4173 = vadd.f32 0.0, %v4172
        %v4174 = vpop.f32.mrb[0].mxu0
        %4175 = vmatprep.mubr.bf16.mxu0 0
        %4176 = vmatmul.mubr.bf16.gmra.mrb[0].mxu0 %v4003
        %v4177 = vpop.f32.mrb[0].mxu0
        %v4178 = vadd.f32 0.0, %v4177
        %v4179 = vpop.f32.mrb[0].mxu0
        %v4180 = vpop.f32.mrb[0].mxu0
        %v4181 = vadd.f32 0.0, %v4180
        %v4182 = vpop.f32.mrb[0].mxu0
        %4183 = vmatprep.mubr.bf16.mxu0 0
        %4184 = vmatmul.mubr.bf16.gmra.mrb[0].mxu0 %v4005
        %v4185 = vpop.f32.mrb[0].mxu0
        %v4186 = vadd.f32 0.0, %v4185
        %v4187 = vpop.f32.mrb[0].mxu0
        %v4188 = vpop.f32.mrb[0].mxu0
        %v4189 = vadd.f32 0.0, %v4188
        %v4190 = vpop.f32.mrb[0].mxu0
        %4191 = vmatprep.mubr.bf16.mxu0 0
        %4192 = vmatmul.mubr.bf16.gmra.mrb[0].mxu0 %v4007
        %v4193 = vpop.f32.mrb[0].mxu0
        %v4194 = vadd.f32 0.0, %v4193
        %v4195 = vpop.f32.mrb[0].mxu0
        %v4196 = vpop.f32.mrb[0].mxu0
        %v4197 = vadd.f32 0.0, %v4196
        %v4198 = vpop.f32.mrb[0].mxu0
        %4199 = vmatprep.mubr.bf16.mxu0 0
        %4200 = vmatmul.mubr.bf16.gmra.mrb[0].mxu0 %v4009
        %v4201 = vpop.f32.mrb[0].mxu0
        %v4202 = vadd.f32 0.0, %v4201
        %v4203 = vpop.f32.mrb[0].mxu0
        %v4204 = vpop.f32.mrb[0].mxu0
        %v4205 = vadd.f32 0.0, %v4204
        %v4206 = vpop.f32.mrb[0].mxu0
        %4207 = vmatprep.mubr.bf16.mxu0 0
        %4208 = vmatmul.mubr.bf16.gmra.mrb[0].mxu0 %v4011
        %v4209 = vpop.f32.mrb[0].mxu0
        %v4210 = vadd.f32 0.0, %v4209
        %v4211 = vpop.f32.mrb[0].mxu0
        %v4212 = vpop.f32.mrb[0].mxu0
        %v4213 = vadd.f32 0.0, %v4212
        %v4214 = vpop.f32.mrb[0].mxu0
        %4215 = vmatprep.mubr.bf16.mxu0 0
        %4216 = vmatmul.mubr.bf16.gmra.mrb[0].mxu0 %v4013
        %v4217 = vpop.f32.mrb[0].mxu0
        %v4218 = vadd.f32 0.0, %v4217
        %v4219 = vpop.f32.mrb[0].mxu0
        %v4220 = vpop.f32.mrb[0].mxu0
        %v4221 = vadd.f32 0.0, %v4220
        %v4222 = vpop.f32.mrb[0].mxu0
        %4223 = vmatprep.mubr.bf16.mxu0 0
        %4224 = vmatmul.mubr.bf16.gmra.mrb[0].mxu0 %v4015
        %v4225 = vpop.f32.mrb[0].mxu0
        %v4226 = vadd.f32 0.0, %v4225
        %v4227 = vpop.f32.mrb[0].mxu0
        %v4228 = vpop.f32.mrb[0].mxu0
        %v4229 = vadd.f32 0.0, %v4228
        %v4230 = vpop.f32.mrb[0].mxu0
        %4231 = vmatprep.mubr.bf16.mxu0 0
        %4232 = vmatmul.mubr.bf16.gmra.mrb[0].mxu0 %v4017
        %v4233 = vpop.f32.mrb[0].mxu0
        %v4234 = vadd.f32 0.0, %v4233
        %v4235 = vpop.f32.mrb[0].mxu0
        %v4236 = vpop.f32.mrb[0].mxu0
        %v4237 = vadd.f32 0.0, %v4236
        %v4238 = vpop.f32.mrb[0].mxu0
        %4239 = vmatprep.mubr.bf16.mxu0 0
        %4240 = vmatmul.mubr.bf16.gmra.mrb[0].mxu0 %v4019
        %v4241 = vpop.f32.mrb[0].mxu0
        %v4242 = vadd.f32 0.0, %v4241
        %v4243 = vpop.f32.mrb[0].mxu0
        %v4244 = vpop.f32.mrb[0].mxu0
        %v4245 = vadd.f32 0.0, %v4244
        %v4246 = vpop.f32.mrb[0].mxu0
        %4247 = vmatprep.mubr.bf16.mxu0 0
        %4248 = vmatmul.mubr.bf16.gmra.mrb[0].mxu0 %v4021
        %v4249 = vpop.f32.mrb[0].mxu0
        %v4250 = vadd.f32 0.0, %v4249
        %v4251 = vpop.f32.mrb[0].mxu0
        %v4252 = vpop.f32.mrb[0].mxu0
        %v4253 = vadd.f32 0.0, %v4252
        %v4254 = vpop.f32.mrb[0].mxu0
        %4255 = vmatprep.mubr.bf16.mxu0 0
        %4256 = vmatmul.mubr.bf16.gmra.mrb[0].mxu0 %v4023
        %v4257 = vpop.f32.mrb[0].mxu0
        %v4258 = vadd.f32 0.0, %v4257
        %v4259 = vpop.f32.mrb[0].mxu0
        %v4260 = vpop.f32.mrb[0].mxu0
        %v4261 = vadd.f32 0.0, %v4260
        %v4262 = vpop.f32.mrb[0].mxu0
        %4263 = vmatprep.mubr.bf16.mxu0 0
        %4264 = vmatmul.mubr.bf16.gmra.mrb[0].mxu0 %v4025
        %v4265 = vpop.f32.mrb[0].mxu0
        %v4266 = vadd.f32 0.0, %v4265
        %v4267 = vpop.f32.mrb[0].mxu0
        %v4268 = vpop.f32.mrb[0].mxu0
        %v4269 = vadd.f32 0.0, %v4268
        %v4270 = vpop.f32.mrb[0].mxu0
        %4271 = vmatprep.mubr.bf16.mxu0 0
        %4272 = vmatmul.mubr.bf16.gmra.mrb[0].mxu0 %v4027
        %v4273 = vpop.f32.mrb[0].mxu0
        %v4274 = vadd.f32 0.0, %v4273
        %v4275 = vpop.f32.mrb[0].mxu0
        %v4276 = vpop.f32.mrb[0].mxu0
        %v4277 = vadd.f32 0.0, %v4276
        %v4278 = vpop.f32.mrb[0].mxu0
        %4279 = vmatprep.mubr.bf16.mxu0 0
        %4280 = vmatmul.mubr.bf16.gmra.mrb[0].mxu0 %v4029
        %v4281 = vpop.f32.mrb[0].mxu0
        %v4282 = vadd.f32 0.0, %v4281
        %v4283 = vpop.f32.mrb[0].mxu0
        %v4284 = vpop.f32.mrb[0].mxu0
        %v4285 = vadd.f32 0.0, %v4284
        %v4286 = vpop.f32.mrb[0].mxu0
        %4287 = vmatprep.mubr.bf16.mxu0 0
        %4288 = vmatmul.mubr.bf16.gmra.mrb[0].mxu0 %v4031
        %v4289 = vpop.f32.mrb[0].mxu0
        %v4290 = vadd.f32 0.0, %v4289
        %v4291 = vpop.f32.mrb[0].mxu0
        %v4292 = vpop.f32.mrb[0].mxu0
        %v4293 = vadd.f32 0.0, %v4292
        %v4294 = vpop.f32.mrb[0].mxu0
        %4295 = vmatprep.mubr.bf16.mxu0 0
        %4296 = vmatmul.mubr.bf16.gmra.mrb[0].mxu0 %v4033
        %v4297 = vpop.f32.mrb[0].mxu0
        %v4298 = vadd.f32 0.0, %v4297
        %v4299 = vpop.f32.mrb[0].mxu0
        %v4300 = vpop.f32.mrb[0].mxu0
        %v4301 = vadd.f32 0.0, %v4300
        %v4302 = vpop.f32.mrb[0].mxu0
        %4303 = vmatprep.mubr.bf16.mxu0 0
        %4304 = vmatmul.mubr.bf16.gmra.mrb[0].mxu0 %v4035
        %v4305 = vpop.f32.mrb[0].mxu0
        %v4306 = vadd.f32 0.0, %v4305
        %v4307 = vpop.f32.mrb[0].mxu0
        %v4308 = vpop.f32.mrb[0].mxu0
        %v4309 = vadd.f32 0.0, %v4308
        %v4310 = vpop.f32.mrb[0].mxu0
        %4311 = vmatprep.mubr.bf16.mxu0 0
        %4312 = vmatmul.mubr.bf16.gmra.mrb[0].mxu0 %v4037
        %v4313 = vpop.f32.mrb[0].mxu0
        %v4314 = vadd.f32 0.0, %v4313
        %v4315 = vpop.f32.mrb[0].mxu0
        %v4316 = vpop.f32.mrb[0].mxu0
        %v4317 = vadd.f32 0.0, %v4316
        %v4318 = vpop.f32.mrb[0].mxu0
        %4319 = vmatprep.mubr.bf16.mxu0 0
        %4320 = vmatmul.mubr.bf16.gmra.mrb[0].mxu0 %v4039
        %v4321 = vpop.f32.mrb[0].mxu0
        %v4322 = vadd.f32 0.0, %v4321
        %v4323 = vpop.f32.mrb[0].mxu0
        %v4324 = vpop.f32.mrb[0].mxu0
        %v4325 = vadd.f32 0.0, %v4324
        %v4326 = vpop.f32.mrb[0].mxu0
        %4327 = vmatprep.mubr.bf16.mxu0 0
        %4328 = vmatmul.mubr.bf16.gmra.mrb[0].mxu0 %v4041
        %v4329 = vpop.f32.mrb[0].mxu0
        %v4330 = vadd.f32 0.0, %v4329
        %v4331 = vpop.f32.mrb[0].mxu0
        %v4332 = vpop.f32.mrb[0].mxu0
        %v4333 = vadd.f32 0.0, %v4332
        %v4334 = vpop.f32.mrb[0].mxu0
        %4335 = vmatprep.mubr.bf16.mxu0 0
        %4336 = vmatmul.mubr.bf16.gmra.mrb[0].mxu0 %v4043
        %v4337 = vpop.f32.mrb[0].mxu0
        %v4338 = vadd.f32 0.0, %v4337
        %v4339 = vpop.f32.mrb[0].mxu0
        %v4340 = vpop.f32.mrb[0].mxu0
        %v4341 = vadd.f32 0.0, %v4340
        %v4342 = vpop.f32.mrb[0].mxu0
        %4343 = vmatprep.mubr.bf16.mxu0 0
        %4344 = vmatmul.mubr.bf16.gmra.mrb[0].mxu0 %v4045
        %v4345 = vpop.f32.mrb[0].mxu0
        %v4346 = vadd.f32 0.0, %v4345
        %v4347 = vpop.f32.mrb[0].mxu0
        %v4348 = vpop.f32.mrb[0].mxu0
        %v4349 = vadd.f32 0.0, %v4348
        %v4350 = vpop.f32.mrb[0].mxu0
        %4351 = vmatprep.mubr.bf16.mxu0 0
        %4352 = vmatmul.mubr.bf16.gmra.mrb[0].mxu0 %v4047
        %v4353 = vpop.f32.mrb[0].mxu0
        %v4354 = vadd.f32 0.0, %v4353
        %v4355 = vpop.f32.mrb[0].mxu0
        %v4356 = vpop.f32.mrb[0].mxu0
        %v4357 = vadd.f32 0.0, %v4356
        %v4358 = vpop.f32.mrb[0].mxu0
        %4359 = vmatprep.mubr.bf16.mxu0 0
        %4360 = vmatmul.mubr.bf16.gmra.mrb[0].mxu0 %v4049
        %v4361 = vpop.f32.mrb[0].mxu0
        %v4362 = vadd.f32 0.0, %v4361
        %v4363 = vpop.f32.mrb[0].mxu0
        %v4364 = vpop.f32.mrb[0].mxu0
        %v4365 = vadd.f32 0.0, %v4364
        %v4366 = vpop.f32.mrb[0].mxu0
        %4367 = vmatprep.mubr.bf16.mxu0 0
        %4368 = vmatmul.mubr.bf16.gmra.mrb[0].mxu0 %v4051
        %v4369 = vpop.f32.mrb[0].mxu0
        %v4370 = vadd.f32 0.0, %v4369
        %v4371 = vpop.f32.mrb[0].mxu0
        %v4372 = vpop.f32.mrb[0].mxu0
        %v4373 = vadd.f32 0.0, %v4372
        %v4374 = vpop.f32.mrb[0].mxu0
        %4375 = vdwg.mxu0
        %v4376 = vld [vmem:[#allocation3] sm:$0xff]
        %v4377 = vld [vmem:[#allocation3 + $0x8] sm:$0xff]
        %v4378 = vld [vmem:[#allocation3 + $0x10] sm:$0xff]
        %v4379 = vld [vmem:[#allocation3 + $0x18] sm:$0xff]
        %v4380 = vld [vmem:[#allocation3 + $0x20] sm:$0xff]
        %v4381 = vld [vmem:[#allocation3 + $0x28] sm:$0xff]
        %v4382 = vld [vmem:[#allocation3 + $0x30] sm:$0xff]
        %v4383 = vld [vmem:[#allocation3 + $0x38] sm:$0xff]
        %v4384 = vld [vmem:[#allocation3 + $0x40] sm:$0xff]
        %v4385 = vld [vmem:[#allocation3 + $0x48] sm:$0xff]
        %v4386 = vld [vmem:[#allocation3 + $0x50] sm:$0xff]
        %v4387 = vld [vmem:[#allocation3 + $0x58] sm:$0xff]
        %v4388 = vld [vmem:[#allocation3 + $0x60] sm:$0xff]
        %v4389 = vld [vmem:[#allocation3 + $0x68] sm:$0xff]
        %v4390 = vld [vmem:[#allocation3 + $0x70] sm:$0xff]
        %v4391 = vld [vmem:[#allocation3 + $0x78] sm:$0xff]
        %v4392 = vld [vmem:[#allocation3 + $0x80] sm:$0xff]
        %v4393 = vld [vmem:[#allocation3 + $0x88] sm:$0xff]
        %v4394 = vld [vmem:[#allocation3 + $0x90] sm:$0xff]
        %v4395 = vld [vmem:[#allocation3 + $0x98] sm:$0xff]
        %v4396 = vld [vmem:[#allocation3 + $0xa0] sm:$0xff]
        %v4397 = vld [vmem:[#allocation3 + $0xa8] sm:$0xff]
        %v4398 = vld [vmem:[#allocation3 + $0xb0] sm:$0xff]
        %v4399 = vld [vmem:[#allocation3 + $0xb8] sm:$0xff]
        %v4400 = vld [vmem:[#allocation3 + $0xc0] sm:$0xff]
        %v4401 = vld [vmem:[#allocation3 + $0xc8] sm:$0xff]
        %v4402 = vld [vmem:[#allocation3 + $0xd0] sm:$0xff]
        %v4403 = vld [vmem:[#allocation3 + $0xd8] sm:$0xff]
        %v4404 = vld [vmem:[#allocation3 + $0xe0] sm:$0xff]
        %v4405 = vld [vmem:[#allocation3 + $0xe8] sm:$0xff]
        %v4406 = vld [vmem:[#allocation3 + $0xf0] sm:$0xff]
        %v4407 = vld [vmem:[#allocation3 + $0xf8] sm:$0xff]
        %v4408 = vld [vmem:[#allocation3 + $0x100] sm:$0xff]
        %v4409 = vld [vmem:[#allocation3 + $0x108] sm:$0xff]
        %v4410 = vld [vmem:[#allocation3 + $0x110] sm:$0xff]
        %v4411 = vld [vmem:[#allocation3 + $0x118] sm:$0xff]
        %v4412 = vld [vmem:[#allocation3 + $0x120] sm:$0xff]
        %v4413 = vld [vmem:[#allocation3 + $0x128] sm:$0xff]
        %v4414 = vld [vmem:[#allocation3 + $0x130] sm:$0xff]
        %v4415 = vld [vmem:[#allocation3 + $0x138] sm:$0xff]
        %v4416 = vld [vmem:[#allocation3 + $0x140] sm:$0xff]
        %v4417 = vld [vmem:[#allocation3 + $0x148] sm:$0xff]
        %v4418 = vld [vmem:[#allocation3 + $0x150] sm:$0xff]
        %v4419 = vld [vmem:[#allocation3 + $0x158] sm:$0xff]
        %v4420 = vld [vmem:[#allocation3 + $0x160] sm:$0xff]
        %v4421 = vld [vmem:[#allocation3 + $0x168] sm:$0xff]
        %v4422 = vld [vmem:[#allocation3 + $0x170] sm:$0xff]
        %v4423 = vld [vmem:[#allocation3 + $0x178] sm:$0xff]
        %v4424 = vld [vmem:[#allocation3 + $0x180] sm:$0xff]
        %v4425 = vld [vmem:[#allocation3 + $0x188] sm:$0xff]
        %v4426 = vld [vmem:[#allocation3 + $0x190] sm:$0xff]
        %v4427 = vld [vmem:[#allocation3 + $0x198] sm:$0xff]
        %v4428 = vld [vmem:[#allocation3 + $0x1a0] sm:$0xff]
        %v4429 = vld [vmem:[#allocation3 + $0x1a8] sm:$0xff]
        %v4430 = vadd.f32 %v4376, %v4162
        %v4431 = vadd.f32 %v4377, %v4165
        %v4432 = vadd.f32 %v4378, %v4170
        %v4433 = vadd.f32 %v4379, %v4173
        %v4434 = vadd.f32 %v4380, %v4178
        %v4435 = vadd.f32 %v4381, %v4181
        %v4436 = vadd.f32 %v4382, %v4186
        %v4437 = vadd.f32 %v4383, %v4189
        %v4438 = vadd.f32 %v4384, %v4194
        %v4439 = vadd.f32 %v4385, %v4197
        %v4440 = vadd.f32 %v4386, %v4202
        %v4441 = vadd.f32 %v4387, %v4205
        %v4442 = vadd.f32 %v4388, %v4210
        %v4443 = vadd.f32 %v4389, %v4213
        %v4444 = vadd.f32 %v4390, %v4218
        %v4445 = vadd.f32 %v4391, %v4221
        %v4446 = vadd.f32 %v4392, %v4226
        %v4447 = vadd.f32 %v4393, %v4229
        %v4448 = vadd.f32 %v4394, %v4234
        %v4449 = vadd.f32 %v4395, %v4237
        %v4450 = vadd.f32 %v4396, %v4242
        %v4451 = vadd.f32 %v4397, %v4245
        %v4452 = vadd.f32 %v4398, %v4250
        %v4453 = vadd.f32 %v4399, %v4253
        %v4454 = vadd.f32 %v4400, %v4258
        %v4455 = vadd.f32 %v4401, %v4261
        %v4456 = vadd.f32 %v4402, %v4266
        %v4457 = vadd.f32 %v4403, %v4269
        %v4458 = vadd.f32 %v4404, %v4274
        %v4459 = vadd.f32 %v4405, %v4277
        %v4460 = vadd.f32 %v4406, %v4282
        %v4461 = vadd.f32 %v4407, %v4285
        %v4462 = vadd.f32 %v4408, %v4290
        %v4463 = vadd.f32 %v4409, %v4293
        %v4464 = vadd.f32 %v4410, %v4298
        %v4465 = vadd.f32 %v4411, %v4301
        %v4466 = vadd.f32 %v4412, %v4306
        %v4467 = vadd.f32 %v4413, %v4309
        %v4468 = vadd.f32 %v4414, %v4314
        %v4469 = vadd.f32 %v4415, %v4317
        %v4470 = vadd.f32 %v4416, %v4322
        %v4471 = vadd.f32 %v4417, %v4325
        %v4472 = vadd.f32 %v4418, %v4330
        %v4473 = vadd.f32 %v4419, %v4333
        %v4474 = vadd.f32 %v4420, %v4338
        %v4475 = vadd.f32 %v4421, %v4341
        %v4476 = vadd.f32 %v4422, %v4346
        %v4477 = vadd.f32 %v4423, %v4349
        %v4478 = vadd.f32 %v4424, %v4354
        %v4479 = vadd.f32 %v4425, %v4357
        %v4480 = vadd.f32 %v4426, %v4362
        %v4481 = vadd.f32 %v4427, %v4365
        %v4482 = vadd.f32 %v4428, %v4370
        %v4483 = vadd.f32 %v4429, %v4373
        %4484 = vst [vmem:[#allocation3] sm:$0xff] %v4430
        %4485 = vst [vmem:[#allocation3 + $0x8] sm:$0xff] %v4431
        %4486 = vst [vmem:[#allocation3 + $0x10] sm:$0xff] %v4432
        %4487 = vst [vmem:[#allocation3 + $0x18] sm:$0xff] %v4433
        %4488 = vst [vmem:[#allocation3 + $0x20] sm:$0xff] %v4434
        %4489 = vst [vmem:[#allocation3 + $0x28] sm:$0xff] %v4435
        %4490 = vst [vmem:[#allocation3 + $0x30] sm:$0xff] %v4436
        %4491 = vst [vmem:[#allocation3 + $0x38] sm:$0xff] %v4437
        %4492 = vst [vmem:[#allocation3 + $0x40] sm:$0xff] %v4438
        %4493 = vst [vmem:[#allocation3 + $0x48] sm:$0xff] %v4439
        %4494 = vst [vmem:[#allocation3 + $0x50] sm:$0xff] %v4440
        %4495 = vst [vmem:[#allocation3 + $0x58] sm:$0xff] %v4441
        %4496 = vst [vmem:[#allocation3 + $0x60] sm:$0xff] %v4442
        %4497 = vst [vmem:[#allocation3 + $0x68] sm:$0xff] %v4443
        %4498 = vst [vmem:[#allocation3 + $0x70] sm:$0xff] %v4444
        %4499 = vst [vmem:[#allocation3 + $0x78] sm:$0xff] %v4445
        %4500 = vst [vmem:[#allocation3 + $0x80] sm:$0xff] %v4446
        %4501 = vst [vmem:[#allocation3 + $0x88] sm:$0xff] %v4447
        %4502 = vst [vmem:[#allocation3 + $0x90] sm:$0xff] %v4448
        %4503 = vst [vmem:[#allocation3 + $0x98] sm:$0xff] %v4449
        %4504 = vst [vmem:[#allocation3 + $0xa0] sm:$0xff] %v4450
        %4505 = vst [vmem:[#allocation3 + $0xa8] sm:$0xff] %v4451
        %4506 = vst [vmem:[#allocation3 + $0xb0] sm:$0xff] %v4452
        %4507 = vst [vmem:[#allocation3 + $0xb8] sm:$0xff] %v4453
        %4508 = vst [vmem:[#allocation3 + $0xc0] sm:$0xff] %v4454
        %4509 = vst [vmem:[#allocation3 + $0xc8] sm:$0xff] %v4455
        %4510 = vst [vmem:[#allocation3 + $0xd0] sm:$0xff] %v4456
        %4511 = vst [vmem:[#allocation3 + $0xd8] sm:$0xff] %v4457
        %4512 = vst [vmem:[#allocation3 + $0xe0] sm:$0xff] %v4458
        %4513 = vst [vmem:[#allocation3 + $0xe8] sm:$0xff] %v4459
        %4514 = vst [vmem:[#allocation3 + $0xf0] sm:$0xff] %v4460
        %4515 = vst [vmem:[#allocation3 + $0xf8] sm:$0xff] %v4461
        %4516 = vst [vmem:[#allocation3 + $0x100] sm:$0xff] %v4462
        %4517 = vst [vmem:[#allocation3 + $0x108] sm:$0xff] %v4463
        %4518 = vst [vmem:[#allocation3 + $0x110] sm:$0xff] %v4464
        %4519 = vst [vmem:[#allocation3 + $0x118] sm:$0xff] %v4465
        %4520 = vst [vmem:[#allocation3 + $0x120] sm:$0xff] %v4466
        %4521 = vst [vmem:[#allocation3 + $0x128] sm:$0xff] %v4467
        %4522 = vst [vmem:[#allocation3 + $0x130] sm:$0xff] %v4468
        %4523 = vst [vmem:[#allocation3 + $0x138] sm:$0xff] %v4469
        %4524 = vst [vmem:[#allocation3 + $0x140] sm:$0xff] %v4470
        %4525 = vst [vmem:[#allocation3 + $0x148] sm:$0xff] %v4471
        %4526 = vst [vmem:[#allocation3 + $0x150] sm:$0xff] %v4472
        %4527 = vst [vmem:[#allocation3 + $0x158] sm:$0xff] %v4473
        %4528 = vst [vmem:[#allocation3 + $0x160] sm:$0xff] %v4474
        %4529 = vst [vmem:[#allocation3 + $0x168] sm:$0xff] %v4475
        %4530 = vst [vmem:[#allocation3 + $0x170] sm:$0xff] %v4476
        %4531 = vst [vmem:[#allocation3 + $0x178] sm:$0xff] %v4477
        %4532 = vst [vmem:[#allocation3 + $0x180] sm:$0xff] %v4478
        %4533 = vst [vmem:[#allocation3 + $0x188] sm:$0xff] %v4479
        %4534 = vst [vmem:[#allocation3 + $0x190] sm:$0xff] %v4480
        %4535 = vst [vmem:[#allocation3 + $0x198] sm:$0xff] %v4481
        %4536 = vst [vmem:[#allocation3 + $0x1a0] sm:$0xff] %v4482
        %4537 = vst [vmem:[#allocation3 + $0x1a8] sm:$0xff] %v4483
        %v4538 = vld [vmem:[#allocation2 + $0x18] sm:$0xff]
        %v4539 = vld [vmem:[#allocation2 + $0x20] sm:$0xff]
        %v4540 = vld [vmem:[#allocation2 + $0x28] sm:$0xff]
        %v4541 = vld [vmem:[#allocation2 + $0x30] sm:$0xff]
        %v4542 = vld [vmem:[#allocation2 + $0x38] sm:$0xff]
        %v4543 = vld [vmem:[#allocation2 + $0x40] sm:$0xff]
        %v4544 = vld [vmem:[#allocation2 + $0x48] sm:$0xff]
        %v4545 = vld [vmem:[#allocation2 + $0x50] sm:$0xff]
        %v4546 = vld [vmem:[#allocation2 + $0x58] sm:$0xff]
        %v4547 = vld [vmem:[#allocation2 + $0x60] sm:$0xff]
        %v4548 = vld [vmem:[#allocation2 + $0x68] sm:$0xff]
        %v4549 = vld [vmem:[#allocation2 + $0x70] sm:$0xff]
        %v4550 = vld [vmem:[#allocation2 + $0x78] sm:$0xff]
        %v4551 = vld [vmem:[#allocation2 + $0x80] sm:$0xff]
        %v4552 = vld [vmem:[#allocation2 + $0x88] sm:$0xff]
        %v4553 = vld [vmem:[#allocation2 + $0x90] sm:$0xff]
        %v4554 = vld [vmem:[#allocation2 + $0x98] sm:$0xff]
        %v4555 = vld [vmem:[#allocation2 + $0xa0] sm:$0xff]
        %v4556 = vld [vmem:[#allocation2 + $0xa8] sm:$0xff]
        %v4557 = vld [vmem:[#allocation2 + $0xb0] sm:$0xff]
        %v4558 = vld [vmem:[#allocation2 + $0xb8] sm:$0xff]
        %v4559 = vld [vmem:[#allocation2 + $0xc0] sm:$0xff]
        %v4560 = vld [vmem:[#allocation2 + $0xc8] sm:$0xff]
        %v4561 = vld [vmem:[#allocation2 + $0xd0] sm:$0xff]
        %v4562 = vld [vmem:[#allocation2 + $0xd8] sm:$0xff]
        %v4563 = vld [vmem:[#allocation2 + $0xe0] sm:$0xff]
        %v4564 = vld [vmem:[#allocation2 + $0xe8] sm:$0xff]
        %s4565 = sadd.s32 %s772, 6
        %s4566 = smul.u32 %s4565, 16
        %s4567 = smul.addr %s4566, 4
        %s4568 = scalar_lea.vmem %s1, %s4567
        %v4569 = vld [vmem:[%s4568] sm:$0xf]
        %v4570 = vld [vmem:[%s4568 + $0x4] sm:$0xf]
        %v4571 = vld [vmem:[%s4568 + $0x8] sm:$0xf]
        %v4572 = vld [vmem:[%s4568 + $0xc] sm:$0xf]
        %v4573 = vld [vmem:[%s4568 + $0x10] sm:$0xf]
        %v4574 = vld [vmem:[%s4568 + $0x14] sm:$0xf]
        %v4575 = vld [vmem:[%s4568 + $0x18] sm:$0xf]
        %v4576 = vld [vmem:[%s4568 + $0x1c] sm:$0xf]
        %v4577 = vld [vmem:[%s4568 + $0x20] sm:$0xf]
        %v4578 = vld [vmem:[%s4568 + $0x24] sm:$0xf]
        %v4579 = vld [vmem:[%s4568 + $0x28] sm:$0xf]
        %v4580 = vld [vmem:[%s4568 + $0x2c] sm:$0xf]
        %v4581 = vld [vmem:[%s4568 + $0x30] sm:$0xf]
        %v4582 = vld [vmem:[%s4568 + $0x34] sm:$0xf]
        %v4583 = vld [vmem:[%s4568 + $0x38] sm:$0xf]
        %v4584 = vld [vmem:[%s4568 + $0x3c] sm:$0xf]
        %v4601 = vunpack.c.l.b16 %v4569
        %v4602 = vunpack.c.l.b16 %v4570
        %v4603 = vunpack.c.l.b16 %v4571
        %v4604 = vunpack.c.l.b16 %v4572
        %v4605 = vunpack.c.l.b16 %v4573
        %v4606 = vunpack.c.l.b16 %v4574
        %v4607 = vunpack.c.l.b16 %v4575
        %v4608 = vunpack.c.l.b16 %v4576
        %v4609 = vunpack.c.l.b16 %v4577
        %v4610 = vunpack.c.l.b16 %v4578
        %v4611 = vunpack.c.l.b16 %v4579
        %v4612 = vunpack.c.l.b16 %v4580
        %v4613 = vunpack.c.l.b16 %v4581
        %v4614 = vunpack.c.l.b16 %v4582
        %v4615 = vunpack.c.l.b16 %v4583
        %v4616 = vunpack.c.l.b16 %v4584
        %v4617 = vpack.c.b16 %v4602, %v4601
        %v4618 = vpack.c.b16 %v4604, %v4603
        %v4619 = vpack.c.b16 %v4606, %v4605
        %v4620 = vpack.c.b16 %v4608, %v4607
        %v4621 = vpack.c.b16 %v4610, %v4609
        %v4622 = vpack.c.b16 %v4612, %v4611
        %v4623 = vpack.c.b16 %v4614, %v4613
        %v4624 = vpack.c.b16 %v4616, %v4615
        %4633 = vmatprep.subr.bf16.mxu0 0
        %4634 = vmatpush1.bf16.msra.mxu0 %v4617
        %4635 = vmatprep.subr.bf16.mxu0 0
        %4636 = vmatpush1.bf16.msra.mxu0 %v4618
        %4637 = vmatprep.subr.bf16.mxu0 0
        %4638 = vmatpush1.bf16.msra.mxu0 %v4619
        %4639 = vmatprep.subr.bf16.mxu0 0
        %4640 = vmatpush1.bf16.msra.mxu0 %v4620
        %4641 = vmatprep.subr.bf16.mxu0 0
        %4642 = vmatpush1.bf16.msra.mxu0 %v4621
        %4643 = vmatprep.subr.bf16.mxu0 0
        %4644 = vmatpush1.bf16.msra.mxu0 %v4622
        %4645 = vmatprep.subr.bf16.mxu0 0
        %4646 = vmatpush1.bf16.msra.mxu0 %v4623
        %4647 = vmatprep.subr.bf16.mxu0 0
        %4648 = vmatpush1.bf16.msra.mxu0 %v4624
        %4649 = vmatprep.subr.bf16.mxu0 0
        %4650 = vmatpush1.bf16.msra.mxu0 0
        %4651 = vmatprep.subr.bf16.mxu0 0
        %4652 = vmatpush1.bf16.msra.mxu0 0
        %4653 = vmatprep.subr.bf16.mxu0 0
        %4654 = vmatpush1.bf16.msra.mxu0 0
        %4655 = vmatprep.subr.bf16.mxu0 0
        %4656 = vmatpush1.bf16.msra.mxu0 0
        %4657 = vmatprep.subr.bf16.mxu0 0
        %4658 = vmatpush1.bf16.msra.mxu0 0
        %4659 = vmatprep.subr.bf16.mxu0 0
        %4660 = vmatpush1.bf16.msra.mxu0 0
        %4661 = vmatprep.subr.bf16.mxu0 0
        %4662 = vmatpush1.bf16.msra.mxu0 0
        %4663 = vmatprep.subr.bf16.mxu0 0
        %4664 = vmatpush1.bf16.msra.mxu0 0
        %4665 = vmatprep.mubr.bf16.mxu0 0
        %4666 = vmatmul.mubr.bf16.gmra.mrb[0].mxu0 %v4538
        %v4667 = vpop.f32.mrb[0].mxu0
        %v4668 = vadd.f32 0.0, %v4667
        %v4669 = vpop.f32.mrb[0].mxu0
        %v4670 = vpop.f32.mrb[0].mxu0
        %v4671 = vadd.f32 0.0, %v4670
        %v4672 = vpop.f32.mrb[0].mxu0
        %4673 = vmatprep.mubr.bf16.mxu0 0
        %4674 = vmatmul.mubr.bf16.gmra.mrb[0].mxu0 %v4539
        %v4675 = vpop.f32.mrb[0].mxu0
        %v4676 = vadd.f32 0.0, %v4675
        %v4677 = vpop.f32.mrb[0].mxu0
        %v4678 = vpop.f32.mrb[0].mxu0
        %v4679 = vadd.f32 0.0, %v4678
        %v4680 = vpop.f32.mrb[0].mxu0
        %4681 = vmatprep.mubr.bf16.mxu0 0
        %4682 = vmatmul.mubr.bf16.gmra.mrb[0].mxu0 %v4540
        %v4683 = vpop.f32.mrb[0].mxu0
        %v4684 = vadd.f32 0.0, %v4683
        %v4685 = vpop.f32.mrb[0].mxu0
        %v4686 = vpop.f32.mrb[0].mxu0
        %v4687 = vadd.f32 0.0, %v4686
        %v4688 = vpop.f32.mrb[0].mxu0
        %4689 = vmatprep.mubr.bf16.mxu0 0
        %4690 = vmatmul.mubr.bf16.gmra.mrb[0].mxu0 %v4541
        %v4691 = vpop.f32.mrb[0].mxu0
        %v4692 = vadd.f32 0.0, %v4691
        %v4693 = vpop.f32.mrb[0].mxu0
        %v4694 = vpop.f32.mrb[0].mxu0
        %v4695 = vadd.f32 0.0, %v4694
        %v4696 = vpop.f32.mrb[0].mxu0
        %4697 = vmatprep.mubr.bf16.mxu0 0
        %4698 = vmatmul.mubr.bf16.gmra.mrb[0].mxu0 %v4542
        %v4699 = vpop.f32.mrb[0].mxu0
        %v4700 = vadd.f32 0.0, %v4699
        %v4701 = vpop.f32.mrb[0].mxu0
        %v4702 = vpop.f32.mrb[0].mxu0
        %v4703 = vadd.f32 0.0, %v4702
        %v4704 = vpop.f32.mrb[0].mxu0
        %4705 = vmatprep.mubr.bf16.mxu0 0
        %4706 = vmatmul.mubr.bf16.gmra.mrb[0].mxu0 %v4543
        %v4707 = vpop.f32.mrb[0].mxu0
        %v4708 = vadd.f32 0.0, %v4707
        %v4709 = vpop.f32.mrb[0].mxu0
        %v4710 = vpop.f32.mrb[0].mxu0
        %v4711 = vadd.f32 0.0, %v4710
        %v4712 = vpop.f32.mrb[0].mxu0
        %4713 = vmatprep.mubr.bf16.mxu0 0
        %4714 = vmatmul.mubr.bf16.gmra.mrb[0].mxu0 %v4544
        %v4715 = vpop.f32.mrb[0].mxu0
        %v4716 = vadd.f32 0.0, %v4715
        %v4717 = vpop.f32.mrb[0].mxu0
        %v4718 = vpop.f32.mrb[0].mxu0
        %v4719 = vadd.f32 0.0, %v4718
        %v4720 = vpop.f32.mrb[0].mxu0
        %4721 = vmatprep.mubr.bf16.mxu0 0
        %4722 = vmatmul.mubr.bf16.gmra.mrb[0].mxu0 %v4545
        %v4723 = vpop.f32.mrb[0].mxu0
        %v4724 = vadd.f32 0.0, %v4723
        %v4725 = vpop.f32.mrb[0].mxu0
        %v4726 = vpop.f32.mrb[0].mxu0
        %v4727 = vadd.f32 0.0, %v4726
        %v4728 = vpop.f32.mrb[0].mxu0
        %4729 = vmatprep.mubr.bf16.mxu0 0
        %4730 = vmatmul.mubr.bf16.gmra.mrb[0].mxu0 %v4546
        %v4731 = vpop.f32.mrb[0].mxu0
        %v4732 = vadd.f32 0.0, %v4731
        %v4733 = vpop.f32.mrb[0].mxu0
        %v4734 = vpop.f32.mrb[0].mxu0
        %v4735 = vadd.f32 0.0, %v4734
        %v4736 = vpop.f32.mrb[0].mxu0
        %4737 = vmatprep.mubr.bf16.mxu0 0
        %4738 = vmatmul.mubr.bf16.gmra.mrb[0].mxu0 %v4547
        %v4739 = vpop.f32.mrb[0].mxu0
        %v4740 = vadd.f32 0.0, %v4739
        %v4741 = vpop.f32.mrb[0].mxu0
        %v4742 = vpop.f32.mrb[0].mxu0
        %v4743 = vadd.f32 0.0, %v4742
        %v4744 = vpop.f32.mrb[0].mxu0
        %4745 = vmatprep.mubr.bf16.mxu0 0
        %4746 = vmatmul.mubr.bf16.gmra.mrb[0].mxu0 %v4548
        %v4747 = vpop.f32.mrb[0].mxu0
        %v4748 = vadd.f32 0.0, %v4747
        %v4749 = vpop.f32.mrb[0].mxu0
        %v4750 = vpop.f32.mrb[0].mxu0
        %v4751 = vadd.f32 0.0, %v4750
        %v4752 = vpop.f32.mrb[0].mxu0
        %4753 = vmatprep.mubr.bf16.mxu0 0
        %4754 = vmatmul.mubr.bf16.gmra.mrb[0].mxu0 %v4549
        %v4755 = vpop.f32.mrb[0].mxu0
        %v4756 = vadd.f32 0.0, %v4755
        %v4757 = vpop.f32.mrb[0].mxu0
        %v4758 = vpop.f32.mrb[0].mxu0
        %v4759 = vadd.f32 0.0, %v4758
        %v4760 = vpop.f32.mrb[0].mxu0
        %4761 = vmatprep.mubr.bf16.mxu0 0
        %4762 = vmatmul.mubr.bf16.gmra.mrb[0].mxu0 %v4550
        %v4763 = vpop.f32.mrb[0].mxu0
        %v4764 = vadd.f32 0.0, %v4763
        %v4765 = vpop.f32.mrb[0].mxu0
        %v4766 = vpop.f32.mrb[0].mxu0
        %v4767 = vadd.f32 0.0, %v4766
        %v4768 = vpop.f32.mrb[0].mxu0
        %4769 = vmatprep.mubr.bf16.mxu0 0
        %4770 = vmatmul.mubr.bf16.gmra.mrb[0].mxu0 %v4551
        %v4771 = vpop.f32.mrb[0].mxu0
        %v4772 = vadd.f32 0.0, %v4771
        %v4773 = vpop.f32.mrb[0].mxu0
        %v4774 = vpop.f32.mrb[0].mxu0
        %v4775 = vadd.f32 0.0, %v4774
        %v4776 = vpop.f32.mrb[0].mxu0
        %4777 = vmatprep.mubr.bf16.mxu0 0
        %4778 = vmatmul.mubr.bf16.gmra.mrb[0].mxu0 %v4552
        %v4779 = vpop.f32.mrb[0].mxu0
        %v4780 = vadd.f32 0.0, %v4779
        %v4781 = vpop.f32.mrb[0].mxu0
        %v4782 = vpop.f32.mrb[0].mxu0
        %v4783 = vadd.f32 0.0, %v4782
        %v4784 = vpop.f32.mrb[0].mxu0
        %4785 = vmatprep.mubr.bf16.mxu0 0
        %4786 = vmatmul.mubr.bf16.gmra.mrb[0].mxu0 %v4553
        %v4787 = vpop.f32.mrb[0].mxu0
        %v4788 = vadd.f32 0.0, %v4787
        %v4789 = vpop.f32.mrb[0].mxu0
        %v4790 = vpop.f32.mrb[0].mxu0
        %v4791 = vadd.f32 0.0, %v4790
        %v4792 = vpop.f32.mrb[0].mxu0
        %4793 = vmatprep.mubr.bf16.mxu0 0
        %4794 = vmatmul.mubr.bf16.gmra.mrb[0].mxu0 %v4554
        %v4795 = vpop.f32.mrb[0].mxu0
        %v4796 = vadd.f32 0.0, %v4795
        %v4797 = vpop.f32.mrb[0].mxu0
        %v4798 = vpop.f32.mrb[0].mxu0
        %v4799 = vadd.f32 0.0, %v4798
        %v4800 = vpop.f32.mrb[0].mxu0
        %4801 = vmatprep.mubr.bf16.mxu0 0
        %4802 = vmatmul.mubr.bf16.gmra.mrb[0].mxu0 %v4555
        %v4803 = vpop.f32.mrb[0].mxu0
        %v4804 = vadd.f32 0.0, %v4803
        %v4805 = vpop.f32.mrb[0].mxu0
        %v4806 = vpop.f32.mrb[0].mxu0
        %v4807 = vadd.f32 0.0, %v4806
        %v4808 = vpop.f32.mrb[0].mxu0
        %4809 = vmatprep.mubr.bf16.mxu0 0
        %4810 = vmatmul.mubr.bf16.gmra.mrb[0].mxu0 %v4556
        %v4811 = vpop.f32.mrb[0].mxu0
        %v4812 = vadd.f32 0.0, %v4811
        %v4813 = vpop.f32.mrb[0].mxu0
        %v4814 = vpop.f32.mrb[0].mxu0
        %v4815 = vadd.f32 0.0, %v4814
        %v4816 = vpop.f32.mrb[0].mxu0
        %4817 = vmatprep.mubr.bf16.mxu0 0
        %4818 = vmatmul.mubr.bf16.gmra.mrb[0].mxu0 %v4557
        %v4819 = vpop.f32.mrb[0].mxu0
        %v4820 = vadd.f32 0.0, %v4819
        %v4821 = vpop.f32.mrb[0].mxu0
        %v4822 = vpop.f32.mrb[0].mxu0
        %v4823 = vadd.f32 0.0, %v4822
        %v4824 = vpop.f32.mrb[0].mxu0
        %4825 = vmatprep.mubr.bf16.mxu0 0
        %4826 = vmatmul.mubr.bf16.gmra.mrb[0].mxu0 %v4558
        %v4827 = vpop.f32.mrb[0].mxu0
        %v4828 = vadd.f32 0.0, %v4827
        %v4829 = vpop.f32.mrb[0].mxu0
        %v4830 = vpop.f32.mrb[0].mxu0
        %v4831 = vadd.f32 0.0, %v4830
        %v4832 = vpop.f32.mrb[0].mxu0
        %4833 = vmatprep.mubr.bf16.mxu0 0
        %4834 = vmatmul.mubr.bf16.gmra.mrb[0].mxu0 %v4559
        %v4835 = vpop.f32.mrb[0].mxu0
        %v4836 = vadd.f32 0.0, %v4835
        %v4837 = vpop.f32.mrb[0].mxu0
        %v4838 = vpop.f32.mrb[0].mxu0
        %v4839 = vadd.f32 0.0, %v4838
        %v4840 = vpop.f32.mrb[0].mxu0
        %4841 = vmatprep.mubr.bf16.mxu0 0
        %4842 = vmatmul.mubr.bf16.gmra.mrb[0].mxu0 %v4560
        %v4843 = vpop.f32.mrb[0].mxu0
        %v4844 = vadd.f32 0.0, %v4843
        %v4845 = vpop.f32.mrb[0].mxu0
        %v4846 = vpop.f32.mrb[0].mxu0
        %v4847 = vadd.f32 0.0, %v4846
        %v4848 = vpop.f32.mrb[0].mxu0
        %4849 = vmatprep.mubr.bf16.mxu0 0
        %4850 = vmatmul.mubr.bf16.gmra.mrb[0].mxu0 %v4561
        %v4851 = vpop.f32.mrb[0].mxu0
        %v4852 = vadd.f32 0.0, %v4851
        %v4853 = vpop.f32.mrb[0].mxu0
        %v4854 = vpop.f32.mrb[0].mxu0
        %v4855 = vadd.f32 0.0, %v4854
        %v4856 = vpop.f32.mrb[0].mxu0
        %4857 = vmatprep.mubr.bf16.mxu0 0
        %4858 = vmatmul.mubr.bf16.gmra.mrb[0].mxu0 %v4562
        %v4859 = vpop.f32.mrb[0].mxu0
        %v4860 = vadd.f32 0.0, %v4859
        %v4861 = vpop.f32.mrb[0].mxu0
        %v4862 = vpop.f32.mrb[0].mxu0
        %v4863 = vadd.f32 0.0, %v4862
        %v4864 = vpop.f32.mrb[0].mxu0
        %4865 = vmatprep.mubr.bf16.mxu0 0
        %4866 = vmatmul.mubr.bf16.gmra.mrb[0].mxu0 %v4563
        %v4867 = vpop.f32.mrb[0].mxu0
        %v4868 = vadd.f32 0.0, %v4867
        %v4869 = vpop.f32.mrb[0].mxu0
        %v4870 = vpop.f32.mrb[0].mxu0
        %v4871 = vadd.f32 0.0, %v4870
        %v4872 = vpop.f32.mrb[0].mxu0
        %4873 = vmatprep.mubr.bf16.mxu0 0
        %4874 = vmatmul.mubr.bf16.gmra.mrb[0].mxu0 %v4564
        %v4875 = vpop.f32.mrb[0].mxu0
        %v4876 = vadd.f32 0.0, %v4875
        %v4877 = vpop.f32.mrb[0].mxu0
        %v4878 = vpop.f32.mrb[0].mxu0
        %v4879 = vadd.f32 0.0, %v4878
        %v4880 = vpop.f32.mrb[0].mxu0
        %4881 = vdwg.mxu0
        %v4882 = vld [vmem:[#allocation3] sm:$0xff]
        %v4883 = vld [vmem:[#allocation3 + $0x8] sm:$0xff]
        %v4884 = vld [vmem:[#allocation3 + $0x10] sm:$0xff]
        %v4885 = vld [vmem:[#allocation3 + $0x18] sm:$0xff]
        %v4886 = vld [vmem:[#allocation3 + $0x20] sm:$0xff]
        %v4887 = vld [vmem:[#allocation3 + $0x28] sm:$0xff]
        %v4888 = vld [vmem:[#allocation3 + $0x30] sm:$0xff]
        %v4889 = vld [vmem:[#allocation3 + $0x38] sm:$0xff]
        %v4890 = vld [vmem:[#allocation3 + $0x40] sm:$0xff]
        %v4891 = vld [vmem:[#allocation3 + $0x48] sm:$0xff]
        %v4892 = vld [vmem:[#allocation3 + $0x50] sm:$0xff]
        %v4893 = vld [vmem:[#allocation3 + $0x58] sm:$0xff]
        %v4894 = vld [vmem:[#allocation3 + $0x60] sm:$0xff]
        %v4895 = vld [vmem:[#allocation3 + $0x68] sm:$0xff]
        %v4896 = vld [vmem:[#allocation3 + $0x70] sm:$0xff]
        %v4897 = vld [vmem:[#allocation3 + $0x78] sm:$0xff]
        %v4898 = vld [vmem:[#allocation3 + $0x80] sm:$0xff]
        %v4899 = vld [vmem:[#allocation3 + $0x88] sm:$0xff]
        %v4900 = vld [vmem:[#allocation3 + $0x90] sm:$0xff]
        %v4901 = vld [vmem:[#allocation3 + $0x98] sm:$0xff]
        %v4902 = vld [vmem:[#allocation3 + $0xa0] sm:$0xff]
        %v4903 = vld [vmem:[#allocation3 + $0xa8] sm:$0xff]
        %v4904 = vld [vmem:[#allocation3 + $0xb0] sm:$0xff]
        %v4905 = vld [vmem:[#allocation3 + $0xb8] sm:$0xff]
        %v4906 = vld [vmem:[#allocation3 + $0xc0] sm:$0xff]
        %v4907 = vld [vmem:[#allocation3 + $0xc8] sm:$0xff]
        %v4908 = vld [vmem:[#allocation3 + $0xd0] sm:$0xff]
        %v4909 = vld [vmem:[#allocation3 + $0xd8] sm:$0xff]
        %v4910 = vld [vmem:[#allocation3 + $0xe0] sm:$0xff]
        %v4911 = vld [vmem:[#allocation3 + $0xe8] sm:$0xff]
        %v4912 = vld [vmem:[#allocation3 + $0xf0] sm:$0xff]
        %v4913 = vld [vmem:[#allocation3 + $0xf8] sm:$0xff]
        %v4914 = vld [vmem:[#allocation3 + $0x100] sm:$0xff]
        %v4915 = vld [vmem:[#allocation3 + $0x108] sm:$0xff]
        %v4916 = vld [vmem:[#allocation3 + $0x110] sm:$0xff]
        %v4917 = vld [vmem:[#allocation3 + $0x118] sm:$0xff]
        %v4918 = vld [vmem:[#allocation3 + $0x120] sm:$0xff]
        %v4919 = vld [vmem:[#allocation3 + $0x128] sm:$0xff]
        %v4920 = vld [vmem:[#allocation3 + $0x130] sm:$0xff]
        %v4921 = vld [vmem:[#allocation3 + $0x138] sm:$0xff]
        %v4922 = vld [vmem:[#allocation3 + $0x140] sm:$0xff]
        %v4923 = vld [vmem:[#allocation3 + $0x148] sm:$0xff]
        %v4924 = vld [vmem:[#allocation3 + $0x150] sm:$0xff]
        %v4925 = vld [vmem:[#allocation3 + $0x158] sm:$0xff]
        %v4926 = vld [vmem:[#allocation3 + $0x160] sm:$0xff]
        %v4927 = vld [vmem:[#allocation3 + $0x168] sm:$0xff]
        %v4928 = vld [vmem:[#allocation3 + $0x170] sm:$0xff]
        %v4929 = vld [vmem:[#allocation3 + $0x178] sm:$0xff]
        %v4930 = vld [vmem:[#allocation3 + $0x180] sm:$0xff]
        %v4931 = vld [vmem:[#allocation3 + $0x188] sm:$0xff]
        %v4932 = vld [vmem:[#allocation3 + $0x190] sm:$0xff]
        %v4933 = vld [vmem:[#allocation3 + $0x198] sm:$0xff]
        %v4934 = vld [vmem:[#allocation3 + $0x1a0] sm:$0xff]
        %v4935 = vld [vmem:[#allocation3 + $0x1a8] sm:$0xff]
        %v4936 = vadd.f32 %v4882, %v4668
        %v4937 = vadd.f32 %v4883, %v4671
        %v4938 = vadd.f32 %v4884, %v4676
        %v4939 = vadd.f32 %v4885, %v4679
        %v4940 = vadd.f32 %v4886, %v4684
        %v4941 = vadd.f32 %v4887, %v4687
        %v4942 = vadd.f32 %v4888, %v4692
        %v4943 = vadd.f32 %v4889, %v4695
        %v4944 = vadd.f32 %v4890, %v4700
        %v4945 = vadd.f32 %v4891, %v4703
        %v4946 = vadd.f32 %v4892, %v4708
        %v4947 = vadd.f32 %v4893, %v4711
        %v4948 = vadd.f32 %v4894, %v4716
        %v4949 = vadd.f32 %v4895, %v4719
        %v4950 = vadd.f32 %v4896, %v4724
        %v4951 = vadd.f32 %v4897, %v4727
        %v4952 = vadd.f32 %v4898, %v4732
        %v4953 = vadd.f32 %v4899, %v4735
        %v4954 = vadd.f32 %v4900, %v4740
        %v4955 = vadd.f32 %v4901, %v4743
        %v4956 = vadd.f32 %v4902, %v4748
        %v4957 = vadd.f32 %v4903, %v4751
        %v4958 = vadd.f32 %v4904, %v4756
        %v4959 = vadd.f32 %v4905, %v4759
        %v4960 = vadd.f32 %v4906, %v4764
        %v4961 = vadd.f32 %v4907, %v4767
        %v4962 = vadd.f32 %v4908, %v4772
        %v4963 = vadd.f32 %v4909, %v4775
        %v4964 = vadd.f32 %v4910, %v4780
        %v4965 = vadd.f32 %v4911, %v4783
        %v4966 = vadd.f32 %v4912, %v4788
        %v4967 = vadd.f32 %v4913, %v4791
        %v4968 = vadd.f32 %v4914, %v4796
        %v4969 = vadd.f32 %v4915, %v4799
        %v4970 = vadd.f32 %v4916, %v4804
        %v4971 = vadd.f32 %v4917, %v4807
        %v4972 = vadd.f32 %v4918, %v4812
        %v4973 = vadd.f32 %v4919, %v4815
        %v4974 = vadd.f32 %v4920, %v4820
        %v4975 = vadd.f32 %v4921, %v4823
        %v4976 = vadd.f32 %v4922, %v4828
        %v4977 = vadd.f32 %v4923, %v4831
        %v4978 = vadd.f32 %v4924, %v4836
        %v4979 = vadd.f32 %v4925, %v4839
        %v4980 = vadd.f32 %v4926, %v4844
        %v4981 = vadd.f32 %v4927, %v4847
        %v4982 = vadd.f32 %v4928, %v4852
        %v4983 = vadd.f32 %v4929, %v4855
        %v4984 = vadd.f32 %v4930, %v4860
        %v4985 = vadd.f32 %v4931, %v4863
        %v4986 = vadd.f32 %v4932, %v4868
        %v4987 = vadd.f32 %v4933, %v4871
        %v4988 = vadd.f32 %v4934, %v4876
        %v4989 = vadd.f32 %v4935, %v4879
        %4990 = vst [vmem:[#allocation3] sm:$0xff] %v4936
        %4991 = vst [vmem:[#allocation3 + $0x8] sm:$0xff] %v4937
        %4992 = vst [vmem:[#allocation3 + $0x10] sm:$0xff] %v4938
        %4993 = vst [vmem:[#allocation3 + $0x18] sm:$0xff] %v4939
        %4994 = vst [vmem:[#allocation3 + $0x20] sm:$0xff] %v4940
        %4995 = vst [vmem:[#allocation3 + $0x28] sm:$0xff] %v4941
        %4996 = vst [vmem:[#allocation3 + $0x30] sm:$0xff] %v4942
        %4997 = vst [vmem:[#allocation3 + $0x38] sm:$0xff] %v4943
        %4998 = vst [vmem:[#allocation3 + $0x40] sm:$0xff] %v4944
        %4999 = vst [vmem:[#allocation3 + $0x48] sm:$0xff] %v4945
        %5000 = vst [vmem:[#allocation3 + $0x50] sm:$0xff] %v4946
        %5001 = vst [vmem:[#allocation3 + $0x58] sm:$0xff] %v4947
        %5002 = vst [vmem:[#allocation3 + $0x60] sm:$0xff] %v4948
        %5003 = vst [vmem:[#allocation3 + $0x68] sm:$0xff] %v4949
        %5004 = vst [vmem:[#allocation3 + $0x70] sm:$0xff] %v4950
        %5005 = vst [vmem:[#allocation3 + $0x78] sm:$0xff] %v4951
        %5006 = vst [vmem:[#allocation3 + $0x80] sm:$0xff] %v4952
        %5007 = vst [vmem:[#allocation3 + $0x88] sm:$0xff] %v4953
        %5008 = vst [vmem:[#allocation3 + $0x90] sm:$0xff] %v4954
        %5009 = vst [vmem:[#allocation3 + $0x98] sm:$0xff] %v4955
        %5010 = vst [vmem:[#allocation3 + $0xa0] sm:$0xff] %v4956
        %5011 = vst [vmem:[#allocation3 + $0xa8] sm:$0xff] %v4957
        %5012 = vst [vmem:[#allocation3 + $0xb0] sm:$0xff] %v4958
        %5013 = vst [vmem:[#allocation3 + $0xb8] sm:$0xff] %v4959
        %5014 = vst [vmem:[#allocation3 + $0xc0] sm:$0xff] %v4960
        %5015 = vst [vmem:[#allocation3 + $0xc8] sm:$0xff] %v4961
        %5016 = vst [vmem:[#allocation3 + $0xd0] sm:$0xff] %v4962
        %5017 = vst [vmem:[#allocation3 + $0xd8] sm:$0xff] %v4963
        %5018 = vst [vmem:[#allocation3 + $0xe0] sm:$0xff] %v4964
        %5019 = vst [vmem:[#allocation3 + $0xe8] sm:$0xff] %v4965
        %5020 = vst [vmem:[#allocation3 + $0xf0] sm:$0xff] %v4966
        %5021 = vst [vmem:[#allocation3 + $0xf8] sm:$0xff] %v4967
        %5022 = vst [vmem:[#allocation3 + $0x100] sm:$0xff] %v4968
        %5023 = vst [vmem:[#allocation3 + $0x108] sm:$0xff] %v4969
        %5024 = vst [vmem:[#allocation3 + $0x110] sm:$0xff] %v4970
        %5025 = vst [vmem:[#allocation3 + $0x118] sm:$0xff] %v4971
        %5026 = vst [vmem:[#allocation3 + $0x120] sm:$0xff] %v4972
        %5027 = vst [vmem:[#allocation3 + $0x128] sm:$0xff] %v4973
        %5028 = vst [vmem:[#allocation3 + $0x130] sm:$0xff] %v4974
        %5029 = vst [vmem:[#allocation3 + $0x138] sm:$0xff] %v4975
        %5030 = vst [vmem:[#allocation3 + $0x140] sm:$0xff] %v4976
        %5031 = vst [vmem:[#allocation3 + $0x148] sm:$0xff] %v4977
        %5032 = vst [vmem:[#allocation3 + $0x150] sm:$0xff] %v4978
        %5033 = vst [vmem:[#allocation3 + $0x158] sm:$0xff] %v4979
        %5034 = vst [vmem:[#allocation3 + $0x160] sm:$0xff] %v4980
        %5035 = vst [vmem:[#allocation3 + $0x168] sm:$0xff] %v4981
        %5036 = vst [vmem:[#allocation3 + $0x170] sm:$0xff] %v4982
        %5037 = vst [vmem:[#allocation3 + $0x178] sm:$0xff] %v4983
        %5038 = vst [vmem:[#allocation3 + $0x180] sm:$0xff] %v4984
        %5039 = vst [vmem:[#allocation3 + $0x188] sm:$0xff] %v4985
        %5040 = vst [vmem:[#allocation3 + $0x190] sm:$0xff] %v4986
        %5041 = vst [vmem:[#allocation3 + $0x198] sm:$0xff] %v4987
        %5042 = vst [vmem:[#allocation3 + $0x1a0] sm:$0xff] %v4988
        %5043 = vst [vmem:[#allocation3 + $0x1a8] sm:$0xff] %v4989
        %v5044 = vld [vmem:[#allocation2 + $0x18] sm:$0xff]
        %v5045 = vld [vmem:[#allocation2 + $0x20] sm:$0xff]
        %v5046 = vld [vmem:[#allocation2 + $0x28] sm:$0xff]
        %v5047 = vld [vmem:[#allocation2 + $0x30] sm:$0xff]
        %v5048 = vld [vmem:[#allocation2 + $0x38] sm:$0xff]
        %v5049 = vld [vmem:[#allocation2 + $0x40] sm:$0xff]
        %v5050 = vld [vmem:[#allocation2 + $0x48] sm:$0xff]
        %v5051 = vld [vmem:[#allocation2 + $0x50] sm:$0xff]
        %v5052 = vld [vmem:[#allocation2 + $0x58] sm:$0xff]
        %v5053 = vld [vmem:[#allocation2 + $0x60] sm:$0xff]
        %v5054 = vld [vmem:[#allocation2 + $0x68] sm:$0xff]
        %v5055 = vld [vmem:[#allocation2 + $0x70] sm:$0xff]
        %v5056 = vld [vmem:[#allocation2 + $0x78] sm:$0xff]
        %v5057 = vld [vmem:[#allocation2 + $0x80] sm:$0xff]
        %v5058 = vld [vmem:[#allocation2 + $0x88] sm:$0xff]
        %v5059 = vld [vmem:[#allocation2 + $0x90] sm:$0xff]
        %v5060 = vld [vmem:[#allocation2 + $0x98] sm:$0xff]
        %v5061 = vld [vmem:[#allocation2 + $0xa0] sm:$0xff]
        %v5062 = vld [vmem:[#allocation2 + $0xa8] sm:$0xff]
        %v5063 = vld [vmem:[#allocation2 + $0xb0] sm:$0xff]
        %v5064 = vld [vmem:[#allocation2 + $0xb8] sm:$0xff]
        %v5065 = vld [vmem:[#allocation2 + $0xc0] sm:$0xff]
        %v5066 = vld [vmem:[#allocation2 + $0xc8] sm:$0xff]
        %v5067 = vld [vmem:[#allocation2 + $0xd0] sm:$0xff]
        %v5068 = vld [vmem:[#allocation2 + $0xd8] sm:$0xff]
        %v5069 = vld [vmem:[#allocation2 + $0xe0] sm:$0xff]
        %v5070 = vld [vmem:[#allocation2 + $0xe8] sm:$0xff]
        %v5071 = vld [vmem:[#allocation2 + $0xf0] sm:$0x1]
        %s5072 = sadd.s32 %s772, 7
        %s5073 = smul.u32 %s5072, 16
        %s5074 = smul.addr %s5073, 4
        %s5075 = scalar_lea.vmem %s1, %s5074
        %v5076 = vld [vmem:[%s5075] sm:$0xf]
        %v5077 = vld [vmem:[%s5075 + $0x4] sm:$0xf]
        %v5078 = vld [vmem:[%s5075 + $0x8] sm:$0xf]
        %v5079 = vld [vmem:[%s5075 + $0xc] sm:$0xf]
        %v5080 = vld [vmem:[%s5075 + $0x10] sm:$0xf]
        %v5081 = vld [vmem:[%s5075 + $0x14] sm:$0xf]
        %v5082 = vld [vmem:[%s5075 + $0x18] sm:$0xf]
        %v5083 = vld [vmem:[%s5075 + $0x1c] sm:$0xf]
        %v5084 = vld [vmem:[%s5075 + $0x20] sm:$0xf]
        %v5085 = vld [vmem:[%s5075 + $0x24] sm:$0xf]
        %v5086 = vld [vmem:[%s5075 + $0x28] sm:$0xf]
        %v5087 = vld [vmem:[%s5075 + $0x2c] sm:$0xf]
        %v5088 = vld [vmem:[%s5075 + $0x30] sm:$0xf]
        %v5089 = vld [vmem:[%s5075 + $0x34] sm:$0xf]
        %v5090 = vld [vmem:[%s5075 + $0x38] sm:$0xf]
        %v5091 = vld [vmem:[%s5075 + $0x3c] sm:$0xf]
        %v5093 = vshrl.u32 %v5044, 16
        %v5095 = vshll.u32 %v5044, 16
        %v5097 = vrot.slane %v5095, 1
        %v5098 = vor.u32 %v5093, %v5097
        %v5100 = vshll.u32 %v5045, 16
        %v5102 = vrot.slane %v5100, 1
        %v5103 = vsel %vm1191, %v5098, %v5102
        %v5104 = vshrl.u32 %v5045, 16
        %v5106 = vor.u32 %v5104, %v5102
        %v5108 = vshll.u32 %v5046, 16
        %v5110 = vrot.slane %v5108, 1
        %v5111 = vsel %vm1191, %v5106, %v5110
        %v5112 = vshrl.u32 %v5046, 16
        %v5114 = vor.u32 %v5112, %v5110
        %v5116 = vshll.u32 %v5047, 16
        %v5118 = vrot.slane %v5116, 1
        %v5119 = vsel %vm1191, %v5114, %v5118
        %v5120 = vshrl.u32 %v5047, 16
        %v5122 = vor.u32 %v5120, %v5118
        %v5124 = vshll.u32 %v5048, 16
        %v5126 = vrot.slane %v5124, 1
        %v5127 = vsel %vm1191, %v5122, %v5126
        %v5128 = vshrl.u32 %v5048, 16
        %v5130 = vor.u32 %v5128, %v5126
        %v5132 = vshll.u32 %v5049, 16
        %v5134 = vrot.slane %v5132, 1
        %v5135 = vsel %vm1191, %v5130, %v5134
        %v5136 = vshrl.u32 %v5049, 16
        %v5138 = vor.u32 %v5136, %v5134
        %v5140 = vshll.u32 %v5050, 16
        %v5142 = vrot.slane %v5140, 1
        %v5143 = vsel %vm1191, %v5138, %v5142
        %v5144 = vshrl.u32 %v5050, 16
        %v5146 = vor.u32 %v5144, %v5142
        %v5148 = vshll.u32 %v5051, 16
        %v5150 = vrot.slane %v5148, 1
        %v5151 = vsel %vm1191, %v5146, %v5150
        %v5152 = vshrl.u32 %v5051, 16
        %v5154 = vor.u32 %v5152, %v5150
        %v5156 = vshll.u32 %v5052, 16
        %v5158 = vrot.slane %v5156, 1
        %v5159 = vsel %vm1191, %v5154, %v5158
        %v5160 = vshrl.u32 %v5052, 16
        %v5162 = vor.u32 %v5160, %v5158
        %v5164 = vshll.u32 %v5053, 16
        %v5166 = vrot.slane %v5164, 1
        %v5167 = vsel %vm1191, %v5162, %v5166
        %v5168 = vshrl.u32 %v5053, 16
        %v5170 = vor.u32 %v5168, %v5166
        %v5172 = vshll.u32 %v5054, 16
        %v5174 = vrot.slane %v5172, 1
        %v5175 = vsel %vm1191, %v5170, %v5174
        %v5176 = vshrl.u32 %v5054, 16
        %v5178 = vor.u32 %v5176, %v5174
        %v5180 = vshll.u32 %v5055, 16
        %v5182 = vrot.slane %v5180, 1
        %v5183 = vsel %vm1191, %v5178, %v5182
        %v5184 = vshrl.u32 %v5055, 16
        %v5186 = vor.u32 %v5184, %v5182
        %v5188 = vshll.u32 %v5056, 16
        %v5190 = vrot.slane %v5188, 1
        %v5191 = vsel %vm1191, %v5186, %v5190
        %v5192 = vshrl.u32 %v5056, 16
        %v5194 = vor.u32 %v5192, %v5190
        %v5196 = vshll.u32 %v5057, 16
        %v5198 = vrot.slane %v5196, 1
        %v5199 = vsel %vm1191, %v5194, %v5198
        %v5200 = vshrl.u32 %v5057, 16
        %v5202 = vor.u32 %v5200, %v5198
        %v5204 = vshll.u32 %v5058, 16
        %v5206 = vrot.slane %v5204, 1
        %v5207 = vsel %vm1191, %v5202, %v5206
        %v5208 = vshrl.u32 %v5058, 16
        %v5210 = vor.u32 %v5208, %v5206
        %v5212 = vshll.u32 %v5059, 16
        %v5214 = vrot.slane %v5212, 1
        %v5215 = vsel %vm1191, %v5210, %v5214
        %v5216 = vshrl.u32 %v5059, 16
        %v5218 = vor.u32 %v5216, %v5214
        %v5220 = vshll.u32 %v5060, 16
        %v5222 = vrot.slane %v5220, 1
        %v5223 = vsel %vm1191, %v5218, %v5222
        %v5224 = vshrl.u32 %v5060, 16
        %v5226 = vor.u32 %v5224, %v5222
        %v5228 = vshll.u32 %v5061, 16
        %v5230 = vrot.slane %v5228, 1
        %v5231 = vsel %vm1191, %v5226, %v5230
        %v5232 = vshrl.u32 %v5061, 16
        %v5234 = vor.u32 %v5232, %v5230
        %v5236 = vshll.u32 %v5062, 16
        %v5238 = vrot.slane %v5236, 1
        %v5239 = vsel %vm1191, %v5234, %v5238
        %v5240 = vshrl.u32 %v5062, 16
        %v5242 = vor.u32 %v5240, %v5238
        %v5244 = vshll.u32 %v5063, 16
        %v5246 = vrot.slane %v5244, 1
        %v5247 = vsel %vm1191, %v5242, %v5246
        %v5248 = vshrl.u32 %v5063, 16
        %v5250 = vor.u32 %v5248, %v5246
        %v5252 = vshll.u32 %v5064, 16
        %v5254 = vrot.slane %v5252, 1
        %v5255 = vsel %vm1191, %v5250, %v5254
        %v5256 = vshrl.u32 %v5064, 16
        %v5258 = vor.u32 %v5256, %v5254
        %v5260 = vshll.u32 %v5065, 16
        %v5262 = vrot.slane %v5260, 1
        %v5263 = vsel %vm1191, %v5258, %v5262
        %v5264 = vshrl.u32 %v5065, 16
        %v5266 = vor.u32 %v5264, %v5262
        %v5268 = vshll.u32 %v5066, 16
        %v5270 = vrot.slane %v5268, 1
        %v5271 = vsel %vm1191, %v5266, %v5270
        %v5272 = vshrl.u32 %v5066, 16
        %v5274 = vor.u32 %v5272, %v5270
        %v5276 = vshll.u32 %v5067, 16
        %v5278 = vrot.slane %v5276, 1
        %v5279 = vsel %vm1191, %v5274, %v5278
        %v5280 = vshrl.u32 %v5067, 16
        %v5282 = vor.u32 %v5280, %v5278
        %v5284 = vshll.u32 %v5068, 16
        %v5286 = vrot.slane %v5284, 1
        %v5287 = vsel %vm1191, %v5282, %v5286
        %v5288 = vshrl.u32 %v5068, 16
        %v5290 = vor.u32 %v5288, %v5286
        %v5292 = vshll.u32 %v5069, 16
        %v5294 = vrot.slane %v5292, 1
        %v5295 = vsel %vm1191, %v5290, %v5294
        %v5296 = vshrl.u32 %v5069, 16
        %v5298 = vor.u32 %v5296, %v5294
        %v5300 = vshll.u32 %v5070, 16
        %v5302 = vrot.slane %v5300, 1
        %v5303 = vsel %vm1191, %v5298, %v5302
        %v5304 = vshrl.u32 %v5070, 16
        %v5306 = vor.u32 %v5304, %v5302
        %v5308 = vshll.u32 %v5071, 16
        %v5310 = vrot.slane %v5308, 1
        %v5311 = vsel %vm1191, %v5306, %v5310
        %v5355 = vunpack.c.l.b16 %v5076
        %v5356 = vunpack.c.l.b16 %v5077
        %v5357 = vunpack.c.l.b16 %v5078
        %v5358 = vunpack.c.l.b16 %v5079
        %v5359 = vunpack.c.l.b16 %v5080
        %v5360 = vunpack.c.l.b16 %v5081
        %v5361 = vunpack.c.l.b16 %v5082
        %v5362 = vunpack.c.l.b16 %v5083
        %v5363 = vunpack.c.l.b16 %v5084
        %v5364 = vunpack.c.l.b16 %v5085
        %v5365 = vunpack.c.l.b16 %v5086
        %v5366 = vunpack.c.l.b16 %v5087
        %v5367 = vunpack.c.l.b16 %v5088
        %v5368 = vunpack.c.l.b16 %v5089
        %v5369 = vunpack.c.l.b16 %v5090
        %v5370 = vunpack.c.l.b16 %v5091
        %v5371 = vpack.c.b16 %v5356, %v5355
        %v5372 = vpack.c.b16 %v5358, %v5357
        %v5373 = vpack.c.b16 %v5360, %v5359
        %v5374 = vpack.c.b16 %v5362, %v5361
        %v5375 = vpack.c.b16 %v5364, %v5363
        %v5376 = vpack.c.b16 %v5366, %v5365
        %v5377 = vpack.c.b16 %v5368, %v5367
        %v5378 = vpack.c.b16 %v5370, %v5369
        %5387 = vmatprep.subr.bf16.mxu0 0
        %5388 = vmatpush1.bf16.msra.mxu0 %v5371
        %5389 = vmatprep.subr.bf16.mxu0 0
        %5390 = vmatpush1.bf16.msra.mxu0 %v5372
        %5391 = vmatprep.subr.bf16.mxu0 0
        %5392 = vmatpush1.bf16.msra.mxu0 %v5373
        %5393 = vmatprep.subr.bf16.mxu0 0
        %5394 = vmatpush1.bf16.msra.mxu0 %v5374
        %5395 = vmatprep.subr.bf16.mxu0 0
        %5396 = vmatpush1.bf16.msra.mxu0 %v5375
        %5397 = vmatprep.subr.bf16.mxu0 0
        %5398 = vmatpush1.bf16.msra.mxu0 %v5376
        %5399 = vmatprep.subr.bf16.mxu0 0
        %5400 = vmatpush1.bf16.msra.mxu0 %v5377
        %5401 = vmatprep.subr.bf16.mxu0 0
        %5402 = vmatpush1.bf16.msra.mxu0 %v5378
        %5403 = vmatprep.subr.bf16.mxu0 0
        %5404 = vmatpush1.bf16.msra.mxu0 0
        %5405 = vmatprep.subr.bf16.mxu0 0
        %5406 = vmatpush1.bf16.msra.mxu0 0
        %5407 = vmatprep.subr.bf16.mxu0 0
        %5408 = vmatpush1.bf16.msra.mxu0 0
        %5409 = vmatprep.subr.bf16.mxu0 0
        %5410 = vmatpush1.bf16.msra.mxu0 0
        %5411 = vmatprep.subr.bf16.mxu0 0
        %5412 = vmatpush1.bf16.msra.mxu0 0
        %5413 = vmatprep.subr.bf16.mxu0 0
        %5414 = vmatpush1.bf16.msra.mxu0 0
        %5415 = vmatprep.subr.bf16.mxu0 0
        %5416 = vmatpush1.bf16.msra.mxu0 0
        %5417 = vmatprep.subr.bf16.mxu0 0
        %5418 = vmatpush1.bf16.msra.mxu0 0
        %5419 = vmatprep.mubr.bf16.mxu0 0
        %5420 = vmatmul.mubr.bf16.gmra.mrb[0].mxu0 %v5103
        %v5421 = vpop.f32.mrb[0].mxu0
        %v5422 = vadd.f32 0.0, %v5421
        %v5423 = vpop.f32.mrb[0].mxu0
        %v5424 = vpop.f32.mrb[0].mxu0
        %v5425 = vadd.f32 0.0, %v5424
        %v5426 = vpop.f32.mrb[0].mxu0
        %5427 = vmatprep.mubr.bf16.mxu0 0
        %5428 = vmatmul.mubr.bf16.gmra.mrb[0].mxu0 %v5111
        %v5429 = vpop.f32.mrb[0].mxu0
        %v5430 = vadd.f32 0.0, %v5429
        %v5431 = vpop.f32.mrb[0].mxu0
        %v5432 = vpop.f32.mrb[0].mxu0
        %v5433 = vadd.f32 0.0, %v5432
        %v5434 = vpop.f32.mrb[0].mxu0
        %5435 = vmatprep.mubr.bf16.mxu0 0
        %5436 = vmatmul.mubr.bf16.gmra.mrb[0].mxu0 %v5119
        %v5437 = vpop.f32.mrb[0].mxu0
        %v5438 = vadd.f32 0.0, %v5437
        %v5439 = vpop.f32.mrb[0].mxu0
        %v5440 = vpop.f32.mrb[0].mxu0
        %v5441 = vadd.f32 0.0, %v5440
        %v5442 = vpop.f32.mrb[0].mxu0
        %5443 = vmatprep.mubr.bf16.mxu0 0
        %5444 = vmatmul.mubr.bf16.gmra.mrb[0].mxu0 %v5127
        %v5445 = vpop.f32.mrb[0].mxu0
        %v5446 = vadd.f32 0.0, %v5445
        %v5447 = vpop.f32.mrb[0].mxu0
        %v5448 = vpop.f32.mrb[0].mxu0
        %v5449 = vadd.f32 0.0, %v5448
        %v5450 = vpop.f32.mrb[0].mxu0
        %5451 = vmatprep.mubr.bf16.mxu0 0
        %5452 = vmatmul.mubr.bf16.gmra.mrb[0].mxu0 %v5135
        %v5453 = vpop.f32.mrb[0].mxu0
        %v5454 = vadd.f32 0.0, %v5453
        %v5455 = vpop.f32.mrb[0].mxu0
        %v5456 = vpop.f32.mrb[0].mxu0
        %v5457 = vadd.f32 0.0, %v5456
        %v5458 = vpop.f32.mrb[0].mxu0
        %5459 = vmatprep.mubr.bf16.mxu0 0
        %5460 = vmatmul.mubr.bf16.gmra.mrb[0].mxu0 %v5143
        %v5461 = vpop.f32.mrb[0].mxu0
        %v5462 = vadd.f32 0.0, %v5461
        %v5463 = vpop.f32.mrb[0].mxu0
        %v5464 = vpop.f32.mrb[0].mxu0
        %v5465 = vadd.f32 0.0, %v5464
        %v5466 = vpop.f32.mrb[0].mxu0
        %5467 = vmatprep.mubr.bf16.mxu0 0
        %5468 = vmatmul.mubr.bf16.gmra.mrb[0].mxu0 %v5151
        %v5469 = vpop.f32.mrb[0].mxu0
        %v5470 = vadd.f32 0.0, %v5469
        %v5471 = vpop.f32.mrb[0].mxu0
        %v5472 = vpop.f32.mrb[0].mxu0
        %v5473 = vadd.f32 0.0, %v5472
        %v5474 = vpop.f32.mrb[0].mxu0
        %5475 = vmatprep.mubr.bf16.mxu0 0
        %5476 = vmatmul.mubr.bf16.gmra.mrb[0].mxu0 %v5159
        %v5477 = vpop.f32.mrb[0].mxu0
        %v5478 = vadd.f32 0.0, %v5477
        %v5479 = vpop.f32.mrb[0].mxu0
        %v5480 = vpop.f32.mrb[0].mxu0
        %v5481 = vadd.f32 0.0, %v5480
        %v5482 = vpop.f32.mrb[0].mxu0
        %5483 = vmatprep.mubr.bf16.mxu0 0
        %5484 = vmatmul.mubr.bf16.gmra.mrb[0].mxu0 %v5167
        %v5485 = vpop.f32.mrb[0].mxu0
        %v5486 = vadd.f32 0.0, %v5485
        %v5487 = vpop.f32.mrb[0].mxu0
        %v5488 = vpop.f32.mrb[0].mxu0
        %v5489 = vadd.f32 0.0, %v5488
        %v5490 = vpop.f32.mrb[0].mxu0
        %5491 = vmatprep.mubr.bf16.mxu0 0
        %5492 = vmatmul.mubr.bf16.gmra.mrb[0].mxu0 %v5175
        %v5493 = vpop.f32.mrb[0].mxu0
        %v5494 = vadd.f32 0.0, %v5493
        %v5495 = vpop.f32.mrb[0].mxu0
        %v5496 = vpop.f32.mrb[0].mxu0
        %v5497 = vadd.f32 0.0, %v5496
        %v5498 = vpop.f32.mrb[0].mxu0
        %5499 = vmatprep.mubr.bf16.mxu0 0
        %5500 = vmatmul.mubr.bf16.gmra.mrb[0].mxu0 %v5183
        %v5501 = vpop.f32.mrb[0].mxu0
        %v5502 = vadd.f32 0.0, %v5501
        %v5503 = vpop.f32.mrb[0].mxu0
        %v5504 = vpop.f32.mrb[0].mxu0
        %v5505 = vadd.f32 0.0, %v5504
        %v5506 = vpop.f32.mrb[0].mxu0
        %5507 = vmatprep.mubr.bf16.mxu0 0
        %5508 = vmatmul.mubr.bf16.gmra.mrb[0].mxu0 %v5191
        %v5509 = vpop.f32.mrb[0].mxu0
        %v5510 = vadd.f32 0.0, %v5509
        %v5511 = vpop.f32.mrb[0].mxu0
        %v5512 = vpop.f32.mrb[0].mxu0
        %v5513 = vadd.f32 0.0, %v5512
        %v5514 = vpop.f32.mrb[0].mxu0
        %5515 = vmatprep.mubr.bf16.mxu0 0
        %5516 = vmatmul.mubr.bf16.gmra.mrb[0].mxu0 %v5199
        %v5517 = vpop.f32.mrb[0].mxu0
        %v5518 = vadd.f32 0.0, %v5517
        %v5519 = vpop.f32.mrb[0].mxu0
        %v5520 = vpop.f32.mrb[0].mxu0
        %v5521 = vadd.f32 0.0, %v5520
        %v5522 = vpop.f32.mrb[0].mxu0
        %5523 = vmatprep.mubr.bf16.mxu0 0
        %5524 = vmatmul.mubr.bf16.gmra.mrb[0].mxu0 %v5207
        %v5525 = vpop.f32.mrb[0].mxu0
        %v5526 = vadd.f32 0.0, %v5525
        %v5527 = vpop.f32.mrb[0].mxu0
        %v5528 = vpop.f32.mrb[0].mxu0
        %v5529 = vadd.f32 0.0, %v5528
        %v5530 = vpop.f32.mrb[0].mxu0
        %5531 = vmatprep.mubr.bf16.mxu0 0
        %5532 = vmatmul.mubr.bf16.gmra.mrb[0].mxu0 %v5215
        %v5533 = vpop.f32.mrb[0].mxu0
        %v5534 = vadd.f32 0.0, %v5533
        %v5535 = vpop.f32.mrb[0].mxu0
        %v5536 = vpop.f32.mrb[0].mxu0
        %v5537 = vadd.f32 0.0, %v5536
        %v5538 = vpop.f32.mrb[0].mxu0
        %5539 = vmatprep.mubr.bf16.mxu0 0
        %5540 = vmatmul.mubr.bf16.gmra.mrb[0].mxu0 %v5223
        %v5541 = vpop.f32.mrb[0].mxu0
        %v5542 = vadd.f32 0.0, %v5541
        %v5543 = vpop.f32.mrb[0].mxu0
        %v5544 = vpop.f32.mrb[0].mxu0
        %v5545 = vadd.f32 0.0, %v5544
        %v5546 = vpop.f32.mrb[0].mxu0
        %5547 = vmatprep.mubr.bf16.mxu0 0
        %5548 = vmatmul.mubr.bf16.gmra.mrb[0].mxu0 %v5231
        %v5549 = vpop.f32.mrb[0].mxu0
        %v5550 = vadd.f32 0.0, %v5549
        %v5551 = vpop.f32.mrb[0].mxu0
        %v5552 = vpop.f32.mrb[0].mxu0
        %v5553 = vadd.f32 0.0, %v5552
        %v5554 = vpop.f32.mrb[0].mxu0
        %5555 = vmatprep.mubr.bf16.mxu0 0
        %5556 = vmatmul.mubr.bf16.gmra.mrb[0].mxu0 %v5239
        %v5557 = vpop.f32.mrb[0].mxu0
        %v5558 = vadd.f32 0.0, %v5557
        %v5559 = vpop.f32.mrb[0].mxu0
        %v5560 = vpop.f32.mrb[0].mxu0
        %v5561 = vadd.f32 0.0, %v5560
        %v5562 = vpop.f32.mrb[0].mxu0
        %5563 = vmatprep.mubr.bf16.mxu0 0
        %5564 = vmatmul.mubr.bf16.gmra.mrb[0].mxu0 %v5247
        %v5565 = vpop.f32.mrb[0].mxu0
        %v5566 = vadd.f32 0.0, %v5565
        %v5567 = vpop.f32.mrb[0].mxu0
        %v5568 = vpop.f32.mrb[0].mxu0
        %v5569 = vadd.f32 0.0, %v5568
        %v5570 = vpop.f32.mrb[0].mxu0
        %5571 = vmatprep.mubr.bf16.mxu0 0
        %5572 = vmatmul.mubr.bf16.gmra.mrb[0].mxu0 %v5255
        %v5573 = vpop.f32.mrb[0].mxu0
        %v5574 = vadd.f32 0.0, %v5573
        %v5575 = vpop.f32.mrb[0].mxu0
        %v5576 = vpop.f32.mrb[0].mxu0
        %v5577 = vadd.f32 0.0, %v5576
        %v5578 = vpop.f32.mrb[0].mxu0
        %5579 = vmatprep.mubr.bf16.mxu0 0
        %5580 = vmatmul.mubr.bf16.gmra.mrb[0].mxu0 %v5263
        %v5581 = vpop.f32.mrb[0].mxu0
        %v5582 = vadd.f32 0.0, %v5581
        %v5583 = vpop.f32.mrb[0].mxu0
        %v5584 = vpop.f32.mrb[0].mxu0
        %v5585 = vadd.f32 0.0, %v5584
        %v5586 = vpop.f32.mrb[0].mxu0
        %5587 = vmatprep.mubr.bf16.mxu0 0
        %5588 = vmatmul.mubr.bf16.gmra.mrb[0].mxu0 %v5271
        %v5589 = vpop.f32.mrb[0].mxu0
        %v5590 = vadd.f32 0.0, %v5589
        %v5591 = vpop.f32.mrb[0].mxu0
        %v5592 = vpop.f32.mrb[0].mxu0
        %v5593 = vadd.f32 0.0, %v5592
        %v5594 = vpop.f32.mrb[0].mxu0
        %5595 = vmatprep.mubr.bf16.mxu0 0
        %5596 = vmatmul.mubr.bf16.gmra.mrb[0].mxu0 %v5279
        %v5597 = vpop.f32.mrb[0].mxu0
        %v5598 = vadd.f32 0.0, %v5597
        %v5599 = vpop.f32.mrb[0].mxu0
        %v5600 = vpop.f32.mrb[0].mxu0
        %v5601 = vadd.f32 0.0, %v5600
        %v5602 = vpop.f32.mrb[0].mxu0
        %5603 = vmatprep.mubr.bf16.mxu0 0
        %5604 = vmatmul.mubr.bf16.gmra.mrb[0].mxu0 %v5287
        %v5605 = vpop.f32.mrb[0].mxu0
        %v5606 = vadd.f32 0.0, %v5605
        %v5607 = vpop.f32.mrb[0].mxu0
        %v5608 = vpop.f32.mrb[0].mxu0
        %v5609 = vadd.f32 0.0, %v5608
        %v5610 = vpop.f32.mrb[0].mxu0
        %5611 = vmatprep.mubr.bf16.mxu0 0
        %5612 = vmatmul.mubr.bf16.gmra.mrb[0].mxu0 %v5295
        %v5613 = vpop.f32.mrb[0].mxu0
        %v5614 = vadd.f32 0.0, %v5613
        %v5615 = vpop.f32.mrb[0].mxu0
        %v5616 = vpop.f32.mrb[0].mxu0
        %v5617 = vadd.f32 0.0, %v5616
        %v5618 = vpop.f32.mrb[0].mxu0
        %5619 = vmatprep.mubr.bf16.mxu0 0
        %5620 = vmatmul.mubr.bf16.gmra.mrb[0].mxu0 %v5303
        %v5621 = vpop.f32.mrb[0].mxu0
        %v5622 = vadd.f32 0.0, %v5621
        %v5623 = vpop.f32.mrb[0].mxu0
        %v5624 = vpop.f32.mrb[0].mxu0
        %v5625 = vadd.f32 0.0, %v5624
        %v5626 = vpop.f32.mrb[0].mxu0
        %5627 = vmatprep.mubr.bf16.mxu0 0
        %5628 = vmatmul.mubr.bf16.gmra.mrb[0].mxu0 %v5311
        %v5629 = vpop.f32.mrb[0].mxu0
        %v5630 = vadd.f32 0.0, %v5629
        %v5631 = vpop.f32.mrb[0].mxu0
        %v5632 = vpop.f32.mrb[0].mxu0
        %v5633 = vadd.f32 0.0, %v5632
        %v5634 = vpop.f32.mrb[0].mxu0
        %5635 = vdwg.mxu0
        %v5636 = vld [vmem:[#allocation3] sm:$0xff]
        %v5637 = vld [vmem:[#allocation3 + $0x8] sm:$0xff]
        %v5638 = vld [vmem:[#allocation3 + $0x10] sm:$0xff]
        %v5639 = vld [vmem:[#allocation3 + $0x18] sm:$0xff]
        %v5640 = vld [vmem:[#allocation3 + $0x20] sm:$0xff]
        %v5641 = vld [vmem:[#allocation3 + $0x28] sm:$0xff]
        %v5642 = vld [vmem:[#allocation3 + $0x30] sm:$0xff]
        %v5643 = vld [vmem:[#allocation3 + $0x38] sm:$0xff]
        %v5644 = vld [vmem:[#allocation3 + $0x40] sm:$0xff]
        %v5645 = vld [vmem:[#allocation3 + $0x48] sm:$0xff]
        %v5646 = vld [vmem:[#allocation3 + $0x50] sm:$0xff]
        %v5647 = vld [vmem:[#allocation3 + $0x58] sm:$0xff]
        %v5648 = vld [vmem:[#allocation3 + $0x60] sm:$0xff]
        %v5649 = vld [vmem:[#allocation3 + $0x68] sm:$0xff]
        %v5650 = vld [vmem:[#allocation3 + $0x70] sm:$0xff]
        %v5651 = vld [vmem:[#allocation3 + $0x78] sm:$0xff]
        %v5652 = vld [vmem:[#allocation3 + $0x80] sm:$0xff]
        %v5653 = vld [vmem:[#allocation3 + $0x88] sm:$0xff]
        %v5654 = vld [vmem:[#allocation3 + $0x90] sm:$0xff]
        %v5655 = vld [vmem:[#allocation3 + $0x98] sm:$0xff]
        %v5656 = vld [vmem:[#allocation3 + $0xa0] sm:$0xff]
        %v5657 = vld [vmem:[#allocation3 + $0xa8] sm:$0xff]
        %v5658 = vld [vmem:[#allocation3 + $0xb0] sm:$0xff]
        %v5659 = vld [vmem:[#allocation3 + $0xb8] sm:$0xff]
        %v5660 = vld [vmem:[#allocation3 + $0xc0] sm:$0xff]
        %v5661 = vld [vmem:[#allocation3 + $0xc8] sm:$0xff]
        %v5662 = vld [vmem:[#allocation3 + $0xd0] sm:$0xff]
        %v5663 = vld [vmem:[#allocation3 + $0xd8] sm:$0xff]
        %v5664 = vld [vmem:[#allocation3 + $0xe0] sm:$0xff]
        %v5665 = vld [vmem:[#allocation3 + $0xe8] sm:$0xff]
        %v5666 = vld [vmem:[#allocation3 + $0xf0] sm:$0xff]
        %v5667 = vld [vmem:[#allocation3 + $0xf8] sm:$0xff]
        %v5668 = vld [vmem:[#allocation3 + $0x100] sm:$0xff]
        %v5669 = vld [vmem:[#allocation3 + $0x108] sm:$0xff]
        %v5670 = vld [vmem:[#allocation3 + $0x110] sm:$0xff]
        %v5671 = vld [vmem:[#allocation3 + $0x118] sm:$0xff]
        %v5672 = vld [vmem:[#allocation3 + $0x120] sm:$0xff]
        %v5673 = vld [vmem:[#allocation3 + $0x128] sm:$0xff]
        %v5674 = vld [vmem:[#allocation3 + $0x130] sm:$0xff]
        %v5675 = vld [vmem:[#allocation3 + $0x138] sm:$0xff]
        %v5676 = vld [vmem:[#allocation3 + $0x140] sm:$0xff]
        %v5677 = vld [vmem:[#allocation3 + $0x148] sm:$0xff]
        %v5678 = vld [vmem:[#allocation3 + $0x150] sm:$0xff]
        %v5679 = vld [vmem:[#allocation3 + $0x158] sm:$0xff]
        %v5680 = vld [vmem:[#allocation3 + $0x160] sm:$0xff]
        %v5681 = vld [vmem:[#allocation3 + $0x168] sm:$0xff]
        %v5682 = vld [vmem:[#allocation3 + $0x170] sm:$0xff]
        %v5683 = vld [vmem:[#allocation3 + $0x178] sm:$0xff]
        %v5684 = vld [vmem:[#allocation3 + $0x180] sm:$0xff]
        %v5685 = vld [vmem:[#allocation3 + $0x188] sm:$0xff]
        %v5686 = vld [vmem:[#allocation3 + $0x190] sm:$0xff]
        %v5687 = vld [vmem:[#allocation3 + $0x198] sm:$0xff]
        %v5688 = vld [vmem:[#allocation3 + $0x1a0] sm:$0xff]
        %v5689 = vld [vmem:[#allocation3 + $0x1a8] sm:$0xff]
        %v5690 = vadd.f32 %v5636, %v5422
        %v5691 = vadd.f32 %v5637, %v5425
        %v5692 = vadd.f32 %v5638, %v5430
        %v5693 = vadd.f32 %v5639, %v5433
        %v5694 = vadd.f32 %v5640, %v5438
        %v5695 = vadd.f32 %v5641, %v5441
        %v5696 = vadd.f32 %v5642, %v5446
        %v5697 = vadd.f32 %v5643, %v5449
        %v5698 = vadd.f32 %v5644, %v5454
        %v5699 = vadd.f32 %v5645, %v5457
        %v5700 = vadd.f32 %v5646, %v5462
        %v5701 = vadd.f32 %v5647, %v5465
        %v5702 = vadd.f32 %v5648, %v5470
        %v5703 = vadd.f32 %v5649, %v5473
        %v5704 = vadd.f32 %v5650, %v5478
        %v5705 = vadd.f32 %v5651, %v5481
        %v5706 = vadd.f32 %v5652, %v5486
        %v5707 = vadd.f32 %v5653, %v5489
        %v5708 = vadd.f32 %v5654, %v5494
        %v5709 = vadd.f32 %v5655, %v5497
        %v5710 = vadd.f32 %v5656, %v5502
        %v5711 = vadd.f32 %v5657, %v5505
        %v5712 = vadd.f32 %v5658, %v5510
        %v5713 = vadd.f32 %v5659, %v5513
        %v5714 = vadd.f32 %v5660, %v5518
        %v5715 = vadd.f32 %v5661, %v5521
        %v5716 = vadd.f32 %v5662, %v5526
        %v5717 = vadd.f32 %v5663, %v5529
        %v5718 = vadd.f32 %v5664, %v5534
        %v5719 = vadd.f32 %v5665, %v5537
        %v5720 = vadd.f32 %v5666, %v5542
        %v5721 = vadd.f32 %v5667, %v5545
        %v5722 = vadd.f32 %v5668, %v5550
        %v5723 = vadd.f32 %v5669, %v5553
        %v5724 = vadd.f32 %v5670, %v5558
        %v5725 = vadd.f32 %v5671, %v5561
        %v5726 = vadd.f32 %v5672, %v5566
        %v5727 = vadd.f32 %v5673, %v5569
        %v5728 = vadd.f32 %v5674, %v5574
        %v5729 = vadd.f32 %v5675, %v5577
        %v5730 = vadd.f32 %v5676, %v5582
        %v5731 = vadd.f32 %v5677, %v5585
        %v5732 = vadd.f32 %v5678, %v5590
        %v5733 = vadd.f32 %v5679, %v5593
        %v5734 = vadd.f32 %v5680, %v5598
        %v5735 = vadd.f32 %v5681, %v5601
        %v5736 = vadd.f32 %v5682, %v5606
        %v5737 = vadd.f32 %v5683, %v5609
        %v5738 = vadd.f32 %v5684, %v5614
        %v5739 = vadd.f32 %v5685, %v5617
        %v5740 = vadd.f32 %v5686, %v5622
        %v5741 = vadd.f32 %v5687, %v5625
        %v5742 = vadd.f32 %v5688, %v5630
        %v5743 = vadd.f32 %v5689, %v5633
        %5744 = vst [vmem:[#allocation3] sm:$0xff] %v5690
        %5745 = vst [vmem:[#allocation3 + $0x8] sm:$0xff] %v5691
        %5746 = vst [vmem:[#allocation3 + $0x10] sm:$0xff] %v5692
        %5747 = vst [vmem:[#allocation3 + $0x18] sm:$0xff] %v5693
        %5748 = vst [vmem:[#allocation3 + $0x20] sm:$0xff] %v5694
        %5749 = vst [vmem:[#allocation3 + $0x28] sm:$0xff] %v5695
        %5750 = vst [vmem:[#allocation3 + $0x30] sm:$0xff] %v5696
        %5751 = vst [vmem:[#allocation3 + $0x38] sm:$0xff] %v5697
        %5752 = vst [vmem:[#allocation3 + $0x40] sm:$0xff] %v5698
        %5753 = vst [vmem:[#allocation3 + $0x48] sm:$0xff] %v5699
        %5754 = vst [vmem:[#allocation3 + $0x50] sm:$0xff] %v5700
        %5755 = vst [vmem:[#allocation3 + $0x58] sm:$0xff] %v5701
        %5756 = vst [vmem:[#allocation3 + $0x60] sm:$0xff] %v5702
        %5757 = vst [vmem:[#allocation3 + $0x68] sm:$0xff] %v5703
        %5758 = vst [vmem:[#allocation3 + $0x70] sm:$0xff] %v5704
        %5759 = vst [vmem:[#allocation3 + $0x78] sm:$0xff] %v5705
        %5760 = vst [vmem:[#allocation3 + $0x80] sm:$0xff] %v5706
        %5761 = vst [vmem:[#allocation3 + $0x88] sm:$0xff] %v5707
        %5762 = vst [vmem:[#allocation3 + $0x90] sm:$0xff] %v5708
        %5763 = vst [vmem:[#allocation3 + $0x98] sm:$0xff] %v5709
        %5764 = vst [vmem:[#allocation3 + $0xa0] sm:$0xff] %v5710
        %5765 = vst [vmem:[#allocation3 + $0xa8] sm:$0xff] %v5711
        %5766 = vst [vmem:[#allocation3 + $0xb0] sm:$0xff] %v5712
        %5767 = vst [vmem:[#allocation3 + $0xb8] sm:$0xff] %v5713
        %5768 = vst [vmem:[#allocation3 + $0xc0] sm:$0xff] %v5714
        %5769 = vst [vmem:[#allocation3 + $0xc8] sm:$0xff] %v5715
        %5770 = vst [vmem:[#allocation3 + $0xd0] sm:$0xff] %v5716
        %5771 = vst [vmem:[#allocation3 + $0xd8] sm:$0xff] %v5717
        %5772 = vst [vmem:[#allocation3 + $0xe0] sm:$0xff] %v5718
        %5773 = vst [vmem:[#allocation3 + $0xe8] sm:$0xff] %v5719
        %5774 = vst [vmem:[#allocation3 + $0xf0] sm:$0xff] %v5720
        %5775 = vst [vmem:[#allocation3 + $0xf8] sm:$0xff] %v5721
        %5776 = vst [vmem:[#allocation3 + $0x100] sm:$0xff] %v5722
        %5777 = vst [vmem:[#allocation3 + $0x108] sm:$0xff] %v5723
        %5778 = vst [vmem:[#allocation3 + $0x110] sm:$0xff] %v5724
        %5779 = vst [vmem:[#allocation3 + $0x118] sm:$0xff] %v5725
        %5780 = vst [vmem:[#allocation3 + $0x120] sm:$0xff] %v5726
        %5781 = vst [vmem:[#allocation3 + $0x128] sm:$0xff] %v5727
        %5782 = vst [vmem:[#allocation3 + $0x130] sm:$0xff] %v5728
        %5783 = vst [vmem:[#allocation3 + $0x138] sm:$0xff] %v5729
        %5784 = vst [vmem:[#allocation3 + $0x140] sm:$0xff] %v5730
        %5785 = vst [vmem:[#allocation3 + $0x148] sm:$0xff] %v5731
        %5786 = vst [vmem:[#allocation3 + $0x150] sm:$0xff] %v5732
        %5787 = vst [vmem:[#allocation3 + $0x158] sm:$0xff] %v5733
        %5788 = vst [vmem:[#allocation3 + $0x160] sm:$0xff] %v5734
        %5789 = vst [vmem:[#allocation3 + $0x168] sm:$0xff] %v5735
        %5790 = vst [vmem:[#allocation3 + $0x170] sm:$0xff] %v5736
        %5791 = vst [vmem:[#allocation3 + $0x178] sm:$0xff] %v5737
        %5792 = vst [vmem:[#allocation3 + $0x180] sm:$0xff] %v5738
        %5793 = vst [vmem:[#allocation3 + $0x188] sm:$0xff] %v5739
        %5794 = vst [vmem:[#allocation3 + $0x190] sm:$0xff] %v5740
        %5795 = vst [vmem:[#allocation3 + $0x198] sm:$0xff] %v5741
        %5796 = vst [vmem:[#allocation3 + $0x1a0] sm:$0xff] %v5742
        %5797 = vst [vmem:[#allocation3 + $0x1a8] sm:$0xff] %v5743
        %v5798 = vld [vmem:[#allocation2 + $0x18] sm:$0xfe]
        %v5799 = vld [vmem:[#allocation2 + $0x20] sm:$0xff]
        %v5800 = vld [vmem:[#allocation2 + $0x28] sm:$0xff]
        %v5801 = vld [vmem:[#allocation2 + $0x30] sm:$0xff]
        %v5802 = vld [vmem:[#allocation2 + $0x38] sm:$0xff]
        %v5803 = vld [vmem:[#allocation2 + $0x40] sm:$0xff]
        %v5804 = vld [vmem:[#allocation2 + $0x48] sm:$0xff]
        %v5805 = vld [vmem:[#allocation2 + $0x50] sm:$0xff]
        %v5806 = vld [vmem:[#allocation2 + $0x58] sm:$0xff]
        %v5807 = vld [vmem:[#allocation2 + $0x60] sm:$0xff]
        %v5808 = vld [vmem:[#allocation2 + $0x68] sm:$0xff]
        %v5809 = vld [vmem:[#allocation2 + $0x70] sm:$0xff]
        %v5810 = vld [vmem:[#allocation2 + $0x78] sm:$0xff]
        %v5811 = vld [vmem:[#allocation2 + $0x80] sm:$0xff]
        %v5812 = vld [vmem:[#allocation2 + $0x88] sm:$0xff]
        %v5813 = vld [vmem:[#allocation2 + $0x90] sm:$0xff]
        %v5814 = vld [vmem:[#allocation2 + $0x98] sm:$0xff]
        %v5815 = vld [vmem:[#allocation2 + $0xa0] sm:$0xff]
        %v5816 = vld [vmem:[#allocation2 + $0xa8] sm:$0xff]
        %v5817 = vld [vmem:[#allocation2 + $0xb0] sm:$0xff]
        %v5818 = vld [vmem:[#allocation2 + $0xb8] sm:$0xff]
        %v5819 = vld [vmem:[#allocation2 + $0xc0] sm:$0xff]
        %v5820 = vld [vmem:[#allocation2 + $0xc8] sm:$0xff]
        %v5821 = vld [vmem:[#allocation2 + $0xd0] sm:$0xff]
        %v5822 = vld [vmem:[#allocation2 + $0xd8] sm:$0xff]
        %v5823 = vld [vmem:[#allocation2 + $0xe0] sm:$0xff]
        %v5824 = vld [vmem:[#allocation2 + $0xe8] sm:$0xff]
        %v5825 = vld [vmem:[#allocation2 + $0xf0] sm:$0x1]
        %s5826 = sadd.s32 %s772, 8
        %s5827 = smul.u32 %s5826, 16
        %s5828 = smul.addr %s5827, 4
        %s5829 = scalar_lea.vmem %s1, %s5828
        %v5830 = vld [vmem:[%s5829] sm:$0xf]
        %v5831 = vld [vmem:[%s5829 + $0x4] sm:$0xf]
        %v5832 = vld [vmem:[%s5829 + $0x8] sm:$0xf]
        %v5833 = vld [vmem:[%s5829 + $0xc] sm:$0xf]
        %v5834 = vld [vmem:[%s5829 + $0x10] sm:$0xf]
        %v5835 = vld [vmem:[%s5829 + $0x14] sm:$0xf]
        %v5836 = vld [vmem:[%s5829 + $0x18] sm:$0xf]
        %v5837 = vld [vmem:[%s5829 + $0x1c] sm:$0xf]
        %v5838 = vld [vmem:[%s5829 + $0x20] sm:$0xf]
        %v5839 = vld [vmem:[%s5829 + $0x24] sm:$0xf]
        %v5840 = vld [vmem:[%s5829 + $0x28] sm:$0xf]
        %v5841 = vld [vmem:[%s5829 + $0x2c] sm:$0xf]
        %v5842 = vld [vmem:[%s5829 + $0x30] sm:$0xf]
        %v5843 = vld [vmem:[%s5829 + $0x34] sm:$0xf]
        %v5844 = vld [vmem:[%s5829 + $0x38] sm:$0xf]
        %v5845 = vld [vmem:[%s5829 + $0x3c] sm:$0xf]
        %v5874 = vrot.slane %v5798, 1
        %v5875 = vrot.slane %v5799, 1
        %v5876 = vsel %vm1974, %v5874, %v5875
        %v5877 = vrot.slane %v5800, 1
        %v5878 = vsel %vm1974, %v5875, %v5877
        %v5879 = vrot.slane %v5801, 1
        %v5880 = vsel %vm1974, %v5877, %v5879
        %v5881 = vrot.slane %v5802, 1
        %v5882 = vsel %vm1974, %v5879, %v5881
        %v5883 = vrot.slane %v5803, 1
        %v5884 = vsel %vm1974, %v5881, %v5883
        %v5885 = vrot.slane %v5804, 1
        %v5886 = vsel %vm1974, %v5883, %v5885
        %v5887 = vrot.slane %v5805, 1
        %v5888 = vsel %vm1974, %v5885, %v5887
        %v5889 = vrot.slane %v5806, 1
        %v5890 = vsel %vm1974, %v5887, %v5889
        %v5891 = vrot.slane %v5807, 1
        %v5892 = vsel %vm1974, %v5889, %v5891
        %v5893 = vrot.slane %v5808, 1
        %v5894 = vsel %vm1974, %v5891, %v5893
        %v5895 = vrot.slane %v5809, 1
        %v5896 = vsel %vm1974, %v5893, %v5895
        %v5897 = vrot.slane %v5810, 1
        %v5898 = vsel %vm1974, %v5895, %v5897
        %v5899 = vrot.slane %v5811, 1
        %v5900 = vsel %vm1974, %v5897, %v5899
        %v5901 = vrot.slane %v5812, 1
        %v5902 = vsel %vm1974, %v5899, %v5901
        %v5903 = vrot.slane %v5813, 1
        %v5904 = vsel %vm1974, %v5901, %v5903
        %v5905 = vrot.slane %v5814, 1
        %v5906 = vsel %vm1974, %v5903, %v5905
        %v5907 = vrot.slane %v5815, 1
        %v5908 = vsel %vm1974, %v5905, %v5907
        %v5909 = vrot.slane %v5816, 1
        %v5910 = vsel %vm1974, %v5907, %v5909
        %v5911 = vrot.slane %v5817, 1
        %v5912 = vsel %vm1974, %v5909, %v5911
        %v5913 = vrot.slane %v5818, 1
        %v5914 = vsel %vm1974, %v5911, %v5913
        %v5915 = vrot.slane %v5819, 1
        %v5916 = vsel %vm1974, %v5913, %v5915
        %v5917 = vrot.slane %v5820, 1
        %v5918 = vsel %vm1974, %v5915, %v5917
        %v5919 = vrot.slane %v5821, 1
        %v5920 = vsel %vm1974, %v5917, %v5919
        %v5921 = vrot.slane %v5822, 1
        %v5922 = vsel %vm1974, %v5919, %v5921
        %v5923 = vrot.slane %v5823, 1
        %v5924 = vsel %vm1974, %v5921, %v5923
        %v5925 = vrot.slane %v5824, 1
        %v5926 = vsel %vm1974, %v5923, %v5925
        %v5927 = vrot.slane %v5825, 1
        %v5928 = vsel %vm1974, %v5925, %v5927
        %v5972 = vunpack.c.l.b16 %v5830
        %v5973 = vunpack.c.l.b16 %v5831
        %v5974 = vunpack.c.l.b16 %v5832
        %v5975 = vunpack.c.l.b16 %v5833
        %v5976 = vunpack.c.l.b16 %v5834
        %v5977 = vunpack.c.l.b16 %v5835
        %v5978 = vunpack.c.l.b16 %v5836
        %v5979 = vunpack.c.l.b16 %v5837
        %v5980 = vunpack.c.l.b16 %v5838
        %v5981 = vunpack.c.l.b16 %v5839
        %v5982 = vunpack.c.l.b16 %v5840
        %v5983 = vunpack.c.l.b16 %v5841
        %v5984 = vunpack.c.l.b16 %v5842
        %v5985 = vunpack.c.l.b16 %v5843
        %v5986 = vunpack.c.l.b16 %v5844
        %v5987 = vunpack.c.l.b16 %v5845
        %v5988 = vpack.c.b16 %v5973, %v5972
        %v5989 = vpack.c.b16 %v5975, %v5974
        %v5990 = vpack.c.b16 %v5977, %v5976
        %v5991 = vpack.c.b16 %v5979, %v5978
        %v5992 = vpack.c.b16 %v5981, %v5980
        %v5993 = vpack.c.b16 %v5983, %v5982
        %v5994 = vpack.c.b16 %v5985, %v5984
        %v5995 = vpack.c.b16 %v5987, %v5986
        %6004 = vmatprep.subr.bf16.mxu0 0
        %6005 = vmatpush1.bf16.msra.mxu0 %v5988
        %6006 = vmatprep.subr.bf16.mxu0 0
        %6007 = vmatpush1.bf16.msra.mxu0 %v5989
        %6008 = vmatprep.subr.bf16.mxu0 0
        %6009 = vmatpush1.bf16.msra.mxu0 %v5990
        %6010 = vmatprep.subr.bf16.mxu0 0
        %6011 = vmatpush1.bf16.msra.mxu0 %v5991
        %6012 = vmatprep.subr.bf16.mxu0 0
        %6013 = vmatpush1.bf16.msra.mxu0 %v5992
        %6014 = vmatprep.subr.bf16.mxu0 0
        %6015 = vmatpush1.bf16.msra.mxu0 %v5993
        %6016 = vmatprep.subr.bf16.mxu0 0
        %6017 = vmatpush1.bf16.msra.mxu0 %v5994
        %6018 = vmatprep.subr.bf16.mxu0 0
        %6019 = vmatpush1.bf16.msra.mxu0 %v5995
        %6020 = vmatprep.subr.bf16.mxu0 0
        %6021 = vmatpush1.bf16.msra.mxu0 0
        %6022 = vmatprep.subr.bf16.mxu0 0
        %6023 = vmatpush1.bf16.msra.mxu0 0
        %6024 = vmatprep.subr.bf16.mxu0 0
        %6025 = vmatpush1.bf16.msra.mxu0 0
        %6026 = vmatprep.subr.bf16.mxu0 0
        %6027 = vmatpush1.bf16.msra.mxu0 0
        %6028 = vmatprep.subr.bf16.mxu0 0
        %6029 = vmatpush1.bf16.msra.mxu0 0
        %6030 = vmatprep.subr.bf16.mxu0 0
        %6031 = vmatpush1.bf16.msra.mxu0 0
        %6032 = vmatprep.subr.bf16.mxu0 0
        %6033 = vmatpush1.bf16.msra.mxu0 0
        %6034 = vmatprep.subr.bf16.mxu0 0
        %6035 = vmatpush1.bf16.msra.mxu0 0
        %6036 = vmatprep.mubr.bf16.mxu0 0
        %6037 = vmatmul.mubr.bf16.gmra.mrb[0].mxu0 %v5876
        %v6038 = vpop.f32.mrb[0].mxu0
        %v6039 = vadd.f32 0.0, %v6038
        %v6040 = vpop.f32.mrb[0].mxu0
        %v6041 = vpop.f32.mrb[0].mxu0
        %v6042 = vadd.f32 0.0, %v6041
        %v6043 = vpop.f32.mrb[0].mxu0
        %6044 = vmatprep.mubr.bf16.mxu0 0
        %6045 = vmatmul.mubr.bf16.gmra.mrb[0].mxu0 %v5878
        %v6046 = vpop.f32.mrb[0].mxu0
        %v6047 = vadd.f32 0.0, %v6046
        %v6048 = vpop.f32.mrb[0].mxu0
        %v6049 = vpop.f32.mrb[0].mxu0
        %v6050 = vadd.f32 0.0, %v6049
        %v6051 = vpop.f32.mrb[0].mxu0
        %6052 = vmatprep.mubr.bf16.mxu0 0
        %6053 = vmatmul.mubr.bf16.gmra.mrb[0].mxu0 %v5880
        %v6054 = vpop.f32.mrb[0].mxu0
        %v6055 = vadd.f32 0.0, %v6054
        %v6056 = vpop.f32.mrb[0].mxu0
        %v6057 = vpop.f32.mrb[0].mxu0
        %v6058 = vadd.f32 0.0, %v6057
        %v6059 = vpop.f32.mrb[0].mxu0
        %6060 = vmatprep.mubr.bf16.mxu0 0
        %6061 = vmatmul.mubr.bf16.gmra.mrb[0].mxu0 %v5882
        %v6062 = vpop.f32.mrb[0].mxu0
        %v6063 = vadd.f32 0.0, %v6062
        %v6064 = vpop.f32.mrb[0].mxu0
        %v6065 = vpop.f32.mrb[0].mxu0
        %v6066 = vadd.f32 0.0, %v6065
        %v6067 = vpop.f32.mrb[0].mxu0
        %6068 = vmatprep.mubr.bf16.mxu0 0
        %6069 = vmatmul.mubr.bf16.gmra.mrb[0].mxu0 %v5884
        %v6070 = vpop.f32.mrb[0].mxu0
        %v6071 = vadd.f32 0.0, %v6070
        %v6072 = vpop.f32.mrb[0].mxu0
        %v6073 = vpop.f32.mrb[0].mxu0
        %v6074 = vadd.f32 0.0, %v6073
        %v6075 = vpop.f32.mrb[0].mxu0
        %6076 = vmatprep.mubr.bf16.mxu0 0
        %6077 = vmatmul.mubr.bf16.gmra.mrb[0].mxu0 %v5886
        %v6078 = vpop.f32.mrb[0].mxu0
        %v6079 = vadd.f32 0.0, %v6078
        %v6080 = vpop.f32.mrb[0].mxu0
        %v6081 = vpop.f32.mrb[0].mxu0
        %v6082 = vadd.f32 0.0, %v6081
        %v6083 = vpop.f32.mrb[0].mxu0
        %6084 = vmatprep.mubr.bf16.mxu0 0
        %6085 = vmatmul.mubr.bf16.gmra.mrb[0].mxu0 %v5888
        %v6086 = vpop.f32.mrb[0].mxu0
        %v6087 = vadd.f32 0.0, %v6086
        %v6088 = vpop.f32.mrb[0].mxu0
        %v6089 = vpop.f32.mrb[0].mxu0
        %v6090 = vadd.f32 0.0, %v6089
        %v6091 = vpop.f32.mrb[0].mxu0
        %6092 = vmatprep.mubr.bf16.mxu0 0
        %6093 = vmatmul.mubr.bf16.gmra.mrb[0].mxu0 %v5890
        %v6094 = vpop.f32.mrb[0].mxu0
        %v6095 = vadd.f32 0.0, %v6094
        %v6096 = vpop.f32.mrb[0].mxu0
        %v6097 = vpop.f32.mrb[0].mxu0
        %v6098 = vadd.f32 0.0, %v6097
        %v6099 = vpop.f32.mrb[0].mxu0
        %6100 = vmatprep.mubr.bf16.mxu0 0
        %6101 = vmatmul.mubr.bf16.gmra.mrb[0].mxu0 %v5892
        %v6102 = vpop.f32.mrb[0].mxu0
        %v6103 = vadd.f32 0.0, %v6102
        %v6104 = vpop.f32.mrb[0].mxu0
        %v6105 = vpop.f32.mrb[0].mxu0
        %v6106 = vadd.f32 0.0, %v6105
        %v6107 = vpop.f32.mrb[0].mxu0
        %6108 = vmatprep.mubr.bf16.mxu0 0
        %6109 = vmatmul.mubr.bf16.gmra.mrb[0].mxu0 %v5894
        %v6110 = vpop.f32.mrb[0].mxu0
        %v6111 = vadd.f32 0.0, %v6110
        %v6112 = vpop.f32.mrb[0].mxu0
        %v6113 = vpop.f32.mrb[0].mxu0
        %v6114 = vadd.f32 0.0, %v6113
        %v6115 = vpop.f32.mrb[0].mxu0
        %6116 = vmatprep.mubr.bf16.mxu0 0
        %6117 = vmatmul.mubr.bf16.gmra.mrb[0].mxu0 %v5896
        %v6118 = vpop.f32.mrb[0].mxu0
        %v6119 = vadd.f32 0.0, %v6118
        %v6120 = vpop.f32.mrb[0].mxu0
        %v6121 = vpop.f32.mrb[0].mxu0
        %v6122 = vadd.f32 0.0, %v6121
        %v6123 = vpop.f32.mrb[0].mxu0
        %6124 = vmatprep.mubr.bf16.mxu0 0
        %6125 = vmatmul.mubr.bf16.gmra.mrb[0].mxu0 %v5898
        %v6126 = vpop.f32.mrb[0].mxu0
        %v6127 = vadd.f32 0.0, %v6126
        %v6128 = vpop.f32.mrb[0].mxu0
        %v6129 = vpop.f32.mrb[0].mxu0
        %v6130 = vadd.f32 0.0, %v6129
        %v6131 = vpop.f32.mrb[0].mxu0
        %6132 = vmatprep.mubr.bf16.mxu0 0
        %6133 = vmatmul.mubr.bf16.gmra.mrb[0].mxu0 %v5900
        %v6134 = vpop.f32.mrb[0].mxu0
        %v6135 = vadd.f32 0.0, %v6134
        %v6136 = vpop.f32.mrb[0].mxu0
        %v6137 = vpop.f32.mrb[0].mxu0
        %v6138 = vadd.f32 0.0, %v6137
        %v6139 = vpop.f32.mrb[0].mxu0
        %6140 = vmatprep.mubr.bf16.mxu0 0
        %6141 = vmatmul.mubr.bf16.gmra.mrb[0].mxu0 %v5902
        %v6142 = vpop.f32.mrb[0].mxu0
        %v6143 = vadd.f32 0.0, %v6142
        %v6144 = vpop.f32.mrb[0].mxu0
        %v6145 = vpop.f32.mrb[0].mxu0
        %v6146 = vadd.f32 0.0, %v6145
        %v6147 = vpop.f32.mrb[0].mxu0
        %6148 = vmatprep.mubr.bf16.mxu0 0
        %6149 = vmatmul.mubr.bf16.gmra.mrb[0].mxu0 %v5904
        %v6150 = vpop.f32.mrb[0].mxu0
        %v6151 = vadd.f32 0.0, %v6150
        %v6152 = vpop.f32.mrb[0].mxu0
        %v6153 = vpop.f32.mrb[0].mxu0
        %v6154 = vadd.f32 0.0, %v6153
        %v6155 = vpop.f32.mrb[0].mxu0
        %6156 = vmatprep.mubr.bf16.mxu0 0
        %6157 = vmatmul.mubr.bf16.gmra.mrb[0].mxu0 %v5906
        %v6158 = vpop.f32.mrb[0].mxu0
        %v6159 = vadd.f32 0.0, %v6158
        %v6160 = vpop.f32.mrb[0].mxu0
        %v6161 = vpop.f32.mrb[0].mxu0
        %v6162 = vadd.f32 0.0, %v6161
        %v6163 = vpop.f32.mrb[0].mxu0
        %6164 = vmatprep.mubr.bf16.mxu0 0
        %6165 = vmatmul.mubr.bf16.gmra.mrb[0].mxu0 %v5908
        %v6166 = vpop.f32.mrb[0].mxu0
        %v6167 = vadd.f32 0.0, %v6166
        %v6168 = vpop.f32.mrb[0].mxu0
        %v6169 = vpop.f32.mrb[0].mxu0
        %v6170 = vadd.f32 0.0, %v6169
        %v6171 = vpop.f32.mrb[0].mxu0
        %6172 = vmatprep.mubr.bf16.mxu0 0
        %6173 = vmatmul.mubr.bf16.gmra.mrb[0].mxu0 %v5910
        %v6174 = vpop.f32.mrb[0].mxu0
        %v6175 = vadd.f32 0.0, %v6174
        %v6176 = vpop.f32.mrb[0].mxu0
        %v6177 = vpop.f32.mrb[0].mxu0
        %v6178 = vadd.f32 0.0, %v6177
        %v6179 = vpop.f32.mrb[0].mxu0
        %6180 = vmatprep.mubr.bf16.mxu0 0
        %6181 = vmatmul.mubr.bf16.gmra.mrb[0].mxu0 %v5912
        %v6182 = vpop.f32.mrb[0].mxu0
        %v6183 = vadd.f32 0.0, %v6182
        %v6184 = vpop.f32.mrb[0].mxu0
        %v6185 = vpop.f32.mrb[0].mxu0
        %v6186 = vadd.f32 0.0, %v6185
        %v6187 = vpop.f32.mrb[0].mxu0
        %6188 = vmatprep.mubr.bf16.mxu0 0
        %6189 = vmatmul.mubr.bf16.gmra.mrb[0].mxu0 %v5914
        %v6190 = vpop.f32.mrb[0].mxu0
        %v6191 = vadd.f32 0.0, %v6190
        %v6192 = vpop.f32.mrb[0].mxu0
        %v6193 = vpop.f32.mrb[0].mxu0
        %v6194 = vadd.f32 0.0, %v6193
        %v6195 = vpop.f32.mrb[0].mxu0
        %6196 = vmatprep.mubr.bf16.mxu0 0
        %6197 = vmatmul.mubr.bf16.gmra.mrb[0].mxu0 %v5916
        %v6198 = vpop.f32.mrb[0].mxu0
        %v6199 = vadd.f32 0.0, %v6198
        %v6200 = vpop.f32.mrb[0].mxu0
        %v6201 = vpop.f32.mrb[0].mxu0
        %v6202 = vadd.f32 0.0, %v6201
        %v6203 = vpop.f32.mrb[0].mxu0
        %6204 = vmatprep.mubr.bf16.mxu0 0
        %6205 = vmatmul.mubr.bf16.gmra.mrb[0].mxu0 %v5918
        %v6206 = vpop.f32.mrb[0].mxu0
        %v6207 = vadd.f32 0.0, %v6206
        %v6208 = vpop.f32.mrb[0].mxu0
        %v6209 = vpop.f32.mrb[0].mxu0
        %v6210 = vadd.f32 0.0, %v6209
        %v6211 = vpop.f32.mrb[0].mxu0
        %6212 = vmatprep.mubr.bf16.mxu0 0
        %6213 = vmatmul.mubr.bf16.gmra.mrb[0].mxu0 %v5920
        %v6214 = vpop.f32.mrb[0].mxu0
        %v6215 = vadd.f32 0.0, %v6214
        %v6216 = vpop.f32.mrb[0].mxu0
        %v6217 = vpop.f32.mrb[0].mxu0
        %v6218 = vadd.f32 0.0, %v6217
        %v6219 = vpop.f32.mrb[0].mxu0
        %6220 = vmatprep.mubr.bf16.mxu0 0
        %6221 = vmatmul.mubr.bf16.gmra.mrb[0].mxu0 %v5922
        %v6222 = vpop.f32.mrb[0].mxu0
        %v6223 = vadd.f32 0.0, %v6222
        %v6224 = vpop.f32.mrb[0].mxu0
        %v6225 = vpop.f32.mrb[0].mxu0
        %v6226 = vadd.f32 0.0, %v6225
        %v6227 = vpop.f32.mrb[0].mxu0
        %6228 = vmatprep.mubr.bf16.mxu0 0
        %6229 = vmatmul.mubr.bf16.gmra.mrb[0].mxu0 %v5924
        %v6230 = vpop.f32.mrb[0].mxu0
        %v6231 = vadd.f32 0.0, %v6230
        %v6232 = vpop.f32.mrb[0].mxu0
        %v6233 = vpop.f32.mrb[0].mxu0
        %v6234 = vadd.f32 0.0, %v6233
        %v6235 = vpop.f32.mrb[0].mxu0
        %6236 = vmatprep.mubr.bf16.mxu0 0
        %6237 = vmatmul.mubr.bf16.gmra.mrb[0].mxu0 %v5926
        %v6238 = vpop.f32.mrb[0].mxu0
        %v6239 = vadd.f32 0.0, %v6238
        %v6240 = vpop.f32.mrb[0].mxu0
        %v6241 = vpop.f32.mrb[0].mxu0
        %v6242 = vadd.f32 0.0, %v6241
        %v6243 = vpop.f32.mrb[0].mxu0
        %6244 = vmatprep.mubr.bf16.mxu0 0
        %6245 = vmatmul.mubr.bf16.gmra.mrb[0].mxu0 %v5928
        %v6246 = vpop.f32.mrb[0].mxu0
        %v6247 = vadd.f32 0.0, %v6246
        %v6248 = vpop.f32.mrb[0].mxu0
        %v6249 = vpop.f32.mrb[0].mxu0
        %v6250 = vadd.f32 0.0, %v6249
        %v6251 = vpop.f32.mrb[0].mxu0
        %6252 = vdwg.mxu0
        %v6253 = vld [vmem:[#allocation3] sm:$0xff]
        %v6254 = vld [vmem:[#allocation3 + $0x8] sm:$0xff]
        %v6255 = vld [vmem:[#allocation3 + $0x10] sm:$0xff]
        %v6256 = vld [vmem:[#allocation3 + $0x18] sm:$0xff]
        %v6257 = vld [vmem:[#allocation3 + $0x20] sm:$0xff]
        %v6258 = vld [vmem:[#allocation3 + $0x28] sm:$0xff]
        %v6259 = vld [vmem:[#allocation3 + $0x30] sm:$0xff]
        %v6260 = vld [vmem:[#allocation3 + $0x38] sm:$0xff]
        %v6261 = vld [vmem:[#allocation3 + $0x40] sm:$0xff]
        %v6262 = vld [vmem:[#allocation3 + $0x48] sm:$0xff]
        %v6263 = vld [vmem:[#allocation3 + $0x50] sm:$0xff]
        %v6264 = vld [vmem:[#allocation3 + $0x58] sm:$0xff]
        %v6265 = vld [vmem:[#allocation3 + $0x60] sm:$0xff]
        %v6266 = vld [vmem:[#allocation3 + $0x68] sm:$0xff]
        %v6267 = vld [vmem:[#allocation3 + $0x70] sm:$0xff]
        %v6268 = vld [vmem:[#allocation3 + $0x78] sm:$0xff]
        %v6269 = vld [vmem:[#allocation3 + $0x80] sm:$0xff]
        %v6270 = vld [vmem:[#allocation3 + $0x88] sm:$0xff]
        %v6271 = vld [vmem:[#allocation3 + $0x90] sm:$0xff]
        %v6272 = vld [vmem:[#allocation3 + $0x98] sm:$0xff]
        %v6273 = vld [vmem:[#allocation3 + $0xa0] sm:$0xff]
        %v6274 = vld [vmem:[#allocation3 + $0xa8] sm:$0xff]
        %v6275 = vld [vmem:[#allocation3 + $0xb0] sm:$0xff]
        %v6276 = vld [vmem:[#allocation3 + $0xb8] sm:$0xff]
        %v6277 = vld [vmem:[#allocation3 + $0xc0] sm:$0xff]
        %v6278 = vld [vmem:[#allocation3 + $0xc8] sm:$0xff]
        %v6279 = vld [vmem:[#allocation3 + $0xd0] sm:$0xff]
        %v6280 = vld [vmem:[#allocation3 + $0xd8] sm:$0xff]
        %v6281 = vld [vmem:[#allocation3 + $0xe0] sm:$0xff]
        %v6282 = vld [vmem:[#allocation3 + $0xe8] sm:$0xff]
        %v6283 = vld [vmem:[#allocation3 + $0xf0] sm:$0xff]
        %v6284 = vld [vmem:[#allocation3 + $0xf8] sm:$0xff]
        %v6285 = vld [vmem:[#allocation3 + $0x100] sm:$0xff]
        %v6286 = vld [vmem:[#allocation3 + $0x108] sm:$0xff]
        %v6287 = vld [vmem:[#allocation3 + $0x110] sm:$0xff]
        %v6288 = vld [vmem:[#allocation3 + $0x118] sm:$0xff]
        %v6289 = vld [vmem:[#allocation3 + $0x120] sm:$0xff]
        %v6290 = vld [vmem:[#allocation3 + $0x128] sm:$0xff]
        %v6291 = vld [vmem:[#allocation3 + $0x130] sm:$0xff]
        %v6292 = vld [vmem:[#allocation3 + $0x138] sm:$0xff]
        %v6293 = vld [vmem:[#allocation3 + $0x140] sm:$0xff]
        %v6294 = vld [vmem:[#allocation3 + $0x148] sm:$0xff]
        %v6295 = vld [vmem:[#allocation3 + $0x150] sm:$0xff]
        %v6296 = vld [vmem:[#allocation3 + $0x158] sm:$0xff]
        %v6297 = vld [vmem:[#allocation3 + $0x160] sm:$0xff]
        %v6298 = vld [vmem:[#allocation3 + $0x168] sm:$0xff]
        %v6299 = vld [vmem:[#allocation3 + $0x170] sm:$0xff]
        %v6300 = vld [vmem:[#allocation3 + $0x178] sm:$0xff]
        %v6301 = vld [vmem:[#allocation3 + $0x180] sm:$0xff]
        %v6302 = vld [vmem:[#allocation3 + $0x188] sm:$0xff]
        %v6303 = vld [vmem:[#allocation3 + $0x190] sm:$0xff]
        %v6304 = vld [vmem:[#allocation3 + $0x198] sm:$0xff]
        %v6305 = vld [vmem:[#allocation3 + $0x1a0] sm:$0xff]
        %v6306 = vld [vmem:[#allocation3 + $0x1a8] sm:$0xff]
        %v6307 = vadd.f32 %v6253, %v6039
        %v6308 = vadd.f32 %v6254, %v6042
        %v6309 = vadd.f32 %v6255, %v6047
        %v6310 = vadd.f32 %v6256, %v6050
        %v6311 = vadd.f32 %v6257, %v6055
        %v6312 = vadd.f32 %v6258, %v6058
        %v6313 = vadd.f32 %v6259, %v6063
        %v6314 = vadd.f32 %v6260, %v6066
        %v6315 = vadd.f32 %v6261, %v6071
        %v6316 = vadd.f32 %v6262, %v6074
        %v6317 = vadd.f32 %v6263, %v6079
        %v6318 = vadd.f32 %v6264, %v6082
        %v6319 = vadd.f32 %v6265, %v6087
        %v6320 = vadd.f32 %v6266, %v6090
        %v6321 = vadd.f32 %v6267, %v6095
        %v6322 = vadd.f32 %v6268, %v6098
        %v6323 = vadd.f32 %v6269, %v6103
        %v6324 = vadd.f32 %v6270, %v6106
        %v6325 = vadd.f32 %v6271, %v6111
        %v6326 = vadd.f32 %v6272, %v6114
        %v6327 = vadd.f32 %v6273, %v6119
        %v6328 = vadd.f32 %v6274, %v6122
        %v6329 = vadd.f32 %v6275, %v6127
        %v6330 = vadd.f32 %v6276, %v6130
        %v6331 = vadd.f32 %v6277, %v6135
        %v6332 = vadd.f32 %v6278, %v6138
        %v6333 = vadd.f32 %v6279, %v6143
        %v6334 = vadd.f32 %v6280, %v6146
        %v6335 = vadd.f32 %v6281, %v6151
        %v6336 = vadd.f32 %v6282, %v6154
        %v6337 = vadd.f32 %v6283, %v6159
        %v6338 = vadd.f32 %v6284, %v6162
        %v6339 = vadd.f32 %v6285, %v6167
        %v6340 = vadd.f32 %v6286, %v6170
        %v6341 = vadd.f32 %v6287, %v6175
        %v6342 = vadd.f32 %v6288, %v6178
        %v6343 = vadd.f32 %v6289, %v6183
        %v6344 = vadd.f32 %v6290, %v6186
        %v6345 = vadd.f32 %v6291, %v6191
        %v6346 = vadd.f32 %v6292, %v6194
        %v6347 = vadd.f32 %v6293, %v6199
        %v6348 = vadd.f32 %v6294, %v6202
        %v6349 = vadd.f32 %v6295, %v6207
        %v6350 = vadd.f32 %v6296, %v6210
        %v6351 = vadd.f32 %v6297, %v6215
        %v6352 = vadd.f32 %v6298, %v6218
        %v6353 = vadd.f32 %v6299, %v6223
        %v6354 = vadd.f32 %v6300, %v6226
        %v6355 = vadd.f32 %v6301, %v6231
        %v6356 = vadd.f32 %v6302, %v6234
        %v6357 = vadd.f32 %v6303, %v6239
        %v6358 = vadd.f32 %v6304, %v6242
        %v6359 = vadd.f32 %v6305, %v6247
        %v6360 = vadd.f32 %v6306, %v6250
        %6361 = vst [vmem:[#allocation3] sm:$0xff] %v6307
        %6362 = vst [vmem:[#allocation3 + $0x8] sm:$0xff] %v6308
        %6363 = vst [vmem:[#allocation3 + $0x10] sm:$0xff] %v6309
        %6364 = vst [vmem:[#allocation3 + $0x18] sm:$0xff] %v6310
        %6365 = vst [vmem:[#allocation3 + $0x20] sm:$0xff] %v6311
        %6366 = vst [vmem:[#allocation3 + $0x28] sm:$0xff] %v6312
        %6367 = vst [vmem:[#allocation3 + $0x30] sm:$0xff] %v6313
        %6368 = vst [vmem:[#allocation3 + $0x38] sm:$0xff] %v6314
        %6369 = vst [vmem:[#allocation3 + $0x40] sm:$0xff] %v6315
        %6370 = vst [vmem:[#allocation3 + $0x48] sm:$0xff] %v6316
        %6371 = vst [vmem:[#allocation3 + $0x50] sm:$0xff] %v6317
        %6372 = vst [vmem:[#allocation3 + $0x58] sm:$0xff] %v6318
        %6373 = vst [vmem:[#allocation3 + $0x60] sm:$0xff] %v6319
        %6374 = vst [vmem:[#allocation3 + $0x68] sm:$0xff] %v6320
        %6375 = vst [vmem:[#allocation3 + $0x70] sm:$0xff] %v6321
        %6376 = vst [vmem:[#allocation3 + $0x78] sm:$0xff] %v6322
        %6377 = vst [vmem:[#allocation3 + $0x80] sm:$0xff] %v6323
        %6378 = vst [vmem:[#allocation3 + $0x88] sm:$0xff] %v6324
        %6379 = vst [vmem:[#allocation3 + $0x90] sm:$0xff] %v6325
        %6380 = vst [vmem:[#allocation3 + $0x98] sm:$0xff] %v6326
        %6381 = vst [vmem:[#allocation3 + $0xa0] sm:$0xff] %v6327
        %6382 = vst [vmem:[#allocation3 + $0xa8] sm:$0xff] %v6328
        %6383 = vst [vmem:[#allocation3 + $0xb0] sm:$0xff] %v6329
        %6384 = vst [vmem:[#allocation3 + $0xb8] sm:$0xff] %v6330
        %6385 = vst [vmem:[#allocation3 + $0xc0] sm:$0xff] %v6331
        %6386 = vst [vmem:[#allocation3 + $0xc8] sm:$0xff] %v6332
        %6387 = vst [vmem:[#allocation3 + $0xd0] sm:$0xff] %v6333
        %6388 = vst [vmem:[#allocation3 + $0xd8] sm:$0xff] %v6334
        %6389 = vst [vmem:[#allocation3 + $0xe0] sm:$0xff] %v6335
        %6390 = vst [vmem:[#allocation3 + $0xe8] sm:$0xff] %v6336
        %6391 = vst [vmem:[#allocation3 + $0xf0] sm:$0xff] %v6337
        %6392 = vst [vmem:[#allocation3 + $0xf8] sm:$0xff] %v6338
        %6393 = vst [vmem:[#allocation3 + $0x100] sm:$0xff] %v6339
        %6394 = vst [vmem:[#allocation3 + $0x108] sm:$0xff] %v6340
        %6395 = vst [vmem:[#allocation3 + $0x110] sm:$0xff] %v6341
        %6396 = vst [vmem:[#allocation3 + $0x118] sm:$0xff] %v6342
        %6397 = vst [vmem:[#allocation3 + $0x120] sm:$0xff] %v6343
        %6398 = vst [vmem:[#allocation3 + $0x128] sm:$0xff] %v6344
        %6399 = vst [vmem:[#allocation3 + $0x130] sm:$0xff] %v6345
        %6400 = vst [vmem:[#allocation3 + $0x138] sm:$0xff] %v6346
        %6401 = vst [vmem:[#allocation3 + $0x140] sm:$0xff] %v6347
        %6402 = vst [vmem:[#allocation3 + $0x148] sm:$0xff] %v6348
        %6403 = vst [vmem:[#allocation3 + $0x150] sm:$0xff] %v6349
        %6404 = vst [vmem:[#allocation3 + $0x158] sm:$0xff] %v6350
        %6405 = vst [vmem:[#allocation3 + $0x160] sm:$0xff] %v6351
        %6406 = vst [vmem:[#allocation3 + $0x168] sm:$0xff] %v6352
        %6407 = vst [vmem:[#allocation3 + $0x170] sm:$0xff] %v6353
        %6408 = vst [vmem:[#allocation3 + $0x178] sm:$0xff] %v6354
        %6409 = vst [vmem:[#allocation3 + $0x180] sm:$0xff] %v6355
        %6410 = vst [vmem:[#allocation3 + $0x188] sm:$0xff] %v6356
        %6411 = vst [vmem:[#allocation3 + $0x190] sm:$0xff] %v6357
        %6412 = vst [vmem:[#allocation3 + $0x198] sm:$0xff] %v6358
        %6413 = vst [vmem:[#allocation3 + $0x1a0] sm:$0xff] %v6359
        %6414 = vst [vmem:[#allocation3 + $0x1a8] sm:$0xff] %v6360
        %s6415 = scalar_lea.vmem %s2, %s24
        %v6416 = vld [vmem:[%s6415] sm:$0x1]
        %v6417 = vld [vmem:[#allocation3] sm:$0xff]
        %v6418 = vld [vmem:[#allocation3 + $0x8] sm:$0xff]
        %v6419 = vld [vmem:[#allocation3 + $0x10] sm:$0xff]
        %v6420 = vld [vmem:[#allocation3 + $0x18] sm:$0xff]
        %v6421 = vld [vmem:[#allocation3 + $0x20] sm:$0xff]
        %v6422 = vld [vmem:[#allocation3 + $0x28] sm:$0xff]
        %v6423 = vld [vmem:[#allocation3 + $0x30] sm:$0xff]
        %v6424 = vld [vmem:[#allocation3 + $0x38] sm:$0xff]
        %v6425 = vld [vmem:[#allocation3 + $0x40] sm:$0xff]
        %v6426 = vld [vmem:[#allocation3 + $0x48] sm:$0xff]
        %v6427 = vld [vmem:[#allocation3 + $0x50] sm:$0xff]
        %v6428 = vld [vmem:[#allocation3 + $0x58] sm:$0xff]
        %v6429 = vld [vmem:[#allocation3 + $0x60] sm:$0xff]
        %v6430 = vld [vmem:[#allocation3 + $0x68] sm:$0xff]
        %v6431 = vld [vmem:[#allocation3 + $0x70] sm:$0xff]
        %v6432 = vld [vmem:[#allocation3 + $0x78] sm:$0xff]
        %v6433 = vld [vmem:[#allocation3 + $0x80] sm:$0xff]
        %v6434 = vld [vmem:[#allocation3 + $0x88] sm:$0xff]
        %v6435 = vld [vmem:[#allocation3 + $0x90] sm:$0xff]
        %v6436 = vld [vmem:[#allocation3 + $0x98] sm:$0xff]
        %v6437 = vld [vmem:[#allocation3 + $0xa0] sm:$0xff]
        %v6438 = vld [vmem:[#allocation3 + $0xa8] sm:$0xff]
        %v6439 = vld [vmem:[#allocation3 + $0xb0] sm:$0xff]
        %v6440 = vld [vmem:[#allocation3 + $0xb8] sm:$0xff]
        %v6441 = vld [vmem:[#allocation3 + $0xc0] sm:$0xff]
        %v6442 = vld [vmem:[#allocation3 + $0xc8] sm:$0xff]
        %v6443 = vld [vmem:[#allocation3 + $0xd0] sm:$0xff]
        %v6444 = vld [vmem:[#allocation3 + $0xd8] sm:$0xff]
        %v6445 = vld [vmem:[#allocation3 + $0xe0] sm:$0xff]
        %v6446 = vld [vmem:[#allocation3 + $0xe8] sm:$0xff]
        %v6447 = vld [vmem:[#allocation3 + $0xf0] sm:$0xff]
        %v6448 = vld [vmem:[#allocation3 + $0xf8] sm:$0xff]
        %v6449 = vld [vmem:[#allocation3 + $0x100] sm:$0xff]
        %v6450 = vld [vmem:[#allocation3 + $0x108] sm:$0xff]
        %v6451 = vld [vmem:[#allocation3 + $0x110] sm:$0xff]
        %v6452 = vld [vmem:[#allocation3 + $0x118] sm:$0xff]
        %v6453 = vld [vmem:[#allocation3 + $0x120] sm:$0xff]
        %v6454 = vld [vmem:[#allocation3 + $0x128] sm:$0xff]
        %v6455 = vld [vmem:[#allocation3 + $0x130] sm:$0xff]
        %v6456 = vld [vmem:[#allocation3 + $0x138] sm:$0xff]
        %v6457 = vld [vmem:[#allocation3 + $0x140] sm:$0xff]
        %v6458 = vld [vmem:[#allocation3 + $0x148] sm:$0xff]
        %v6459 = vld [vmem:[#allocation3 + $0x150] sm:$0xff]
        %v6460 = vld [vmem:[#allocation3 + $0x158] sm:$0xff]
        %v6461 = vld [vmem:[#allocation3 + $0x160] sm:$0xff]
        %v6462 = vld [vmem:[#allocation3 + $0x168] sm:$0xff]
        %v6463 = vld [vmem:[#allocation3 + $0x170] sm:$0xff]
        %v6464 = vld [vmem:[#allocation3 + $0x178] sm:$0xff]
        %v6466 = vlaneseq
        %v6467 = vshrl.u32 %v6466, 7
        %v6468 = vsub.s32 0, %v6467
        %v6469 = vrot.slane %v6416, %v6468
        %v6471 = vadd.f32 %v6417, %v6469
        %v6472 = vadd.f32 %v6418, %v6469
        %v6473 = vadd.f32 %v6419, %v6469
        %v6474 = vadd.f32 %v6420, %v6469
        %v6475 = vadd.f32 %v6421, %v6469
        %v6476 = vadd.f32 %v6422, %v6469
        %v6477 = vadd.f32 %v6423, %v6469
        %v6478 = vadd.f32 %v6424, %v6469
        %v6479 = vadd.f32 %v6425, %v6469
        %v6480 = vadd.f32 %v6426, %v6469
        %v6481 = vadd.f32 %v6427, %v6469
        %v6482 = vadd.f32 %v6428, %v6469
        %v6483 = vadd.f32 %v6429, %v6469
        %v6484 = vadd.f32 %v6430, %v6469
        %v6485 = vadd.f32 %v6431, %v6469
        %v6486 = vadd.f32 %v6432, %v6469
        %v6487 = vadd.f32 %v6433, %v6469
        %v6488 = vadd.f32 %v6434, %v6469
        %v6489 = vadd.f32 %v6435, %v6469
        %v6490 = vadd.f32 %v6436, %v6469
        %v6491 = vadd.f32 %v6437, %v6469
        %v6492 = vadd.f32 %v6438, %v6469
        %v6493 = vadd.f32 %v6439, %v6469
        %v6494 = vadd.f32 %v6440, %v6469
        %v6495 = vadd.f32 %v6441, %v6469
        %v6496 = vadd.f32 %v6442, %v6469
        %v6497 = vadd.f32 %v6443, %v6469
        %v6498 = vadd.f32 %v6444, %v6469
        %v6499 = vadd.f32 %v6445, %v6469
        %v6500 = vadd.f32 %v6446, %v6469
        %v6501 = vadd.f32 %v6447, %v6469
        %v6502 = vadd.f32 %v6448, %v6469
        %v6503 = vadd.f32 %v6449, %v6469
        %v6504 = vadd.f32 %v6450, %v6469
        %v6505 = vadd.f32 %v6451, %v6469
        %v6506 = vadd.f32 %v6452, %v6469
        %v6507 = vadd.f32 %v6453, %v6469
        %v6508 = vadd.f32 %v6454, %v6469
        %v6509 = vadd.f32 %v6455, %v6469
        %v6510 = vadd.f32 %v6456, %v6469
        %v6511 = vadd.f32 %v6457, %v6469
        %v6512 = vadd.f32 %v6458, %v6469
        %v6513 = vadd.f32 %v6459, %v6469
        %v6514 = vadd.f32 %v6460, %v6469
        %v6515 = vadd.f32 %v6461, %v6469
        %v6516 = vadd.f32 %v6462, %v6469
        %v6517 = vadd.f32 %v6463, %v6469
        %v6518 = vadd.f32 %v6464, %v6469
        %v6519 = vmax.f32 %v6471, 0.0
        %v6520 = vmax.f32 %v6472, 0.0
        %v6521 = vmax.f32 %v6473, 0.0
        %v6522 = vmax.f32 %v6474, 0.0
        %v6523 = vmax.f32 %v6475, 0.0
        %v6524 = vmax.f32 %v6476, 0.0
        %v6525 = vmax.f32 %v6477, 0.0
        %v6526 = vmax.f32 %v6478, 0.0
        %v6527 = vmax.f32 %v6479, 0.0
        %v6528 = vmax.f32 %v6480, 0.0
        %v6529 = vmax.f32 %v6481, 0.0
        %v6530 = vmax.f32 %v6482, 0.0
        %v6531 = vmax.f32 %v6483, 0.0
        %v6532 = vmax.f32 %v6484, 0.0
        %v6533 = vmax.f32 %v6485, 0.0
        %v6534 = vmax.f32 %v6486, 0.0
        %v6535 = vmax.f32 %v6487, 0.0
        %v6536 = vmax.f32 %v6488, 0.0
        %v6537 = vmax.f32 %v6489, 0.0
        %v6538 = vmax.f32 %v6490, 0.0
        %v6539 = vmax.f32 %v6491, 0.0
        %v6540 = vmax.f32 %v6492, 0.0
        %v6541 = vmax.f32 %v6493, 0.0
        %v6542 = vmax.f32 %v6494, 0.0
        %v6543 = vmax.f32 %v6495, 0.0
        %v6544 = vmax.f32 %v6496, 0.0
        %v6545 = vmax.f32 %v6497, 0.0
        %v6546 = vmax.f32 %v6498, 0.0
        %v6547 = vmax.f32 %v6499, 0.0
        %v6548 = vmax.f32 %v6500, 0.0
        %v6549 = vmax.f32 %v6501, 0.0
        %v6550 = vmax.f32 %v6502, 0.0
        %v6551 = vmax.f32 %v6503, 0.0
        %v6552 = vmax.f32 %v6504, 0.0
        %v6553 = vmax.f32 %v6505, 0.0
        %v6554 = vmax.f32 %v6506, 0.0
        %v6555 = vmax.f32 %v6507, 0.0
        %v6556 = vmax.f32 %v6508, 0.0
        %v6557 = vmax.f32 %v6509, 0.0
        %v6558 = vmax.f32 %v6510, 0.0
        %v6559 = vmax.f32 %v6511, 0.0
        %v6560 = vmax.f32 %v6512, 0.0
        %v6561 = vmax.f32 %v6513, 0.0
        %v6562 = vmax.f32 %v6514, 0.0
        %v6563 = vmax.f32 %v6515, 0.0
        %v6564 = vmax.f32 %v6516, 0.0
        %v6565 = vmax.f32 %v6517, 0.0
        %v6566 = vmax.f32 %v6518, 0.0
        %v6567 = vlaneseq
        %v6568 = vshrl.u32 %v6567, 7
        %v6569 = vadd.s32 %v6568, 8
        %v6570 = vadd.s32 %v6568, 16
        %vm6571 = vcmp.lt.s32.totalorder %v6568, 16
        %vm6572 = vcmp.lt.s32.totalorder %v6569, 16
        %vm6573 = vcmp.lt.s32.totalorder %v6570, 16
        %v6574 = vsel %vm6571, 1, 0
        %v6575 = vsel %vm6572, 1, 0
        %v6576 = vsel %vm6573, 1, 0
        %vm6577 = vcmp.eq.s32.totalorder %v6574, 1
        %vm6578 = vcmp.eq.s32.totalorder %v6575, 1
        %vm6579 = vcmp.eq.s32.totalorder %v6576, 1
        %v6580 = vsel %vm6577, %v6519, 0.0
        %v6581 = vsel %vm6578, %v6520, 0.0
        %v6582 = vsel %vm6579, %v6521, 0.0
        %v6583 = vsel %vm6577, %v6522, 0.0
        %v6584 = vsel %vm6578, %v6523, 0.0
        %v6585 = vsel %vm6579, %v6524, 0.0
        %v6586 = vsel %vm6577, %v6525, 0.0
        %v6587 = vsel %vm6578, %v6526, 0.0
        %v6588 = vsel %vm6579, %v6527, 0.0
        %v6589 = vsel %vm6577, %v6528, 0.0
        %v6590 = vsel %vm6578, %v6529, 0.0
        %v6591 = vsel %vm6579, %v6530, 0.0
        %v6592 = vsel %vm6577, %v6531, 0.0
        %v6593 = vsel %vm6578, %v6532, 0.0
        %v6594 = vsel %vm6579, %v6533, 0.0
        %v6595 = vsel %vm6577, %v6534, 0.0
        %v6596 = vsel %vm6578, %v6535, 0.0
        %v6597 = vsel %vm6579, %v6536, 0.0
        %v6598 = vsel %vm6577, %v6537, 0.0
        %v6599 = vsel %vm6578, %v6538, 0.0
        %v6600 = vsel %vm6579, %v6539, 0.0
        %v6601 = vsel %vm6577, %v6540, 0.0
        %v6602 = vsel %vm6578, %v6541, 0.0
        %v6603 = vsel %vm6579, %v6542, 0.0
        %v6604 = vsel %vm6577, %v6543, 0.0
        %v6605 = vsel %vm6578, %v6544, 0.0
        %v6606 = vsel %vm6579, %v6545, 0.0
        %v6607 = vsel %vm6577, %v6546, 0.0
        %v6608 = vsel %vm6578, %v6547, 0.0
        %v6609 = vsel %vm6579, %v6548, 0.0
        %v6610 = vsel %vm6577, %v6549, 0.0
        %v6611 = vsel %vm6578, %v6550, 0.0
        %v6612 = vsel %vm6579, %v6551, 0.0
        %v6613 = vsel %vm6577, %v6552, 0.0
        %v6614 = vsel %vm6578, %v6553, 0.0
        %v6615 = vsel %vm6579, %v6554, 0.0
        %v6616 = vsel %vm6577, %v6555, 0.0
        %v6617 = vsel %vm6578, %v6556, 0.0
        %v6618 = vsel %vm6579, %v6557, 0.0
        %v6619 = vsel %vm6577, %v6558, 0.0
        %v6620 = vsel %vm6578, %v6559, 0.0
        %v6621 = vsel %vm6579, %v6560, 0.0
        %v6622 = vsel %vm6577, %v6561, 0.0
        %v6623 = vsel %vm6578, %v6562, 0.0
        %v6624 = vsel %vm6579, %v6563, 0.0
        %v6625 = vsel %vm6577, %v6564, 0.0
        %v6626 = vsel %vm6578, %v6565, 0.0
        %v6627 = vsel %vm6579, %v6566, 0.0
        %p6628 = scmp.lt.s32.totalorder %s24, 1
        // Predicated region
        $region45: #{cnn_n_layer_forward.1} parent=39 // pred_check
          %p6629 = pneg %p6628
        $region46: #{cnn_n_layer_forward.1} parent=39 // pred_check_branch
          %6631 = sbr.rel (%p6629) target = $region48
        $region47: #{cnn_n_layer_forward.1} parent=39 // pred_region
          %v6632 = vpack.c.bf16 %v6581, %v6580
          %v6633 = vpack.c.bf16 %v6583, %v6582
          %v6634 = vpack.c.bf16 %v6585, %v6584
          %v6635 = vpack.c.bf16 %v6587, %v6586
          %v6636 = vpack.c.bf16 %v6589, %v6588
          %v6637 = vpack.c.bf16 %v6591, %v6590
          %v6638 = vpack.c.bf16 %v6593, %v6592
          %v6639 = vpack.c.bf16 %v6595, %v6594
          %v6640 = vpack.c.bf16 %v6597, %v6596
          %v6641 = vpack.c.bf16 %v6599, %v6598
          %v6642 = vpack.c.bf16 %v6601, %v6600
          %v6643 = vpack.c.bf16 %v6603, %v6602
          %v6644 = vpack.c.bf16 %v6605, %v6604
          %v6645 = vpack.c.bf16 %v6607, %v6606
          %v6646 = vpack.c.bf16 %v6609, %v6608
          %v6647 = vpack.c.bf16 %v6611, %v6610
          %v6648 = vpack.c.bf16 %v6613, %v6612
          %v6649 = vpack.c.bf16 %v6615, %v6614
          %v6650 = vpack.c.bf16 %v6617, %v6616
          %v6651 = vpack.c.bf16 %v6619, %v6618
          %v6652 = vpack.c.bf16 %v6621, %v6620
          %v6653 = vpack.c.bf16 %v6623, %v6622
          %v6654 = vpack.c.bf16 %v6625, %v6624
          %v6655 = vpack.c.bf16 %v6627, %v6626
          %vm6656 = vsmask.f32 4352
          %v6658 = vshrl.u32 %v6632, 16
          %v6660 = vrot.slane %v6658, 3
          %v6661 = vshll.u32 %v6632, 16
          %v6663 = vrot.slane %v6661, 4
          %v6664 = vor.u32 %v6660, %v6663
          %v6666 = vshrl.u32 %v6633, 16
          %v6668 = vrot.slane %v6666, 3
          %v6669 = vshll.u32 %v6633, 16
          %v6671 = vrot.slane %v6669, 4
          %v6672 = vor.u32 %v6668, %v6671
          %v6673 = vsel %vm6656, %v6664, %v6672
          %v6675 = vshrl.u32 %v6634, 16
          %v6677 = vrot.slane %v6675, 3
          %v6678 = vshll.u32 %v6634, 16
          %v6680 = vrot.slane %v6678, 4
          %v6681 = vor.u32 %v6677, %v6680
          %v6682 = vsel %vm6656, %v6672, %v6681
          %v6684 = vshrl.u32 %v6635, 16
          %v6686 = vrot.slane %v6684, 3
          %v6687 = vshll.u32 %v6635, 16
          %v6689 = vrot.slane %v6687, 4
          %v6690 = vor.u32 %v6686, %v6689
          %v6691 = vsel %vm6656, %v6681, %v6690
          %v6693 = vshrl.u32 %v6636, 16
          %v6695 = vrot.slane %v6693, 3
          %v6696 = vshll.u32 %v6636, 16
          %v6698 = vrot.slane %v6696, 4
          %v6699 = vor.u32 %v6695, %v6698
          %v6700 = vsel %vm6656, %v6690, %v6699
          %v6702 = vshrl.u32 %v6637, 16
          %v6704 = vrot.slane %v6702, 3
          %v6705 = vshll.u32 %v6637, 16
          %v6707 = vrot.slane %v6705, 4
          %v6708 = vor.u32 %v6704, %v6707
          %v6709 = vsel %vm6656, %v6699, %v6708
          %v6711 = vshrl.u32 %v6638, 16
          %v6713 = vrot.slane %v6711, 3
          %v6714 = vshll.u32 %v6638, 16
          %v6716 = vrot.slane %v6714, 4
          %v6717 = vor.u32 %v6713, %v6716
          %v6718 = vsel %vm6656, %v6708, %v6717
          %v6720 = vshrl.u32 %v6639, 16
          %v6722 = vrot.slane %v6720, 3
          %v6723 = vshll.u32 %v6639, 16
          %v6725 = vrot.slane %v6723, 4
          %v6726 = vor.u32 %v6722, %v6725
          %v6727 = vsel %vm6656, %v6717, %v6726
          %v6729 = vshrl.u32 %v6640, 16
          %v6731 = vrot.slane %v6729, 3
          %v6732 = vshll.u32 %v6640, 16
          %v6734 = vrot.slane %v6732, 4
          %v6735 = vor.u32 %v6731, %v6734
          %v6736 = vsel %vm6656, %v6726, %v6735
          %v6738 = vshrl.u32 %v6641, 16
          %v6740 = vrot.slane %v6738, 3
          %v6741 = vshll.u32 %v6641, 16
          %v6743 = vrot.slane %v6741, 4
          %v6744 = vor.u32 %v6740, %v6743
          %v6745 = vsel %vm6656, %v6735, %v6744
          %v6747 = vshrl.u32 %v6642, 16
          %v6749 = vrot.slane %v6747, 3
          %v6750 = vshll.u32 %v6642, 16
          %v6752 = vrot.slane %v6750, 4
          %v6753 = vor.u32 %v6749, %v6752
          %v6754 = vsel %vm6656, %v6744, %v6753
          %v6756 = vshrl.u32 %v6643, 16
          %v6758 = vrot.slane %v6756, 3
          %v6759 = vshll.u32 %v6643, 16
          %v6761 = vrot.slane %v6759, 4
          %v6762 = vor.u32 %v6758, %v6761
          %v6763 = vsel %vm6656, %v6753, %v6762
          %v6765 = vshrl.u32 %v6644, 16
          %v6767 = vrot.slane %v6765, 3
          %v6768 = vshll.u32 %v6644, 16
          %v6770 = vrot.slane %v6768, 4
          %v6771 = vor.u32 %v6767, %v6770
          %v6772 = vsel %vm6656, %v6762, %v6771
          %v6774 = vshrl.u32 %v6645, 16
          %v6776 = vrot.slane %v6774, 3
          %v6777 = vshll.u32 %v6645, 16
          %v6779 = vrot.slane %v6777, 4
          %v6780 = vor.u32 %v6776, %v6779
          %v6781 = vsel %vm6656, %v6771, %v6780
          %v6783 = vshrl.u32 %v6646, 16
          %v6785 = vrot.slane %v6783, 3
          %v6786 = vshll.u32 %v6646, 16
          %v6788 = vrot.slane %v6786, 4
          %v6789 = vor.u32 %v6785, %v6788
          %v6790 = vsel %vm6656, %v6780, %v6789
          %v6792 = vshrl.u32 %v6647, 16
          %v6794 = vrot.slane %v6792, 3
          %v6795 = vshll.u32 %v6647, 16
          %v6797 = vrot.slane %v6795, 4
          %v6798 = vor.u32 %v6794, %v6797
          %v6799 = vsel %vm6656, %v6789, %v6798
          %v6801 = vshrl.u32 %v6648, 16
          %v6803 = vrot.slane %v6801, 3
          %v6804 = vshll.u32 %v6648, 16
          %v6806 = vrot.slane %v6804, 4
          %v6807 = vor.u32 %v6803, %v6806
          %v6808 = vsel %vm6656, %v6798, %v6807
          %v6810 = vshrl.u32 %v6649, 16
          %v6812 = vrot.slane %v6810, 3
          %v6813 = vshll.u32 %v6649, 16
          %v6815 = vrot.slane %v6813, 4
          %v6816 = vor.u32 %v6812, %v6815
          %v6817 = vsel %vm6656, %v6807, %v6816
          %v6819 = vshrl.u32 %v6650, 16
          %v6821 = vrot.slane %v6819, 3
          %v6822 = vshll.u32 %v6650, 16
          %v6824 = vrot.slane %v6822, 4
          %v6825 = vor.u32 %v6821, %v6824
          %v6826 = vsel %vm6656, %v6816, %v6825
          %v6828 = vshrl.u32 %v6651, 16
          %v6830 = vrot.slane %v6828, 3
          %v6831 = vshll.u32 %v6651, 16
          %v6833 = vrot.slane %v6831, 4
          %v6834 = vor.u32 %v6830, %v6833
          %v6835 = vsel %vm6656, %v6825, %v6834
          %v6837 = vshrl.u32 %v6652, 16
          %v6839 = vrot.slane %v6837, 3
          %v6840 = vshll.u32 %v6652, 16
          %v6842 = vrot.slane %v6840, 4
          %v6843 = vor.u32 %v6839, %v6842
          %v6844 = vsel %vm6656, %v6834, %v6843
          %v6846 = vshrl.u32 %v6653, 16
          %v6848 = vrot.slane %v6846, 3
          %v6849 = vshll.u32 %v6653, 16
          %v6851 = vrot.slane %v6849, 4
          %v6852 = vor.u32 %v6848, %v6851
          %v6853 = vsel %vm6656, %v6843, %v6852
          %v6855 = vshrl.u32 %v6654, 16
          %v6857 = vrot.slane %v6855, 3
          %v6858 = vshll.u32 %v6654, 16
          %v6860 = vrot.slane %v6858, 4
          %v6861 = vor.u32 %v6857, %v6860
          %v6862 = vsel %vm6656, %v6852, %v6861
          %v6864 = vshrl.u32 %v6655, 16
          %v6866 = vrot.slane %v6864, 3
          %v6867 = vshll.u32 %v6655, 16
          %v6869 = vrot.slane %v6867, 4
          %v6870 = vor.u32 %v6866, %v6869
          %v6871 = vsel %vm6656, %v6861, %v6870
          %vm6897 = vcmask 1047556
          %vm6898 = vsmask.f32 7954
          %vm6899 = vmand %vm6897, %vm6898
          %v6900 = vld [vmem:[#allocation2 + $0x8] sm:$0xf0]
          %v6901 = vsel %vm6899, %v6664, %v6900
          %6902 = vst [vmem:[#allocation2 + $0x8] sm:$0xf0] %v6901
          %6903 = vst [vmem:[#allocation2 + $0x10] sm:$0xff] %v6673
          %6904 = vst [vmem:[#allocation2 + $0x18] sm:$0xff] %v6682
          %6905 = vst [vmem:[#allocation2 + $0x20] sm:$0xff] %v6691
          %6906 = vst [vmem:[#allocation2 + $0x28] sm:$0xff] %v6700
          %6907 = vst [vmem:[#allocation2 + $0x30] sm:$0xff] %v6709
          %6908 = vst [vmem:[#allocation2 + $0x38] sm:$0xff] %v6718
          %6909 = vst [vmem:[#allocation2 + $0x40] sm:$0xff] %v6727
          %6910 = vst [vmem:[#allocation2 + $0x48] sm:$0xff] %v6736
          %6911 = vst [vmem:[#allocation2 + $0x50] sm:$0xff] %v6745
          %6912 = vst [vmem:[#allocation2 + $0x58] sm:$0xff] %v6754
          %6913 = vst [vmem:[#allocation2 + $0x60] sm:$0xff] %v6763
          %6914 = vst [vmem:[#allocation2 + $0x68] sm:$0xff] %v6772
          %6915 = vst [vmem:[#allocation2 + $0x70] sm:$0xff] %v6781
          %6916 = vst [vmem:[#allocation2 + $0x78] sm:$0xff] %v6790
          %6917 = vst [vmem:[#allocation2 + $0x80] sm:$0xff] %v6799
          %6918 = vst [vmem:[#allocation2 + $0x88] sm:$0xff] %v6808
          %6919 = vst [vmem:[#allocation2 + $0x90] sm:$0xff] %v6817
          %6920 = vst [vmem:[#allocation2 + $0x98] sm:$0xff] %v6826
          %6921 = vst [vmem:[#allocation2 + $0xa0] sm:$0xff] %v6835
          %6922 = vst [vmem:[#allocation2 + $0xa8] sm:$0xff] %v6844
          %6923 = vst [vmem:[#allocation2 + $0xb0] sm:$0xff] %v6853
          %6924 = vst [vmem:[#allocation2 + $0xb8] sm:$0xff] %v6862
          %6925 = vst [vmem:[#allocation2 + $0xc0] sm:$0xff] %v6871
          %vm6926 = vcmask 1044480
          %vm6927 = vmand %vm6926, %vm6656
          %v6928 = vld [vmem:[#allocation2 + $0xc8] sm:$0x1f]
          %v6929 = vsel %vm6927, %v6870, %v6928
          %6930 = vst [vmem:[#allocation2 + $0xc8] sm:$0x1f] %v6929
        $region48: #{cnn_n_layer_forward.1} parent=39 // pred_fallthru
          _
        %p6931 = scmp.eq.s32.totalorder %s24, 1
        // Predicated region
        $region49: #{cnn_n_layer_forward.1} parent=39 // pred_check
          %p6932 = pneg %p6931
        $region50: #{cnn_n_layer_forward.1} parent=39 // pred_check_branch
          %6934 = sbr.rel (%p6932) target = $region52
        $region51: #{cnn_n_layer_forward.1} parent=39 // pred_region
          %v6935 = vadd.f32 %v6580, %v6581
          %v6936 = vadd.f32 %v6935, %v6582
          %v6937 = vadd.f32 %v6936, %v6583
          %v6938 = vadd.f32 %v6937, %v6584
          %v6939 = vadd.f32 %v6938, %v6585
          %v6940 = vadd.f32 %v6939, %v6586
          %v6941 = vadd.f32 %v6940, %v6587
          %v6942 = vadd.f32 %v6941, %v6588
          %v6943 = vadd.f32 %v6942, %v6589
          %v6944 = vadd.f32 %v6943, %v6590
          %v6945 = vadd.f32 %v6944, %v6591
          %v6946 = vadd.f32 %v6945, %v6592
          %v6947 = vadd.f32 %v6946, %v6593
          %v6948 = vadd.f32 %v6947, %v6594
          %v6949 = vadd.f32 %v6948, %v6595
          %v6950 = vadd.f32 %v6949, %v6596
          %v6951 = vadd.f32 %v6950, %v6597
          %v6952 = vadd.f32 %v6951, %v6598
          %v6953 = vadd.f32 %v6952, %v6599
          %v6954 = vadd.f32 %v6953, %v6600
          %v6955 = vadd.f32 %v6954, %v6601
          %v6956 = vadd.f32 %v6955, %v6602
          %v6957 = vadd.f32 %v6956, %v6603
          %v6958 = vadd.f32 %v6957, %v6604
          %v6959 = vadd.f32 %v6958, %v6605
          %v6960 = vadd.f32 %v6959, %v6606
          %v6961 = vadd.f32 %v6960, %v6607
          %v6962 = vadd.f32 %v6961, %v6608
          %v6963 = vadd.f32 %v6962, %v6609
          %v6964 = vadd.f32 %v6963, %v6610
          %v6965 = vadd.f32 %v6964, %v6611
          %v6966 = vadd.f32 %v6965, %v6612
          %v6967 = vadd.f32 %v6966, %v6613
          %v6968 = vadd.f32 %v6967, %v6614
          %v6969 = vadd.f32 %v6968, %v6615
          %v6970 = vadd.f32 %v6969, %v6616
          %v6971 = vadd.f32 %v6970, %v6617
          %v6972 = vadd.f32 %v6971, %v6618
          %v6973 = vadd.f32 %v6972, %v6619
          %v6974 = vadd.f32 %v6973, %v6620
          %v6975 = vadd.f32 %v6974, %v6621
          %v6976 = vadd.f32 %v6975, %v6622
          %v6977 = vadd.f32 %v6976, %v6623
          %v6978 = vadd.f32 %v6977, %v6624
          %v6979 = vadd.f32 %v6978, %v6625
          %v6980 = vadd.f32 %v6979, %v6626
          %v6981 = vadd.f32 %v6980, %v6627
          %v6982 = vrot.slane %v6981, 4
          %v6983 = vadd.f32 %v6981, %v6982
          %v6984 = vrot.slane %v6983, 2
          %v6985 = vadd.f32 %v6983, %v6984
          %v6986 = vrot.slane %v6985, 1
          %v6987 = vadd.f32 %v6985, %v6986
          %v6988 = vmul.f32 %v6987, 0.00390625
          %v6989 = vpack.c.bf16 %v6988, %v6988
          %v6990 = vld [vmem:[%s3] sm:$0xf]
          %v6991 = vld [vmem:[%s3 + $0x4] sm:$0xf]
          %v6992 = vld [vmem:[%s3 + $0x8] sm:$0xf]
          %v6993 = vld [vmem:[%s3 + $0xc] sm:$0xf]
          %v6994 = vld [vmem:[%s3 + $0x10] sm:$0xf]
          %v6995 = vld [vmem:[%s3 + $0x14] sm:$0xf]
          %v6996 = vld [vmem:[%s3 + $0x18] sm:$0xf]
          %v6997 = vld [vmem:[%s3 + $0x1c] sm:$0xf]
          %v6998 = vld [vmem:[%s3 + $0x20] sm:$0xf]
          %v6999 = vld [vmem:[%s3 + $0x24] sm:$0xf]
          %v7000 = vld [vmem:[%s3 + $0x28] sm:$0xf]
          %v7001 = vld [vmem:[%s3 + $0x2c] sm:$0xf]
          %v7002 = vld [vmem:[%s3 + $0x30] sm:$0xf]
          %v7003 = vld [vmem:[%s3 + $0x34] sm:$0xf]
          %v7004 = vld [vmem:[%s3 + $0x38] sm:$0xf]
          %v7005 = vld [vmem:[%s3 + $0x3c] sm:$0xf]
          %v7006 = vld [vmem:[%s4] sm:$0x1]
          %v7023 = vunpack.c.l.b16 %v6990
          %v7024 = vunpack.c.l.b16 %v6991
          %v7025 = vunpack.c.l.b16 %v6992
          %v7026 = vunpack.c.l.b16 %v6993
          %v7027 = vunpack.c.l.b16 %v6994
          %v7028 = vunpack.c.l.b16 %v6995
          %v7029 = vunpack.c.l.b16 %v6996
          %v7030 = vunpack.c.l.b16 %v6997
          %v7031 = vunpack.c.l.b16 %v6998
          %v7032 = vunpack.c.l.b16 %v6999
          %v7033 = vunpack.c.l.b16 %v7000
          %v7034 = vunpack.c.l.b16 %v7001
          %v7035 = vunpack.c.l.b16 %v7002
          %v7036 = vunpack.c.l.b16 %v7003
          %v7037 = vunpack.c.l.b16 %v7004
          %v7038 = vunpack.c.l.b16 %v7005
          %v7039 = vpack.c.b16 %v7024, %v7023
          %v7040 = vpack.c.b16 %v7026, %v7025
          %v7041 = vpack.c.b16 %v7028, %v7027
          %v7042 = vpack.c.b16 %v7030, %v7029
          %v7043 = vpack.c.b16 %v7032, %v7031
          %v7044 = vpack.c.b16 %v7034, %v7033
          %v7045 = vpack.c.b16 %v7036, %v7035
          %v7046 = vpack.c.b16 %v7038, %v7037
          %7055 = vmatprep.subr.bf16.mxu0 0
          %7056 = vmatpush1.bf16.msra.mxu0 %v7039
          %7057 = vmatprep.subr.bf16.mxu0 0
          %7058 = vmatpush1.bf16.msra.mxu0 %v7040
          %7059 = vmatprep.subr.bf16.mxu0 0
          %7060 = vmatpush1.bf16.msra.mxu0 %v7041
          %7061 = vmatprep.subr.bf16.mxu0 0
          %7062 = vmatpush1.bf16.msra.mxu0 %v7042
          %7063 = vmatprep.subr.bf16.mxu0 0
          %7064 = vmatpush1.bf16.msra.mxu0 %v7043
          %7065 = vmatprep.subr.bf16.mxu0 0
          %7066 = vmatpush1.bf16.msra.mxu0 %v7044
          %7067 = vmatprep.subr.bf16.mxu0 0
          %7068 = vmatpush1.bf16.msra.mxu0 %v7045
          %7069 = vmatprep.subr.bf16.mxu0 0
          %7070 = vmatpush1.bf16.msra.mxu0 %v7046
          %7071 = vmatprep.subr.bf16.mxu0 0
          %7072 = vmatpush1.bf16.msra.mxu0 0
          %7073 = vmatprep.subr.bf16.mxu0 0
          %7074 = vmatpush1.bf16.msra.mxu0 0
          %7075 = vmatprep.subr.bf16.mxu0 0
          %7076 = vmatpush1.bf16.msra.mxu0 0
          %7077 = vmatprep.subr.bf16.mxu0 0
          %7078 = vmatpush1.bf16.msra.mxu0 0
          %7079 = vmatprep.subr.bf16.mxu0 0
          %7080 = vmatpush1.bf16.msra.mxu0 0
          %7081 = vmatprep.subr.bf16.mxu0 0
          %7082 = vmatpush1.bf16.msra.mxu0 0
          %7083 = vmatprep.subr.bf16.mxu0 0
          %7084 = vmatpush1.bf16.msra.mxu0 0
          %7085 = vmatprep.subr.bf16.mxu0 0
          %7086 = vmatpush1.bf16.msra.mxu0 0
          %7087 = vmatprep.mubr.bf16.mxu0 0
          %7088 = vmatmul.mubr.bf16.gmra.mrb[0].mxu0 %v6989
          %v7089 = vpop.f32.mrb[0].mxu0
          %v7090 = vadd.f32 %v7006, %v7089
          %v7091 = vpop.f32.mrb[0].mxu0
          %v7092 = vpop.f32.mrb[0].mxu0
          %v7093 = vpop.f32.mrb[0].mxu0
          %7094 = vdwg.mxu0
          %7095 = vst [vmem:[%s228] sm:$0x1] %v7090
        $region52: #{cnn_n_layer_forward.1} parent=39 // pred_fallthru
          _
        %s7096 = sand.u32 %s149, 1
        %s7097 = scalar_lea.sflag [#allocation5], %s7096
        %s7098 = sand.u32 %s149, 1
        %s7099 = scalar_lea.vmem [#allocation4], %s7098
        // Predicated region
        $region53: #{cnn_n_layer_forward.1} parent=39 // pred_check
          %p7100 = pneg %p159
        $region54: #{cnn_n_layer_forward.1} parent=39 // pred_check_branch
          %7102 = sbr.rel (%p7100) target = $region56
        $region55: #{cnn_n_layer_forward.1} parent=39 // pred_region
          %s7104 = ssub.s32 16, 16
          %7105 = vsyncadd %s7097, %s7104
          %s7106 = smul.addr %s23, 16
          %s7107 = scalar_lea.hbm %s5, %s7106
          %s7109 = sshll.u32 %s7099, 4
          %s7110 = int_to_ptr.vmem [resolvable:$true] %s7109
          %7112 = dma.vmem_to_hbm [thread:$0]  %s7110, 16, %s7107, %s7097
        $region56: #{cnn_n_layer_forward.1} parent=39 // pred_fallthru
          _
      $region40: #{cnn_n_layer_forward.1} parent=5 // pred_fallthru
        _
      %p7113 = scmp.le.s32.totalorder 2, %s14
      // Predicated region
      $region57: #{cnn_n_layer_forward.1} parent=5 // pred_check
        %p7114 = pneg %p7113
      $region58: #{cnn_n_layer_forward.1} parent=5 // pred_check_branch
        %7116 = sbr.rel (%p7114) target = $region60
      $region59: #{cnn_n_layer_forward.1} parent=5 // pred_region
        %s7117 = ssub.s32 %s14, 2
        // Predicated region
        $region61: #{cnn_n_layer_forward.1} parent=59 // pred_check
          %p7118 = pneg %p165
        $region62: #{cnn_n_layer_forward.1} parent=59 // pred_check_branch
          %7120 = sbr.rel (%p7118) target = $region64
        $region63: #{cnn_n_layer_forward.1} parent=59 // pred_region
          %s7121 = sand.u32 %s150, 1
          %s7122 = scalar_lea.sflag [#allocation5], %s7121
          %s7123 = sand.u32 %s150, 1
          %s7124 = scalar_lea.vmem [#allocation4], %s7123
          %7125 = dma.done %s7122, 16
        $region64: #{cnn_n_layer_forward.1} parent=59 // pred_fallthru
          _
      $region60: #{cnn_n_layer_forward.1} parent=5 // pred_fallthru
        _
    $region6: #{cnn_n_layer_forward.1} parent=1 // loop_footer
      %s18 = sadd.s32 1, %s14
    $region7: #{cnn_n_layer_forward.1} parent=1 // loop_footer_branch
      %13 = sbr.rel target = $region3
    $region8: #{cnn_n_layer_forward.1} parent=1 // loop_exit
      _
    %7126 = vsyncpa [#allocation5], 1
    %s7127 = scalar_lea.sflag [#allocation5], 1
    %7128 = vsyncpa %s7127, 1

</llo_original>
